<compile_context>
chip_gen: v5e
topology: v5e:2x2
jax: 0.10.0
libtpu: 0.0.40
codegen_flags: <defaults>
</compile_context>

<pallas_src>
import functools

import jax
import jax.numpy as jnp
from jax.experimental import pallas as pl
from jax.experimental.pallas import tpu as pltpu

BN_EPS = 1e-5


def _bn_train(x, gamma, beta, inv_m):
    """Training-mode BatchNorm over axis 0 of an (m, c) activation.

    Two-pass (mean, then centered variance): avoids the E[x^2]-E[x]^2
    cancellation flagged in the perf review at no extra cost, since (x - mean)
    is needed for the normalization anyway.
    """
    mean = jnp.sum(x, axis=0, keepdims=True) * inv_m
    d = x - mean
    var = jnp.sum(d * d, axis=0, keepdims=True) * inv_m
    return gamma * d * jax.lax.rsqrt(var + BN_EPS) + beta


# --------------------------------------------------------------------------- #
# Single fused kernel: stem conv+BN+ReLU+maxpool  ->  layer2 residual block    #
# --------------------------------------------------------------------------- #
def _fused_client_kernel(p_ref, w1_ref, wa_ref, wb_ref, gb_ref, out_ref,
                         xpad_ref, patch_ref, *, n, ho, wo, c):
    """p_ref    : (n*ho*wo, 49*cin) bf16  im2col patches of the 7x7/stride-2 conv
       w1_ref   : (49*cin, c)       bf16  stem conv weight, rows ordered (ky,kx,cin)
       wa_ref   : (9*c, c)          bf16  layer2 conv-a weight, rows (ky,kx,cin)
       wb_ref   : (9*c, c)          bf16  layer2 conv-b weight
       gb_ref   : (6, c)            f32   [g_stem; b_stem; g_a; b_a; g_b; b_b]
       out_ref  : (n*hp*wp//2, 2*c) f32   lane-dense output slab (see wrapper)
       xpad_ref : (n, wp+2, hp+2, c) bf16 scratch: halo-padded conv input (x-major)
       patch_ref: (n*hp*wp, 9*c)     bf16 scratch: im2col buffer for the 3x3 convs
    """
    hp = ho // 2
    wp = wo // 2
    m1 = n * ho * wo
    m2 = n * hp * wp

    # ----- layer1: conv 7x7 / stride 2 as ONE MXU matmul, then BN + ReLU -----
    acc1 = jnp.dot(p_ref[...], w1_ref[...], preferred_element_type=jnp.float32)
    h = _bn_train(acc1, gb_ref[0:1, :], gb_ref[1:2, :], 1.0 / m1)
    h = jnp.maximum(h, 0.0)                                       # (m1, c)

    # ----- MaxPool2d(kernel=3, stride=2, padding=1), vectorized --------------
    # Post-ReLU values are >= 0, so PyTorch's -inf padding is equivalent to a
    # zero pad here.  H reduction: split ho into (hp, 2) on a MAJOR dim (layout
    # no-op), take max of the even row, odd row and the previous odd row.
    h5 = h.reshape(n, hp, 2, wo, c)
    r_even = h5[:, :, 0]                                          # rows 2*oy
    r_odd = h5[:, :, 1]                                           # rows 2*oy+1
    r_prev = jnp.concatenate(                                     # rows 2*oy-1
        [jnp.zeros((n, 1, wo, c), jnp.float32), r_odd[:, :hp - 1]], axis=1)
    rmax = jnp.maximum(jnp.maximum(r_even, r_odd), r_prev)        # (n, hp, wo, c)

    # W reduction: per output column, max of 2-3 static column extractions.
    # Results are stacked along a NEW MAJOR axis, leaving the pooled feature in
    # x-major spatial order (n, wp, hp, c).  The rest of the block consistently
    # uses this x-major order; the wrapper undoes it for free.  No per-element
    # stores remain (old oy/ox store loop removed per the perf review).
    cols = []
    for ox in range(wp):
        v = jnp.maximum(rmax[:, :, 2 * ox, :], rmax[:, :, 2 * ox + 1, :])
        if ox > 0:
            v = jnp.maximum(v, rmax[:, :, 2 * ox - 1, :])
        cols.append(v)                                            # (n, hp, c)
    r1_t = jnp.stack(cols, axis=1)                                # (n, wp, hp, c)
    r1_flat = r1_t.reshape(m2, c)                                 # rows (b, x, y)
    # The extra F.relu(layer1(x)) in forward() is a no-op on these >= 0 values.

    # ----- layer2 residual block ---------------------------------------------
    # Zero only the 1-wide halo of the bf16 padded scratch, once.
    x_edge = jnp.zeros((n, hp + 2, c), jnp.bfloat16)
    y_edge = jnp.zeros((n, wp + 2, c), jnp.bfloat16)
    xpad_ref[:, 0, :, :] = x_edge
    xpad_ref[:, wp + 1, :, :] = x_edge
    xpad_ref[:, :, 0, :] = y_edge
    xpad_ref[:, :, hp + 1, :] = y_edge

    def conv3x3_bn(src_xmajor, wmat_ref, gamma, beta):
        # 3x3 / stride-1 / pad-1 conv as ONE (m2, 9c) @ (9c, c) MXU matmul
        # (bf16 operands, f32 accumulation), then one training-mode BN.
        # Source is cast to bf16 ONCE here (no per-tap casts).
        xpad_ref[:, 1:wp + 1, 1:hp + 1, :] = src_xmajor.astype(jnp.bfloat16)

        def tap(t):
            ky, kx = divmod(t, 3)
            # x-major layout: the (ky, kx) tap is the (kx, ky) spatial window.
            return xpad_ref[:, kx:kx + wp, ky:ky + hp, :].reshape(m2, c)

        # 128-lane-aligned paired tap writes (c == 64 -> 2 taps = 128 lanes):
        # 4 unmasked 128-wide stores + 1 aligned 64-wide store, instead of 9
        # half-lane stores (4 of them lane-misaligned).
        for t in range(0, 8, 2):
            patch_ref[:, t * c:(t + 2) * c] = jnp.concatenate(
                [tap(t), tap(t + 1)], axis=1)
        patch_ref[:, 8 * c:9 * c] = tap(8)

        acc = jnp.dot(patch_ref[...], wmat_ref[...],
                      preferred_element_type=jnp.float32)          # (m2, c)
        return _bn_train(acc, gamma, beta, 1.0 / m2)

    h1 = jnp.maximum(
        conv3x3_bn(r1_t, wa_ref, gb_ref[2:3, :], gb_ref[3:4, :]), 0.0)
    # NOTE: the second conv's bias is intentionally omitted — a per-channel bias
    # is exactly cancelled by the *training-mode* BatchNorm that follows it.
    # (In eval mode with running statistics this would no longer hold.)
    h2 = conv3x3_bn(h1.reshape(n, wp, hp, c), wb_ref,
                    gb_ref[4:5, :], gb_ref[5:6, :])

    out = jnp.maximum(h2 + r1_flat, 0.0)                           # skip + ReLU

    # Lane-dense output slab (last dim 2*c = 128): the two row-halves are packed
    # side by side along lanes so every output store is a full-lane vst; the
    # wrapper unpacks this with free reshape/concat plumbing.
    half = m2 // 2
    out_ref[...] = jnp.concatenate([out[:half, :], out[half:, :]], axis=1)


# --------------------------------------------------------------------------- #
# Wrapper                                                                      #
# --------------------------------------------------------------------------- #
def resnet18_client_forward(x_nchw, params):
    """Pallas forward for ResNet18_client_side.  Input/output are NCHW."""
    n, cin, hi, wi = x_nchw.shape
    c = params["w_stem"].shape[-1]                                 # 64

    ho = (hi + 2 * 3 - 7) // 2 + 1
    wo = (wi + 2 * 3 - 7) // 2 + 1
    assert ho % 2 == 0 and wo % 2 == 0, "kernel assumes even stem-conv output"
    hp, wp = ho // 2, wo // 2
    m2 = n * hp * wp
    assert m2 % 2 == 0

    x = jnp.transpose(x_nchw, (0, 2, 3, 1)).astype(jnp.float32)    # NHWC

    # Stem im2col (49-tap stride-2 gather) prepared host-side.
    # TODO(synk): at production shapes move this gather in-kernel (parity-
    # decomposed padded input + VMEM patch scratch) to avoid the 49x HBM
    # expansion; at CIFAR-like sizes it is a few hundred KB and negligible.
    xp = jnp.pad(x, ((0, 0), (3, 3), (3, 3), (0, 0)))
    taps = []
    for ky in range(7):
        for kx in range(7):
            taps.append(jax.lax.slice(
                xp, (0, ky, kx, 0),
                (n, ky + 2 * (ho - 1) + 1, kx + 2 * (wo - 1) + 1, cin),
                (1, 2, 2, 1)))
    patches = jnp.concatenate(taps, axis=-1).reshape(n * ho * wo, 49 * cin)
    patches = patches.astype(jnp.bfloat16)

    w1 = params["w_stem"].reshape(49 * cin, c).astype(jnp.bfloat16)
    wa = params["w_a"].reshape(9 * c, c).astype(jnp.bfloat16)
    wb = params["w_b"].reshape(9 * c, c).astype(jnp.bfloat16)
    gb = jnp.stack([params["g_stem"], params["be_stem"],
                    params["g_a"], params["be_a"],
                    params["g_b"], params["be_b"]]).astype(jnp.float32)

    vmem = pl.BlockSpec(memory_space=pltpu.MemorySpace.VMEM)
    # TODO(synk): for production shapes add a ("parallel", ...) grid over N/H
    # tiles (v7x has 2 TensorCores) plus a separate global-BN statistics pass,
    # and re-derive tile sizes against v7x's 64 MiB VMEM.  At these shapes a
    # single invocation fits easily and a grid would break global batch stats.
    cparams = pltpu.CompilerParams(vmem_limit_bytes=32 * 1024 * 1024)

    cost = pl.CostEstimate(
        flops=2 * (n * ho * wo) * (49 * cin) * c + 2 * 2 * m2 * (9 * c) * c,
        transcendentals=3 * c,
        bytes_accessed=(patches.size * 2 + w1.size * 2 + wa.size * 2
                        + wb.size * 2 + gb.size * 4 + m2 * c * 4))

    slab = pl.pallas_call(
        functools.partial(_fused_client_kernel, n=n, ho=ho, wo=wo, c=c),
        out_shape=jax.ShapeDtypeStruct((m2 // 2, 2 * c), jnp.float32),
        in_specs=[vmem, vmem, vmem, vmem, vmem],
        out_specs=vmem,
        scratch_shapes=[
            pltpu.VMEM((n, wp + 2, hp + 2, c), jnp.bfloat16),  # bf16 halo scratch
            pltpu.VMEM((m2, 9 * c), jnp.bfloat16),             # im2col buffer
        ],
        compiler_params=cparams,
        cost_estimate=cost,
    )(patches, w1, wa, wb, gb)

    # Unpack the lane-dense slab (free layout plumbing in the wrapper):
    # rows were split in half and packed along lanes; spatial order is x-major.
    out_flat = jnp.concatenate([slab[:, :c], slab[:, c:]], axis=0)  # (m2, c)
    out_xmajor = out_flat.reshape(n, wp, hp, c)                      # (b, x, y, c)
    return jnp.transpose(out_xmajor, (0, 3, 2, 1))                   # (b, c, y, x)


# --------------------------------------------------------------------------- #
# Pure-JAX reference (same math, including the conv bias that BN cancels)      #
# --------------------------------------------------------------------------- #
def reference_forward(x_nchw, params):
    x = jnp.transpose(x_nchw, (0, 2, 3, 1)).astype(jnp.float32)

    def conv(h, wgt, stride, pad):
        return jax.lax.conv_general_dilated(
            h, wgt, (stride, stride), [(pad, pad), (pad, pad)],
            dimension_numbers=("NHWC", "HWIO", "NHWC"))

    def bn(y, g, b):
        mu = jnp.mean(y, axis=(0, 1, 2), keepdims=True)
        var = jnp.mean((y - mu) ** 2, axis=(0, 1, 2), keepdims=True)
        return (g.reshape(1, 1, 1, -1) * (y - mu) * jax.lax.rsqrt(var + BN_EPS)
                + b.reshape(1, 1, 1, -1))

    def maxpool(y):  # kernel 3, stride 2, padding 1
        return jax.lax.reduce_window(
            y, -jnp.inf, jax.lax.max, (1, 3, 3, 1), (1, 2, 2, 1),
            ((0, 0), (1, 1), (1, 1), (0, 0)))

    h = jax.nn.relu(bn(conv(x, params["w_stem"], 2, 3),
                       params["g_stem"], params["be_stem"]))
    r1 = jax.nn.relu(maxpool(h))
    a = jax.nn.relu(bn(conv(r1, params["w_a"], 1, 1),
                       params["g_a"], params["be_a"]))
    b = bn(conv(a, params["w_b"], 1, 1) + params["b_b"].reshape(1, 1, 1, -1),
           params["g_b"], params["be_b"])
    out = jax.nn.relu(b + r1)
    return jnp.transpose(out, (0, 3, 1, 2))


def init_params(key, cin, c=64):
    ks = jax.random.split(key, 10)
    f32 = jnp.float32

    def conv_w(k, kh, kw, ci, co):   # module init: normal(0, sqrt(2 / (k*k*out)))
        return jax.random.normal(k, (kh, kw, ci, co), f32) * (2.0 / (kh * kw * co)) ** 0.5

    return {
        "w_stem": conv_w(ks[0], 7, 7, cin, c),
        "g_stem": 1.0 + 0.1 * jax.random.normal(ks[1], (c,), f32),
        "be_stem": 0.1 * jax.random.normal(ks[2], (c,), f32),
        "w_a": conv_w(ks[3], 3, 3, c, c),
        "g_a": 1.0 + 0.1 * jax.random.normal(ks[4], (c,), f32),
        "be_a": 0.1 * jax.random.normal(ks[5], (c,), f32),
        "w_b": conv_w(ks[6], 3, 3, c, c),
        # The second layer2 conv HAS a bias in PyTorch.  The Pallas kernel omits
        # it (training-mode BN cancels a per-channel bias exactly); it is kept
        # here and used by the reference to verify that cancellation numerically.
        "b_b": 0.1 * jax.random.normal(ks[7], (c,), f32),
        "g_b": 1.0 + 0.1 * jax.random.normal(ks[8], (c,), f32),
        "be_b": 0.1 * jax.random.normal(ks[9], (c,), f32),
    }


if __name__ == "__main__":
    key = jax.random.PRNGKey(0)
    k_x, k_p = jax.random.split(key)

    N, CIN, H, W = 2, 3, 32, 32          # small CIFAR-like input
    x = jax.random.normal(k_x, (N, CIN, H, W), jnp.float32)
    params = init_params(k_p, CIN, 64)

    fwd = jax.jit(resnet18_client_forward)
    out = jax.block_until_ready(fwd(x, params))
    ref = jax.block_until_ready(reference_forward(x, params))

    assert out.shape == (N, 64, 8, 8), out.shape
    err = jnp.abs(out - ref)
    max_err = float(jnp.max(err))
    mean_err = float(jnp.mean(err))
    # bf16 MXU operands with f32 accumulation through three conv+BN stages ->
    # expected error ~1e-2; thresholds leave headroom.
    assert max_err < 1e-1, f"max mismatch vs reference: {max_err}"
    assert mean_err < 2e-2, f"mean mismatch vs reference: {mean_err}"

    print("KERNEL_OK")
</pallas_src>

<mosaic_0001>
module attributes {stable_mosaic.version = 11 : i64} {
  func.func @_fused_client_kernel(%arg0: memref<512x147xbf16, #tpu.memory_space<vmem>>, %arg1: memref<147x64xbf16, #tpu.memory_space<vmem>>, %arg2: memref<576x64xbf16, #tpu.memory_space<vmem>>, %arg3: memref<576x64xbf16, #tpu.memory_space<vmem>>, %arg4: memref<6x64xf32, #tpu.memory_space<vmem>>, %arg5: memref<64x128xf32, #tpu.memory_space<vmem>>, %arg6: memref<2x10x10x64xbf16, #tpu.memory_space<vmem>>, %arg7: memref<128x576xbf16, #tpu.memory_space<vmem>>) attributes {dimension_semantics = [], scalar_prefetch = 0 : i64, scratch_operands = 2 : i64, tpu.core_type = #tpu.core_type<tc>} {
    %c0 = arith.constant 0 : index
    %c0_0 = arith.constant 0 : index
    %0 = vector.load %arg0[%c0, %c0_0] : memref<512x147xbf16, #tpu.memory_space<vmem>>, vector<512x147xbf16>
    %c0_1 = arith.constant 0 : index
    %c0_2 = arith.constant 0 : index
    %1 = vector.load %arg1[%c0_1, %c0_2] : memref<147x64xbf16, #tpu.memory_space<vmem>>, vector<147x64xbf16>
    %cst = arith.constant dense<0.000000e+00> : vector<512x64xf32>
    %2 = tpu.matmul %0, %1, %cst {dimension_numbers = #tpu.dot_dimension_numbers<[1], [0], [0], [1], [0, 0, 1, 1], [], []>} : vector<512x147xbf16>, vector<147x64xbf16>, vector<512x64xf32> -> vector<512x64xf32>
    %c0_3 = arith.constant 0 : index
    %c0_4 = arith.constant 0 : index
    %3 = vector.load %arg4[%c0_3, %c0_4] : memref<6x64xf32, #tpu.memory_space<vmem>>, vector<1x64xf32>
    %c1 = arith.constant 1 : index
    %c0_5 = arith.constant 0 : index
    %4 = vector.load %arg4[%c1, %c0_5] : memref<6x64xf32, #tpu.memory_space<vmem>>, vector<1x64xf32>
    %cst_6 = arith.constant dense<0.000000e+00> : vector<64xf32>
    %5 = vector.multi_reduction <add>, %2, %cst_6 [0] : vector<512x64xf32> to vector<64xf32>
    %6 = vector.shape_cast %5 : vector<64xf32> to vector<1x64xf32>
    %cst_7 = arith.constant 0.001953125 : f32
    %7 = vector.broadcast %cst_7 : f32 to vector<1x64xf32>
    %8 = arith.mulf %6, %7 : vector<1x64xf32>
    %9 = vector.broadcast %8 : vector<1x64xf32> to vector<512x64xf32>
    %10 = arith.subf %2, %9 : vector<512x64xf32>
    %11 = arith.mulf %10, %10 : vector<512x64xf32>
    %cst_8 = arith.constant dense<0.000000e+00> : vector<64xf32>
    %12 = vector.multi_reduction <add>, %11, %cst_8 [0] : vector<512x64xf32> to vector<64xf32>
    %13 = vector.shape_cast %12 : vector<64xf32> to vector<1x64xf32>
    %cst_9 = arith.constant 0.001953125 : f32
    %14 = vector.broadcast %cst_9 : f32 to vector<1x64xf32>
    %15 = arith.mulf %13, %14 : vector<1x64xf32>
    %16 = vector.broadcast %3 : vector<1x64xf32> to vector<512x64xf32>
    %17 = arith.mulf %16, %10 : vector<512x64xf32>
    %cst_10 = arith.constant 9.99999974E-6 : f32
    %18 = vector.broadcast %cst_10 : f32 to vector<1x64xf32>
    %19 = arith.addf %15, %18 : vector<1x64xf32>
    %20 = math.rsqrt %19 : vector<1x64xf32>
    %21 = vector.broadcast %20 : vector<1x64xf32> to vector<512x64xf32>
    %22 = arith.mulf %17, %21 : vector<512x64xf32>
    %23 = vector.broadcast %4 : vector<1x64xf32> to vector<512x64xf32>
    %24 = arith.addf %22, %23 : vector<512x64xf32>
    %cst_11 = arith.constant 0.000000e+00 : f32
    %25 = vector.broadcast %cst_11 : f32 to vector<512x64xf32>
    %26 = arith.maximumf %24, %25 : vector<512x64xf32>
    %27 = vector.shape_cast %26 : vector<512x64xf32> to vector<2x8x2x16x64xf32>
    %28 = vector.extract_strided_slice %27 {offsets = [0, 0, 0, 0, 0], sizes = [2, 8, 1, 16, 64], strides = [1, 1, 1, 1, 1]} : vector<2x8x2x16x64xf32> to vector<2x8x1x16x64xf32>
    %29 = vector.shape_cast %28 : vector<2x8x1x16x64xf32> to vector<2x8x16x64xf32>
    %30 = vector.extract_strided_slice %27 {offsets = [0, 0, 1, 0, 0], sizes = [2, 8, 1, 16, 64], strides = [1, 1, 1, 1, 1]} : vector<2x8x2x16x64xf32> to vector<2x8x1x16x64xf32>
    %31 = vector.shape_cast %30 : vector<2x8x1x16x64xf32> to vector<2x8x16x64xf32>
    %cst_12 = arith.constant 0.000000e+00 : f32
    %32 = vector.broadcast %cst_12 : f32 to vector<2x1x16x64xf32>
    %33 = vector.extract_strided_slice %31 {offsets = [0, 0, 0, 0], sizes = [2, 7, 16, 64], strides = [1, 1, 1, 1]} : vector<2x8x16x64xf32> to vector<2x7x16x64xf32>
    %34 = tpu.concatenate %32, %33 in 1 : vector<2x1x16x64xf32>, vector<2x7x16x64xf32> -> vector<2x8x16x64xf32>
    %35 = arith.maximumf %29, %31 : vector<2x8x16x64xf32>
    %36 = arith.maximumf %35, %34 : vector<2x8x16x64xf32>
    %37 = vector.extract_strided_slice %36 {offsets = [0, 0, 0, 0], sizes = [2, 8, 1, 64], strides = [1, 1, 1, 1]} : vector<2x8x16x64xf32> to vector<2x8x1x64xf32>
    %38 = vector.shape_cast %37 : vector<2x8x1x64xf32> to vector<2x8x64xf32>
    %39 = vector.extract_strided_slice %36 {offsets = [0, 0, 1, 0], sizes = [2, 8, 1, 64], strides = [1, 1, 1, 1]} : vector<2x8x16x64xf32> to vector<2x8x1x64xf32>
    %40 = vector.shape_cast %39 : vector<2x8x1x64xf32> to vector<2x8x64xf32>
    %41 = arith.maximumf %38, %40 : vector<2x8x64xf32>
    %42 = vector.extract_strided_slice %36 {offsets = [0, 0, 2, 0], sizes = [2, 8, 1, 64], strides = [1, 1, 1, 1]} : vector<2x8x16x64xf32> to vector<2x8x1x64xf32>
    %43 = vector.shape_cast %42 : vector<2x8x1x64xf32> to vector<2x8x64xf32>
    %44 = vector.extract_strided_slice %36 {offsets = [0, 0, 3, 0], sizes = [2, 8, 1, 64], strides = [1, 1, 1, 1]} : vector<2x8x16x64xf32> to vector<2x8x1x64xf32>
    %45 = vector.shape_cast %44 : vector<2x8x1x64xf32> to vector<2x8x64xf32>
    %46 = arith.maximumf %43, %45 : vector<2x8x64xf32>
    %47 = vector.extract_strided_slice %36 {offsets = [0, 0, 1, 0], sizes = [2, 8, 1, 64], strides = [1, 1, 1, 1]} : vector<2x8x16x64xf32> to vector<2x8x1x64xf32>
    %48 = vector.shape_cast %47 : vector<2x8x1x64xf32> to vector<2x8x64xf32>
    %49 = arith.maximumf %46, %48 : vector<2x8x64xf32>
    %50 = vector.extract_strided_slice %36 {offsets = [0, 0, 4, 0], sizes = [2, 8, 1, 64], strides = [1, 1, 1, 1]} : vector<2x8x16x64xf32> to vector<2x8x1x64xf32>
    %51 = vector.shape_cast %50 : vector<2x8x1x64xf32> to vector<2x8x64xf32>
    %52 = vector.extract_strided_slice %36 {offsets = [0, 0, 5, 0], sizes = [2, 8, 1, 64], strides = [1, 1, 1, 1]} : vector<2x8x16x64xf32> to vector<2x8x1x64xf32>
    %53 = vector.shape_cast %52 : vector<2x8x1x64xf32> to vector<2x8x64xf32>
    %54 = arith.maximumf %51, %53 : vector<2x8x64xf32>
    %55 = vector.extract_strided_slice %36 {offsets = [0, 0, 3, 0], sizes = [2, 8, 1, 64], strides = [1, 1, 1, 1]} : vector<2x8x16x64xf32> to vector<2x8x1x64xf32>
    %56 = vector.shape_cast %55 : vector<2x8x1x64xf32> to vector<2x8x64xf32>
    %57 = arith.maximumf %54, %56 : vector<2x8x64xf32>
    %58 = vector.extract_strided_slice %36 {offsets = [0, 0, 6, 0], sizes = [2, 8, 1, 64], strides = [1, 1, 1, 1]} : vector<2x8x16x64xf32> to vector<2x8x1x64xf32>
    %59 = vector.shape_cast %58 : vector<2x8x1x64xf32> to vector<2x8x64xf32>
    %60 = vector.extract_strided_slice %36 {offsets = [0, 0, 7, 0], sizes = [2, 8, 1, 64], strides = [1, 1, 1, 1]} : vector<2x8x16x64xf32> to vector<2x8x1x64xf32>
    %61 = vector.shape_cast %60 : vector<2x8x1x64xf32> to vector<2x8x64xf32>
    %62 = arith.maximumf %59, %61 : vector<2x8x64xf32>
    %63 = vector.extract_strided_slice %36 {offsets = [0, 0, 5, 0], sizes = [2, 8, 1, 64], strides = [1, 1, 1, 1]} : vector<2x8x16x64xf32> to vector<2x8x1x64xf32>
    %64 = vector.shape_cast %63 : vector<2x8x1x64xf32> to vector<2x8x64xf32>
    %65 = arith.maximumf %62, %64 : vector<2x8x64xf32>
    %66 = vector.extract_strided_slice %36 {offsets = [0, 0, 8, 0], sizes = [2, 8, 1, 64], strides = [1, 1, 1, 1]} : vector<2x8x16x64xf32> to vector<2x8x1x64xf32>
    %67 = vector.shape_cast %66 : vector<2x8x1x64xf32> to vector<2x8x64xf32>
    %68 = vector.extract_strided_slice %36 {offsets = [0, 0, 9, 0], sizes = [2, 8, 1, 64], strides = [1, 1, 1, 1]} : vector<2x8x16x64xf32> to vector<2x8x1x64xf32>
    %69 = vector.shape_cast %68 : vector<2x8x1x64xf32> to vector<2x8x64xf32>
    %70 = arith.maximumf %67, %69 : vector<2x8x64xf32>
    %71 = vector.extract_strided_slice %36 {offsets = [0, 0, 7, 0], sizes = [2, 8, 1, 64], strides = [1, 1, 1, 1]} : vector<2x8x16x64xf32> to vector<2x8x1x64xf32>
    %72 = vector.shape_cast %71 : vector<2x8x1x64xf32> to vector<2x8x64xf32>
    %73 = arith.maximumf %70, %72 : vector<2x8x64xf32>
    %74 = vector.extract_strided_slice %36 {offsets = [0, 0, 10, 0], sizes = [2, 8, 1, 64], strides = [1, 1, 1, 1]} : vector<2x8x16x64xf32> to vector<2x8x1x64xf32>
    %75 = vector.shape_cast %74 : vector<2x8x1x64xf32> to vector<2x8x64xf32>
    %76 = vector.extract_strided_slice %36 {offsets = [0, 0, 11, 0], sizes = [2, 8, 1, 64], strides = [1, 1, 1, 1]} : vector<2x8x16x64xf32> to vector<2x8x1x64xf32>
    %77 = vector.shape_cast %76 : vector<2x8x1x64xf32> to vector<2x8x64xf32>
    %78 = arith.maximumf %75, %77 : vector<2x8x64xf32>
    %79 = vector.extract_strided_slice %36 {offsets = [0, 0, 9, 0], sizes = [2, 8, 1, 64], strides = [1, 1, 1, 1]} : vector<2x8x16x64xf32> to vector<2x8x1x64xf32>
    %80 = vector.shape_cast %79 : vector<2x8x1x64xf32> to vector<2x8x64xf32>
    %81 = arith.maximumf %78, %80 : vector<2x8x64xf32>
    %82 = vector.extract_strided_slice %36 {offsets = [0, 0, 12, 0], sizes = [2, 8, 1, 64], strides = [1, 1, 1, 1]} : vector<2x8x16x64xf32> to vector<2x8x1x64xf32>
    %83 = vector.shape_cast %82 : vector<2x8x1x64xf32> to vector<2x8x64xf32>
    %84 = vector.extract_strided_slice %36 {offsets = [0, 0, 13, 0], sizes = [2, 8, 1, 64], strides = [1, 1, 1, 1]} : vector<2x8x16x64xf32> to vector<2x8x1x64xf32>
    %85 = vector.shape_cast %84 : vector<2x8x1x64xf32> to vector<2x8x64xf32>
    %86 = arith.maximumf %83, %85 : vector<2x8x64xf32>
    %87 = vector.extract_strided_slice %36 {offsets = [0, 0, 11, 0], sizes = [2, 8, 1, 64], strides = [1, 1, 1, 1]} : vector<2x8x16x64xf32> to vector<2x8x1x64xf32>
    %88 = vector.shape_cast %87 : vector<2x8x1x64xf32> to vector<2x8x64xf32>
    %89 = arith.maximumf %86, %88 : vector<2x8x64xf32>
    %90 = vector.extract_strided_slice %36 {offsets = [0, 0, 14, 0], sizes = [2, 8, 1, 64], strides = [1, 1, 1, 1]} : vector<2x8x16x64xf32> to vector<2x8x1x64xf32>
    %91 = vector.shape_cast %90 : vector<2x8x1x64xf32> to vector<2x8x64xf32>
    %92 = vector.extract_strided_slice %36 {offsets = [0, 0, 15, 0], sizes = [2, 8, 1, 64], strides = [1, 1, 1, 1]} : vector<2x8x16x64xf32> to vector<2x8x1x64xf32>
    %93 = vector.shape_cast %92 : vector<2x8x1x64xf32> to vector<2x8x64xf32>
    %94 = arith.maximumf %91, %93 : vector<2x8x64xf32>
    %95 = vector.extract_strided_slice %36 {offsets = [0, 0, 13, 0], sizes = [2, 8, 1, 64], strides = [1, 1, 1, 1]} : vector<2x8x16x64xf32> to vector<2x8x1x64xf32>
    %96 = vector.shape_cast %95 : vector<2x8x1x64xf32> to vector<2x8x64xf32>
    %97 = arith.maximumf %94, %96 : vector<2x8x64xf32>
    %98 = vector.shape_cast %41 : vector<2x8x64xf32> to vector<2x1x8x64xf32>
    %99 = vector.shape_cast %49 : vector<2x8x64xf32> to vector<2x1x8x64xf32>
    %100 = vector.shape_cast %57 : vector<2x8x64xf32> to vector<2x1x8x64xf32>
    %101 = vector.shape_cast %65 : vector<2x8x64xf32> to vector<2x1x8x64xf32>
    %102 = vector.shape_cast %73 : vector<2x8x64xf32> to vector<2x1x8x64xf32>
    %103 = vector.shape_cast %81 : vector<2x8x64xf32> to vector<2x1x8x64xf32>
    %104 = vector.shape_cast %89 : vector<2x8x64xf32> to vector<2x1x8x64xf32>
    %105 = vector.shape_cast %97 : vector<2x8x64xf32> to vector<2x1x8x64xf32>
    %106 = tpu.concatenate %98, %99, %100, %101, %102, %103, %104, %105 in 1 : vector<2x1x8x64xf32>, vector<2x1x8x64xf32>, vector<2x1x8x64xf32>, vector<2x1x8x64xf32>, vector<2x1x8x64xf32>, vector<2x1x8x64xf32>, vector<2x1x8x64xf32>, vector<2x1x8x64xf32> -> vector<2x8x8x64xf32>
    %107 = vector.shape_cast %106 : vector<2x8x8x64xf32> to vector<128x64xf32>
    %cst_13 = arith.constant 0.000000e+00 : bf16
    %108 = vector.broadcast %cst_13 : bf16 to vector<2x10x64xbf16>
    %cst_14 = arith.constant 0.000000e+00 : bf16
    %109 = vector.broadcast %cst_14 : bf16 to vector<2x10x64xbf16>
    %c0_15 = arith.constant 0 : index
    %c0_16 = arith.constant 0 : index
    %c0_17 = arith.constant 0 : index
    %c0_18 = arith.constant 0 : index
    %110 = vector.load %arg6[%c0_15, %c0_16, %c0_17, %c0_18] : memref<2x10x10x64xbf16, #tpu.memory_space<vmem>>, vector<2x1x10x64xbf16>
    %111 = vector.shape_cast %110 : vector<2x1x10x64xbf16> to vector<2x10x64xbf16>
    %112 = vector.shape_cast %108 : vector<2x10x64xbf16> to vector<2x1x10x64xbf16>
    tpu.vector_store %arg6[%c0_15, %c0_16, %c0_17, %c0_18], %112 {strides = array<i32>} : memref<2x10x10x64xbf16, #tpu.memory_space<vmem>>, vector<2x1x10x64xbf16>,
    %c0_19 = arith.constant 0 : index
    %c9 = arith.constant 9 : index
    %c0_20 = arith.constant 0 : index
    %c0_21 = arith.constant 0 : index
    %113 = vector.load %arg6[%c0_19, %c9, %c0_20, %c0_21] : memref<2x10x10x64xbf16, #tpu.memory_space<vmem>>, vector<2x1x10x64xbf16>
    %114 = vector.shape_cast %113 : vector<2x1x10x64xbf16> to vector<2x10x64xbf16>
    %115 = vector.shape_cast %108 : vector<2x10x64xbf16> to vector<2x1x10x64xbf16>
    tpu.vector_store %arg6[%c0_19, %c9, %c0_20, %c0_21], %115 {strides = array<i32>} : memref<2x10x10x64xbf16, #tpu.memory_space<vmem>>, vector<2x1x10x64xbf16>,
    %c0_22 = arith.constant 0 : index
    %c0_23 = arith.constant 0 : index
    %c0_24 = arith.constant 0 : index
    %c0_25 = arith.constant 0 : index
    %116 = vector.load %arg6[%c0_22, %c0_23, %c0_24, %c0_25] : memref<2x10x10x64xbf16, #tpu.memory_space<vmem>>, vector<2x10x1x64xbf16>
    %117 = vector.shape_cast %116 : vector<2x10x1x64xbf16> to vector<2x10x64xbf16>
    %118 = vector.shape_cast %109 : vector<2x10x64xbf16> to vector<2x10x1x64xbf16>
    tpu.vector_store %arg6[%c0_22, %c0_23, %c0_24, %c0_25], %118 {strides = array<i32>} : memref<2x10x10x64xbf16, #tpu.memory_space<vmem>>, vector<2x10x1x64xbf16>,
    %c0_26 = arith.constant 0 : index
    %c0_27 = arith.constant 0 : index
    %c9_28 = arith.constant 9 : index
    %c0_29 = arith.constant 0 : index
    %119 = vector.load %arg6[%c0_26, %c0_27, %c9_28, %c0_29] : memref<2x10x10x64xbf16, #tpu.memory_space<vmem>>, vector<2x10x1x64xbf16>
    %120 = vector.shape_cast %119 : vector<2x10x1x64xbf16> to vector<2x10x64xbf16>
    %121 = vector.shape_cast %109 : vector<2x10x64xbf16> to vector<2x10x1x64xbf16>
    tpu.vector_store %arg6[%c0_26, %c0_27, %c9_28, %c0_29], %121 {strides = array<i32>} : memref<2x10x10x64xbf16, #tpu.memory_space<vmem>>, vector<2x10x1x64xbf16>,
    %c2 = arith.constant 2 : index
    %c0_30 = arith.constant 0 : index
    %122 = vector.load %arg4[%c2, %c0_30] : memref<6x64xf32, #tpu.memory_space<vmem>>, vector<1x64xf32>
    %c3 = arith.constant 3 : index
    %c0_31 = arith.constant 0 : index
    %123 = vector.load %arg4[%c3, %c0_31] : memref<6x64xf32, #tpu.memory_space<vmem>>, vector<1x64xf32>
    %124 = arith.truncf %106 : vector<2x8x8x64xf32> to vector<2x8x8x64xbf16>
    %c0_32 = arith.constant 0 : index
    %c1_33 = arith.constant 1 : index
    %c1_34 = arith.constant 1 : index
    %c0_35 = arith.constant 0 : index
    %125 = vector.load %arg6[%c0_32, %c1_33, %c1_34, %c0_35] : memref<2x10x10x64xbf16, #tpu.memory_space<vmem>>, vector<2x8x8x64xbf16>
    tpu.vector_store %arg6[%c0_32, %c1_33, %c1_34, %c0_35], %124 {strides = array<i32>} : memref<2x10x10x64xbf16, #tpu.memory_space<vmem>>, vector<2x8x8x64xbf16>,
    %c0_36 = arith.constant 0 : index
    %c0_37 = arith.constant 0 : index
    %c0_38 = arith.constant 0 : index
    %c0_39 = arith.constant 0 : index
    %126 = vector.load %arg6[%c0_36, %c0_37, %c0_38, %c0_39] : memref<2x10x10x64xbf16, #tpu.memory_space<vmem>>, vector<2x8x8x64xbf16>
    %127 = vector.shape_cast %126 : vector<2x8x8x64xbf16> to vector<128x64xbf16>
    %c0_40 = arith.constant 0 : index
    %c1_41 = arith.constant 1 : index
    %c0_42 = arith.constant 0 : index
    %c0_43 = arith.constant 0 : index
    %128 = vector.load %arg6[%c0_40, %c1_41, %c0_42, %c0_43] : memref<2x10x10x64xbf16, #tpu.memory_space<vmem>>, vector<2x8x8x64xbf16>
    %129 = vector.shape_cast %128 : vector<2x8x8x64xbf16> to vector<128x64xbf16>
    %130 = tpu.concatenate %127, %129 in 1 : vector<128x64xbf16>, vector<128x64xbf16> -> vector<128x128xbf16>
    %c0_44 = arith.constant 0 : index
    %c0_45 = arith.constant 0 : index
    %131 = vector.load %arg7[%c0_44, %c0_45] : memref<128x576xbf16, #tpu.memory_space<vmem>>, vector<128x128xbf16>
    tpu.vector_store %arg7[%c0_44, %c0_45], %130 {strides = array<i32>} : memref<128x576xbf16, #tpu.memory_space<vmem>>, vector<128x128xbf16>,
    %c0_46 = arith.constant 0 : index
    %c2_47 = arith.constant 2 : index
    %c0_48 = arith.constant 0 : index
    %c0_49 = arith.constant 0 : index
    %132 = vector.load %arg6[%c0_46, %c2_47, %c0_48, %c0_49] : memref<2x10x10x64xbf16, #tpu.memory_space<vmem>>, vector<2x8x8x64xbf16>
    %133 = vector.shape_cast %132 : vector<2x8x8x64xbf16> to vector<128x64xbf16>
    %c0_50 = arith.constant 0 : index
    %c0_51 = arith.constant 0 : index
    %c1_52 = arith.constant 1 : index
    %c0_53 = arith.constant 0 : index
    %134 = vector.load %arg6[%c0_50, %c0_51, %c1_52, %c0_53] : memref<2x10x10x64xbf16, #tpu.memory_space<vmem>>, vector<2x8x8x64xbf16>
    %135 = vector.shape_cast %134 : vector<2x8x8x64xbf16> to vector<128x64xbf16>
    %136 = tpu.concatenate %133, %135 in 1 : vector<128x64xbf16>, vector<128x64xbf16> -> vector<128x128xbf16>
    %c0_54 = arith.constant 0 : index
    %c128 = arith.constant 128 : index
    %137 = vector.load %arg7[%c0_54, %c128] : memref<128x576xbf16, #tpu.memory_space<vmem>>, vector<128x128xbf16>
    tpu.vector_store %arg7[%c0_54, %c128], %136 {strides = array<i32>} : memref<128x576xbf16, #tpu.memory_space<vmem>>, vector<128x128xbf16>,
    %c0_55 = arith.constant 0 : index
    %c1_56 = arith.constant 1 : index
    %c1_57 = arith.constant 1 : index
    %c0_58 = arith.constant 0 : index
    %138 = vector.load %arg6[%c0_55, %c1_56, %c1_57, %c0_58] : memref<2x10x10x64xbf16, #tpu.memory_space<vmem>>, vector<2x8x8x64xbf16>
    %139 = vector.shape_cast %138 : vector<2x8x8x64xbf16> to vector<128x64xbf16>
    %c0_59 = arith.constant 0 : index
    %c2_60 = arith.constant 2 : index
    %c1_61 = arith.constant 1 : index
    %c0_62 = arith.constant 0 : index
    %140 = vector.load %arg6[%c0_59, %c2_60, %c1_61, %c0_62] : memref<2x10x10x64xbf16, #tpu.memory_space<vmem>>, vector<2x8x8x64xbf16>
    %141 = vector.shape_cast %140 : vector<2x8x8x64xbf16> to vector<128x64xbf16>
    %142 = tpu.concatenate %139, %141 in 1 : vector<128x64xbf16>, vector<128x64xbf16> -> vector<128x128xbf16>
    %c0_63 = arith.constant 0 : index
    %c256 = arith.constant 256 : index
    %143 = vector.load %arg7[%c0_63, %c256] : memref<128x576xbf16, #tpu.memory_space<vmem>>, vector<128x128xbf16>
    tpu.vector_store %arg7[%c0_63, %c256], %142 {strides = array<i32>} : memref<128x576xbf16, #tpu.memory_space<vmem>>, vector<128x128xbf16>,
    %c0_64 = arith.constant 0 : index
    %c0_65 = arith.constant 0 : index
    %c2_66 = arith.constant 2 : index
    %c0_67 = arith.constant 0 : index
    %144 = vector.load %arg6[%c0_64, %c0_65, %c2_66, %c0_67] : memref<2x10x10x64xbf16, #tpu.memory_space<vmem>>, vector<2x8x8x64xbf16>
    %145 = vector.shape_cast %144 : vector<2x8x8x64xbf16> to vector<128x64xbf16>
    %c0_68 = arith.constant 0 : index
    %c1_69 = arith.constant 1 : index
    %c2_70 = arith.constant 2 : index
    %c0_71 = arith.constant 0 : index
    %146 = vector.load %arg6[%c0_68, %c1_69, %c2_70, %c0_71] : memref<2x10x10x64xbf16, #tpu.memory_space<vmem>>, vector<2x8x8x64xbf16>
    %147 = vector.shape_cast %146 : vector<2x8x8x64xbf16> to vector<128x64xbf16>
    %148 = tpu.concatenate %145, %147 in 1 : vector<128x64xbf16>, vector<128x64xbf16> -> vector<128x128xbf16>
    %c0_72 = arith.constant 0 : index
    %c384 = arith.constant 384 : index
    %149 = vector.load %arg7[%c0_72, %c384] : memref<128x576xbf16, #tpu.memory_space<vmem>>, vector<128x128xbf16>
    tpu.vector_store %arg7[%c0_72, %c384], %148 {strides = array<i32>} : memref<128x576xbf16, #tpu.memory_space<vmem>>, vector<128x128xbf16>,
    %c0_73 = arith.constant 0 : index
    %c2_74 = arith.constant 2 : index
    %c2_75 = arith.constant 2 : index
    %c0_76 = arith.constant 0 : index
    %150 = vector.load %arg6[%c0_73, %c2_74, %c2_75, %c0_76] : memref<2x10x10x64xbf16, #tpu.memory_space<vmem>>, vector<2x8x8x64xbf16>
    %151 = vector.shape_cast %150 : vector<2x8x8x64xbf16> to vector<128x64xbf16>
    %c0_77 = arith.constant 0 : index
    %c512 = arith.constant 512 : index
    %152 = vector.load %arg7[%c0_77, %c512] : memref<128x576xbf16, #tpu.memory_space<vmem>>, vector<128x64xbf16>
    tpu.vector_store %arg7[%c0_77, %c512], %151 {strides = array<i32>} : memref<128x576xbf16, #tpu.memory_space<vmem>>, vector<128x64xbf16>,
    %c0_78 = arith.constant 0 : index
    %c0_79 = arith.constant 0 : index
    %153 = vector.load %arg7[%c0_78, %c0_79] : memref<128x576xbf16, #tpu.memory_space<vmem>>, vector<128x576xbf16>
    %c0_80 = arith.constant 0 : index
    %c0_81 = arith.constant 0 : index
    %154 = vector.load %arg2[%c0_80, %c0_81] : memref<576x64xbf16, #tpu.memory_space<vmem>>, vector<576x64xbf16>
    %cst_82 = arith.constant dense<0.000000e+00> : vector<128x64xf32>
    %155 = tpu.matmul %153, %154, %cst_82 {dimension_numbers = #tpu.dot_dimension_numbers<[1], [0], [0], [1], [0, 0, 1, 1], [], []>} : vector<128x576xbf16>, vector<576x64xbf16>, vector<128x64xf32> -> vector<128x64xf32>
    %cst_83 = arith.constant dense<0.000000e+00> : vector<64xf32>
    %156 = vector.multi_reduction <add>, %155, %cst_83 [0] : vector<128x64xf32> to vector<64xf32>
    %157 = vector.shape_cast %156 : vector<64xf32> to vector<1x64xf32>
    %cst_84 = arith.constant 7.812500e-03 : f32
    %158 = vector.broadcast %cst_84 : f32 to vector<1x64xf32>
    %159 = arith.mulf %157, %158 : vector<1x64xf32>
    %160 = vector.broadcast %159 : vector<1x64xf32> to vector<128x64xf32>
    %161 = arith.subf %155, %160 : vector<128x64xf32>
    %162 = arith.mulf %161, %161 : vector<128x64xf32>
    %cst_85 = arith.constant dense<0.000000e+00> : vector<64xf32>
    %163 = vector.multi_reduction <add>, %162, %cst_85 [0] : vector<128x64xf32> to vector<64xf32>
    %164 = vector.shape_cast %163 : vector<64xf32> to vector<1x64xf32>
    %cst_86 = arith.constant 7.812500e-03 : f32
    %165 = vector.broadcast %cst_86 : f32 to vector<1x64xf32>
    %166 = arith.mulf %164, %165 : vector<1x64xf32>
    %167 = vector.broadcast %122 : vector<1x64xf32> to vector<128x64xf32>
    %168 = arith.mulf %167, %161 : vector<128x64xf32>
    %cst_87 = arith.constant 9.99999974E-6 : f32
    %169 = vector.broadcast %cst_87 : f32 to vector<1x64xf32>
    %170 = arith.addf %166, %169 : vector<1x64xf32>
    %171 = math.rsqrt %170 : vector<1x64xf32>
    %172 = vector.broadcast %171 : vector<1x64xf32> to vector<128x64xf32>
    %173 = arith.mulf %168, %172 : vector<128x64xf32>
    %174 = vector.broadcast %123 : vector<1x64xf32> to vector<128x64xf32>
    %175 = arith.addf %173, %174 : vector<128x64xf32>
    %cst_88 = arith.constant 0.000000e+00 : f32
    %176 = vector.broadcast %cst_88 : f32 to vector<128x64xf32>
    %177 = arith.maximumf %175, %176 : vector<128x64xf32>
    %178 = vector.shape_cast %177 : vector<128x64xf32> to vector<2x8x8x64xf32>
    %c4 = arith.constant 4 : index
    %c0_89 = arith.constant 0 : index
    %179 = vector.load %arg4[%c4, %c0_89] : memref<6x64xf32, #tpu.memory_space<vmem>>, vector<1x64xf32>
    %c5 = arith.constant 5 : index
    %c0_90 = arith.constant 0 : index
    %180 = vector.load %arg4[%c5, %c0_90] : memref<6x64xf32, #tpu.memory_space<vmem>>, vector<1x64xf32>
    %181 = arith.truncf %178 : vector<2x8x8x64xf32> to vector<2x8x8x64xbf16>
    %c0_91 = arith.constant 0 : index
    %c1_92 = arith.constant 1 : index
    %c1_93 = arith.constant 1 : index
    %c0_94 = arith.constant 0 : index
    %182 = vector.load %arg6[%c0_91, %c1_92, %c1_93, %c0_94] : memref<2x10x10x64xbf16, #tpu.memory_space<vmem>>, vector<2x8x8x64xbf16>
    tpu.vector_store %arg6[%c0_91, %c1_92, %c1_93, %c0_94], %181 {strides = array<i32>} : memref<2x10x10x64xbf16, #tpu.memory_space<vmem>>, vector<2x8x8x64xbf16>,
    %c0_95 = arith.constant 0 : index
    %c0_96 = arith.constant 0 : index
    %c0_97 = arith.constant 0 : index
    %c0_98 = arith.constant 0 : index
    %183 = vector.load %arg6[%c0_95, %c0_96, %c0_97, %c0_98] : memref<2x10x10x64xbf16, #tpu.memory_space<vmem>>, vector<2x8x8x64xbf16>
    %184 = vector.shape_cast %183 : vector<2x8x8x64xbf16> to vector<128x64xbf16>
    %c0_99 = arith.constant 0 : index
    %c1_100 = arith.constant 1 : index
    %c0_101 = arith.constant 0 : index
    %c0_102 = arith.constant 0 : index
    %185 = vector.load %arg6[%c0_99, %c1_100, %c0_101, %c0_102] : memref<2x10x10x64xbf16, #tpu.memory_space<vmem>>, vector<2x8x8x64xbf16>
    %186 = vector.shape_cast %185 : vector<2x8x8x64xbf16> to vector<128x64xbf16>
    %187 = tpu.concatenate %184, %186 in 1 : vector<128x64xbf16>, vector<128x64xbf16> -> vector<128x128xbf16>
    %c0_103 = arith.constant 0 : index
    %c0_104 = arith.constant 0 : index
    %188 = vector.load %arg7[%c0_103, %c0_104] : memref<128x576xbf16, #tpu.memory_space<vmem>>, vector<128x128xbf16>
    tpu.vector_store %arg7[%c0_103, %c0_104], %187 {strides = array<i32>} : memref<128x576xbf16, #tpu.memory_space<vmem>>, vector<128x128xbf16>,
    %c0_105 = arith.constant 0 : index
    %c2_106 = arith.constant 2 : index
    %c0_107 = arith.constant 0 : index
    %c0_108 = arith.constant 0 : index
    %189 = vector.load %arg6[%c0_105, %c2_106, %c0_107, %c0_108] : memref<2x10x10x64xbf16, #tpu.memory_space<vmem>>, vector<2x8x8x64xbf16>
    %190 = vector.shape_cast %189 : vector<2x8x8x64xbf16> to vector<128x64xbf16>
    %c0_109 = arith.constant 0 : index
    %c0_110 = arith.constant 0 : index
    %c1_111 = arith.constant 1 : index
    %c0_112 = arith.constant 0 : index
    %191 = vector.load %arg6[%c0_109, %c0_110, %c1_111, %c0_112] : memref<2x10x10x64xbf16, #tpu.memory_space<vmem>>, vector<2x8x8x64xbf16>
    %192 = vector.shape_cast %191 : vector<2x8x8x64xbf16> to vector<128x64xbf16>
    %193 = tpu.concatenate %190, %192 in 1 : vector<128x64xbf16>, vector<128x64xbf16> -> vector<128x128xbf16>
    %c0_113 = arith.constant 0 : index
    %c128_114 = arith.constant 128 : index
    %194 = vector.load %arg7[%c0_113, %c128_114] : memref<128x576xbf16, #tpu.memory_space<vmem>>, vector<128x128xbf16>
    tpu.vector_store %arg7[%c0_113, %c128_114], %193 {strides = array<i32>} : memref<128x576xbf16, #tpu.memory_space<vmem>>, vector<128x128xbf16>,
    %c0_115 = arith.constant 0 : index
    %c1_116 = arith.constant 1 : index
    %c1_117 = arith.constant 1 : index
    %c0_118 = arith.constant 0 : index
    %195 = vector.load %arg6[%c0_115, %c1_116, %c1_117, %c0_118] : memref<2x10x10x64xbf16, #tpu.memory_space<vmem>>, vector<2x8x8x64xbf16>
    %196 = vector.shape_cast %195 : vector<2x8x8x64xbf16> to vector<128x64xbf16>
    %c0_119 = arith.constant 0 : index
    %c2_120 = arith.constant 2 : index
    %c1_121 = arith.constant 1 : index
    %c0_122 = arith.constant 0 : index
    %197 = vector.load %arg6[%c0_119, %c2_120, %c1_121, %c0_122] : memref<2x10x10x64xbf16, #tpu.memory_space<vmem>>, vector<2x8x8x64xbf16>
    %198 = vector.shape_cast %197 : vector<2x8x8x64xbf16> to vector<128x64xbf16>
    %199 = tpu.concatenate %196, %198 in 1 : vector<128x64xbf16>, vector<128x64xbf16> -> vector<128x128xbf16>
    %c0_123 = arith.constant 0 : index
    %c256_124 = arith.constant 256 : index
    %200 = vector.load %arg7[%c0_123, %c256_124] : memref<128x576xbf16, #tpu.memory_space<vmem>>, vector<128x128xbf16>
    tpu.vector_store %arg7[%c0_123, %c256_124], %199 {strides = array<i32>} : memref<128x576xbf16, #tpu.memory_space<vmem>>, vector<128x128xbf16>,
    %c0_125 = arith.constant 0 : index
    %c0_126 = arith.constant 0 : index
    %c2_127 = arith.constant 2 : index
    %c0_128 = arith.constant 0 : index
    %201 = vector.load %arg6[%c0_125, %c0_126, %c2_127, %c0_128] : memref<2x10x10x64xbf16, #tpu.memory_space<vmem>>, vector<2x8x8x64xbf16>
    %202 = vector.shape_cast %201 : vector<2x8x8x64xbf16> to vector<128x64xbf16>
    %c0_129 = arith.constant 0 : index
    %c1_130 = arith.constant 1 : index
    %c2_131 = arith.constant 2 : index
    %c0_132 = arith.constant 0 : index
    %203 = vector.load %arg6[%c0_129, %c1_130, %c2_131, %c0_132] : memref<2x10x10x64xbf16, #tpu.memory_space<vmem>>, vector<2x8x8x64xbf16>
    %204 = vector.shape_cast %203 : vector<2x8x8x64xbf16> to vector<128x64xbf16>
    %205 = tpu.concatenate %202, %204 in 1 : vector<128x64xbf16>, vector<128x64xbf16> -> vector<128x128xbf16>
    %c0_133 = arith.constant 0 : index
    %c384_134 = arith.constant 384 : index
    %206 = vector.load %arg7[%c0_133, %c384_134] : memref<128x576xbf16, #tpu.memory_space<vmem>>, vector<128x128xbf16>
    tpu.vector_store %arg7[%c0_133, %c384_134], %205 {strides = array<i32>} : memref<128x576xbf16, #tpu.memory_space<vmem>>, vector<128x128xbf16>,
    %c0_135 = arith.constant 0 : index
    %c2_136 = arith.constant 2 : index
    %c2_137 = arith.constant 2 : index
    %c0_138 = arith.constant 0 : index
    %207 = vector.load %arg6[%c0_135, %c2_136, %c2_137, %c0_138] : memref<2x10x10x64xbf16, #tpu.memory_space<vmem>>, vector<2x8x8x64xbf16>
    %208 = vector.shape_cast %207 : vector<2x8x8x64xbf16> to vector<128x64xbf16>
    %c0_139 = arith.constant 0 : index
    %c512_140 = arith.constant 512 : index
    %209 = vector.load %arg7[%c0_139, %c512_140] : memref<128x576xbf16, #tpu.memory_space<vmem>>, vector<128x64xbf16>
    tpu.vector_store %arg7[%c0_139, %c512_140], %208 {strides = array<i32>} : memref<128x576xbf16, #tpu.memory_space<vmem>>, vector<128x64xbf16>,
    %c0_141 = arith.constant 0 : index
    %c0_142 = arith.constant 0 : index
    %210 = vector.load %arg7[%c0_141, %c0_142] : memref<128x576xbf16, #tpu.memory_space<vmem>>, vector<128x576xbf16>
    %c0_143 = arith.constant 0 : index
    %c0_144 = arith.constant 0 : index
    %211 = vector.load %arg3[%c0_143, %c0_144] : memref<576x64xbf16, #tpu.memory_space<vmem>>, vector<576x64xbf16>
    %cst_145 = arith.constant dense<0.000000e+00> : vector<128x64xf32>
    %212 = tpu.matmul %210, %211, %cst_145 {dimension_numbers = #tpu.dot_dimension_numbers<[1], [0], [0], [1], [0, 0, 1, 1], [], []>} : vector<128x576xbf16>, vector<576x64xbf16>, vector<128x64xf32> -> vector<128x64xf32>
    %cst_146 = arith.constant dense<0.000000e+00> : vector<64xf32>
    %213 = vector.multi_reduction <add>, %212, %cst_146 [0] : vector<128x64xf32> to vector<64xf32>
    %214 = vector.shape_cast %213 : vector<64xf32> to vector<1x64xf32>
    %cst_147 = arith.constant 7.812500e-03 : f32
    %215 = vector.broadcast %cst_147 : f32 to vector<1x64xf32>
    %216 = arith.mulf %214, %215 : vector<1x64xf32>
    %217 = vector.broadcast %216 : vector<1x64xf32> to vector<128x64xf32>
    %218 = arith.subf %212, %217 : vector<128x64xf32>
    %219 = arith.mulf %218, %218 : vector<128x64xf32>
    %cst_148 = arith.constant dense<0.000000e+00> : vector<64xf32>
    %220 = vector.multi_reduction <add>, %219, %cst_148 [0] : vector<128x64xf32> to vector<64xf32>
    %221 = vector.shape_cast %220 : vector<64xf32> to vector<1x64xf32>
    %cst_149 = arith.constant 7.812500e-03 : f32
    %222 = vector.broadcast %cst_149 : f32 to vector<1x64xf32>
    %223 = arith.mulf %221, %222 : vector<1x64xf32>
    %224 = vector.broadcast %179 : vector<1x64xf32> to vector<128x64xf32>
    %225 = arith.mulf %224, %218 : vector<128x64xf32>
    %cst_150 = arith.constant 9.99999974E-6 : f32
    %226 = vector.broadcast %cst_150 : f32 to vector<1x64xf32>
    %227 = arith.addf %223, %226 : vector<1x64xf32>
    %228 = math.rsqrt %227 : vector<1x64xf32>
    %229 = vector.broadcast %228 : vector<1x64xf32> to vector<128x64xf32>
    %230 = arith.mulf %225, %229 : vector<128x64xf32>
    %231 = vector.broadcast %180 : vector<1x64xf32> to vector<128x64xf32>
    %232 = arith.addf %230, %231 : vector<128x64xf32>
    %233 = arith.addf %232, %107 : vector<128x64xf32>
    %cst_151 = arith.constant 0.000000e+00 : f32
    %234 = vector.broadcast %cst_151 : f32 to vector<128x64xf32>
    %235 = arith.maximumf %233, %234 : vector<128x64xf32>
    %236 = vector.extract_strided_slice %235 {offsets = [0, 0], sizes = [64, 64], strides = [1, 1]} : vector<128x64xf32> to vector<64x64xf32>
    %237 = vector.extract_strided_slice %235 {offsets = [64, 0], sizes = [64, 64], strides = [1, 1]} : vector<128x64xf32> to vector<64x64xf32>
    %238 = tpu.concatenate %236, %237 in 1 : vector<64x64xf32>, vector<64x64xf32> -> vector<64x128xf32>
    %c0_152 = arith.constant 0 : index
    %c0_153 = arith.constant 0 : index
    %239 = vector.load %arg5[%c0_152, %c0_153] : memref<64x128xf32, #tpu.memory_space<vmem>>, vector<64x128xf32>
    tpu.vector_store %arg5[%c0_152, %c0_153], %238 {strides = array<i32>} : memref<64x128xf32, #tpu.memory_space<vmem>>, vector<64x128xf32>,
    return
  }
}

</mosaic_0001>

<llo_original>
// kernel: resnet18_client_forward.1
$region0: #{resnet18_client_forward.1}
  #allocation0 [shape = 'u32[]', space=smem, size = 0x4, offset = 0x4, fixed_abs, tag = 'smem constant byte address 0x4 - core index']
  #allocation1 [shape = 'u32[72,128]{1,0:T(1,128)}', space=vmem, size = 0x9000, scoped, tag = 'internal scratch']
  #allocation2 [shape = 'bf16[2,10,10,64]{3,2,1,0:T(8,128)(2,1)}', space=vmem, size = 0x14000, scoped, tag = 'scratch operand']
  #allocation3 [shape = 'bf16[128,576]{1,0:T(8,128)(2,1)}', space=vmem, size = 0x28000, scoped, tag = 'scratch operand']
  %s0 = inlined_call_operand.vmem [shape: bf16[512,147], index: 0, kind: input, shape index: {}]
  %s1 = inlined_call_operand.vmem [shape: bf16[147,64], index: 1, kind: input, shape index: {}]
  %s2 = inlined_call_operand.vmem [shape: bf16[576,64], index: 2, kind: input, shape index: {}]
  %s3 = inlined_call_operand.vmem [shape: bf16[576,64], index: 3, kind: input, shape index: {}]
  %s4 = inlined_call_operand.vmem [shape: f32[6,64], index: 4, kind: input, shape index: {}]
  %s5 = inlined_call_operand.vmem [shape: f32[64,128], index: 5, kind: output, shape index: {}]
  %s6 = sld [smem:[#allocation0]]
  $region30: #{resnet18_client_forward.1} parent=0
    _
  %s8 = ssub.s32 1, %s6
  %s9 = scalar_select 0, %s8, %s6
  // Predicated region
  $region2: #{resnet18_client_forward.1} parent=0 // pred_check
    _
  $region3: #{resnet18_client_forward.1} parent=0 // pred_check_branch
    %11 = sbr.rel (0) target = $region5
  $region4: #{resnet18_client_forward.1} parent=0 // pred_region
    _
  $region5: #{resnet18_client_forward.1} parent=0 // pred_fallthru
    _
  // Predicated region
  $region6: #{resnet18_client_forward.1} parent=0 // pred_check
    _
  $region7: #{resnet18_client_forward.1} parent=0 // pred_check_branch
    %13 = sbr.rel (0) target = $region9
  $region8: #{resnet18_client_forward.1} parent=0 // pred_region
    _
  $region9: #{resnet18_client_forward.1} parent=0 // pred_fallthru
    _
  // Predicated region
  $region10: #{resnet18_client_forward.1} parent=0 // pred_check
    _
  $region11: #{resnet18_client_forward.1} parent=0 // pred_check_branch
    %15 = sbr.rel (0) target = $region13
  $region12: #{resnet18_client_forward.1} parent=0 // pred_region
    _
  $region13: #{resnet18_client_forward.1} parent=0 // pred_fallthru
    _
  // Predicated region
  $region14: #{resnet18_client_forward.1} parent=0 // pred_check
    _
  $region15: #{resnet18_client_forward.1} parent=0 // pred_check_branch
    %17 = sbr.rel (0) target = $region17
  $region16: #{resnet18_client_forward.1} parent=0 // pred_region
    _
  $region17: #{resnet18_client_forward.1} parent=0 // pred_fallthru
    _
  // Predicated region
  $region18: #{resnet18_client_forward.1} parent=0 // pred_check
    _
  $region19: #{resnet18_client_forward.1} parent=0 // pred_check_branch
    %19 = sbr.rel (0) target = $region21
  $region20: #{resnet18_client_forward.1} parent=0 // pred_region
    _
  $region21: #{resnet18_client_forward.1} parent=0 // pred_fallthru
    _
  %v21 = vld [vmem:[%s0] sm:$0xff]
  %v22 = vld [vmem:[%s0 + $0x8] sm:$0xff]
  %v23 = vld [vmem:[%s0 + $0x10] sm:$0xff]
  %v24 = vld [vmem:[%s0 + $0x18] sm:$0xff]
  %v25 = vld [vmem:[%s0 + $0x20] sm:$0xff]
  %v26 = vld [vmem:[%s0 + $0x28] sm:$0xff]
  %v27 = vld [vmem:[%s0 + $0x30] sm:$0xff]
  %v28 = vld [vmem:[%s0 + $0x38] sm:$0xff]
  %v29 = vld [vmem:[%s0 + $0x40] sm:$0xff]
  %v30 = vld [vmem:[%s0 + $0x48] sm:$0xff]
  %v31 = vld [vmem:[%s0 + $0x50] sm:$0xff]
  %v32 = vld [vmem:[%s0 + $0x58] sm:$0xff]
  %v33 = vld [vmem:[%s0 + $0x60] sm:$0xff]
  %v34 = vld [vmem:[%s0 + $0x68] sm:$0xff]
  %v35 = vld [vmem:[%s0 + $0x70] sm:$0xff]
  %v36 = vld [vmem:[%s0 + $0x78] sm:$0xff]
  %v37 = vld [vmem:[%s0 + $0x80] sm:$0xff]
  %v38 = vld [vmem:[%s0 + $0x88] sm:$0xff]
  %v39 = vld [vmem:[%s0 + $0x90] sm:$0xff]
  %v40 = vld [vmem:[%s0 + $0x98] sm:$0xff]
  %v41 = vld [vmem:[%s0 + $0xa0] sm:$0xff]
  %v42 = vld [vmem:[%s0 + $0xa8] sm:$0xff]
  %v43 = vld [vmem:[%s0 + $0xb0] sm:$0xff]
  %v44 = vld [vmem:[%s0 + $0xb8] sm:$0xff]
  %v45 = vld [vmem:[%s0 + $0xc0] sm:$0xff]
  %v46 = vld [vmem:[%s0 + $0xc8] sm:$0xff]
  %v47 = vld [vmem:[%s0 + $0xd0] sm:$0xff]
  %v48 = vld [vmem:[%s0 + $0xd8] sm:$0xff]
  %v49 = vld [vmem:[%s0 + $0xe0] sm:$0xff]
  %v50 = vld [vmem:[%s0 + $0xe8] sm:$0xff]
  %v51 = vld [vmem:[%s0 + $0xf0] sm:$0xff]
  %v52 = vld [vmem:[%s0 + $0xf8] sm:$0xff]
  %v53 = vld [vmem:[%s0 + $0x100] sm:$0xff]
  %v54 = vld [vmem:[%s0 + $0x108] sm:$0xff]
  %v55 = vld [vmem:[%s0 + $0x110] sm:$0xff]
  %v56 = vld [vmem:[%s0 + $0x118] sm:$0xff]
  %v57 = vld [vmem:[%s0 + $0x120] sm:$0xff]
  %v58 = vld [vmem:[%s0 + $0x128] sm:$0xff]
  %v59 = vld [vmem:[%s0 + $0x130] sm:$0xff]
  %v60 = vld [vmem:[%s0 + $0x138] sm:$0xff]
  %v61 = vld [vmem:[%s0 + $0x140] sm:$0xff]
  %v62 = vld [vmem:[%s0 + $0x148] sm:$0xff]
  %v63 = vld [vmem:[%s0 + $0x150] sm:$0xff]
  %v64 = vld [vmem:[%s0 + $0x158] sm:$0xff]
  %v65 = vld [vmem:[%s0 + $0x160] sm:$0xff]
  %v66 = vld [vmem:[%s0 + $0x168] sm:$0xff]
  %v67 = vld [vmem:[%s0 + $0x170] sm:$0xff]
  %v68 = vld [vmem:[%s0 + $0x178] sm:$0xff]
  %v69 = vld [vmem:[%s0 + $0x180] sm:$0xff]
  %v70 = vld [vmem:[%s0 + $0x188] sm:$0xff]
  %v71 = vld [vmem:[%s0 + $0x190] sm:$0xff]
  %v72 = vld [vmem:[%s0 + $0x198] sm:$0xff]
  %v73 = vld [vmem:[%s0 + $0x1a0] sm:$0xff]
  %v74 = vld [vmem:[%s0 + $0x1a8] sm:$0xff]
  %v75 = vld [vmem:[%s0 + $0x1b0] sm:$0xff]
  %v76 = vld [vmem:[%s0 + $0x1b8] sm:$0xff]
  %v77 = vld [vmem:[%s0 + $0x1c0] sm:$0xff]
  %v78 = vld [vmem:[%s0 + $0x1c8] sm:$0xff]
  %v79 = vld [vmem:[%s0 + $0x1d0] sm:$0xff]
  %v80 = vld [vmem:[%s0 + $0x1d8] sm:$0xff]
  %v81 = vld [vmem:[%s0 + $0x1e0] sm:$0xff]
  %v82 = vld [vmem:[%s0 + $0x1e8] sm:$0xff]
  %v83 = vld [vmem:[%s0 + $0x1f0] sm:$0xff]
  %v84 = vld [vmem:[%s0 + $0x1f8] sm:$0xff]
  %v85 = vld [vmem:[%s1] sm:$0xf]
  %v86 = vld [vmem:[%s1 + $0x4] sm:$0xf]
  %v87 = vld [vmem:[%s1 + $0x8] sm:$0xf]
  %v88 = vld [vmem:[%s1 + $0xc] sm:$0xf]
  %v89 = vld [vmem:[%s1 + $0x10] sm:$0xf]
  %v90 = vld [vmem:[%s1 + $0x14] sm:$0xf]
  %v91 = vld [vmem:[%s1 + $0x18] sm:$0xf]
  %v92 = vld [vmem:[%s1 + $0x1c] sm:$0xf]
  %v93 = vld [vmem:[%s1 + $0x20] sm:$0xf]
  %v94 = vld [vmem:[%s1 + $0x24] sm:$0xf]
  %v95 = vld [vmem:[%s1 + $0x28] sm:$0xf]
  %v96 = vld [vmem:[%s1 + $0x2c] sm:$0xf]
  %v97 = vld [vmem:[%s1 + $0x30] sm:$0xf]
  %v98 = vld [vmem:[%s1 + $0x34] sm:$0xf]
  %v99 = vld [vmem:[%s1 + $0x38] sm:$0xf]
  %v100 = vld [vmem:[%s1 + $0x3c] sm:$0xf]
  %v101 = vld [vmem:[%s1 + $0x40] sm:$0xf]
  %v102 = vld [vmem:[%s1 + $0x44] sm:$0xf]
  %v103 = vld [vmem:[%s1 + $0x48] sm:$0x3]
  %v168 = vunpack.c.l.b16 %v21
  %v169 = vunpack.c.h.b16 %v21
  %v170 = vunpack.c.l.b16 %v22
  %v171 = vunpack.c.h.b16 %v22
  %v172 = vunpack.c.l.b16 %v23
  %v173 = vunpack.c.h.b16 %v23
  %v174 = vunpack.c.l.b16 %v24
  %v175 = vunpack.c.h.b16 %v24
  %v176 = vunpack.c.l.b16 %v25
  %v177 = vunpack.c.h.b16 %v25
  %v178 = vunpack.c.l.b16 %v26
  %v179 = vunpack.c.h.b16 %v26
  %v180 = vunpack.c.l.b16 %v27
  %v181 = vunpack.c.h.b16 %v27
  %v182 = vunpack.c.l.b16 %v28
  %v183 = vunpack.c.h.b16 %v28
  %v184 = vunpack.c.l.b16 %v29
  %v185 = vunpack.c.h.b16 %v29
  %v186 = vunpack.c.l.b16 %v30
  %v187 = vunpack.c.h.b16 %v30
  %v188 = vunpack.c.l.b16 %v31
  %v189 = vunpack.c.h.b16 %v31
  %v190 = vunpack.c.l.b16 %v32
  %v191 = vunpack.c.h.b16 %v32
  %v192 = vunpack.c.l.b16 %v33
  %v193 = vunpack.c.h.b16 %v33
  %v194 = vunpack.c.l.b16 %v34
  %v195 = vunpack.c.h.b16 %v34
  %v196 = vunpack.c.l.b16 %v35
  %v197 = vunpack.c.h.b16 %v35
  %v198 = vunpack.c.l.b16 %v36
  %v199 = vunpack.c.h.b16 %v36
  %v200 = vunpack.c.l.b16 %v37
  %v201 = vunpack.c.h.b16 %v37
  %v202 = vunpack.c.l.b16 %v38
  %v203 = vunpack.c.h.b16 %v38
  %v204 = vunpack.c.l.b16 %v39
  %v205 = vunpack.c.h.b16 %v39
  %v206 = vunpack.c.l.b16 %v40
  %v207 = vunpack.c.h.b16 %v40
  %v208 = vunpack.c.l.b16 %v41
  %v209 = vunpack.c.h.b16 %v41
  %v210 = vunpack.c.l.b16 %v42
  %v211 = vunpack.c.h.b16 %v42
  %v212 = vunpack.c.l.b16 %v43
  %v213 = vunpack.c.h.b16 %v43
  %v214 = vunpack.c.l.b16 %v44
  %v215 = vunpack.c.h.b16 %v44
  %v216 = vunpack.c.l.b16 %v45
  %v217 = vunpack.c.h.b16 %v45
  %v218 = vunpack.c.l.b16 %v46
  %v219 = vunpack.c.h.b16 %v46
  %v220 = vunpack.c.l.b16 %v47
  %v221 = vunpack.c.h.b16 %v47
  %v222 = vunpack.c.l.b16 %v48
  %v223 = vunpack.c.h.b16 %v48
  %v224 = vunpack.c.l.b16 %v49
  %v225 = vunpack.c.h.b16 %v49
  %v226 = vunpack.c.l.b16 %v50
  %v227 = vunpack.c.h.b16 %v50
  %v228 = vunpack.c.l.b16 %v51
  %v229 = vunpack.c.h.b16 %v51
  %v230 = vunpack.c.l.b16 %v52
  %v231 = vunpack.c.h.b16 %v52
  %v232 = vunpack.c.l.b16 %v53
  %v233 = vunpack.c.h.b16 %v53
  %v234 = vunpack.c.l.b16 %v54
  %v235 = vunpack.c.h.b16 %v54
  %v236 = vunpack.c.l.b16 %v55
  %v237 = vunpack.c.h.b16 %v55
  %v238 = vunpack.c.l.b16 %v56
  %v239 = vunpack.c.h.b16 %v56
  %v240 = vunpack.c.l.b16 %v57
  %v241 = vunpack.c.h.b16 %v57
  %v242 = vunpack.c.l.b16 %v58
  %v243 = vunpack.c.h.b16 %v58
  %v244 = vunpack.c.l.b16 %v59
  %v245 = vunpack.c.h.b16 %v59
  %v246 = vunpack.c.l.b16 %v60
  %v247 = vunpack.c.h.b16 %v60
  %v248 = vunpack.c.l.b16 %v61
  %v249 = vunpack.c.h.b16 %v61
  %v250 = vunpack.c.l.b16 %v62
  %v251 = vunpack.c.h.b16 %v62
  %v252 = vunpack.c.l.b16 %v63
  %v253 = vunpack.c.h.b16 %v63
  %v254 = vunpack.c.l.b16 %v64
  %v255 = vunpack.c.h.b16 %v64
  %v256 = vunpack.c.l.b16 %v65
  %v257 = vunpack.c.h.b16 %v65
  %v258 = vunpack.c.l.b16 %v66
  %v259 = vunpack.c.h.b16 %v66
  %v260 = vunpack.c.l.b16 %v67
  %v261 = vunpack.c.h.b16 %v67
  %v262 = vunpack.c.l.b16 %v68
  %v263 = vunpack.c.h.b16 %v68
  %v264 = vunpack.c.l.b16 %v69
  %v265 = vunpack.c.h.b16 %v69
  %v266 = vunpack.c.l.b16 %v70
  %v267 = vunpack.c.h.b16 %v70
  %v268 = vunpack.c.l.b16 %v71
  %v269 = vunpack.c.h.b16 %v71
  %v270 = vunpack.c.l.b16 %v72
  %v271 = vunpack.c.h.b16 %v72
  %v272 = vunpack.c.l.b16 %v73
  %v273 = vunpack.c.h.b16 %v73
  %v274 = vunpack.c.l.b16 %v74
  %v275 = vunpack.c.h.b16 %v74
  %v276 = vunpack.c.l.b16 %v75
  %v277 = vunpack.c.h.b16 %v75
  %v278 = vunpack.c.l.b16 %v76
  %v279 = vunpack.c.h.b16 %v76
  %v280 = vunpack.c.l.b16 %v77
  %v281 = vunpack.c.h.b16 %v77
  %v282 = vunpack.c.l.b16 %v78
  %v283 = vunpack.c.h.b16 %v78
  %v284 = vunpack.c.l.b16 %v79
  %v285 = vunpack.c.h.b16 %v79
  %v286 = vunpack.c.l.b16 %v80
  %v287 = vunpack.c.h.b16 %v80
  %v288 = vunpack.c.l.b16 %v81
  %v289 = vunpack.c.h.b16 %v81
  %v290 = vunpack.c.l.b16 %v82
  %v291 = vunpack.c.h.b16 %v82
  %v292 = vunpack.c.l.b16 %v83
  %v293 = vunpack.c.h.b16 %v83
  %v294 = vunpack.c.l.b16 %v84
  %v295 = vunpack.c.h.b16 %v84
  %v296 = vpack.c.b16 %v170, %v168
  %v297 = vpack.c.b16 %v171, %v169
  %v298 = vpack.c.b16 %v174, %v172
  %v299 = vpack.c.b16 %v175, %v173
  %v300 = vpack.c.b16 %v178, %v176
  %v301 = vpack.c.b16 %v179, %v177
  %v302 = vpack.c.b16 %v182, %v180
  %v303 = vpack.c.b16 %v183, %v181
  %v304 = vpack.c.b16 %v186, %v184
  %v305 = vpack.c.b16 %v187, %v185
  %v306 = vpack.c.b16 %v190, %v188
  %v307 = vpack.c.b16 %v191, %v189
  %v308 = vpack.c.b16 %v194, %v192
  %v309 = vpack.c.b16 %v195, %v193
  %v310 = vpack.c.b16 %v198, %v196
  %v311 = vpack.c.b16 %v199, %v197
  %v312 = vpack.c.b16 %v202, %v200
  %v313 = vpack.c.b16 %v203, %v201
  %v314 = vpack.c.b16 %v206, %v204
  %v315 = vpack.c.b16 %v207, %v205
  %v316 = vpack.c.b16 %v210, %v208
  %v317 = vpack.c.b16 %v211, %v209
  %v318 = vpack.c.b16 %v214, %v212
  %v319 = vpack.c.b16 %v215, %v213
  %v320 = vpack.c.b16 %v218, %v216
  %v321 = vpack.c.b16 %v219, %v217
  %v322 = vpack.c.b16 %v222, %v220
  %v323 = vpack.c.b16 %v223, %v221
  %v324 = vpack.c.b16 %v226, %v224
  %v325 = vpack.c.b16 %v227, %v225
  %v326 = vpack.c.b16 %v230, %v228
  %v327 = vpack.c.b16 %v231, %v229
  %v328 = vpack.c.b16 %v234, %v232
  %v329 = vpack.c.b16 %v235, %v233
  %v330 = vpack.c.b16 %v238, %v236
  %v331 = vpack.c.b16 %v239, %v237
  %v332 = vpack.c.b16 %v242, %v240
  %v333 = vpack.c.b16 %v243, %v241
  %v334 = vpack.c.b16 %v246, %v244
  %v335 = vpack.c.b16 %v247, %v245
  %v336 = vpack.c.b16 %v250, %v248
  %v337 = vpack.c.b16 %v251, %v249
  %v338 = vpack.c.b16 %v254, %v252
  %v339 = vpack.c.b16 %v255, %v253
  %v340 = vpack.c.b16 %v258, %v256
  %v341 = vpack.c.b16 %v259, %v257
  %v342 = vpack.c.b16 %v262, %v260
  %v343 = vpack.c.b16 %v263, %v261
  %v344 = vpack.c.b16 %v266, %v264
  %v345 = vpack.c.b16 %v267, %v265
  %v346 = vpack.c.b16 %v270, %v268
  %v347 = vpack.c.b16 %v271, %v269
  %v348 = vpack.c.b16 %v274, %v272
  %v349 = vpack.c.b16 %v275, %v273
  %v350 = vpack.c.b16 %v278, %v276
  %v351 = vpack.c.b16 %v279, %v277
  %v352 = vpack.c.b16 %v282, %v280
  %v353 = vpack.c.b16 %v283, %v281
  %v354 = vpack.c.b16 %v286, %v284
  %v355 = vpack.c.b16 %v287, %v285
  %v356 = vpack.c.b16 %v290, %v288
  %v357 = vpack.c.b16 %v291, %v289
  %v358 = vpack.c.b16 %v294, %v292
  %v359 = vpack.c.b16 %v295, %v293
  %v411 = vunpack.c.l.b16 %v85
  %v412 = vunpack.c.l.b16 %v86
  %v413 = vunpack.c.l.b16 %v87
  %v414 = vunpack.c.l.b16 %v88
  %v415 = vunpack.c.l.b16 %v89
  %v416 = vunpack.c.l.b16 %v90
  %v417 = vunpack.c.l.b16 %v91
  %v418 = vunpack.c.l.b16 %v92
  %v419 = vunpack.c.l.b16 %v93
  %v420 = vunpack.c.l.b16 %v94
  %v421 = vunpack.c.l.b16 %v95
  %v422 = vunpack.c.l.b16 %v96
  %v423 = vunpack.c.l.b16 %v97
  %v424 = vunpack.c.l.b16 %v98
  %v425 = vunpack.c.l.b16 %v99
  %v426 = vunpack.c.l.b16 %v100
  %v427 = vunpack.c.l.b16 %v101
  %v428 = vunpack.c.l.b16 %v102
  %v429 = vunpack.c.l.b16 %v103
  %v430 = vpack.c.b16 %v412, %v411
  %v431 = vpack.c.b16 %v414, %v413
  %v432 = vpack.c.b16 %v416, %v415
  %v433 = vpack.c.b16 %v418, %v417
  %v434 = vpack.c.b16 %v420, %v419
  %v435 = vpack.c.b16 %v422, %v421
  %v436 = vpack.c.b16 %v424, %v423
  %v437 = vpack.c.b16 %v426, %v425
  %v438 = vpack.c.b16 %v428, %v427
  %v439 = vpack.c.b16 %v429, %v429
  %vm449 = vcmask 154624
  %v451 = vsel %vm449, %v297, 0
  %v454 = vsel %vm449, %v299, 0
  %v457 = vsel %vm449, %v301, 0
  %v460 = vsel %vm449, %v303, 0
  %v463 = vsel %vm449, %v305, 0
  %v466 = vsel %vm449, %v307, 0
  %v469 = vsel %vm449, %v309, 0
  %v472 = vsel %vm449, %v311, 0
  %v475 = vsel %vm449, %v313, 0
  %v478 = vsel %vm449, %v315, 0
  %v481 = vsel %vm449, %v317, 0
  %v484 = vsel %vm449, %v319, 0
  %v487 = vsel %vm449, %v321, 0
  %v490 = vsel %vm449, %v323, 0
  %v493 = vsel %vm449, %v325, 0
  %v496 = vsel %vm449, %v327, 0
  %v499 = vsel %vm449, %v329, 0
  %v502 = vsel %vm449, %v331, 0
  %v505 = vsel %vm449, %v333, 0
  %v508 = vsel %vm449, %v335, 0
  %v511 = vsel %vm449, %v337, 0
  %v514 = vsel %vm449, %v339, 0
  %v517 = vsel %vm449, %v341, 0
  %v520 = vsel %vm449, %v343, 0
  %v523 = vsel %vm449, %v345, 0
  %v526 = vsel %vm449, %v347, 0
  %v529 = vsel %vm449, %v349, 0
  %v532 = vsel %vm449, %v351, 0
  %v535 = vsel %vm449, %v353, 0
  %v538 = vsel %vm449, %v355, 0
  %v541 = vsel %vm449, %v357, 0
  %v544 = vsel %vm449, %v359, 0
  %vm546 = vcmask 1040384
  %vm547 = vcmask 1041408
  %v548 = vsel %vm546, 4294967295, 65535
  %v549 = vsel %vm547, %v548, 0
  %v551 = vand.u32 %v439, %v549
  %553 = vmatpush.bf16.msra.mxu0 %v437
  %554 = vmatpush.bf16.msra.mxu0 %v436
  %555 = vmatpush.bf16.msra.mxu0 %v435
  %556 = vmatpush.bf16.msra.mxu0 %v434
  %557 = vmatpush.bf16.msra.mxu0 %v433
  %558 = vmatpush.bf16.msra.mxu0 %v432
  %559 = vmatpush.bf16.msra.mxu0 %v431
  %560 = vmatpush.bf16.msra.mxu0 %v430
  %561 = vmatmul.bf16.gmra.mxu0 %v296
  %v562 = vpop.f32.mrf.mxu0
  %v563 = vadd.f32 0.0, %v562
  %v564 = vpop.f32.mrf.mxu0
  %v565 = vadd.f32 0.0, %v564
  %566 = vmatmul.bf16.gmra.mxu0 %v298
  %v567 = vpop.f32.mrf.mxu0
  %v568 = vadd.f32 0.0, %v567
  %v569 = vpop.f32.mrf.mxu0
  %v570 = vadd.f32 0.0, %v569
  %571 = vmatmul.bf16.gmra.mxu0 %v300
  %v572 = vpop.f32.mrf.mxu0
  %v573 = vadd.f32 0.0, %v572
  %v574 = vpop.f32.mrf.mxu0
  %v575 = vadd.f32 0.0, %v574
  %576 = vmatmul.bf16.gmra.mxu0 %v302
  %v577 = vpop.f32.mrf.mxu0
  %v578 = vadd.f32 0.0, %v577
  %v579 = vpop.f32.mrf.mxu0
  %v580 = vadd.f32 0.0, %v579
  %581 = vmatmul.bf16.gmra.mxu0 %v304
  %v582 = vpop.f32.mrf.mxu0
  %v583 = vadd.f32 0.0, %v582
  %v584 = vpop.f32.mrf.mxu0
  %v585 = vadd.f32 0.0, %v584
  %586 = vmatmul.bf16.gmra.mxu0 %v306
  %v587 = vpop.f32.mrf.mxu0
  %v588 = vadd.f32 0.0, %v587
  %v589 = vpop.f32.mrf.mxu0
  %v590 = vadd.f32 0.0, %v589
  %591 = vmatmul.bf16.gmra.mxu0 %v308
  %v592 = vpop.f32.mrf.mxu0
  %v593 = vadd.f32 0.0, %v592
  %v594 = vpop.f32.mrf.mxu0
  %v595 = vadd.f32 0.0, %v594
  %596 = vmatmul.bf16.gmra.mxu0 %v310
  %v597 = vpop.f32.mrf.mxu0
  %v598 = vadd.f32 0.0, %v597
  %v599 = vpop.f32.mrf.mxu0
  %v600 = vadd.f32 0.0, %v599
  %601 = vmatmul.bf16.gmra.mxu0 %v312
  %v602 = vpop.f32.mrf.mxu0
  %v603 = vadd.f32 0.0, %v602
  %v604 = vpop.f32.mrf.mxu0
  %v605 = vadd.f32 0.0, %v604
  %606 = vmatmul.bf16.gmra.mxu0 %v314
  %v607 = vpop.f32.mrf.mxu0
  %v608 = vadd.f32 0.0, %v607
  %v609 = vpop.f32.mrf.mxu0
  %v610 = vadd.f32 0.0, %v609
  %611 = vmatmul.bf16.gmra.mxu0 %v316
  %v612 = vpop.f32.mrf.mxu0
  %v613 = vadd.f32 0.0, %v612
  %v614 = vpop.f32.mrf.mxu0
  %v615 = vadd.f32 0.0, %v614
  %616 = vmatmul.bf16.gmra.mxu0 %v318
  %v617 = vpop.f32.mrf.mxu0
  %v618 = vadd.f32 0.0, %v617
  %v619 = vpop.f32.mrf.mxu0
  %v620 = vadd.f32 0.0, %v619
  %621 = vmatmul.bf16.gmra.mxu0 %v320
  %v622 = vpop.f32.mrf.mxu0
  %v623 = vadd.f32 0.0, %v622
  %v624 = vpop.f32.mrf.mxu0
  %v625 = vadd.f32 0.0, %v624
  %626 = vmatmul.bf16.gmra.mxu0 %v322
  %v627 = vpop.f32.mrf.mxu0
  %v628 = vadd.f32 0.0, %v627
  %v629 = vpop.f32.mrf.mxu0
  %v630 = vadd.f32 0.0, %v629
  %631 = vmatmul.bf16.gmra.mxu0 %v324
  %v632 = vpop.f32.mrf.mxu0
  %v633 = vadd.f32 0.0, %v632
  %v634 = vpop.f32.mrf.mxu0
  %v635 = vadd.f32 0.0, %v634
  %636 = vmatmul.bf16.gmra.mxu0 %v326
  %v637 = vpop.f32.mrf.mxu0
  %v638 = vadd.f32 0.0, %v637
  %v639 = vpop.f32.mrf.mxu0
  %v640 = vadd.f32 0.0, %v639
  %641 = vmatmul.bf16.gmra.mxu0 %v328
  %v642 = vpop.f32.mrf.mxu0
  %v643 = vadd.f32 0.0, %v642
  %v644 = vpop.f32.mrf.mxu0
  %v645 = vadd.f32 0.0, %v644
  %646 = vmatmul.bf16.gmra.mxu0 %v330
  %v647 = vpop.f32.mrf.mxu0
  %v648 = vadd.f32 0.0, %v647
  %v649 = vpop.f32.mrf.mxu0
  %v650 = vadd.f32 0.0, %v649
  %651 = vmatmul.bf16.gmra.mxu0 %v332
  %v652 = vpop.f32.mrf.mxu0
  %v653 = vadd.f32 0.0, %v652
  %v654 = vpop.f32.mrf.mxu0
  %v655 = vadd.f32 0.0, %v654
  %656 = vmatmul.bf16.gmra.mxu0 %v334
  %v657 = vpop.f32.mrf.mxu0
  %v658 = vadd.f32 0.0, %v657
  %v659 = vpop.f32.mrf.mxu0
  %v660 = vadd.f32 0.0, %v659
  %661 = vmatmul.bf16.gmra.mxu0 %v336
  %v662 = vpop.f32.mrf.mxu0
  %v663 = vadd.f32 0.0, %v662
  %v664 = vpop.f32.mrf.mxu0
  %v665 = vadd.f32 0.0, %v664
  %666 = vmatmul.bf16.gmra.mxu0 %v338
  %v667 = vpop.f32.mrf.mxu0
  %v668 = vadd.f32 0.0, %v667
  %v669 = vpop.f32.mrf.mxu0
  %v670 = vadd.f32 0.0, %v669
  %671 = vmatmul.bf16.gmra.mxu0 %v340
  %v672 = vpop.f32.mrf.mxu0
  %v673 = vadd.f32 0.0, %v672
  %v674 = vpop.f32.mrf.mxu0
  %v675 = vadd.f32 0.0, %v674
  %676 = vmatmul.bf16.gmra.mxu0 %v342
  %v677 = vpop.f32.mrf.mxu0
  %v678 = vadd.f32 0.0, %v677
  %v679 = vpop.f32.mrf.mxu0
  %v680 = vadd.f32 0.0, %v679
  %681 = vmatmul.bf16.gmra.mxu0 %v344
  %v682 = vpop.f32.mrf.mxu0
  %v683 = vadd.f32 0.0, %v682
  %v684 = vpop.f32.mrf.mxu0
  %v685 = vadd.f32 0.0, %v684
  %686 = vmatmul.bf16.gmra.mxu0 %v346
  %v687 = vpop.f32.mrf.mxu0
  %v688 = vadd.f32 0.0, %v687
  %v689 = vpop.f32.mrf.mxu0
  %v690 = vadd.f32 0.0, %v689
  %691 = vmatmul.bf16.gmra.mxu0 %v348
  %v692 = vpop.f32.mrf.mxu0
  %v693 = vadd.f32 0.0, %v692
  %v694 = vpop.f32.mrf.mxu0
  %v695 = vadd.f32 0.0, %v694
  %696 = vmatmul.bf16.gmra.mxu0 %v350
  %v697 = vpop.f32.mrf.mxu0
  %v698 = vadd.f32 0.0, %v697
  %v699 = vpop.f32.mrf.mxu0
  %v700 = vadd.f32 0.0, %v699
  %701 = vmatmul.bf16.gmra.mxu0 %v352
  %v702 = vpop.f32.mrf.mxu0
  %v703 = vadd.f32 0.0, %v702
  %v704 = vpop.f32.mrf.mxu0
  %v705 = vadd.f32 0.0, %v704
  %706 = vmatmul.bf16.gmra.mxu0 %v354
  %v707 = vpop.f32.mrf.mxu0
  %v708 = vadd.f32 0.0, %v707
  %v709 = vpop.f32.mrf.mxu0
  %v710 = vadd.f32 0.0, %v709
  %711 = vmatmul.bf16.gmra.mxu0 %v356
  %v712 = vpop.f32.mrf.mxu0
  %v713 = vadd.f32 0.0, %v712
  %v714 = vpop.f32.mrf.mxu0
  %v715 = vadd.f32 0.0, %v714
  %716 = vmatmul.bf16.gmra.mxu0 %v358
  %v717 = vpop.f32.mrf.mxu0
  %v718 = vadd.f32 0.0, %v717
  %v719 = vpop.f32.mrf.mxu0
  %v720 = vadd.f32 0.0, %v719
  %721 = vdwg.mxu0
  %722 = vmatpush.bf16.msra.mxu0 0
  %723 = vmatpush.bf16.msra.mxu0 0
  %724 = vmatpush.bf16.msra.mxu0 0
  %725 = vmatpush.bf16.msra.mxu0 0
  %726 = vmatpush.bf16.msra.mxu0 0
  %727 = vmatpush.bf16.msra.mxu0 0
  %728 = vmatpush.bf16.msra.mxu0 %v551
  %729 = vmatpush.bf16.msra.mxu0 %v438
  %730 = vmatmul.bf16.gmra.mxu0 %v451
  %v731 = vpop.f32.mrf.mxu0
  %v732 = vadd.f32 %v563, %v731
  %v733 = vpop.f32.mrf.mxu0
  %v734 = vadd.f32 %v565, %v733
  %735 = vmatmul.bf16.gmra.mxu0 %v454
  %v736 = vpop.f32.mrf.mxu0
  %v737 = vadd.f32 %v568, %v736
  %v738 = vpop.f32.mrf.mxu0
  %v739 = vadd.f32 %v570, %v738
  %740 = vmatmul.bf16.gmra.mxu0 %v457
  %v741 = vpop.f32.mrf.mxu0
  %v742 = vadd.f32 %v573, %v741
  %v743 = vpop.f32.mrf.mxu0
  %v744 = vadd.f32 %v575, %v743
  %745 = vmatmul.bf16.gmra.mxu0 %v460
  %v746 = vpop.f32.mrf.mxu0
  %v747 = vadd.f32 %v578, %v746
  %v748 = vpop.f32.mrf.mxu0
  %v749 = vadd.f32 %v580, %v748
  %750 = vmatmul.bf16.gmra.mxu0 %v463
  %v751 = vpop.f32.mrf.mxu0
  %v752 = vadd.f32 %v583, %v751
  %v753 = vpop.f32.mrf.mxu0
  %v754 = vadd.f32 %v585, %v753
  %755 = vmatmul.bf16.gmra.mxu0 %v466
  %v756 = vpop.f32.mrf.mxu0
  %v757 = vadd.f32 %v588, %v756
  %v758 = vpop.f32.mrf.mxu0
  %v759 = vadd.f32 %v590, %v758
  %760 = vmatmul.bf16.gmra.mxu0 %v469
  %v761 = vpop.f32.mrf.mxu0
  %v762 = vadd.f32 %v593, %v761
  %v763 = vpop.f32.mrf.mxu0
  %v764 = vadd.f32 %v595, %v763
  %765 = vmatmul.bf16.gmra.mxu0 %v472
  %v766 = vpop.f32.mrf.mxu0
  %v767 = vadd.f32 %v598, %v766
  %v768 = vpop.f32.mrf.mxu0
  %v769 = vadd.f32 %v600, %v768
  %770 = vmatmul.bf16.gmra.mxu0 %v475
  %v771 = vpop.f32.mrf.mxu0
  %v772 = vadd.f32 %v603, %v771
  %v773 = vpop.f32.mrf.mxu0
  %v774 = vadd.f32 %v605, %v773
  %775 = vmatmul.bf16.gmra.mxu0 %v478
  %v776 = vpop.f32.mrf.mxu0
  %v777 = vadd.f32 %v608, %v776
  %v778 = vpop.f32.mrf.mxu0
  %v779 = vadd.f32 %v610, %v778
  %780 = vmatmul.bf16.gmra.mxu0 %v481
  %v781 = vpop.f32.mrf.mxu0
  %v782 = vadd.f32 %v613, %v781
  %v783 = vpop.f32.mrf.mxu0
  %v784 = vadd.f32 %v615, %v783
  %785 = vmatmul.bf16.gmra.mxu0 %v484
  %v786 = vpop.f32.mrf.mxu0
  %v787 = vadd.f32 %v618, %v786
  %v788 = vpop.f32.mrf.mxu0
  %v789 = vadd.f32 %v620, %v788
  %790 = vmatmul.bf16.gmra.mxu0 %v487
  %v791 = vpop.f32.mrf.mxu0
  %v792 = vadd.f32 %v623, %v791
  %v793 = vpop.f32.mrf.mxu0
  %v794 = vadd.f32 %v625, %v793
  %795 = vmatmul.bf16.gmra.mxu0 %v490
  %v796 = vpop.f32.mrf.mxu0
  %v797 = vadd.f32 %v628, %v796
  %v798 = vpop.f32.mrf.mxu0
  %v799 = vadd.f32 %v630, %v798
  %800 = vmatmul.bf16.gmra.mxu0 %v493
  %v801 = vpop.f32.mrf.mxu0
  %v802 = vadd.f32 %v633, %v801
  %v803 = vpop.f32.mrf.mxu0
  %v804 = vadd.f32 %v635, %v803
  %805 = vmatmul.bf16.gmra.mxu0 %v496
  %v806 = vpop.f32.mrf.mxu0
  %v807 = vadd.f32 %v638, %v806
  %v808 = vpop.f32.mrf.mxu0
  %v809 = vadd.f32 %v640, %v808
  %810 = vmatmul.bf16.gmra.mxu0 %v499
  %v811 = vpop.f32.mrf.mxu0
  %v812 = vadd.f32 %v643, %v811
  %v813 = vpop.f32.mrf.mxu0
  %v814 = vadd.f32 %v645, %v813
  %815 = vmatmul.bf16.gmra.mxu0 %v502
  %v816 = vpop.f32.mrf.mxu0
  %v817 = vadd.f32 %v648, %v816
  %v818 = vpop.f32.mrf.mxu0
  %v819 = vadd.f32 %v650, %v818
  %820 = vmatmul.bf16.gmra.mxu0 %v505
  %v821 = vpop.f32.mrf.mxu0
  %v822 = vadd.f32 %v653, %v821
  %v823 = vpop.f32.mrf.mxu0
  %v824 = vadd.f32 %v655, %v823
  %825 = vmatmul.bf16.gmra.mxu0 %v508
  %v826 = vpop.f32.mrf.mxu0
  %v827 = vadd.f32 %v658, %v826
  %v828 = vpop.f32.mrf.mxu0
  %v829 = vadd.f32 %v660, %v828
  %830 = vmatmul.bf16.gmra.mxu0 %v511
  %v831 = vpop.f32.mrf.mxu0
  %v832 = vadd.f32 %v663, %v831
  %v833 = vpop.f32.mrf.mxu0
  %v834 = vadd.f32 %v665, %v833
  %835 = vmatmul.bf16.gmra.mxu0 %v514
  %v836 = vpop.f32.mrf.mxu0
  %v837 = vadd.f32 %v668, %v836
  %v838 = vpop.f32.mrf.mxu0
  %v839 = vadd.f32 %v670, %v838
  %840 = vmatmul.bf16.gmra.mxu0 %v517
  %v841 = vpop.f32.mrf.mxu0
  %v842 = vadd.f32 %v673, %v841
  %v843 = vpop.f32.mrf.mxu0
  %v844 = vadd.f32 %v675, %v843
  %845 = vmatmul.bf16.gmra.mxu0 %v520
  %v846 = vpop.f32.mrf.mxu0
  %v847 = vadd.f32 %v678, %v846
  %v848 = vpop.f32.mrf.mxu0
  %v849 = vadd.f32 %v680, %v848
  %850 = vmatmul.bf16.gmra.mxu0 %v523
  %v851 = vpop.f32.mrf.mxu0
  %v852 = vadd.f32 %v683, %v851
  %v853 = vpop.f32.mrf.mxu0
  %v854 = vadd.f32 %v685, %v853
  %855 = vmatmul.bf16.gmra.mxu0 %v526
  %v856 = vpop.f32.mrf.mxu0
  %v857 = vadd.f32 %v688, %v856
  %v858 = vpop.f32.mrf.mxu0
  %v859 = vadd.f32 %v690, %v858
  %860 = vmatmul.bf16.gmra.mxu0 %v529
  %v861 = vpop.f32.mrf.mxu0
  %v862 = vadd.f32 %v693, %v861
  %v863 = vpop.f32.mrf.mxu0
  %v864 = vadd.f32 %v695, %v863
  %865 = vmatmul.bf16.gmra.mxu0 %v532
  %v866 = vpop.f32.mrf.mxu0
  %v867 = vadd.f32 %v698, %v866
  %v868 = vpop.f32.mrf.mxu0
  %v869 = vadd.f32 %v700, %v868
  %870 = vmatmul.bf16.gmra.mxu0 %v535
  %v871 = vpop.f32.mrf.mxu0
  %v872 = vadd.f32 %v703, %v871
  %v873 = vpop.f32.mrf.mxu0
  %v874 = vadd.f32 %v705, %v873
  %875 = vmatmul.bf16.gmra.mxu0 %v538
  %v876 = vpop.f32.mrf.mxu0
  %v877 = vadd.f32 %v708, %v876
  %v878 = vpop.f32.mrf.mxu0
  %v879 = vadd.f32 %v710, %v878
  %880 = vmatmul.bf16.gmra.mxu0 %v541
  %v881 = vpop.f32.mrf.mxu0
  %v882 = vadd.f32 %v713, %v881
  %v883 = vpop.f32.mrf.mxu0
  %v884 = vadd.f32 %v715, %v883
  %885 = vmatmul.bf16.gmra.mxu0 %v544
  %v886 = vpop.f32.mrf.mxu0
  %v887 = vadd.f32 %v718, %v886
  %v888 = vpop.f32.mrf.mxu0
  %v889 = vadd.f32 %v720, %v888
  %890 = vdwg.mxu0
  %v891 = vld [vmem:[%s4] sm:$0x1]
  %v892 = vld [vmem:[%s4 + $0x1] sm:$0x1]
  %vm893 = vcmask 523264
  %v894 = vsel %vm893, %v732, 0.0
  %v895 = vsel %vm893, %v734, 0.0
  %v896 = vadd.f32 %v894, %v895
  %v897 = vsel %vm893, %v737, 0.0
  %v898 = vadd.f32 %v896, %v897
  %v899 = vsel %vm893, %v739, 0.0
  %v900 = vadd.f32 %v898, %v899
  %v901 = vsel %vm893, %v742, 0.0
  %v902 = vadd.f32 %v900, %v901
  %v903 = vsel %vm893, %v744, 0.0
  %v904 = vadd.f32 %v902, %v903
  %v905 = vsel %vm893, %v747, 0.0
  %v906 = vadd.f32 %v904, %v905
  %v907 = vsel %vm893, %v749, 0.0
  %v908 = vadd.f32 %v906, %v907
  %v909 = vsel %vm893, %v752, 0.0
  %v910 = vadd.f32 %v908, %v909
  %v911 = vsel %vm893, %v754, 0.0
  %v912 = vadd.f32 %v910, %v911
  %v913 = vsel %vm893, %v757, 0.0
  %v914 = vadd.f32 %v912, %v913
  %v915 = vsel %vm893, %v759, 0.0
  %v916 = vadd.f32 %v914, %v915
  %v917 = vsel %vm893, %v762, 0.0
  %v918 = vadd.f32 %v916, %v917
  %v919 = vsel %vm893, %v764, 0.0
  %v920 = vadd.f32 %v918, %v919
  %v921 = vsel %vm893, %v767, 0.0
  %v922 = vadd.f32 %v920, %v921
  %v923 = vsel %vm893, %v769, 0.0
  %v924 = vadd.f32 %v922, %v923
  %v925 = vsel %vm893, %v772, 0.0
  %v926 = vadd.f32 %v924, %v925
  %v927 = vsel %vm893, %v774, 0.0
  %v928 = vadd.f32 %v926, %v927
  %v929 = vsel %vm893, %v777, 0.0
  %v930 = vadd.f32 %v928, %v929
  %v931 = vsel %vm893, %v779, 0.0
  %v932 = vadd.f32 %v930, %v931
  %v933 = vsel %vm893, %v782, 0.0
  %v934 = vadd.f32 %v932, %v933
  %v935 = vsel %vm893, %v784, 0.0
  %v936 = vadd.f32 %v934, %v935
  %v937 = vsel %vm893, %v787, 0.0
  %v938 = vadd.f32 %v936, %v937
  %v939 = vsel %vm893, %v789, 0.0
  %v940 = vadd.f32 %v938, %v939
  %v941 = vsel %vm893, %v792, 0.0
  %v942 = vadd.f32 %v940, %v941
  %v943 = vsel %vm893, %v794, 0.0
  %v944 = vadd.f32 %v942, %v943
  %v945 = vsel %vm893, %v797, 0.0
  %v946 = vadd.f32 %v944, %v945
  %v947 = vsel %vm893, %v799, 0.0
  %v948 = vadd.f32 %v946, %v947
  %v949 = vsel %vm893, %v802, 0.0
  %v950 = vadd.f32 %v948, %v949
  %v951 = vsel %vm893, %v804, 0.0
  %v952 = vadd.f32 %v950, %v951
  %v953 = vsel %vm893, %v807, 0.0
  %v954 = vadd.f32 %v952, %v953
  %v955 = vsel %vm893, %v809, 0.0
  %v956 = vadd.f32 %v954, %v955
  %v957 = vsel %vm893, %v812, 0.0
  %v958 = vadd.f32 %v956, %v957
  %v959 = vsel %vm893, %v814, 0.0
  %v960 = vadd.f32 %v958, %v959
  %v961 = vsel %vm893, %v817, 0.0
  %v962 = vadd.f32 %v960, %v961
  %v963 = vsel %vm893, %v819, 0.0
  %v964 = vadd.f32 %v962, %v963
  %v965 = vsel %vm893, %v822, 0.0
  %v966 = vadd.f32 %v964, %v965
  %v967 = vsel %vm893, %v824, 0.0
  %v968 = vadd.f32 %v966, %v967
  %v969 = vsel %vm893, %v827, 0.0
  %v970 = vadd.f32 %v968, %v969
  %v971 = vsel %vm893, %v829, 0.0
  %v972 = vadd.f32 %v970, %v971
  %v973 = vsel %vm893, %v832, 0.0
  %v974 = vadd.f32 %v972, %v973
  %v975 = vsel %vm893, %v834, 0.0
  %v976 = vadd.f32 %v974, %v975
  %v977 = vsel %vm893, %v837, 0.0
  %v978 = vadd.f32 %v976, %v977
  %v979 = vsel %vm893, %v839, 0.0
  %v980 = vadd.f32 %v978, %v979
  %v981 = vsel %vm893, %v842, 0.0
  %v982 = vadd.f32 %v980, %v981
  %v983 = vsel %vm893, %v844, 0.0
  %v984 = vadd.f32 %v982, %v983
  %v985 = vsel %vm893, %v847, 0.0
  %v986 = vadd.f32 %v984, %v985
  %v987 = vsel %vm893, %v849, 0.0
  %v988 = vadd.f32 %v986, %v987
  %v989 = vsel %vm893, %v852, 0.0
  %v990 = vadd.f32 %v988, %v989
  %v991 = vsel %vm893, %v854, 0.0
  %v992 = vadd.f32 %v990, %v991
  %v993 = vsel %vm893, %v857, 0.0
  %v994 = vadd.f32 %v992, %v993
  %v995 = vsel %vm893, %v859, 0.0
  %v996 = vadd.f32 %v994, %v995
  %v997 = vsel %vm893, %v862, 0.0
  %v998 = vadd.f32 %v996, %v997
  %v999 = vsel %vm893, %v864, 0.0
  %v1000 = vadd.f32 %v998, %v999
  %v1001 = vsel %vm893, %v867, 0.0
  %v1002 = vadd.f32 %v1000, %v1001
  %v1003 = vsel %vm893, %v869, 0.0
  %v1004 = vadd.f32 %v1002, %v1003
  %v1005 = vsel %vm893, %v872, 0.0
  %v1006 = vadd.f32 %v1004, %v1005
  %v1007 = vsel %vm893, %v874, 0.0
  %v1008 = vadd.f32 %v1006, %v1007
  %v1009 = vsel %vm893, %v877, 0.0
  %v1010 = vadd.f32 %v1008, %v1009
  %v1011 = vsel %vm893, %v879, 0.0
  %v1012 = vadd.f32 %v1010, %v1011
  %v1013 = vsel %vm893, %v882, 0.0
  %v1014 = vadd.f32 %v1012, %v1013
  %v1015 = vsel %vm893, %v884, 0.0
  %v1016 = vadd.f32 %v1014, %v1015
  %v1017 = vsel %vm893, %v887, 0.0
  %v1018 = vadd.f32 %v1016, %v1017
  %v1019 = vsel %vm893, %v889, 0.0
  %v1020 = vadd.f32 %v1018, %v1019
  %v1021 = vrot.slane %v1020, 4
  %v1022 = vadd.f32 %v1020, %v1021
  %v1023 = vrot.slane %v1022, 2
  %v1024 = vadd.f32 %v1022, %v1023
  %v1025 = vrot.slane %v1024, 1
  %v1026 = vadd.f32 %v1024, %v1025
  %v1027 = vmul.f32 %v1026, 0.001953125
  %v1028 = vsub.f32 %v732, %v1027
  %v1029 = vsub.f32 %v734, %v1027
  %v1030 = vsub.f32 %v737, %v1027
  %v1031 = vsub.f32 %v739, %v1027
  %v1032 = vsub.f32 %v742, %v1027
  %v1033 = vsub.f32 %v744, %v1027
  %v1034 = vsub.f32 %v747, %v1027
  %v1035 = vsub.f32 %v749, %v1027
  %v1036 = vsub.f32 %v752, %v1027
  %v1037 = vsub.f32 %v754, %v1027
  %v1038 = vsub.f32 %v757, %v1027
  %v1039 = vsub.f32 %v759, %v1027
  %v1040 = vsub.f32 %v762, %v1027
  %v1041 = vsub.f32 %v764, %v1027
  %v1042 = vsub.f32 %v767, %v1027
  %v1043 = vsub.f32 %v769, %v1027
  %v1044 = vsub.f32 %v772, %v1027
  %v1045 = vsub.f32 %v774, %v1027
  %v1046 = vsub.f32 %v777, %v1027
  %v1047 = vsub.f32 %v779, %v1027
  %v1048 = vsub.f32 %v782, %v1027
  %v1049 = vsub.f32 %v784, %v1027
  %v1050 = vsub.f32 %v787, %v1027
  %v1051 = vsub.f32 %v789, %v1027
  %v1052 = vsub.f32 %v792, %v1027
  %v1053 = vsub.f32 %v794, %v1027
  %v1054 = vsub.f32 %v797, %v1027
  %v1055 = vsub.f32 %v799, %v1027
  %v1056 = vsub.f32 %v802, %v1027
  %v1057 = vsub.f32 %v804, %v1027
  %v1058 = vsub.f32 %v807, %v1027
  %v1059 = vsub.f32 %v809, %v1027
  %v1060 = vsub.f32 %v812, %v1027
  %v1061 = vsub.f32 %v814, %v1027
  %v1062 = vsub.f32 %v817, %v1027
  %v1063 = vsub.f32 %v819, %v1027
  %v1064 = vsub.f32 %v822, %v1027
  %v1065 = vsub.f32 %v824, %v1027
  %v1066 = vsub.f32 %v827, %v1027
  %v1067 = vsub.f32 %v829, %v1027
  %v1068 = vsub.f32 %v832, %v1027
  %v1069 = vsub.f32 %v834, %v1027
  %v1070 = vsub.f32 %v837, %v1027
  %v1071 = vsub.f32 %v839, %v1027
  %v1072 = vsub.f32 %v842, %v1027
  %v1073 = vsub.f32 %v844, %v1027
  %v1074 = vsub.f32 %v847, %v1027
  %v1075 = vsub.f32 %v849, %v1027
  %v1076 = vsub.f32 %v852, %v1027
  %v1077 = vsub.f32 %v854, %v1027
  %v1078 = vsub.f32 %v857, %v1027
  %v1079 = vsub.f32 %v859, %v1027
  %v1080 = vsub.f32 %v862, %v1027
  %v1081 = vsub.f32 %v864, %v1027
  %v1082 = vsub.f32 %v867, %v1027
  %v1083 = vsub.f32 %v869, %v1027
  %v1084 = vsub.f32 %v872, %v1027
  %v1085 = vsub.f32 %v874, %v1027
  %v1086 = vsub.f32 %v877, %v1027
  %v1087 = vsub.f32 %v879, %v1027
  %v1088 = vsub.f32 %v882, %v1027
  %v1089 = vsub.f32 %v884, %v1027
  %v1090 = vsub.f32 %v887, %v1027
  %v1091 = vsub.f32 %v889, %v1027
  %v1092 = vmul.f32 %v1028, %v1028
  %v1093 = vmul.f32 %v1029, %v1029
  %v1094 = vmul.f32 %v1030, %v1030
  %v1095 = vmul.f32 %v1031, %v1031
  %v1096 = vmul.f32 %v1032, %v1032
  %v1097 = vmul.f32 %v1033, %v1033
  %v1098 = vmul.f32 %v1034, %v1034
  %v1099 = vmul.f32 %v1035, %v1035
  %v1100 = vmul.f32 %v1036, %v1036
  %v1101 = vmul.f32 %v1037, %v1037
  %v1102 = vmul.f32 %v1038, %v1038
  %v1103 = vmul.f32 %v1039, %v1039
  %v1104 = vmul.f32 %v1040, %v1040
  %v1105 = vmul.f32 %v1041, %v1041
  %v1106 = vmul.f32 %v1042, %v1042
  %v1107 = vmul.f32 %v1043, %v1043
  %v1108 = vmul.f32 %v1044, %v1044
  %v1109 = vmul.f32 %v1045, %v1045
  %v1110 = vmul.f32 %v1046, %v1046
  %v1111 = vmul.f32 %v1047, %v1047
  %v1112 = vmul.f32 %v1048, %v1048
  %v1113 = vmul.f32 %v1049, %v1049
  %v1114 = vmul.f32 %v1050, %v1050
  %v1115 = vmul.f32 %v1051, %v1051
  %v1116 = vmul.f32 %v1052, %v1052
  %v1117 = vmul.f32 %v1053, %v1053
  %v1118 = vmul.f32 %v1054, %v1054
  %v1119 = vmul.f32 %v1055, %v1055
  %v1120 = vmul.f32 %v1056, %v1056
  %v1121 = vmul.f32 %v1057, %v1057
  %v1122 = vmul.f32 %v1058, %v1058
  %v1123 = vmul.f32 %v1059, %v1059
  %v1124 = vmul.f32 %v1060, %v1060
  %v1125 = vmul.f32 %v1061, %v1061
  %v1126 = vmul.f32 %v1062, %v1062
  %v1127 = vmul.f32 %v1063, %v1063
  %v1128 = vmul.f32 %v1064, %v1064
  %v1129 = vmul.f32 %v1065, %v1065
  %v1130 = vmul.f32 %v1066, %v1066
  %v1131 = vmul.f32 %v1067, %v1067
  %v1132 = vmul.f32 %v1068, %v1068
  %v1133 = vmul.f32 %v1069, %v1069
  %v1134 = vmul.f32 %v1070, %v1070
  %v1135 = vmul.f32 %v1071, %v1071
  %v1136 = vmul.f32 %v1072, %v1072
  %v1137 = vmul.f32 %v1073, %v1073
  %v1138 = vmul.f32 %v1074, %v1074
  %v1139 = vmul.f32 %v1075, %v1075
  %v1140 = vmul.f32 %v1076, %v1076
  %v1141 = vmul.f32 %v1077, %v1077
  %v1142 = vmul.f32 %v1078, %v1078
  %v1143 = vmul.f32 %v1079, %v1079
  %v1144 = vmul.f32 %v1080, %v1080
  %v1145 = vmul.f32 %v1081, %v1081
  %v1146 = vmul.f32 %v1082, %v1082
  %v1147 = vmul.f32 %v1083, %v1083
  %v1148 = vmul.f32 %v1084, %v1084
  %v1149 = vmul.f32 %v1085, %v1085
  %v1150 = vmul.f32 %v1086, %v1086
  %v1151 = vmul.f32 %v1087, %v1087
  %v1152 = vmul.f32 %v1088, %v1088
  %v1153 = vmul.f32 %v1089, %v1089
  %v1154 = vmul.f32 %v1090, %v1090
  %v1155 = vmul.f32 %v1091, %v1091
  %v1156 = vsel %vm893, %v1092, 0.0
  %v1157 = vsel %vm893, %v1093, 0.0
  %v1158 = vadd.f32 %v1156, %v1157
  %v1159 = vsel %vm893, %v1094, 0.0
  %v1160 = vadd.f32 %v1158, %v1159
  %v1161 = vsel %vm893, %v1095, 0.0
  %v1162 = vadd.f32 %v1160, %v1161
  %v1163 = vsel %vm893, %v1096, 0.0
  %v1164 = vadd.f32 %v1162, %v1163
  %v1165 = vsel %vm893, %v1097, 0.0
  %v1166 = vadd.f32 %v1164, %v1165
  %v1167 = vsel %vm893, %v1098, 0.0
  %v1168 = vadd.f32 %v1166, %v1167
  %v1169 = vsel %vm893, %v1099, 0.0
  %v1170 = vadd.f32 %v1168, %v1169
  %v1171 = vsel %vm893, %v1100, 0.0
  %v1172 = vadd.f32 %v1170, %v1171
  %v1173 = vsel %vm893, %v1101, 0.0
  %v1174 = vadd.f32 %v1172, %v1173
  %v1175 = vsel %vm893, %v1102, 0.0
  %v1176 = vadd.f32 %v1174, %v1175
  %v1177 = vsel %vm893, %v1103, 0.0
  %v1178 = vadd.f32 %v1176, %v1177
  %v1179 = vsel %vm893, %v1104, 0.0
  %v1180 = vadd.f32 %v1178, %v1179
  %v1181 = vsel %vm893, %v1105, 0.0
  %v1182 = vadd.f32 %v1180, %v1181
  %v1183 = vsel %vm893, %v1106, 0.0
  %v1184 = vadd.f32 %v1182, %v1183
  %v1185 = vsel %vm893, %v1107, 0.0
  %v1186 = vadd.f32 %v1184, %v1185
  %v1187 = vsel %vm893, %v1108, 0.0
  %v1188 = vadd.f32 %v1186, %v1187
  %v1189 = vsel %vm893, %v1109, 0.0
  %v1190 = vadd.f32 %v1188, %v1189
  %v1191 = vsel %vm893, %v1110, 0.0
  %v1192 = vadd.f32 %v1190, %v1191
  %v1193 = vsel %vm893, %v1111, 0.0
  %v1194 = vadd.f32 %v1192, %v1193
  %v1195 = vsel %vm893, %v1112, 0.0
  %v1196 = vadd.f32 %v1194, %v1195
  %v1197 = vsel %vm893, %v1113, 0.0
  %v1198 = vadd.f32 %v1196, %v1197
  %v1199 = vsel %vm893, %v1114, 0.0
  %v1200 = vadd.f32 %v1198, %v1199
  %v1201 = vsel %vm893, %v1115, 0.0
  %v1202 = vadd.f32 %v1200, %v1201
  %v1203 = vsel %vm893, %v1116, 0.0
  %v1204 = vadd.f32 %v1202, %v1203
  %v1205 = vsel %vm893, %v1117, 0.0
  %v1206 = vadd.f32 %v1204, %v1205
  %v1207 = vsel %vm893, %v1118, 0.0
  %v1208 = vadd.f32 %v1206, %v1207
  %v1209 = vsel %vm893, %v1119, 0.0
  %v1210 = vadd.f32 %v1208, %v1209
  %v1211 = vsel %vm893, %v1120, 0.0
  %v1212 = vadd.f32 %v1210, %v1211
  %v1213 = vsel %vm893, %v1121, 0.0
  %v1214 = vadd.f32 %v1212, %v1213
  %v1215 = vsel %vm893, %v1122, 0.0
  %v1216 = vadd.f32 %v1214, %v1215
  %v1217 = vsel %vm893, %v1123, 0.0
  %v1218 = vadd.f32 %v1216, %v1217
  %v1219 = vsel %vm893, %v1124, 0.0
  %v1220 = vadd.f32 %v1218, %v1219
  %v1221 = vsel %vm893, %v1125, 0.0
  %v1222 = vadd.f32 %v1220, %v1221
  %v1223 = vsel %vm893, %v1126, 0.0
  %v1224 = vadd.f32 %v1222, %v1223
  %v1225 = vsel %vm893, %v1127, 0.0
  %v1226 = vadd.f32 %v1224, %v1225
  %v1227 = vsel %vm893, %v1128, 0.0
  %v1228 = vadd.f32 %v1226, %v1227
  %v1229 = vsel %vm893, %v1129, 0.0
  %v1230 = vadd.f32 %v1228, %v1229
  %v1231 = vsel %vm893, %v1130, 0.0
  %v1232 = vadd.f32 %v1230, %v1231
  %v1233 = vsel %vm893, %v1131, 0.0
  %v1234 = vadd.f32 %v1232, %v1233
  %v1235 = vsel %vm893, %v1132, 0.0
  %v1236 = vadd.f32 %v1234, %v1235
  %v1237 = vsel %vm893, %v1133, 0.0
  %v1238 = vadd.f32 %v1236, %v1237
  %v1239 = vsel %vm893, %v1134, 0.0
  %v1240 = vadd.f32 %v1238, %v1239
  %v1241 = vsel %vm893, %v1135, 0.0
  %v1242 = vadd.f32 %v1240, %v1241
  %v1243 = vsel %vm893, %v1136, 0.0
  %v1244 = vadd.f32 %v1242, %v1243
  %v1245 = vsel %vm893, %v1137, 0.0
  %v1246 = vadd.f32 %v1244, %v1245
  %v1247 = vsel %vm893, %v1138, 0.0
  %v1248 = vadd.f32 %v1246, %v1247
  %v1249 = vsel %vm893, %v1139, 0.0
  %v1250 = vadd.f32 %v1248, %v1249
  %v1251 = vsel %vm893, %v1140, 0.0
  %v1252 = vadd.f32 %v1250, %v1251
  %v1253 = vsel %vm893, %v1141, 0.0
  %v1254 = vadd.f32 %v1252, %v1253
  %v1255 = vsel %vm893, %v1142, 0.0
  %v1256 = vadd.f32 %v1254, %v1255
  %v1257 = vsel %vm893, %v1143, 0.0
  %v1258 = vadd.f32 %v1256, %v1257
  %v1259 = vsel %vm893, %v1144, 0.0
  %v1260 = vadd.f32 %v1258, %v1259
  %v1261 = vsel %vm893, %v1145, 0.0
  %v1262 = vadd.f32 %v1260, %v1261
  %v1263 = vsel %vm893, %v1146, 0.0
  %v1264 = vadd.f32 %v1262, %v1263
  %v1265 = vsel %vm893, %v1147, 0.0
  %v1266 = vadd.f32 %v1264, %v1265
  %v1267 = vsel %vm893, %v1148, 0.0
  %v1268 = vadd.f32 %v1266, %v1267
  %v1269 = vsel %vm893, %v1149, 0.0
  %v1270 = vadd.f32 %v1268, %v1269
  %v1271 = vsel %vm893, %v1150, 0.0
  %v1272 = vadd.f32 %v1270, %v1271
  %v1273 = vsel %vm893, %v1151, 0.0
  %v1274 = vadd.f32 %v1272, %v1273
  %v1275 = vsel %vm893, %v1152, 0.0
  %v1276 = vadd.f32 %v1274, %v1275
  %v1277 = vsel %vm893, %v1153, 0.0
  %v1278 = vadd.f32 %v1276, %v1277
  %v1279 = vsel %vm893, %v1154, 0.0
  %v1280 = vadd.f32 %v1278, %v1279
  %v1281 = vsel %vm893, %v1155, 0.0
  %v1282 = vadd.f32 %v1280, %v1281
  %v1283 = vrot.slane %v1282, 4
  %v1284 = vadd.f32 %v1282, %v1283
  %v1285 = vrot.slane %v1284, 2
  %v1286 = vadd.f32 %v1284, %v1285
  %v1287 = vrot.slane %v1286, 1
  %v1288 = vadd.f32 %v1286, %v1287
  %v1289 = vmul.f32 %v1288, 0.001953125
  %v1290 = vperm.slane %v891, 0
  %v1291 = vmul.f32 %v1290, %v1028
  %v1292 = vmul.f32 %v1290, %v1029
  %v1293 = vmul.f32 %v1290, %v1030
  %v1294 = vmul.f32 %v1290, %v1031
  %v1295 = vmul.f32 %v1290, %v1032
  %v1296 = vmul.f32 %v1290, %v1033
  %v1297 = vmul.f32 %v1290, %v1034
  %v1298 = vmul.f32 %v1290, %v1035
  %v1299 = vmul.f32 %v1290, %v1036
  %v1300 = vmul.f32 %v1290, %v1037
  %v1301 = vmul.f32 %v1290, %v1038
  %v1302 = vmul.f32 %v1290, %v1039
  %v1303 = vmul.f32 %v1290, %v1040
  %v1304 = vmul.f32 %v1290, %v1041
  %v1305 = vmul.f32 %v1290, %v1042
  %v1306 = vmul.f32 %v1290, %v1043
  %v1307 = vmul.f32 %v1290, %v1044
  %v1308 = vmul.f32 %v1290, %v1045
  %v1309 = vmul.f32 %v1290, %v1046
  %v1310 = vmul.f32 %v1290, %v1047
  %v1311 = vmul.f32 %v1290, %v1048
  %v1312 = vmul.f32 %v1290, %v1049
  %v1313 = vmul.f32 %v1290, %v1050
  %v1314 = vmul.f32 %v1290, %v1051
  %v1315 = vmul.f32 %v1290, %v1052
  %v1316 = vmul.f32 %v1290, %v1053
  %v1317 = vmul.f32 %v1290, %v1054
  %v1318 = vmul.f32 %v1290, %v1055
  %v1319 = vmul.f32 %v1290, %v1056
  %v1320 = vmul.f32 %v1290, %v1057
  %v1321 = vmul.f32 %v1290, %v1058
  %v1322 = vmul.f32 %v1290, %v1059
  %v1323 = vmul.f32 %v1290, %v1060
  %v1324 = vmul.f32 %v1290, %v1061
  %v1325 = vmul.f32 %v1290, %v1062
  %v1326 = vmul.f32 %v1290, %v1063
  %v1327 = vmul.f32 %v1290, %v1064
  %v1328 = vmul.f32 %v1290, %v1065
  %v1329 = vmul.f32 %v1290, %v1066
  %v1330 = vmul.f32 %v1290, %v1067
  %v1331 = vmul.f32 %v1290, %v1068
  %v1332 = vmul.f32 %v1290, %v1069
  %v1333 = vmul.f32 %v1290, %v1070
  %v1334 = vmul.f32 %v1290, %v1071
  %v1335 = vmul.f32 %v1290, %v1072
  %v1336 = vmul.f32 %v1290, %v1073
  %v1337 = vmul.f32 %v1290, %v1074
  %v1338 = vmul.f32 %v1290, %v1075
  %v1339 = vmul.f32 %v1290, %v1076
  %v1340 = vmul.f32 %v1290, %v1077
  %v1341 = vmul.f32 %v1290, %v1078
  %v1342 = vmul.f32 %v1290, %v1079
  %v1343 = vmul.f32 %v1290, %v1080
  %v1344 = vmul.f32 %v1290, %v1081
  %v1345 = vmul.f32 %v1290, %v1082
  %v1346 = vmul.f32 %v1290, %v1083
  %v1347 = vmul.f32 %v1290, %v1084
  %v1348 = vmul.f32 %v1290, %v1085
  %v1349 = vmul.f32 %v1290, %v1086
  %v1350 = vmul.f32 %v1290, %v1087
  %v1351 = vmul.f32 %v1290, %v1088
  %v1352 = vmul.f32 %v1290, %v1089
  %v1353 = vmul.f32 %v1290, %v1090
  %v1354 = vmul.f32 %v1290, %v1091
  %v1355 = vadd.f32 %v1289, 1e-05
  %v1356 = vrsqrt.pop %v1355
  %v1357 = vmul.f32 %v1356, %v1355
  %v1358 = vmul.f32 %v1357, %v1356
  %v1359 = vmul.f32 0.5, %v1358
  %v1360 = vsub.f32 1.5, %v1359
  %v1361 = vmul.f32 %v1356, %v1360
  %vm1362 = vweird.f32 %v1355
  %vm1363 = vweird.f32 %v1356
  %vm1364 = vmor %vm1362, %vm1363
  %v1365 = vsel %vm1364, %v1356, %v1361
  %v1366 = vmul.f32 %v1291, %v1365
  %v1367 = vmul.f32 %v1292, %v1365
  %v1368 = vmul.f32 %v1293, %v1365
  %v1369 = vmul.f32 %v1294, %v1365
  %v1370 = vmul.f32 %v1295, %v1365
  %v1371 = vmul.f32 %v1296, %v1365
  %v1372 = vmul.f32 %v1297, %v1365
  %v1373 = vmul.f32 %v1298, %v1365
  %v1374 = vmul.f32 %v1299, %v1365
  %v1375 = vmul.f32 %v1300, %v1365
  %v1376 = vmul.f32 %v1301, %v1365
  %v1377 = vmul.f32 %v1302, %v1365
  %v1378 = vmul.f32 %v1303, %v1365
  %v1379 = vmul.f32 %v1304, %v1365
  %v1380 = vmul.f32 %v1305, %v1365
  %v1381 = vmul.f32 %v1306, %v1365
  %v1382 = vmul.f32 %v1307, %v1365
  %v1383 = vmul.f32 %v1308, %v1365
  %v1384 = vmul.f32 %v1309, %v1365
  %v1385 = vmul.f32 %v1310, %v1365
  %v1386 = vmul.f32 %v1311, %v1365
  %v1387 = vmul.f32 %v1312, %v1365
  %v1388 = vmul.f32 %v1313, %v1365
  %v1389 = vmul.f32 %v1314, %v1365
  %v1390 = vmul.f32 %v1315, %v1365
  %v1391 = vmul.f32 %v1316, %v1365
  %v1392 = vmul.f32 %v1317, %v1365
  %v1393 = vmul.f32 %v1318, %v1365
  %v1394 = vmul.f32 %v1319, %v1365
  %v1395 = vmul.f32 %v1320, %v1365
  %v1396 = vmul.f32 %v1321, %v1365
  %v1397 = vmul.f32 %v1322, %v1365
  %v1398 = vmul.f32 %v1323, %v1365
  %v1399 = vmul.f32 %v1324, %v1365
  %v1400 = vmul.f32 %v1325, %v1365
  %v1401 = vmul.f32 %v1326, %v1365
  %v1402 = vmul.f32 %v1327, %v1365
  %v1403 = vmul.f32 %v1328, %v1365
  %v1404 = vmul.f32 %v1329, %v1365
  %v1405 = vmul.f32 %v1330, %v1365
  %v1406 = vmul.f32 %v1331, %v1365
  %v1407 = vmul.f32 %v1332, %v1365
  %v1408 = vmul.f32 %v1333, %v1365
  %v1409 = vmul.f32 %v1334, %v1365
  %v1410 = vmul.f32 %v1335, %v1365
  %v1411 = vmul.f32 %v1336, %v1365
  %v1412 = vmul.f32 %v1337, %v1365
  %v1413 = vmul.f32 %v1338, %v1365
  %v1414 = vmul.f32 %v1339, %v1365
  %v1415 = vmul.f32 %v1340, %v1365
  %v1416 = vmul.f32 %v1341, %v1365
  %v1417 = vmul.f32 %v1342, %v1365
  %v1418 = vmul.f32 %v1343, %v1365
  %v1419 = vmul.f32 %v1344, %v1365
  %v1420 = vmul.f32 %v1345, %v1365
  %v1421 = vmul.f32 %v1346, %v1365
  %v1422 = vmul.f32 %v1347, %v1365
  %v1423 = vmul.f32 %v1348, %v1365
  %v1424 = vmul.f32 %v1349, %v1365
  %v1425 = vmul.f32 %v1350, %v1365
  %v1426 = vmul.f32 %v1351, %v1365
  %v1427 = vmul.f32 %v1352, %v1365
  %v1428 = vmul.f32 %v1353, %v1365
  %v1429 = vmul.f32 %v1354, %v1365
  %v1430 = vperm.slane %v892, 0
  %v1431 = vadd.f32 %v1366, %v1430
  %v1432 = vadd.f32 %v1367, %v1430
  %v1433 = vadd.f32 %v1368, %v1430
  %v1434 = vadd.f32 %v1369, %v1430
  %v1435 = vadd.f32 %v1370, %v1430
  %v1436 = vadd.f32 %v1371, %v1430
  %v1437 = vadd.f32 %v1372, %v1430
  %v1438 = vadd.f32 %v1373, %v1430
  %v1439 = vadd.f32 %v1374, %v1430
  %v1440 = vadd.f32 %v1375, %v1430
  %v1441 = vadd.f32 %v1376, %v1430
  %v1442 = vadd.f32 %v1377, %v1430
  %v1443 = vadd.f32 %v1378, %v1430
  %v1444 = vadd.f32 %v1379, %v1430
  %v1445 = vadd.f32 %v1380, %v1430
  %v1446 = vadd.f32 %v1381, %v1430
  %v1447 = vadd.f32 %v1382, %v1430
  %v1448 = vadd.f32 %v1383, %v1430
  %v1449 = vadd.f32 %v1384, %v1430
  %v1450 = vadd.f32 %v1385, %v1430
  %v1451 = vadd.f32 %v1386, %v1430
  %v1452 = vadd.f32 %v1387, %v1430
  %v1453 = vadd.f32 %v1388, %v1430
  %v1454 = vadd.f32 %v1389, %v1430
  %v1455 = vadd.f32 %v1390, %v1430
  %v1456 = vadd.f32 %v1391, %v1430
  %v1457 = vadd.f32 %v1392, %v1430
  %v1458 = vadd.f32 %v1393, %v1430
  %v1459 = vadd.f32 %v1394, %v1430
  %v1460 = vadd.f32 %v1395, %v1430
  %v1461 = vadd.f32 %v1396, %v1430
  %v1462 = vadd.f32 %v1397, %v1430
  %v1463 = vadd.f32 %v1398, %v1430
  %v1464 = vadd.f32 %v1399, %v1430
  %v1465 = vadd.f32 %v1400, %v1430
  %v1466 = vadd.f32 %v1401, %v1430
  %v1467 = vadd.f32 %v1402, %v1430
  %v1468 = vadd.f32 %v1403, %v1430
  %v1469 = vadd.f32 %v1404, %v1430
  %v1470 = vadd.f32 %v1405, %v1430
  %v1471 = vadd.f32 %v1406, %v1430
  %v1472 = vadd.f32 %v1407, %v1430
  %v1473 = vadd.f32 %v1408, %v1430
  %v1474 = vadd.f32 %v1409, %v1430
  %v1475 = vadd.f32 %v1410, %v1430
  %v1476 = vadd.f32 %v1411, %v1430
  %v1477 = vadd.f32 %v1412, %v1430
  %v1478 = vadd.f32 %v1413, %v1430
  %v1479 = vadd.f32 %v1414, %v1430
  %v1480 = vadd.f32 %v1415, %v1430
  %v1481 = vadd.f32 %v1416, %v1430
  %v1482 = vadd.f32 %v1417, %v1430
  %v1483 = vadd.f32 %v1418, %v1430
  %v1484 = vadd.f32 %v1419, %v1430
  %v1485 = vadd.f32 %v1420, %v1430
  %v1486 = vadd.f32 %v1421, %v1430
  %v1487 = vadd.f32 %v1422, %v1430
  %v1488 = vadd.f32 %v1423, %v1430
  %v1489 = vadd.f32 %v1424, %v1430
  %v1490 = vadd.f32 %v1425, %v1430
  %v1491 = vadd.f32 %v1426, %v1430
  %v1492 = vadd.f32 %v1427, %v1430
  %v1493 = vadd.f32 %v1428, %v1430
  %v1494 = vadd.f32 %v1429, %v1430
  %v1495 = vmax.f32 %v1431, 0.0
  %v1496 = vmax.f32 %v1432, 0.0
  %v1497 = vmax.f32 %v1433, 0.0
  %v1498 = vmax.f32 %v1434, 0.0
  %v1499 = vmax.f32 %v1435, 0.0
  %v1500 = vmax.f32 %v1436, 0.0
  %v1501 = vmax.f32 %v1437, 0.0
  %v1502 = vmax.f32 %v1438, 0.0
  %v1503 = vmax.f32 %v1439, 0.0
  %v1504 = vmax.f32 %v1440, 0.0
  %v1505 = vmax.f32 %v1441, 0.0
  %v1506 = vmax.f32 %v1442, 0.0
  %v1507 = vmax.f32 %v1443, 0.0
  %v1508 = vmax.f32 %v1444, 0.0
  %v1509 = vmax.f32 %v1445, 0.0
  %v1510 = vmax.f32 %v1446, 0.0
  %v1511 = vmax.f32 %v1447, 0.0
  %v1512 = vmax.f32 %v1448, 0.0
  %v1513 = vmax.f32 %v1449, 0.0
  %v1514 = vmax.f32 %v1450, 0.0
  %v1515 = vmax.f32 %v1451, 0.0
  %v1516 = vmax.f32 %v1452, 0.0
  %v1517 = vmax.f32 %v1453, 0.0
  %v1518 = vmax.f32 %v1454, 0.0
  %v1519 = vmax.f32 %v1455, 0.0
  %v1520 = vmax.f32 %v1456, 0.0
  %v1521 = vmax.f32 %v1457, 0.0
  %v1522 = vmax.f32 %v1458, 0.0
  %v1523 = vmax.f32 %v1459, 0.0
  %v1524 = vmax.f32 %v1460, 0.0
  %v1525 = vmax.f32 %v1461, 0.0
  %v1526 = vmax.f32 %v1462, 0.0
  %v1527 = vmax.f32 %v1463, 0.0
  %v1528 = vmax.f32 %v1464, 0.0
  %v1529 = vmax.f32 %v1465, 0.0
  %v1530 = vmax.f32 %v1466, 0.0
  %v1531 = vmax.f32 %v1467, 0.0
  %v1532 = vmax.f32 %v1468, 0.0
  %v1533 = vmax.f32 %v1469, 0.0
  %v1534 = vmax.f32 %v1470, 0.0
  %v1535 = vmax.f32 %v1471, 0.0
  %v1536 = vmax.f32 %v1472, 0.0
  %v1537 = vmax.f32 %v1473, 0.0
  %v1538 = vmax.f32 %v1474, 0.0
  %v1539 = vmax.f32 %v1475, 0.0
  %v1540 = vmax.f32 %v1476, 0.0
  %v1541 = vmax.f32 %v1477, 0.0
  %v1542 = vmax.f32 %v1478, 0.0
  %v1543 = vmax.f32 %v1479, 0.0
  %v1544 = vmax.f32 %v1480, 0.0
  %v1545 = vmax.f32 %v1481, 0.0
  %v1546 = vmax.f32 %v1482, 0.0
  %v1547 = vmax.f32 %v1483, 0.0
  %v1548 = vmax.f32 %v1484, 0.0
  %v1549 = vmax.f32 %v1485, 0.0
  %v1550 = vmax.f32 %v1486, 0.0
  %v1551 = vmax.f32 %v1487, 0.0
  %v1552 = vmax.f32 %v1488, 0.0
  %v1553 = vmax.f32 %v1489, 0.0
  %v1554 = vmax.f32 %v1490, 0.0
  %v1555 = vmax.f32 %v1491, 0.0
  %v1556 = vmax.f32 %v1492, 0.0
  %v1557 = vmax.f32 %v1493, 0.0
  %v1558 = vmax.f32 %v1494, 0.0
  %v1559 = vmax.f32 %v1495, %v1497
  %v1560 = vmax.f32 %v1496, %v1498
  %v1561 = vmax.f32 %v1499, %v1501
  %v1562 = vmax.f32 %v1500, %v1502
  %v1563 = vmax.f32 %v1503, %v1505
  %v1564 = vmax.f32 %v1504, %v1506
  %v1565 = vmax.f32 %v1507, %v1509
  %v1566 = vmax.f32 %v1508, %v1510
  %v1567 = vmax.f32 %v1511, %v1513
  %v1568 = vmax.f32 %v1512, %v1514
  %v1569 = vmax.f32 %v1515, %v1517
  %v1570 = vmax.f32 %v1516, %v1518
  %v1571 = vmax.f32 %v1519, %v1521
  %v1572 = vmax.f32 %v1520, %v1522
  %v1573 = vmax.f32 %v1523, %v1525
  %v1574 = vmax.f32 %v1524, %v1526
  %v1575 = vmax.f32 %v1527, %v1529
  %v1576 = vmax.f32 %v1528, %v1530
  %v1577 = vmax.f32 %v1531, %v1533
  %v1578 = vmax.f32 %v1532, %v1534
  %v1579 = vmax.f32 %v1535, %v1537
  %v1580 = vmax.f32 %v1536, %v1538
  %v1581 = vmax.f32 %v1539, %v1541
  %v1582 = vmax.f32 %v1540, %v1542
  %v1583 = vmax.f32 %v1543, %v1545
  %v1584 = vmax.f32 %v1544, %v1546
  %v1585 = vmax.f32 %v1547, %v1549
  %v1586 = vmax.f32 %v1548, %v1550
  %v1587 = vmax.f32 %v1551, %v1553
  %v1588 = vmax.f32 %v1552, %v1554
  %v1589 = vmax.f32 %v1555, %v1557
  %v1590 = vmax.f32 %v1556, %v1558
  %v1591 = vmax.f32 %v1559, 0.0
  %v1592 = vmax.f32 %v1560, 0.0
  %v1593 = vmax.f32 %v1561, %v1497
  %v1594 = vmax.f32 %v1562, %v1498
  %v1595 = vmax.f32 %v1563, %v1501
  %v1596 = vmax.f32 %v1564, %v1502
  %v1597 = vmax.f32 %v1565, %v1505
  %v1598 = vmax.f32 %v1566, %v1506
  %v1599 = vmax.f32 %v1567, %v1509
  %v1600 = vmax.f32 %v1568, %v1510
  %v1601 = vmax.f32 %v1569, %v1513
  %v1602 = vmax.f32 %v1570, %v1514
  %v1603 = vmax.f32 %v1571, %v1517
  %v1604 = vmax.f32 %v1572, %v1518
  %v1605 = vmax.f32 %v1573, %v1521
  %v1606 = vmax.f32 %v1574, %v1522
  %v1607 = vmax.f32 %v1575, 0.0
  %v1608 = vmax.f32 %v1576, 0.0
  %v1609 = vmax.f32 %v1577, %v1529
  %v1610 = vmax.f32 %v1578, %v1530
  %v1611 = vmax.f32 %v1579, %v1533
  %v1612 = vmax.f32 %v1580, %v1534
  %v1613 = vmax.f32 %v1581, %v1537
  %v1614 = vmax.f32 %v1582, %v1538
  %v1615 = vmax.f32 %v1583, %v1541
  %v1616 = vmax.f32 %v1584, %v1542
  %v1617 = vmax.f32 %v1585, %v1545
  %v1618 = vmax.f32 %v1586, %v1546
  %v1619 = vmax.f32 %v1587, %v1549
  %v1620 = vmax.f32 %v1588, %v1550
  %v1621 = vmax.f32 %v1589, %v1553
  %v1622 = vmax.f32 %v1590, %v1554
  %v1639 = vrot.slane %v1591, 1
  %v1640 = vrot.slane %v1593, 1
  %v1641 = vrot.slane %v1595, 1
  %v1642 = vrot.slane %v1597, 1
  %v1643 = vrot.slane %v1599, 1
  %v1644 = vrot.slane %v1601, 1
  %v1645 = vrot.slane %v1603, 1
  %v1646 = vrot.slane %v1605, 1
  %v1647 = vrot.slane %v1607, 1
  %v1648 = vrot.slane %v1609, 1
  %v1649 = vrot.slane %v1611, 1
  %v1650 = vrot.slane %v1613, 1
  %v1651 = vrot.slane %v1615, 1
  %v1652 = vrot.slane %v1617, 1
  %v1653 = vrot.slane %v1619, 1
  %v1654 = vrot.slane %v1621, 1
  %v1671 = vmax.f32 %v1591, %v1639
  %v1672 = vmax.f32 %v1593, %v1640
  %v1673 = vmax.f32 %v1595, %v1641
  %v1674 = vmax.f32 %v1597, %v1642
  %v1675 = vmax.f32 %v1599, %v1643
  %v1676 = vmax.f32 %v1601, %v1644
  %v1677 = vmax.f32 %v1603, %v1645
  %v1678 = vmax.f32 %v1605, %v1646
  %v1679 = vmax.f32 %v1607, %v1647
  %v1680 = vmax.f32 %v1609, %v1648
  %v1681 = vmax.f32 %v1611, %v1649
  %v1682 = vmax.f32 %v1613, %v1650
  %v1683 = vmax.f32 %v1615, %v1651
  %v1684 = vmax.f32 %v1617, %v1652
  %v1685 = vmax.f32 %v1619, %v1653
  %v1686 = vmax.f32 %v1621, %v1654
  %v1687 = vrot.slane %v1591, 7
  %v1688 = vrot.slane %v1593, 7
  %v1689 = vrot.slane %v1595, 7
  %v1690 = vrot.slane %v1597, 7
  %v1691 = vrot.slane %v1599, 7
  %v1692 = vrot.slane %v1601, 7
  %v1693 = vrot.slane %v1603, 7
  %v1694 = vrot.slane %v1605, 7
  %v1695 = vrot.slane %v1607, 7
  %v1696 = vrot.slane %v1609, 7
  %v1697 = vrot.slane %v1611, 7
  %v1698 = vrot.slane %v1613, 7
  %v1699 = vrot.slane %v1615, 7
  %v1700 = vrot.slane %v1617, 7
  %v1701 = vrot.slane %v1619, 7
  %v1702 = vrot.slane %v1621, 7
  %v1719 = vmax.f32 %v1671, %v1687
  %v1720 = vmax.f32 %v1672, %v1688
  %v1721 = vmax.f32 %v1673, %v1689
  %v1722 = vmax.f32 %v1674, %v1690
  %v1723 = vmax.f32 %v1675, %v1691
  %v1724 = vmax.f32 %v1676, %v1692
  %v1725 = vmax.f32 %v1677, %v1693
  %v1726 = vmax.f32 %v1678, %v1694
  %v1727 = vmax.f32 %v1679, %v1695
  %v1728 = vmax.f32 %v1680, %v1696
  %v1729 = vmax.f32 %v1681, %v1697
  %v1730 = vmax.f32 %v1682, %v1698
  %v1731 = vmax.f32 %v1683, %v1699
  %v1732 = vmax.f32 %v1684, %v1700
  %v1733 = vmax.f32 %v1685, %v1701
  %v1734 = vmax.f32 %v1686, %v1702
  %v1751 = vrot.slane %v1592, 1
  %v1752 = vrot.slane %v1594, 1
  %v1753 = vrot.slane %v1596, 1
  %v1754 = vrot.slane %v1598, 1
  %v1755 = vrot.slane %v1600, 1
  %v1756 = vrot.slane %v1602, 1
  %v1757 = vrot.slane %v1604, 1
  %v1758 = vrot.slane %v1606, 1
  %v1759 = vrot.slane %v1608, 1
  %v1760 = vrot.slane %v1610, 1
  %v1761 = vrot.slane %v1612, 1
  %v1762 = vrot.slane %v1614, 1
  %v1763 = vrot.slane %v1616, 1
  %v1764 = vrot.slane %v1618, 1
  %v1765 = vrot.slane %v1620, 1
  %v1766 = vrot.slane %v1622, 1
  %v1783 = vmax.f32 %v1592, %v1751
  %v1784 = vmax.f32 %v1594, %v1752
  %v1785 = vmax.f32 %v1596, %v1753
  %v1786 = vmax.f32 %v1598, %v1754
  %v1787 = vmax.f32 %v1600, %v1755
  %v1788 = vmax.f32 %v1602, %v1756
  %v1789 = vmax.f32 %v1604, %v1757
  %v1790 = vmax.f32 %v1606, %v1758
  %v1791 = vmax.f32 %v1608, %v1759
  %v1792 = vmax.f32 %v1610, %v1760
  %v1793 = vmax.f32 %v1612, %v1761
  %v1794 = vmax.f32 %v1614, %v1762
  %v1795 = vmax.f32 %v1616, %v1763
  %v1796 = vmax.f32 %v1618, %v1764
  %v1797 = vmax.f32 %v1620, %v1765
  %v1798 = vmax.f32 %v1622, %v1766
  %v1799 = vmax.f32 %v1783, %v1687
  %v1800 = vmax.f32 %v1784, %v1688
  %v1801 = vmax.f32 %v1785, %v1689
  %v1802 = vmax.f32 %v1786, %v1690
  %v1803 = vmax.f32 %v1787, %v1691
  %v1804 = vmax.f32 %v1788, %v1692
  %v1805 = vmax.f32 %v1789, %v1693
  %v1806 = vmax.f32 %v1790, %v1694
  %v1807 = vmax.f32 %v1791, %v1695
  %v1808 = vmax.f32 %v1792, %v1696
  %v1809 = vmax.f32 %v1793, %v1697
  %v1810 = vmax.f32 %v1794, %v1698
  %v1811 = vmax.f32 %v1795, %v1699
  %v1812 = vmax.f32 %v1796, %v1700
  %v1813 = vmax.f32 %v1797, %v1701
  %v1814 = vmax.f32 %v1798, %v1702
  %v1815 = vrot.slane %v1592, 7
  %v1816 = vrot.slane %v1594, 7
  %v1817 = vrot.slane %v1596, 7
  %v1818 = vrot.slane %v1598, 7
  %v1819 = vrot.slane %v1600, 7
  %v1820 = vrot.slane %v1602, 7
  %v1821 = vrot.slane %v1604, 7
  %v1822 = vrot.slane %v1606, 7
  %v1823 = vrot.slane %v1608, 7
  %v1824 = vrot.slane %v1610, 7
  %v1825 = vrot.slane %v1612, 7
  %v1826 = vrot.slane %v1614, 7
  %v1827 = vrot.slane %v1616, 7
  %v1828 = vrot.slane %v1618, 7
  %v1829 = vrot.slane %v1620, 7
  %v1830 = vrot.slane %v1622, 7
  %v1847 = vmax.f32 %v1783, %v1815
  %v1848 = vmax.f32 %v1784, %v1816
  %v1849 = vmax.f32 %v1785, %v1817
  %v1850 = vmax.f32 %v1786, %v1818
  %v1851 = vmax.f32 %v1787, %v1819
  %v1852 = vmax.f32 %v1788, %v1820
  %v1853 = vmax.f32 %v1789, %v1821
  %v1854 = vmax.f32 %v1790, %v1822
  %v1855 = vmax.f32 %v1791, %v1823
  %v1856 = vmax.f32 %v1792, %v1824
  %v1857 = vmax.f32 %v1793, %v1825
  %v1858 = vmax.f32 %v1794, %v1826
  %v1859 = vmax.f32 %v1795, %v1827
  %v1860 = vmax.f32 %v1796, %v1828
  %v1861 = vmax.f32 %v1797, %v1829
  %v1862 = vmax.f32 %v1798, %v1830
  %v1879 = vrot.slane %v1719, 2
  %v1880 = vrot.slane %v1720, 2
  %v1881 = vrot.slane %v1721, 2
  %v1882 = vrot.slane %v1722, 2
  %v1883 = vrot.slane %v1723, 2
  %v1884 = vrot.slane %v1724, 2
  %v1885 = vrot.slane %v1725, 2
  %v1886 = vrot.slane %v1726, 2
  %v1887 = vrot.slane %v1727, 2
  %v1888 = vrot.slane %v1728, 2
  %v1889 = vrot.slane %v1729, 2
  %v1890 = vrot.slane %v1730, 2
  %v1891 = vrot.slane %v1731, 2
  %v1892 = vrot.slane %v1732, 2
  %v1893 = vrot.slane %v1733, 2
  %v1894 = vrot.slane %v1734, 2
  %v1911 = vrot.slane %v1719, 4
  %v1912 = vrot.slane %v1720, 4
  %v1913 = vrot.slane %v1721, 4
  %v1914 = vrot.slane %v1722, 4
  %v1915 = vrot.slane %v1723, 4
  %v1916 = vrot.slane %v1724, 4
  %v1917 = vrot.slane %v1725, 4
  %v1918 = vrot.slane %v1726, 4
  %v1919 = vrot.slane %v1727, 4
  %v1920 = vrot.slane %v1728, 4
  %v1921 = vrot.slane %v1729, 4
  %v1922 = vrot.slane %v1730, 4
  %v1923 = vrot.slane %v1731, 4
  %v1924 = vrot.slane %v1732, 4
  %v1925 = vrot.slane %v1733, 4
  %v1926 = vrot.slane %v1734, 4
  %v1943 = vrot.slane %v1719, 6
  %v1944 = vrot.slane %v1720, 6
  %v1945 = vrot.slane %v1721, 6
  %v1946 = vrot.slane %v1722, 6
  %v1947 = vrot.slane %v1723, 6
  %v1948 = vrot.slane %v1724, 6
  %v1949 = vrot.slane %v1725, 6
  %v1950 = vrot.slane %v1726, 6
  %v1951 = vrot.slane %v1727, 6
  %v1952 = vrot.slane %v1728, 6
  %v1953 = vrot.slane %v1729, 6
  %v1954 = vrot.slane %v1730, 6
  %v1955 = vrot.slane %v1731, 6
  %v1956 = vrot.slane %v1732, 6
  %v1957 = vrot.slane %v1733, 6
  %v1958 = vrot.slane %v1734, 6
  %v1991 = vrot.slane %v1847, 2
  %v1992 = vrot.slane %v1848, 2
  %v1993 = vrot.slane %v1849, 2
  %v1994 = vrot.slane %v1850, 2
  %v1995 = vrot.slane %v1851, 2
  %v1996 = vrot.slane %v1852, 2
  %v1997 = vrot.slane %v1853, 2
  %v1998 = vrot.slane %v1854, 2
  %v1999 = vrot.slane %v1855, 2
  %v2000 = vrot.slane %v1856, 2
  %v2001 = vrot.slane %v1857, 2
  %v2002 = vrot.slane %v1858, 2
  %v2003 = vrot.slane %v1859, 2
  %v2004 = vrot.slane %v1860, 2
  %v2005 = vrot.slane %v1861, 2
  %v2006 = vrot.slane %v1862, 2
  %v2023 = vrot.slane %v1847, 4
  %v2024 = vrot.slane %v1848, 4
  %v2025 = vrot.slane %v1849, 4
  %v2026 = vrot.slane %v1850, 4
  %v2027 = vrot.slane %v1851, 4
  %v2028 = vrot.slane %v1852, 4
  %v2029 = vrot.slane %v1853, 4
  %v2030 = vrot.slane %v1854, 4
  %v2031 = vrot.slane %v1855, 4
  %v2032 = vrot.slane %v1856, 4
  %v2033 = vrot.slane %v1857, 4
  %v2034 = vrot.slane %v1858, 4
  %v2035 = vrot.slane %v1859, 4
  %v2036 = vrot.slane %v1860, 4
  %v2037 = vrot.slane %v1861, 4
  %v2038 = vrot.slane %v1862, 4
  %v2055 = vrot.slane %v1847, 6
  %v2056 = vrot.slane %v1848, 6
  %v2057 = vrot.slane %v1849, 6
  %v2058 = vrot.slane %v1850, 6
  %v2059 = vrot.slane %v1851, 6
  %v2060 = vrot.slane %v1852, 6
  %v2061 = vrot.slane %v1853, 6
  %v2062 = vrot.slane %v1854, 6
  %v2063 = vrot.slane %v1855, 6
  %v2064 = vrot.slane %v1856, 6
  %v2065 = vrot.slane %v1857, 6
  %v2066 = vrot.slane %v1858, 6
  %v2067 = vrot.slane %v1859, 6
  %v2068 = vrot.slane %v1860, 6
  %v2069 = vrot.slane %v1861, 6
  %v2070 = vrot.slane %v1862, 6
  %vm2087 = vcmask 519168
  %2088 = vst.msk [vmem:[#allocation2] sm:$0xf] %vm2087, 0
  %vm2089 = vcmask 516096
  %2090 = vst.msk [vmem:[#allocation2 + $0x4] sm:$0x1] %vm2089, 0
  %2091 = vst.msk [vmem:[#allocation2 + $0x50] sm:$0xf] %vm2087, 0
  %2092 = vst.msk [vmem:[#allocation2 + $0x54] sm:$0x1] %vm2089, 0
  %s2093 = scalar_lea.vmem [#allocation2], 72
  %2094 = vst.msk [vmem:[%s2093] sm:$0xf] %vm2087, 0
  %2095 = vst.msk [vmem:[%s2093 + $0x4] sm:$0x1] %vm2089, 0
  %2096 = vst.msk [vmem:[%s2093 + $0x50] sm:$0xf] %vm2087, 0
  %2097 = vst.msk [vmem:[%s2093 + $0x54] sm:$0x1] %vm2089, 0
  %vm2098 = vcmask 516096
  %vm2099 = vsmask.f32 256
  %vm2100 = vmand %vm2098, %vm2099
  %v2101 = vld [vmem:[#allocation2] sm:$0x1]
  %v2102 = vsel %vm2100, 0, %v2101
  %2103 = vst [vmem:[#allocation2] sm:$0x1] %v2102
  %v2104 = vld [vmem:[#allocation2 + $0x8] sm:$0x1]
  %v2105 = vsel %vm2100, 0, %v2104
  %2106 = vst [vmem:[#allocation2 + $0x8] sm:$0x1] %v2105
  %v2107 = vld [vmem:[#allocation2 + $0x10] sm:$0x1]
  %v2108 = vsel %vm2100, 0, %v2107
  %2109 = vst [vmem:[#allocation2 + $0x10] sm:$0x1] %v2108
  %v2110 = vld [vmem:[#allocation2 + $0x18] sm:$0x1]
  %v2111 = vsel %vm2100, 0, %v2110
  %2112 = vst [vmem:[#allocation2 + $0x18] sm:$0x1] %v2111
  %v2113 = vld [vmem:[#allocation2 + $0x20] sm:$0x1]
  %v2114 = vsel %vm2100, 0, %v2113
  %2115 = vst [vmem:[#allocation2 + $0x20] sm:$0x1] %v2114
  %v2116 = vld [vmem:[#allocation2 + $0x28] sm:$0x1]
  %v2117 = vsel %vm2100, 0, %v2116
  %2118 = vst [vmem:[#allocation2 + $0x28] sm:$0x1] %v2117
  %v2119 = vld [vmem:[#allocation2 + $0x30] sm:$0x1]
  %v2120 = vsel %vm2100, 0, %v2119
  %2121 = vst [vmem:[#allocation2 + $0x30] sm:$0x1] %v2120
  %v2122 = vld [vmem:[#allocation2 + $0x38] sm:$0x1]
  %v2123 = vsel %vm2100, 0, %v2122
  %2124 = vst [vmem:[#allocation2 + $0x38] sm:$0x1] %v2123
  %v2125 = vld [vmem:[#allocation2 + $0x40] sm:$0x1]
  %v2126 = vsel %vm2100, 0, %v2125
  %2127 = vst [vmem:[#allocation2 + $0x40] sm:$0x1] %v2126
  %v2128 = vld [vmem:[#allocation2 + $0x48] sm:$0x1]
  %v2129 = vsel %vm2100, 0, %v2128
  %2130 = vst [vmem:[#allocation2 + $0x48] sm:$0x1] %v2129
  %v2131 = vld [vmem:[#allocation2 + $0x50] sm:$0x1]
  %v2132 = vsel %vm2100, 0, %v2131
  %2133 = vst [vmem:[#allocation2 + $0x50] sm:$0x1] %v2132
  %v2134 = vld [vmem:[#allocation2 + $0x58] sm:$0x1]
  %v2135 = vsel %vm2100, 0, %v2134
  %2136 = vst [vmem:[#allocation2 + $0x58] sm:$0x1] %v2135
  %v2137 = vld [vmem:[#allocation2 + $0x60] sm:$0x1]
  %v2138 = vsel %vm2100, 0, %v2137
  %2139 = vst [vmem:[#allocation2 + $0x60] sm:$0x1] %v2138
  %v2140 = vld [vmem:[#allocation2 + $0x68] sm:$0x1]
  %v2141 = vsel %vm2100, 0, %v2140
  %2142 = vst [vmem:[#allocation2 + $0x68] sm:$0x1] %v2141
  %v2143 = vld [vmem:[#allocation2 + $0x70] sm:$0x1]
  %v2144 = vsel %vm2100, 0, %v2143
  %2145 = vst [vmem:[#allocation2 + $0x70] sm:$0x1] %v2144
  %v2146 = vld [vmem:[#allocation2 + $0x78] sm:$0x1]
  %v2147 = vsel %vm2100, 0, %v2146
  %2148 = vst [vmem:[#allocation2 + $0x78] sm:$0x1] %v2147
  %v2149 = vld [vmem:[#allocation2 + $0x80] sm:$0x1]
  %v2150 = vsel %vm2100, 0, %v2149
  %2151 = vst [vmem:[#allocation2 + $0x80] sm:$0x1] %v2150
  %v2152 = vld [vmem:[#allocation2 + $0x88] sm:$0x1]
  %v2153 = vsel %vm2100, 0, %v2152
  %2154 = vst [vmem:[#allocation2 + $0x88] sm:$0x1] %v2153
  %v2155 = vld [vmem:[#allocation2 + $0x90] sm:$0x1]
  %v2156 = vsel %vm2100, 0, %v2155
  %2157 = vst [vmem:[#allocation2 + $0x90] sm:$0x1] %v2156
  %v2158 = vld [vmem:[#allocation2 + $0x98] sm:$0x1]
  %v2159 = vsel %vm2100, 0, %v2158
  %2160 = vst [vmem:[#allocation2 + $0x98] sm:$0x1] %v2159
  %vm2161 = vsmask.f32 7938
  %vm2162 = vmand %vm2098, %vm2161
  %v2163 = vld [vmem:[#allocation2 + $0x4] sm:$0x1]
  %v2164 = vsel %vm2162, 0, %v2163
  %2165 = vst [vmem:[#allocation2 + $0x4] sm:$0x1] %v2164
  %v2166 = vld [vmem:[#allocation2 + $0xc] sm:$0x1]
  %v2167 = vsel %vm2162, 0, %v2166
  %2168 = vst [vmem:[#allocation2 + $0xc] sm:$0x1] %v2167
  %v2169 = vld [vmem:[#allocation2 + $0x14] sm:$0x1]
  %v2170 = vsel %vm2162, 0, %v2169
  %2171 = vst [vmem:[#allocation2 + $0x14] sm:$0x1] %v2170
  %v2172 = vld [vmem:[#allocation2 + $0x1c] sm:$0x1]
  %v2173 = vsel %vm2162, 0, %v2172
  %2174 = vst [vmem:[#allocation2 + $0x1c] sm:$0x1] %v2173
  %v2175 = vld [vmem:[#allocation2 + $0x24] sm:$0x1]
  %v2176 = vsel %vm2162, 0, %v2175
  %2177 = vst [vmem:[#allocation2 + $0x24] sm:$0x1] %v2176
  %v2178 = vld [vmem:[#allocation2 + $0x2c] sm:$0x1]
  %v2179 = vsel %vm2162, 0, %v2178
  %2180 = vst [vmem:[#allocation2 + $0x2c] sm:$0x1] %v2179
  %v2181 = vld [vmem:[#allocation2 + $0x34] sm:$0x1]
  %v2182 = vsel %vm2162, 0, %v2181
  %2183 = vst [vmem:[#allocation2 + $0x34] sm:$0x1] %v2182
  %v2184 = vld [vmem:[#allocation2 + $0x3c] sm:$0x1]
  %v2185 = vsel %vm2162, 0, %v2184
  %2186 = vst [vmem:[#allocation2 + $0x3c] sm:$0x1] %v2185
  %v2187 = vld [vmem:[#allocation2 + $0x44] sm:$0x1]
  %v2188 = vsel %vm2162, 0, %v2187
  %2189 = vst [vmem:[#allocation2 + $0x44] sm:$0x1] %v2188
  %v2190 = vld [vmem:[#allocation2 + $0x4c] sm:$0x1]
  %v2191 = vsel %vm2162, 0, %v2190
  %2192 = vst [vmem:[#allocation2 + $0x4c] sm:$0x1] %v2191
  %v2193 = vld [vmem:[#allocation2 + $0x54] sm:$0x1]
  %v2194 = vsel %vm2162, 0, %v2193
  %2195 = vst [vmem:[#allocation2 + $0x54] sm:$0x1] %v2194
  %v2196 = vld [vmem:[#allocation2 + $0x5c] sm:$0x1]
  %v2197 = vsel %vm2162, 0, %v2196
  %2198 = vst [vmem:[#allocation2 + $0x5c] sm:$0x1] %v2197
  %v2199 = vld [vmem:[#allocation2 + $0x64] sm:$0x1]
  %v2200 = vsel %vm2162, 0, %v2199
  %2201 = vst [vmem:[#allocation2 + $0x64] sm:$0x1] %v2200
  %v2202 = vld [vmem:[#allocation2 + $0x6c] sm:$0x1]
  %v2203 = vsel %vm2162, 0, %v2202
  %2204 = vst [vmem:[#allocation2 + $0x6c] sm:$0x1] %v2203
  %v2205 = vld [vmem:[#allocation2 + $0x74] sm:$0x1]
  %v2206 = vsel %vm2162, 0, %v2205
  %2207 = vst [vmem:[#allocation2 + $0x74] sm:$0x1] %v2206
  %v2208 = vld [vmem:[#allocation2 + $0x7c] sm:$0x1]
  %v2209 = vsel %vm2162, 0, %v2208
  %2210 = vst [vmem:[#allocation2 + $0x7c] sm:$0x1] %v2209
  %v2211 = vld [vmem:[#allocation2 + $0x84] sm:$0x1]
  %v2212 = vsel %vm2162, 0, %v2211
  %2213 = vst [vmem:[#allocation2 + $0x84] sm:$0x1] %v2212
  %v2214 = vld [vmem:[#allocation2 + $0x8c] sm:$0x1]
  %v2215 = vsel %vm2162, 0, %v2214
  %2216 = vst [vmem:[#allocation2 + $0x8c] sm:$0x1] %v2215
  %v2217 = vld [vmem:[#allocation2 + $0x94] sm:$0x1]
  %v2218 = vsel %vm2162, 0, %v2217
  %2219 = vst [vmem:[#allocation2 + $0x94] sm:$0x1] %v2218
  %v2220 = vld [vmem:[#allocation2 + $0x9c] sm:$0x1]
  %v2221 = vsel %vm2162, 0, %v2220
  %2222 = vst [vmem:[#allocation2 + $0x9c] sm:$0x1] %v2221
  %v2223 = vld [vmem:[%s4 + $0x2] sm:$0x1]
  %v2224 = vld [vmem:[%s4 + $0x3] sm:$0x1]
  %v2225 = vpack.c.bf16 %v1671, %v1671
  %v2226 = vpack.c.bf16 %v1672, %v1672
  %v2227 = vpack.c.bf16 %v1673, %v1673
  %v2228 = vpack.c.bf16 %v1674, %v1674
  %v2229 = vpack.c.bf16 %v1675, %v1675
  %v2230 = vpack.c.bf16 %v1676, %v1676
  %v2231 = vpack.c.bf16 %v1677, %v1677
  %v2232 = vpack.c.bf16 %v1678, %v1678
  %v2233 = vpack.c.bf16 %v1879, %v1879
  %v2234 = vpack.c.bf16 %v1880, %v1880
  %v2235 = vpack.c.bf16 %v1881, %v1881
  %v2236 = vpack.c.bf16 %v1882, %v1882
  %v2237 = vpack.c.bf16 %v1883, %v1883
  %v2238 = vpack.c.bf16 %v1884, %v1884
  %v2239 = vpack.c.bf16 %v1885, %v1885
  %v2240 = vpack.c.bf16 %v1886, %v1886
  %v2241 = vpack.c.bf16 %v1911, %v1911
  %v2242 = vpack.c.bf16 %v1912, %v1912
  %v2243 = vpack.c.bf16 %v1913, %v1913
  %v2244 = vpack.c.bf16 %v1914, %v1914
  %v2245 = vpack.c.bf16 %v1915, %v1915
  %v2246 = vpack.c.bf16 %v1916, %v1916
  %v2247 = vpack.c.bf16 %v1917, %v1917
  %v2248 = vpack.c.bf16 %v1918, %v1918
  %v2249 = vpack.c.bf16 %v1943, %v1943
  %v2250 = vpack.c.bf16 %v1944, %v1944
  %v2251 = vpack.c.bf16 %v1945, %v1945
  %v2252 = vpack.c.bf16 %v1946, %v1946
  %v2253 = vpack.c.bf16 %v1947, %v1947
  %v2254 = vpack.c.bf16 %v1948, %v1948
  %v2255 = vpack.c.bf16 %v1949, %v1949
  %v2256 = vpack.c.bf16 %v1950, %v1950
  %v2257 = vpack.c.bf16 %v1799, %v1799
  %v2258 = vpack.c.bf16 %v1800, %v1800
  %v2259 = vpack.c.bf16 %v1801, %v1801
  %v2260 = vpack.c.bf16 %v1802, %v1802
  %v2261 = vpack.c.bf16 %v1803, %v1803
  %v2262 = vpack.c.bf16 %v1804, %v1804
  %v2263 = vpack.c.bf16 %v1805, %v1805
  %v2264 = vpack.c.bf16 %v1806, %v1806
  %v2265 = vpack.c.bf16 %v1991, %v1991
  %v2266 = vpack.c.bf16 %v1992, %v1992
  %v2267 = vpack.c.bf16 %v1993, %v1993
  %v2268 = vpack.c.bf16 %v1994, %v1994
  %v2269 = vpack.c.bf16 %v1995, %v1995
  %v2270 = vpack.c.bf16 %v1996, %v1996
  %v2271 = vpack.c.bf16 %v1997, %v1997
  %v2272 = vpack.c.bf16 %v1998, %v1998
  %v2273 = vpack.c.bf16 %v2023, %v2023
  %v2274 = vpack.c.bf16 %v2024, %v2024
  %v2275 = vpack.c.bf16 %v2025, %v2025
  %v2276 = vpack.c.bf16 %v2026, %v2026
  %v2277 = vpack.c.bf16 %v2027, %v2027
  %v2278 = vpack.c.bf16 %v2028, %v2028
  %v2279 = vpack.c.bf16 %v2029, %v2029
  %v2280 = vpack.c.bf16 %v2030, %v2030
  %v2281 = vpack.c.bf16 %v2055, %v2055
  %v2282 = vpack.c.bf16 %v2056, %v2056
  %v2283 = vpack.c.bf16 %v2057, %v2057
  %v2284 = vpack.c.bf16 %v2058, %v2058
  %v2285 = vpack.c.bf16 %v2059, %v2059
  %v2286 = vpack.c.bf16 %v2060, %v2060
  %v2287 = vpack.c.bf16 %v2061, %v2061
  %v2288 = vpack.c.bf16 %v2062, %v2062
  %v2289 = vpack.c.bf16 %v1679, %v1679
  %v2290 = vpack.c.bf16 %v1680, %v1680
  %v2291 = vpack.c.bf16 %v1681, %v1681
  %v2292 = vpack.c.bf16 %v1682, %v1682
  %v2293 = vpack.c.bf16 %v1683, %v1683
  %v2294 = vpack.c.bf16 %v1684, %v1684
  %v2295 = vpack.c.bf16 %v1685, %v1685
  %v2296 = vpack.c.bf16 %v1686, %v1686
  %v2297 = vpack.c.bf16 %v1887, %v1887
  %v2298 = vpack.c.bf16 %v1888, %v1888
  %v2299 = vpack.c.bf16 %v1889, %v1889
  %v2300 = vpack.c.bf16 %v1890, %v1890
  %v2301 = vpack.c.bf16 %v1891, %v1891
  %v2302 = vpack.c.bf16 %v1892, %v1892
  %v2303 = vpack.c.bf16 %v1893, %v1893
  %v2304 = vpack.c.bf16 %v1894, %v1894
  %v2305 = vpack.c.bf16 %v1919, %v1919
  %v2306 = vpack.c.bf16 %v1920, %v1920
  %v2307 = vpack.c.bf16 %v1921, %v1921
  %v2308 = vpack.c.bf16 %v1922, %v1922
  %v2309 = vpack.c.bf16 %v1923, %v1923
  %v2310 = vpack.c.bf16 %v1924, %v1924
  %v2311 = vpack.c.bf16 %v1925, %v1925
  %v2312 = vpack.c.bf16 %v1926, %v1926
  %v2313 = vpack.c.bf16 %v1951, %v1951
  %v2314 = vpack.c.bf16 %v1952, %v1952
  %v2315 = vpack.c.bf16 %v1953, %v1953
  %v2316 = vpack.c.bf16 %v1954, %v1954
  %v2317 = vpack.c.bf16 %v1955, %v1955
  %v2318 = vpack.c.bf16 %v1956, %v1956
  %v2319 = vpack.c.bf16 %v1957, %v1957
  %v2320 = vpack.c.bf16 %v1958, %v1958
  %v2321 = vpack.c.bf16 %v1807, %v1807
  %v2322 = vpack.c.bf16 %v1808, %v1808
  %v2323 = vpack.c.bf16 %v1809, %v1809
  %v2324 = vpack.c.bf16 %v1810, %v1810
  %v2325 = vpack.c.bf16 %v1811, %v1811
  %v2326 = vpack.c.bf16 %v1812, %v1812
  %v2327 = vpack.c.bf16 %v1813, %v1813
  %v2328 = vpack.c.bf16 %v1814, %v1814
  %v2329 = vpack.c.bf16 %v1999, %v1999
  %v2330 = vpack.c.bf16 %v2000, %v2000
  %v2331 = vpack.c.bf16 %v2001, %v2001
  %v2332 = vpack.c.bf16 %v2002, %v2002
  %v2333 = vpack.c.bf16 %v2003, %v2003
  %v2334 = vpack.c.bf16 %v2004, %v2004
  %v2335 = vpack.c.bf16 %v2005, %v2005
  %v2336 = vpack.c.bf16 %v2006, %v2006
  %v2337 = vpack.c.bf16 %v2031, %v2031
  %v2338 = vpack.c.bf16 %v2032, %v2032
  %v2339 = vpack.c.bf16 %v2033, %v2033
  %v2340 = vpack.c.bf16 %v2034, %v2034
  %v2341 = vpack.c.bf16 %v2035, %v2035
  %v2342 = vpack.c.bf16 %v2036, %v2036
  %v2343 = vpack.c.bf16 %v2037, %v2037
  %v2344 = vpack.c.bf16 %v2038, %v2038
  %v2345 = vpack.c.bf16 %v2063, %v2063
  %v2346 = vpack.c.bf16 %v2064, %v2064
  %v2347 = vpack.c.bf16 %v2065, %v2065
  %v2348 = vpack.c.bf16 %v2066, %v2066
  %v2349 = vpack.c.bf16 %v2067, %v2067
  %v2350 = vpack.c.bf16 %v2068, %v2068
  %v2351 = vpack.c.bf16 %v2069, %v2069
  %v2352 = vpack.c.bf16 %v2070, %v2070
  %v2481 = vunpack.c.l.b16 %v2225
  %v2482 = vunpack.c.l.b16 %v2226
  %v2483 = vunpack.c.l.b16 %v2227
  %v2484 = vunpack.c.l.b16 %v2228
  %v2485 = vunpack.c.l.b16 %v2229
  %v2486 = vunpack.c.l.b16 %v2230
  %v2487 = vunpack.c.l.b16 %v2231
  %v2488 = vunpack.c.l.b16 %v2232
  %v2489 = vunpack.c.l.b16 %v2233
  %v2490 = vunpack.c.l.b16 %v2234
  %v2491 = vunpack.c.l.b16 %v2235
  %v2492 = vunpack.c.l.b16 %v2236
  %v2493 = vunpack.c.l.b16 %v2237
  %v2494 = vunpack.c.l.b16 %v2238
  %v2495 = vunpack.c.l.b16 %v2239
  %v2496 = vunpack.c.l.b16 %v2240
  %v2497 = vunpack.c.l.b16 %v2241
  %v2498 = vunpack.c.l.b16 %v2242
  %v2499 = vunpack.c.l.b16 %v2243
  %v2500 = vunpack.c.l.b16 %v2244
  %v2501 = vunpack.c.l.b16 %v2245
  %v2502 = vunpack.c.l.b16 %v2246
  %v2503 = vunpack.c.l.b16 %v2247
  %v2504 = vunpack.c.l.b16 %v2248
  %v2505 = vunpack.c.l.b16 %v2249
  %v2506 = vunpack.c.l.b16 %v2250
  %v2507 = vunpack.c.l.b16 %v2251
  %v2508 = vunpack.c.l.b16 %v2252
  %v2509 = vunpack.c.l.b16 %v2253
  %v2510 = vunpack.c.l.b16 %v2254
  %v2511 = vunpack.c.l.b16 %v2255
  %v2512 = vunpack.c.l.b16 %v2256
  %v2513 = vunpack.c.l.b16 %v2257
  %v2514 = vunpack.c.l.b16 %v2258
  %v2515 = vunpack.c.l.b16 %v2259
  %v2516 = vunpack.c.l.b16 %v2260
  %v2517 = vunpack.c.l.b16 %v2261
  %v2518 = vunpack.c.l.b16 %v2262
  %v2519 = vunpack.c.l.b16 %v2263
  %v2520 = vunpack.c.l.b16 %v2264
  %v2521 = vunpack.c.l.b16 %v2265
  %v2522 = vunpack.c.l.b16 %v2266
  %v2523 = vunpack.c.l.b16 %v2267
  %v2524 = vunpack.c.l.b16 %v2268
  %v2525 = vunpack.c.l.b16 %v2269
  %v2526 = vunpack.c.l.b16 %v2270
  %v2527 = vunpack.c.l.b16 %v2271
  %v2528 = vunpack.c.l.b16 %v2272
  %v2529 = vunpack.c.l.b16 %v2273
  %v2530 = vunpack.c.l.b16 %v2274
  %v2531 = vunpack.c.l.b16 %v2275
  %v2532 = vunpack.c.l.b16 %v2276
  %v2533 = vunpack.c.l.b16 %v2277
  %v2534 = vunpack.c.l.b16 %v2278
  %v2535 = vunpack.c.l.b16 %v2279
  %v2536 = vunpack.c.l.b16 %v2280
  %v2537 = vunpack.c.l.b16 %v2281
  %v2538 = vunpack.c.l.b16 %v2282
  %v2539 = vunpack.c.l.b16 %v2283
  %v2540 = vunpack.c.l.b16 %v2284
  %v2541 = vunpack.c.l.b16 %v2285
  %v2542 = vunpack.c.l.b16 %v2286
  %v2543 = vunpack.c.l.b16 %v2287
  %v2544 = vunpack.c.l.b16 %v2288
  %v2545 = vunpack.c.l.b16 %v2289
  %v2546 = vunpack.c.l.b16 %v2290
  %v2547 = vunpack.c.l.b16 %v2291
  %v2548 = vunpack.c.l.b16 %v2292
  %v2549 = vunpack.c.l.b16 %v2293
  %v2550 = vunpack.c.l.b16 %v2294
  %v2551 = vunpack.c.l.b16 %v2295
  %v2552 = vunpack.c.l.b16 %v2296
  %v2553 = vunpack.c.l.b16 %v2297
  %v2554 = vunpack.c.l.b16 %v2298
  %v2555 = vunpack.c.l.b16 %v2299
  %v2556 = vunpack.c.l.b16 %v2300
  %v2557 = vunpack.c.l.b16 %v2301
  %v2558 = vunpack.c.l.b16 %v2302
  %v2559 = vunpack.c.l.b16 %v2303
  %v2560 = vunpack.c.l.b16 %v2304
  %v2561 = vunpack.c.l.b16 %v2305
  %v2562 = vunpack.c.l.b16 %v2306
  %v2563 = vunpack.c.l.b16 %v2307
  %v2564 = vunpack.c.l.b16 %v2308
  %v2565 = vunpack.c.l.b16 %v2309
  %v2566 = vunpack.c.l.b16 %v2310
  %v2567 = vunpack.c.l.b16 %v2311
  %v2568 = vunpack.c.l.b16 %v2312
  %v2569 = vunpack.c.l.b16 %v2313
  %v2570 = vunpack.c.l.b16 %v2314
  %v2571 = vunpack.c.l.b16 %v2315
  %v2572 = vunpack.c.l.b16 %v2316
  %v2573 = vunpack.c.l.b16 %v2317
  %v2574 = vunpack.c.l.b16 %v2318
  %v2575 = vunpack.c.l.b16 %v2319
  %v2576 = vunpack.c.l.b16 %v2320
  %v2577 = vunpack.c.l.b16 %v2321
  %v2578 = vunpack.c.l.b16 %v2322
  %v2579 = vunpack.c.l.b16 %v2323
  %v2580 = vunpack.c.l.b16 %v2324
  %v2581 = vunpack.c.l.b16 %v2325
  %v2582 = vunpack.c.l.b16 %v2326
  %v2583 = vunpack.c.l.b16 %v2327
  %v2584 = vunpack.c.l.b16 %v2328
  %v2585 = vunpack.c.l.b16 %v2329
  %v2586 = vunpack.c.l.b16 %v2330
  %v2587 = vunpack.c.l.b16 %v2331
  %v2588 = vunpack.c.l.b16 %v2332
  %v2589 = vunpack.c.l.b16 %v2333
  %v2590 = vunpack.c.l.b16 %v2334
  %v2591 = vunpack.c.l.b16 %v2335
  %v2592 = vunpack.c.l.b16 %v2336
  %v2593 = vunpack.c.l.b16 %v2337
  %v2594 = vunpack.c.l.b16 %v2338
  %v2595 = vunpack.c.l.b16 %v2339
  %v2596 = vunpack.c.l.b16 %v2340
  %v2597 = vunpack.c.l.b16 %v2341
  %v2598 = vunpack.c.l.b16 %v2342
  %v2599 = vunpack.c.l.b16 %v2343
  %v2600 = vunpack.c.l.b16 %v2344
  %v2601 = vunpack.c.l.b16 %v2345
  %v2602 = vunpack.c.l.b16 %v2346
  %v2603 = vunpack.c.l.b16 %v2347
  %v2604 = vunpack.c.l.b16 %v2348
  %v2605 = vunpack.c.l.b16 %v2349
  %v2606 = vunpack.c.l.b16 %v2350
  %v2607 = vunpack.c.l.b16 %v2351
  %v2608 = vunpack.c.l.b16 %v2352
  %v2609 = vrot.slane %v2481, 7
  %v2610 = vrot.slane %v2482, 6
  %vm2611 = vcmask 1042434
  %v2612 = vsel %vm2611, %v2610, %v2609
  %v2613 = vrot.slane %v2483, 5
  %vm2614 = vcmask 1043459
  %v2615 = vsel %vm2614, %v2613, %v2612
  %v2616 = vrot.slane %v2484, 4
  %vm2617 = vcmask 1044484
  %v2618 = vsel %vm2617, %v2616, %v2615
  %v2619 = vrot.slane %v2485, 3
  %vm2620 = vcmask 1045509
  %v2621 = vsel %vm2620, %v2619, %v2618
  %v2622 = vrot.slane %v2486, 2
  %vm2623 = vcmask 1046534
  %v2624 = vsel %vm2623, %v2622, %v2621
  %v2625 = vrot.slane %v2487, 1
  %vm2626 = vcmask 1047559
  %v2627 = vsel %vm2626, %v2625, %v2624
  %v2628 = vrot.slane %v2489, 7
  %v2629 = vrot.slane %v2490, 6
  %v2630 = vsel %vm2611, %v2629, %v2628
  %v2631 = vrot.slane %v2491, 5
  %v2632 = vsel %vm2614, %v2631, %v2630
  %v2633 = vrot.slane %v2492, 4
  %v2634 = vsel %vm2617, %v2633, %v2632
  %v2635 = vrot.slane %v2493, 3
  %v2636 = vsel %vm2620, %v2635, %v2634
  %v2637 = vrot.slane %v2494, 2
  %v2638 = vsel %vm2623, %v2637, %v2636
  %v2639 = vrot.slane %v2495, 1
  %v2640 = vsel %vm2626, %v2639, %v2638
  %v2641 = vrot.slane %v2497, 7
  %v2642 = vrot.slane %v2498, 6
  %v2643 = vsel %vm2611, %v2642, %v2641
  %v2644 = vrot.slane %v2499, 5
  %v2645 = vsel %vm2614, %v2644, %v2643
  %v2646 = vrot.slane %v2500, 4
  %v2647 = vsel %vm2617, %v2646, %v2645
  %v2648 = vrot.slane %v2501, 3
  %v2649 = vsel %vm2620, %v2648, %v2647
  %v2650 = vrot.slane %v2502, 2
  %v2651 = vsel %vm2623, %v2650, %v2649
  %v2652 = vrot.slane %v2503, 1
  %v2653 = vsel %vm2626, %v2652, %v2651
  %v2654 = vrot.slane %v2505, 7
  %v2655 = vrot.slane %v2506, 6
  %v2656 = vsel %vm2611, %v2655, %v2654
  %v2657 = vrot.slane %v2507, 5
  %v2658 = vsel %vm2614, %v2657, %v2656
  %v2659 = vrot.slane %v2508, 4
  %v2660 = vsel %vm2617, %v2659, %v2658
  %v2661 = vrot.slane %v2509, 3
  %v2662 = vsel %vm2620, %v2661, %v2660
  %v2663 = vrot.slane %v2510, 2
  %v2664 = vsel %vm2623, %v2663, %v2662
  %v2665 = vrot.slane %v2511, 1
  %v2666 = vsel %vm2626, %v2665, %v2664
  %v2667 = vrot.slane %v2513, 7
  %v2668 = vrot.slane %v2514, 6
  %v2669 = vsel %vm2611, %v2668, %v2667
  %v2670 = vrot.slane %v2515, 5
  %v2671 = vsel %vm2614, %v2670, %v2669
  %v2672 = vrot.slane %v2516, 4
  %v2673 = vsel %vm2617, %v2672, %v2671
  %v2674 = vrot.slane %v2517, 3
  %v2675 = vsel %vm2620, %v2674, %v2673
  %v2676 = vrot.slane %v2518, 2
  %v2677 = vsel %vm2623, %v2676, %v2675
  %v2678 = vrot.slane %v2519, 1
  %v2679 = vsel %vm2626, %v2678, %v2677
  %v2680 = vrot.slane %v2521, 7
  %v2681 = vrot.slane %v2522, 6
  %v2682 = vsel %vm2611, %v2681, %v2680
  %v2683 = vrot.slane %v2523, 5
  %v2684 = vsel %vm2614, %v2683, %v2682
  %v2685 = vrot.slane %v2524, 4
  %v2686 = vsel %vm2617, %v2685, %v2684
  %v2687 = vrot.slane %v2525, 3
  %v2688 = vsel %vm2620, %v2687, %v2686
  %v2689 = vrot.slane %v2526, 2
  %v2690 = vsel %vm2623, %v2689, %v2688
  %v2691 = vrot.slane %v2527, 1
  %v2692 = vsel %vm2626, %v2691, %v2690
  %v2693 = vrot.slane %v2529, 7
  %v2694 = vrot.slane %v2530, 6
  %v2695 = vsel %vm2611, %v2694, %v2693
  %v2696 = vrot.slane %v2531, 5
  %v2697 = vsel %vm2614, %v2696, %v2695
  %v2698 = vrot.slane %v2532, 4
  %v2699 = vsel %vm2617, %v2698, %v2697
  %v2700 = vrot.slane %v2533, 3
  %v2701 = vsel %vm2620, %v2700, %v2699
  %v2702 = vrot.slane %v2534, 2
  %v2703 = vsel %vm2623, %v2702, %v2701
  %v2704 = vrot.slane %v2535, 1
  %v2705 = vsel %vm2626, %v2704, %v2703
  %v2706 = vrot.slane %v2537, 7
  %v2707 = vrot.slane %v2538, 6
  %v2708 = vsel %vm2611, %v2707, %v2706
  %v2709 = vrot.slane %v2539, 5
  %v2710 = vsel %vm2614, %v2709, %v2708
  %v2711 = vrot.slane %v2540, 4
  %v2712 = vsel %vm2617, %v2711, %v2710
  %v2713 = vrot.slane %v2541, 3
  %v2714 = vsel %vm2620, %v2713, %v2712
  %v2715 = vrot.slane %v2542, 2
  %v2716 = vsel %vm2623, %v2715, %v2714
  %v2717 = vrot.slane %v2543, 1
  %v2718 = vsel %vm2626, %v2717, %v2716
  %v2719 = vrot.slane %v2545, 7
  %v2720 = vrot.slane %v2546, 6
  %v2721 = vsel %vm2611, %v2720, %v2719
  %v2722 = vrot.slane %v2547, 5
  %v2723 = vsel %vm2614, %v2722, %v2721
  %v2724 = vrot.slane %v2548, 4
  %v2725 = vsel %vm2617, %v2724, %v2723
  %v2726 = vrot.slane %v2549, 3
  %v2727 = vsel %vm2620, %v2726, %v2725
  %v2728 = vrot.slane %v2550, 2
  %v2729 = vsel %vm2623, %v2728, %v2727
  %v2730 = vrot.slane %v2551, 1
  %v2731 = vsel %vm2626, %v2730, %v2729
  %v2732 = vrot.slane %v2553, 7
  %v2733 = vrot.slane %v2554, 6
  %v2734 = vsel %vm2611, %v2733, %v2732
  %v2735 = vrot.slane %v2555, 5
  %v2736 = vsel %vm2614, %v2735, %v2734
  %v2737 = vrot.slane %v2556, 4
  %v2738 = vsel %vm2617, %v2737, %v2736
  %v2739 = vrot.slane %v2557, 3
  %v2740 = vsel %vm2620, %v2739, %v2738
  %v2741 = vrot.slane %v2558, 2
  %v2742 = vsel %vm2623, %v2741, %v2740
  %v2743 = vrot.slane %v2559, 1
  %v2744 = vsel %vm2626, %v2743, %v2742
  %v2745 = vrot.slane %v2561, 7
  %v2746 = vrot.slane %v2562, 6
  %v2747 = vsel %vm2611, %v2746, %v2745
  %v2748 = vrot.slane %v2563, 5
  %v2749 = vsel %vm2614, %v2748, %v2747
  %v2750 = vrot.slane %v2564, 4
  %v2751 = vsel %vm2617, %v2750, %v2749
  %v2752 = vrot.slane %v2565, 3
  %v2753 = vsel %vm2620, %v2752, %v2751
  %v2754 = vrot.slane %v2566, 2
  %v2755 = vsel %vm2623, %v2754, %v2753
  %v2756 = vrot.slane %v2567, 1
  %v2757 = vsel %vm2626, %v2756, %v2755
  %v2758 = vrot.slane %v2569, 7
  %v2759 = vrot.slane %v2570, 6
  %v2760 = vsel %vm2611, %v2759, %v2758
  %v2761 = vrot.slane %v2571, 5
  %v2762 = vsel %vm2614, %v2761, %v2760
  %v2763 = vrot.slane %v2572, 4
  %v2764 = vsel %vm2617, %v2763, %v2762
  %v2765 = vrot.slane %v2573, 3
  %v2766 = vsel %vm2620, %v2765, %v2764
  %v2767 = vrot.slane %v2574, 2
  %v2768 = vsel %vm2623, %v2767, %v2766
  %v2769 = vrot.slane %v2575, 1
  %v2770 = vsel %vm2626, %v2769, %v2768
  %v2771 = vrot.slane %v2577, 7
  %v2772 = vrot.slane %v2578, 6
  %v2773 = vsel %vm2611, %v2772, %v2771
  %v2774 = vrot.slane %v2579, 5
  %v2775 = vsel %vm2614, %v2774, %v2773
  %v2776 = vrot.slane %v2580, 4
  %v2777 = vsel %vm2617, %v2776, %v2775
  %v2778 = vrot.slane %v2581, 3
  %v2779 = vsel %vm2620, %v2778, %v2777
  %v2780 = vrot.slane %v2582, 2
  %v2781 = vsel %vm2623, %v2780, %v2779
  %v2782 = vrot.slane %v2583, 1
  %v2783 = vsel %vm2626, %v2782, %v2781
  %v2784 = vrot.slane %v2585, 7
  %v2785 = vrot.slane %v2586, 6
  %v2786 = vsel %vm2611, %v2785, %v2784
  %v2787 = vrot.slane %v2587, 5
  %v2788 = vsel %vm2614, %v2787, %v2786
  %v2789 = vrot.slane %v2588, 4
  %v2790 = vsel %vm2617, %v2789, %v2788
  %v2791 = vrot.slane %v2589, 3
  %v2792 = vsel %vm2620, %v2791, %v2790
  %v2793 = vrot.slane %v2590, 2
  %v2794 = vsel %vm2623, %v2793, %v2792
  %v2795 = vrot.slane %v2591, 1
  %v2796 = vsel %vm2626, %v2795, %v2794
  %v2797 = vrot.slane %v2593, 7
  %v2798 = vrot.slane %v2594, 6
  %v2799 = vsel %vm2611, %v2798, %v2797
  %v2800 = vrot.slane %v2595, 5
  %v2801 = vsel %vm2614, %v2800, %v2799
  %v2802 = vrot.slane %v2596, 4
  %v2803 = vsel %vm2617, %v2802, %v2801
  %v2804 = vrot.slane %v2597, 3
  %v2805 = vsel %vm2620, %v2804, %v2803
  %v2806 = vrot.slane %v2598, 2
  %v2807 = vsel %vm2623, %v2806, %v2805
  %v2808 = vrot.slane %v2599, 1
  %v2809 = vsel %vm2626, %v2808, %v2807
  %v2810 = vrot.slane %v2601, 7
  %v2811 = vrot.slane %v2602, 6
  %v2812 = vsel %vm2611, %v2811, %v2810
  %v2813 = vrot.slane %v2603, 5
  %v2814 = vsel %vm2614, %v2813, %v2812
  %v2815 = vrot.slane %v2604, 4
  %v2816 = vsel %vm2617, %v2815, %v2814
  %v2817 = vrot.slane %v2605, 3
  %v2818 = vsel %vm2620, %v2817, %v2816
  %v2819 = vrot.slane %v2606, 2
  %v2820 = vsel %vm2623, %v2819, %v2818
  %v2821 = vrot.slane %v2607, 1
  %v2822 = vsel %vm2626, %v2821, %v2820
  %v2823 = vpack.c.b16 %v2627, %v2627
  %v2824 = vpack.c.b16 %v2488, %v2488
  %v2825 = vpack.c.b16 %v2640, %v2640
  %v2826 = vpack.c.b16 %v2496, %v2496
  %v2827 = vpack.c.b16 %v2653, %v2653
  %v2828 = vpack.c.b16 %v2504, %v2504
  %v2829 = vpack.c.b16 %v2666, %v2666
  %v2830 = vpack.c.b16 %v2512, %v2512
  %v2831 = vpack.c.b16 %v2679, %v2679
  %v2832 = vpack.c.b16 %v2520, %v2520
  %v2833 = vpack.c.b16 %v2692, %v2692
  %v2834 = vpack.c.b16 %v2528, %v2528
  %v2835 = vpack.c.b16 %v2705, %v2705
  %v2836 = vpack.c.b16 %v2536, %v2536
  %v2837 = vpack.c.b16 %v2718, %v2718
  %v2838 = vpack.c.b16 %v2544, %v2544
  %v2839 = vpack.c.b16 %v2731, %v2731
  %v2840 = vpack.c.b16 %v2552, %v2552
  %v2841 = vpack.c.b16 %v2744, %v2744
  %v2842 = vpack.c.b16 %v2560, %v2560
  %v2843 = vpack.c.b16 %v2757, %v2757
  %v2844 = vpack.c.b16 %v2568, %v2568
  %v2845 = vpack.c.b16 %v2770, %v2770
  %v2846 = vpack.c.b16 %v2576, %v2576
  %v2847 = vpack.c.b16 %v2783, %v2783
  %v2848 = vpack.c.b16 %v2584, %v2584
  %v2849 = vpack.c.b16 %v2796, %v2796
  %v2850 = vpack.c.b16 %v2592, %v2592
  %v2851 = vpack.c.b16 %v2809, %v2809
  %v2852 = vpack.c.b16 %v2600, %v2600
  %v2853 = vpack.c.b16 %v2822, %v2822
  %v2854 = vpack.c.b16 %v2608, %v2608
  %s2887 = scalar_lea.vmem [#allocation2], 8
  %vm2888 = vcmask 519168
  %vm2889 = vmand %vm2888, %vm2161
  %v2890 = vld [vmem:[%s2887] sm:$0xf]
  %v2891 = vsel %vm2889, %v2823, %v2890
  %2892 = vst [vmem:[%s2887] sm:$0xf] %v2891
  %v2893 = vld [vmem:[%s2887 + $0x4] sm:$0x1]
  %v2894 = vsel %vm2100, %v2824, %v2893
  %2895 = vst [vmem:[%s2887 + $0x4] sm:$0x1] %v2894
  %v2896 = vld [vmem:[%s2887 + $0x8] sm:$0xf]
  %v2897 = vsel %vm2889, %v2825, %v2896
  %2898 = vst [vmem:[%s2887 + $0x8] sm:$0xf] %v2897
  %v2899 = vld [vmem:[%s2887 + $0xc] sm:$0x1]
  %v2900 = vsel %vm2100, %v2826, %v2899
  %2901 = vst [vmem:[%s2887 + $0xc] sm:$0x1] %v2900
  %v2902 = vld [vmem:[%s2887 + $0x10] sm:$0xf]
  %v2903 = vsel %vm2889, %v2827, %v2902
  %2904 = vst [vmem:[%s2887 + $0x10] sm:$0xf] %v2903
  %v2905 = vld [vmem:[%s2887 + $0x14] sm:$0x1]
  %v2906 = vsel %vm2100, %v2828, %v2905
  %2907 = vst [vmem:[%s2887 + $0x14] sm:$0x1] %v2906
  %v2908 = vld [vmem:[%s2887 + $0x18] sm:$0xf]
  %v2909 = vsel %vm2889, %v2829, %v2908
  %2910 = vst [vmem:[%s2887 + $0x18] sm:$0xf] %v2909
  %v2911 = vld [vmem:[%s2887 + $0x1c] sm:$0x1]
  %v2912 = vsel %vm2100, %v2830, %v2911
  %2913 = vst [vmem:[%s2887 + $0x1c] sm:$0x1] %v2912
  %v2914 = vld [vmem:[%s2887 + $0x20] sm:$0xf]
  %v2915 = vsel %vm2889, %v2831, %v2914
  %2916 = vst [vmem:[%s2887 + $0x20] sm:$0xf] %v2915
  %v2917 = vld [vmem:[%s2887 + $0x24] sm:$0x1]
  %v2918 = vsel %vm2100, %v2832, %v2917
  %2919 = vst [vmem:[%s2887 + $0x24] sm:$0x1] %v2918
  %v2920 = vld [vmem:[%s2887 + $0x28] sm:$0xf]
  %v2921 = vsel %vm2889, %v2833, %v2920
  %2922 = vst [vmem:[%s2887 + $0x28] sm:$0xf] %v2921
  %v2923 = vld [vmem:[%s2887 + $0x2c] sm:$0x1]
  %v2924 = vsel %vm2100, %v2834, %v2923
  %2925 = vst [vmem:[%s2887 + $0x2c] sm:$0x1] %v2924
  %v2926 = vld [vmem:[%s2887 + $0x30] sm:$0xf]
  %v2927 = vsel %vm2889, %v2835, %v2926
  %2928 = vst [vmem:[%s2887 + $0x30] sm:$0xf] %v2927
  %v2929 = vld [vmem:[%s2887 + $0x34] sm:$0x1]
  %v2930 = vsel %vm2100, %v2836, %v2929
  %2931 = vst [vmem:[%s2887 + $0x34] sm:$0x1] %v2930
  %v2932 = vld [vmem:[%s2887 + $0x38] sm:$0xf]
  %v2933 = vsel %vm2889, %v2837, %v2932
  %2934 = vst [vmem:[%s2887 + $0x38] sm:$0xf] %v2933
  %v2935 = vld [vmem:[%s2887 + $0x3c] sm:$0x1]
  %v2936 = vsel %vm2100, %v2838, %v2935
  %2937 = vst [vmem:[%s2887 + $0x3c] sm:$0x1] %v2936
  %v2938 = vld [vmem:[%s2887 + $0x50] sm:$0xf]
  %v2939 = vsel %vm2889, %v2839, %v2938
  %2940 = vst [vmem:[%s2887 + $0x50] sm:$0xf] %v2939
  %v2941 = vld [vmem:[%s2887 + $0x54] sm:$0x1]
  %v2942 = vsel %vm2100, %v2840, %v2941
  %2943 = vst [vmem:[%s2887 + $0x54] sm:$0x1] %v2942
  %v2944 = vld [vmem:[%s2887 + $0x58] sm:$0xf]
  %v2945 = vsel %vm2889, %v2841, %v2944
  %2946 = vst [vmem:[%s2887 + $0x58] sm:$0xf] %v2945
  %v2947 = vld [vmem:[%s2887 + $0x5c] sm:$0x1]
  %v2948 = vsel %vm2100, %v2842, %v2947
  %2949 = vst [vmem:[%s2887 + $0x5c] sm:$0x1] %v2948
  %v2950 = vld [vmem:[%s2887 + $0x60] sm:$0xf]
  %v2951 = vsel %vm2889, %v2843, %v2950
  %2952 = vst [vmem:[%s2887 + $0x60] sm:$0xf] %v2951
  %v2953 = vld [vmem:[%s2887 + $0x64] sm:$0x1]
  %v2954 = vsel %vm2100, %v2844, %v2953
  %2955 = vst [vmem:[%s2887 + $0x64] sm:$0x1] %v2954
  %v2956 = vld [vmem:[%s2887 + $0x68] sm:$0xf]
  %v2957 = vsel %vm2889, %v2845, %v2956
  %2958 = vst [vmem:[%s2887 + $0x68] sm:$0xf] %v2957
  %v2959 = vld [vmem:[%s2887 + $0x6c] sm:$0x1]
  %v2960 = vsel %vm2100, %v2846, %v2959
  %2961 = vst [vmem:[%s2887 + $0x6c] sm:$0x1] %v2960
  %v2962 = vld [vmem:[%s2887 + $0x70] sm:$0xf]
  %v2963 = vsel %vm2889, %v2847, %v2962
  %2964 = vst [vmem:[%s2887 + $0x70] sm:$0xf] %v2963
  %v2965 = vld [vmem:[%s2887 + $0x74] sm:$0x1]
  %v2966 = vsel %vm2100, %v2848, %v2965
  %2967 = vst [vmem:[%s2887 + $0x74] sm:$0x1] %v2966
  %v2968 = vld [vmem:[%s2887 + $0x78] sm:$0xf]
  %v2969 = vsel %vm2889, %v2849, %v2968
  %2970 = vst [vmem:[%s2887 + $0x78] sm:$0xf] %v2969
  %v2971 = vld [vmem:[%s2887 + $0x7c] sm:$0x1]
  %v2972 = vsel %vm2100, %v2850, %v2971
  %2973 = vst [vmem:[%s2887 + $0x7c] sm:$0x1] %v2972
  %v2974 = vld [vmem:[%s2887 + $0x80] sm:$0xf]
  %v2975 = vsel %vm2889, %v2851, %v2974
  %2976 = vst [vmem:[%s2887 + $0x80] sm:$0xf] %v2975
  %v2977 = vld [vmem:[%s2887 + $0x84] sm:$0x1]
  %v2978 = vsel %vm2100, %v2852, %v2977
  %2979 = vst [vmem:[%s2887 + $0x84] sm:$0x1] %v2978
  %v2980 = vld [vmem:[%s2887 + $0x88] sm:$0xf]
  %v2981 = vsel %vm2889, %v2853, %v2980
  %2982 = vst [vmem:[%s2887 + $0x88] sm:$0xf] %v2981
  %v2983 = vld [vmem:[%s2887 + $0x8c] sm:$0x1]
  %v2984 = vsel %vm2100, %v2854, %v2983
  %2985 = vst [vmem:[%s2887 + $0x8c] sm:$0x1] %v2984
  %v2986 = vld [vmem:[#allocation2] sm:$0xf]
  %v2987 = vld [vmem:[#allocation2 + $0x8] sm:$0xf]
  %v2988 = vld [vmem:[#allocation2 + $0x10] sm:$0xf]
  %v2989 = vld [vmem:[#allocation2 + $0x18] sm:$0xf]
  %v2990 = vld [vmem:[#allocation2 + $0x20] sm:$0xf]
  %v2991 = vld [vmem:[#allocation2 + $0x28] sm:$0xf]
  %v2992 = vld [vmem:[#allocation2 + $0x30] sm:$0xf]
  %v2993 = vld [vmem:[#allocation2 + $0x38] sm:$0xf]
  %v2994 = vld [vmem:[#allocation2 + $0x50] sm:$0xf]
  %v2995 = vld [vmem:[#allocation2 + $0x58] sm:$0xf]
  %v2996 = vld [vmem:[#allocation2 + $0x60] sm:$0xf]
  %v2997 = vld [vmem:[#allocation2 + $0x68] sm:$0xf]
  %v2998 = vld [vmem:[#allocation2 + $0x70] sm:$0xf]
  %v2999 = vld [vmem:[#allocation2 + $0x78] sm:$0xf]
  %v3000 = vld [vmem:[#allocation2 + $0x80] sm:$0xf]
  %v3001 = vld [vmem:[#allocation2 + $0x88] sm:$0xf]
  %v3002 = vld [vmem:[%s2887] sm:$0xf]
  %v3003 = vld [vmem:[%s2887 + $0x8] sm:$0xf]
  %v3004 = vld [vmem:[%s2887 + $0x10] sm:$0xf]
  %v3005 = vld [vmem:[%s2887 + $0x18] sm:$0xf]
  %v3006 = vld [vmem:[%s2887 + $0x20] sm:$0xf]
  %v3007 = vld [vmem:[%s2887 + $0x28] sm:$0xf]
  %v3008 = vld [vmem:[%s2887 + $0x30] sm:$0xf]
  %v3009 = vld [vmem:[%s2887 + $0x38] sm:$0xf]
  %v3010 = vld [vmem:[%s2887 + $0x50] sm:$0xf]
  %v3011 = vld [vmem:[%s2887 + $0x58] sm:$0xf]
  %v3012 = vld [vmem:[%s2887 + $0x60] sm:$0xf]
  %v3013 = vld [vmem:[%s2887 + $0x68] sm:$0xf]
  %v3014 = vld [vmem:[%s2887 + $0x70] sm:$0xf]
  %v3015 = vld [vmem:[%s2887 + $0x78] sm:$0xf]
  %v3016 = vld [vmem:[%s2887 + $0x80] sm:$0xf]
  %v3017 = vld [vmem:[%s2887 + $0x88] sm:$0xf]
  %v3034 = vunpack.c.l.b16 %v2986
  %v3035 = vunpack.c.l.b16 %v2987
  %v3036 = vunpack.c.l.b16 %v2988
  %v3037 = vunpack.c.l.b16 %v2989
  %v3038 = vunpack.c.l.b16 %v2990
  %v3039 = vunpack.c.l.b16 %v2991
  %v3040 = vunpack.c.l.b16 %v2992
  %v3041 = vunpack.c.l.b16 %v2993
  %v3042 = vunpack.c.l.b16 %v2994
  %v3043 = vunpack.c.l.b16 %v2995
  %v3044 = vunpack.c.l.b16 %v2996
  %v3045 = vunpack.c.l.b16 %v2997
  %v3046 = vunpack.c.l.b16 %v2998
  %v3047 = vunpack.c.l.b16 %v2999
  %v3048 = vunpack.c.l.b16 %v3000
  %v3049 = vunpack.c.l.b16 %v3001
  %v3050 = vpack.c.b16 %v3035, %v3034
  %v3051 = vpack.c.b16 %v3037, %v3036
  %v3052 = vpack.c.b16 %v3039, %v3038
  %v3053 = vpack.c.b16 %v3041, %v3040
  %v3054 = vpack.c.b16 %v3043, %v3042
  %v3055 = vpack.c.b16 %v3045, %v3044
  %v3056 = vpack.c.b16 %v3047, %v3046
  %v3057 = vpack.c.b16 %v3049, %v3048
  %v3074 = vunpack.c.l.b16 %v3002
  %v3075 = vunpack.c.l.b16 %v3003
  %v3076 = vunpack.c.l.b16 %v3004
  %v3077 = vunpack.c.l.b16 %v3005
  %v3078 = vunpack.c.l.b16 %v3006
  %v3079 = vunpack.c.l.b16 %v3007
  %v3080 = vunpack.c.l.b16 %v3008
  %v3081 = vunpack.c.l.b16 %v3009
  %v3082 = vunpack.c.l.b16 %v3010
  %v3083 = vunpack.c.l.b16 %v3011
  %v3084 = vunpack.c.l.b16 %v3012
  %v3085 = vunpack.c.l.b16 %v3013
  %v3086 = vunpack.c.l.b16 %v3014
  %v3087 = vunpack.c.l.b16 %v3015
  %v3088 = vunpack.c.l.b16 %v3016
  %v3089 = vunpack.c.l.b16 %v3017
  %v3090 = vpack.c.b16 %v3075, %v3074
  %v3091 = vpack.c.b16 %v3077, %v3076
  %v3092 = vpack.c.b16 %v3079, %v3078
  %v3093 = vpack.c.b16 %v3081, %v3080
  %v3094 = vpack.c.b16 %v3083, %v3082
  %v3095 = vpack.c.b16 %v3085, %v3084
  %v3096 = vpack.c.b16 %v3087, %v3086
  %v3097 = vpack.c.b16 %v3089, %v3088
  %3098 = vrot.lane.b32.xlu0 %v3090, 64
  %v3099 = vpop.permute.xlu0 %3098
  %3100 = vrot.lane.b32.xlu0 %v3091, 64
  %v3101 = vpop.permute.xlu0 %3100
  %3102 = vrot.lane.b32.xlu0 %v3092, 64
  %v3103 = vpop.permute.xlu0 %3102
  %3104 = vrot.lane.b32.xlu0 %v3093, 64
  %v3105 = vpop.permute.xlu0 %3104
  %3106 = vrot.lane.b32.xlu0 %v3094, 64
  %v3107 = vpop.permute.xlu0 %3106
  %3108 = vrot.lane.b32.xlu0 %v3095, 64
  %v3109 = vpop.permute.xlu0 %3108
  %3110 = vrot.lane.b32.xlu0 %v3096, 64
  %v3111 = vpop.permute.xlu0 %3110
  %3112 = vrot.lane.b32.xlu0 %v3097, 64
  %v3113 = vpop.permute.xlu0 %3112
  %v3116 = vsel %vm893, %v3050, %v3099
  %v3119 = vsel %vm893, %v3051, %v3101
  %v3122 = vsel %vm893, %v3052, %v3103
  %v3125 = vsel %vm893, %v3053, %v3105
  %v3128 = vsel %vm893, %v3054, %v3107
  %v3131 = vsel %vm893, %v3055, %v3109
  %v3134 = vsel %vm893, %v3056, %v3111
  %v3137 = vsel %vm893, %v3057, %v3113
  %v3146 = vunpack.c.l.b16 %v3116
  %v3147 = vunpack.c.h.b16 %v3116
  %v3148 = vunpack.c.l.b16 %v3119
  %v3149 = vunpack.c.h.b16 %v3119
  %v3150 = vunpack.c.l.b16 %v3122
  %v3151 = vunpack.c.h.b16 %v3122
  %v3152 = vunpack.c.l.b16 %v3125
  %v3153 = vunpack.c.h.b16 %v3125
  %v3154 = vunpack.c.l.b16 %v3128
  %v3155 = vunpack.c.h.b16 %v3128
  %v3156 = vunpack.c.l.b16 %v3131
  %v3157 = vunpack.c.h.b16 %v3131
  %v3158 = vunpack.c.l.b16 %v3134
  %v3159 = vunpack.c.h.b16 %v3134
  %v3160 = vunpack.c.l.b16 %v3137
  %v3161 = vunpack.c.h.b16 %v3137
  %v3162 = vpack.c.b16 %v3146, %v3146
  %v3163 = vpack.c.b16 %v3147, %v3147
  %v3164 = vpack.c.b16 %v3148, %v3148
  %v3165 = vpack.c.b16 %v3149, %v3149
  %v3166 = vpack.c.b16 %v3150, %v3150
  %v3167 = vpack.c.b16 %v3151, %v3151
  %v3168 = vpack.c.b16 %v3152, %v3152
  %v3169 = vpack.c.b16 %v3153, %v3153
  %v3170 = vpack.c.b16 %v3154, %v3154
  %v3171 = vpack.c.b16 %v3155, %v3155
  %v3172 = vpack.c.b16 %v3156, %v3156
  %v3173 = vpack.c.b16 %v3157, %v3157
  %v3174 = vpack.c.b16 %v3158, %v3158
  %v3175 = vpack.c.b16 %v3159, %v3159
  %v3176 = vpack.c.b16 %v3160, %v3160
  %v3177 = vpack.c.b16 %v3161, %v3161
  %3194 = vst [vmem:[#allocation3] sm:$0xf] %v3162
  %3195 = vst [vmem:[#allocation3 + $0x14] sm:$0xf] %v3163
  %3196 = vst [vmem:[#allocation3 + $0x28] sm:$0xf] %v3164
  %3197 = vst [vmem:[#allocation3 + $0x3c] sm:$0xf] %v3165
  %3198 = vst [vmem:[#allocation3 + $0x50] sm:$0xf] %v3166
  %3199 = vst [vmem:[#allocation3 + $0x64] sm:$0xf] %v3167
  %3200 = vst [vmem:[#allocation3 + $0x78] sm:$0xf] %v3168
  %3201 = vst [vmem:[#allocation3 + $0x8c] sm:$0xf] %v3169
  %3202 = vst [vmem:[#allocation3 + $0xa0] sm:$0xf] %v3170
  %3203 = vst [vmem:[#allocation3 + $0xb4] sm:$0xf] %v3171
  %3204 = vst [vmem:[#allocation3 + $0xc8] sm:$0xf] %v3172
  %3205 = vst [vmem:[#allocation3 + $0xdc] sm:$0xf] %v3173
  %3206 = vst [vmem:[#allocation3 + $0xf0] sm:$0xf] %v3174
  %3207 = vst [vmem:[#allocation3 + $0x104] sm:$0xf] %v3175
  %3208 = vst [vmem:[#allocation3 + $0x118] sm:$0xf] %v3176
  %3209 = vst [vmem:[#allocation3 + $0x12c] sm:$0xf] %v3177
  %s3210 = scalar_lea.vmem [#allocation2], 16
  %v3211 = vld [vmem:[%s3210] sm:$0xf]
  %v3212 = vld [vmem:[%s3210 + $0x8] sm:$0xf]
  %v3213 = vld [vmem:[%s3210 + $0x10] sm:$0xf]
  %v3214 = vld [vmem:[%s3210 + $0x18] sm:$0xf]
  %v3215 = vld [vmem:[%s3210 + $0x20] sm:$0xf]
  %v3216 = vld [vmem:[%s3210 + $0x28] sm:$0xf]
  %v3217 = vld [vmem:[%s3210 + $0x30] sm:$0xf]
  %v3218 = vld [vmem:[%s3210 + $0x38] sm:$0xf]
  %v3219 = vld [vmem:[%s3210 + $0x50] sm:$0xf]
  %v3220 = vld [vmem:[%s3210 + $0x58] sm:$0xf]
  %v3221 = vld [vmem:[%s3210 + $0x60] sm:$0xf]
  %v3222 = vld [vmem:[%s3210 + $0x68] sm:$0xf]
  %v3223 = vld [vmem:[%s3210 + $0x70] sm:$0xf]
  %v3224 = vld [vmem:[%s3210 + $0x78] sm:$0xf]
  %v3225 = vld [vmem:[%s3210 + $0x80] sm:$0xf]
  %v3226 = vld [vmem:[%s3210 + $0x88] sm:$0xf]
  %v3227 = vld [vmem:[#allocation2] sm:$0xf]
  %v3228 = vld [vmem:[#allocation2 + $0x4] sm:$0x1]
  %v3229 = vld [vmem:[#allocation2 + $0x8] sm:$0xf]
  %v3230 = vld [vmem:[#allocation2 + $0xc] sm:$0x1]
  %v3231 = vld [vmem:[#allocation2 + $0x10] sm:$0xf]
  %v3232 = vld [vmem:[#allocation2 + $0x14] sm:$0x1]
  %v3233 = vld [vmem:[#allocation2 + $0x18] sm:$0xf]
  %v3234 = vld [vmem:[#allocation2 + $0x1c] sm:$0x1]
  %v3235 = vld [vmem:[#allocation2 + $0x20] sm:$0xf]
  %v3236 = vld [vmem:[#allocation2 + $0x24] sm:$0x1]
  %v3237 = vld [vmem:[#allocation2 + $0x28] sm:$0xf]
  %v3238 = vld [vmem:[#allocation2 + $0x2c] sm:$0x1]
  %v3239 = vld [vmem:[#allocation2 + $0x30] sm:$0xf]
  %v3240 = vld [vmem:[#allocation2 + $0x34] sm:$0x1]
  %v3241 = vld [vmem:[#allocation2 + $0x38] sm:$0xf]
  %v3242 = vld [vmem:[#allocation2 + $0x3c] sm:$0x1]
  %v3243 = vld [vmem:[#allocation2 + $0x50] sm:$0xf]
  %v3244 = vld [vmem:[#allocation2 + $0x54] sm:$0x1]
  %v3245 = vld [vmem:[#allocation2 + $0x58] sm:$0xf]
  %v3246 = vld [vmem:[#allocation2 + $0x5c] sm:$0x1]
  %v3247 = vld [vmem:[#allocation2 + $0x60] sm:$0xf]
  %v3248 = vld [vmem:[#allocation2 + $0x64] sm:$0x1]
  %v3249 = vld [vmem:[#allocation2 + $0x68] sm:$0xf]
  %v3250 = vld [vmem:[#allocation2 + $0x6c] sm:$0x1]
  %v3251 = vld [vmem:[#allocation2 + $0x70] sm:$0xf]
  %v3252 = vld [vmem:[#allocation2 + $0x74] sm:$0x1]
  %v3253 = vld [vmem:[#allocation2 + $0x78] sm:$0xf]
  %v3254 = vld [vmem:[#allocation2 + $0x7c] sm:$0x1]
  %v3255 = vld [vmem:[#allocation2 + $0x80] sm:$0xf]
  %v3256 = vld [vmem:[#allocation2 + $0x84] sm:$0x1]
  %v3257 = vld [vmem:[#allocation2 + $0x88] sm:$0xf]
  %v3258 = vld [vmem:[#allocation2 + $0x8c] sm:$0x1]
  %vm3259 = vsmask.f32 3328
  %vm3260 = vsmask.f32 7440
  %vm3261 = vmor %vm3259, %vm3260
  %v3263 = vshrl.u32 %v3227, 16
  %v3265 = vrot.slane %v3263, 4
  %v3266 = vshll.u32 %v3227, 16
  %v3268 = vrot.slane %v3266, 5
  %v3269 = vor.u32 %v3265, %v3268
  %v3270 = vrot.slane %v3269, 4
  %v3272 = vshll.u32 %v3228, 16
  %v3274 = vrot.slane %v3272, 5
  %v3275 = vsel %vm3261, %v3270, %v3274
  %v3277 = vshrl.u32 %v3229, 16
  %v3279 = vrot.slane %v3277, 4
  %v3280 = vshll.u32 %v3229, 16
  %v3282 = vrot.slane %v3280, 5
  %v3283 = vor.u32 %v3279, %v3282
  %v3284 = vrot.slane %v3283, 4
  %v3286 = vshll.u32 %v3230, 16
  %v3288 = vrot.slane %v3286, 5
  %v3289 = vsel %vm3261, %v3284, %v3288
  %v3291 = vshrl.u32 %v3231, 16
  %v3293 = vrot.slane %v3291, 4
  %v3294 = vshll.u32 %v3231, 16
  %v3296 = vrot.slane %v3294, 5
  %v3297 = vor.u32 %v3293, %v3296
  %v3298 = vrot.slane %v3297, 4
  %v3300 = vshll.u32 %v3232, 16
  %v3302 = vrot.slane %v3300, 5
  %v3303 = vsel %vm3261, %v3298, %v3302
  %v3305 = vshrl.u32 %v3233, 16
  %v3307 = vrot.slane %v3305, 4
  %v3308 = vshll.u32 %v3233, 16
  %v3310 = vrot.slane %v3308, 5
  %v3311 = vor.u32 %v3307, %v3310
  %v3312 = vrot.slane %v3311, 4
  %v3314 = vshll.u32 %v3234, 16
  %v3316 = vrot.slane %v3314, 5
  %v3317 = vsel %vm3261, %v3312, %v3316
  %v3319 = vshrl.u32 %v3235, 16
  %v3321 = vrot.slane %v3319, 4
  %v3322 = vshll.u32 %v3235, 16
  %v3324 = vrot.slane %v3322, 5
  %v3325 = vor.u32 %v3321, %v3324
  %v3326 = vrot.slane %v3325, 4
  %v3328 = vshll.u32 %v3236, 16
  %v3330 = vrot.slane %v3328, 5
  %v3331 = vsel %vm3261, %v3326, %v3330
  %v3333 = vshrl.u32 %v3237, 16
  %v3335 = vrot.slane %v3333, 4
  %v3336 = vshll.u32 %v3237, 16
  %v3338 = vrot.slane %v3336, 5
  %v3339 = vor.u32 %v3335, %v3338
  %v3340 = vrot.slane %v3339, 4
  %v3342 = vshll.u32 %v3238, 16
  %v3344 = vrot.slane %v3342, 5
  %v3345 = vsel %vm3261, %v3340, %v3344
  %v3347 = vshrl.u32 %v3239, 16
  %v3349 = vrot.slane %v3347, 4
  %v3350 = vshll.u32 %v3239, 16
  %v3352 = vrot.slane %v3350, 5
  %v3353 = vor.u32 %v3349, %v3352
  %v3354 = vrot.slane %v3353, 4
  %v3356 = vshll.u32 %v3240, 16
  %v3358 = vrot.slane %v3356, 5
  %v3359 = vsel %vm3261, %v3354, %v3358
  %v3361 = vshrl.u32 %v3241, 16
  %v3363 = vrot.slane %v3361, 4
  %v3364 = vshll.u32 %v3241, 16
  %v3366 = vrot.slane %v3364, 5
  %v3367 = vor.u32 %v3363, %v3366
  %v3368 = vrot.slane %v3367, 4
  %v3370 = vshll.u32 %v3242, 16
  %v3372 = vrot.slane %v3370, 5
  %v3373 = vsel %vm3261, %v3368, %v3372
  %v3375 = vshrl.u32 %v3243, 16
  %v3377 = vrot.slane %v3375, 4
  %v3378 = vshll.u32 %v3243, 16
  %v3380 = vrot.slane %v3378, 5
  %v3381 = vor.u32 %v3377, %v3380
  %v3382 = vrot.slane %v3381, 4
  %v3384 = vshll.u32 %v3244, 16
  %v3386 = vrot.slane %v3384, 5
  %v3387 = vsel %vm3261, %v3382, %v3386
  %v3389 = vshrl.u32 %v3245, 16
  %v3391 = vrot.slane %v3389, 4
  %v3392 = vshll.u32 %v3245, 16
  %v3394 = vrot.slane %v3392, 5
  %v3395 = vor.u32 %v3391, %v3394
  %v3396 = vrot.slane %v3395, 4
  %v3398 = vshll.u32 %v3246, 16
  %v3400 = vrot.slane %v3398, 5
  %v3401 = vsel %vm3261, %v3396, %v3400
  %v3403 = vshrl.u32 %v3247, 16
  %v3405 = vrot.slane %v3403, 4
  %v3406 = vshll.u32 %v3247, 16
  %v3408 = vrot.slane %v3406, 5
  %v3409 = vor.u32 %v3405, %v3408
  %v3410 = vrot.slane %v3409, 4
  %v3412 = vshll.u32 %v3248, 16
  %v3414 = vrot.slane %v3412, 5
  %v3415 = vsel %vm3261, %v3410, %v3414
  %v3417 = vshrl.u32 %v3249, 16
  %v3419 = vrot.slane %v3417, 4
  %v3420 = vshll.u32 %v3249, 16
  %v3422 = vrot.slane %v3420, 5
  %v3423 = vor.u32 %v3419, %v3422
  %v3424 = vrot.slane %v3423, 4
  %v3426 = vshll.u32 %v3250, 16
  %v3428 = vrot.slane %v3426, 5
  %v3429 = vsel %vm3261, %v3424, %v3428
  %v3431 = vshrl.u32 %v3251, 16
  %v3433 = vrot.slane %v3431, 4
  %v3434 = vshll.u32 %v3251, 16
  %v3436 = vrot.slane %v3434, 5
  %v3437 = vor.u32 %v3433, %v3436
  %v3438 = vrot.slane %v3437, 4
  %v3440 = vshll.u32 %v3252, 16
  %v3442 = vrot.slane %v3440, 5
  %v3443 = vsel %vm3261, %v3438, %v3442
  %v3445 = vshrl.u32 %v3253, 16
  %v3447 = vrot.slane %v3445, 4
  %v3448 = vshll.u32 %v3253, 16
  %v3450 = vrot.slane %v3448, 5
  %v3451 = vor.u32 %v3447, %v3450
  %v3452 = vrot.slane %v3451, 4
  %v3454 = vshll.u32 %v3254, 16
  %v3456 = vrot.slane %v3454, 5
  %v3457 = vsel %vm3261, %v3452, %v3456
  %v3459 = vshrl.u32 %v3255, 16
  %v3461 = vrot.slane %v3459, 4
  %v3462 = vshll.u32 %v3255, 16
  %v3464 = vrot.slane %v3462, 5
  %v3465 = vor.u32 %v3461, %v3464
  %v3466 = vrot.slane %v3465, 4
  %v3468 = vshll.u32 %v3256, 16
  %v3470 = vrot.slane %v3468, 5
  %v3471 = vsel %vm3261, %v3466, %v3470
  %v3473 = vshrl.u32 %v3257, 16
  %v3475 = vrot.slane %v3473, 4
  %v3476 = vshll.u32 %v3257, 16
  %v3478 = vrot.slane %v3476, 5
  %v3479 = vor.u32 %v3475, %v3478
  %v3480 = vrot.slane %v3479, 4
  %v3482 = vshll.u32 %v3258, 16
  %v3484 = vrot.slane %v3482, 5
  %v3485 = vsel %vm3261, %v3480, %v3484
  %v3502 = vunpack.c.l.b16 %v3211
  %v3503 = vunpack.c.l.b16 %v3212
  %v3504 = vunpack.c.l.b16 %v3213
  %v3505 = vunpack.c.l.b16 %v3214
  %v3506 = vunpack.c.l.b16 %v3215
  %v3507 = vunpack.c.l.b16 %v3216
  %v3508 = vunpack.c.l.b16 %v3217
  %v3509 = vunpack.c.l.b16 %v3218
  %v3510 = vunpack.c.l.b16 %v3219
  %v3511 = vunpack.c.l.b16 %v3220
  %v3512 = vunpack.c.l.b16 %v3221
  %v3513 = vunpack.c.l.b16 %v3222
  %v3514 = vunpack.c.l.b16 %v3223
  %v3515 = vunpack.c.l.b16 %v3224
  %v3516 = vunpack.c.l.b16 %v3225
  %v3517 = vunpack.c.l.b16 %v3226
  %v3518 = vpack.c.b16 %v3503, %v3502
  %v3519 = vpack.c.b16 %v3505, %v3504
  %v3520 = vpack.c.b16 %v3507, %v3506
  %v3521 = vpack.c.b16 %v3509, %v3508
  %v3522 = vpack.c.b16 %v3511, %v3510
  %v3523 = vpack.c.b16 %v3513, %v3512
  %v3524 = vpack.c.b16 %v3515, %v3514
  %v3525 = vpack.c.b16 %v3517, %v3516
  %v3526 = vunpack.c.l.b16 %v3275
  %v3527 = vunpack.c.l.b16 %v3289
  %v3528 = vunpack.c.l.b16 %v3303
  %v3529 = vunpack.c.l.b16 %v3317
  %v3530 = vunpack.c.l.b16 %v3331
  %v3531 = vunpack.c.l.b16 %v3345
  %v3532 = vunpack.c.l.b16 %v3359
  %v3533 = vunpack.c.l.b16 %v3373
  %v3534 = vunpack.c.l.b16 %v3387
  %v3535 = vunpack.c.l.b16 %v3401
  %v3536 = vunpack.c.l.b16 %v3415
  %v3537 = vunpack.c.l.b16 %v3429
  %v3538 = vunpack.c.l.b16 %v3443
  %v3539 = vunpack.c.l.b16 %v3457
  %v3540 = vunpack.c.l.b16 %v3471
  %v3541 = vunpack.c.l.b16 %v3485
  %v3542 = vpack.c.b16 %v3527, %v3526
  %v3543 = vpack.c.b16 %v3529, %v3528
  %v3544 = vpack.c.b16 %v3531, %v3530
  %v3545 = vpack.c.b16 %v3533, %v3532
  %v3546 = vpack.c.b16 %v3535, %v3534
  %v3547 = vpack.c.b16 %v3537, %v3536
  %v3548 = vpack.c.b16 %v3539, %v3538
  %v3549 = vpack.c.b16 %v3541, %v3540
  %3550 = vrot.lane.b32.xlu0 %v3542, 64
  %v3551 = vpop.permute.xlu0 %3550
  %3552 = vrot.lane.b32.xlu0 %v3543, 64
  %v3553 = vpop.permute.xlu0 %3552
  %3554 = vrot.lane.b32.xlu0 %v3544, 64
  %v3555 = vpop.permute.xlu0 %3554
  %3556 = vrot.lane.b32.xlu0 %v3545, 64
  %v3557 = vpop.permute.xlu0 %3556
  %3558 = vrot.lane.b32.xlu0 %v3546, 64
  %v3559 = vpop.permute.xlu0 %3558
  %3560 = vrot.lane.b32.xlu0 %v3547, 64
  %v3561 = vpop.permute.xlu0 %3560
  %3562 = vrot.lane.b32.xlu0 %v3548, 64
  %v3563 = vpop.permute.xlu0 %3562
  %3564 = vrot.lane.b32.xlu0 %v3549, 64
  %v3565 = vpop.permute.xlu0 %3564
  %v3568 = vsel %vm893, %v3518, %v3551
  %v3571 = vsel %vm893, %v3519, %v3553
  %v3574 = vsel %vm893, %v3520, %v3555
  %v3577 = vsel %vm893, %v3521, %v3557
  %v3580 = vsel %vm893, %v3522, %v3559
  %v3583 = vsel %vm893, %v3523, %v3561
  %v3586 = vsel %vm893, %v3524, %v3563
  %v3589 = vsel %vm893, %v3525, %v3565
  %v3598 = vunpack.c.l.b16 %v3568
  %v3599 = vunpack.c.h.b16 %v3568
  %v3600 = vunpack.c.l.b16 %v3571
  %v3601 = vunpack.c.h.b16 %v3571
  %v3602 = vunpack.c.l.b16 %v3574
  %v3603 = vunpack.c.h.b16 %v3574
  %v3604 = vunpack.c.l.b16 %v3577
  %v3605 = vunpack.c.h.b16 %v3577
  %v3606 = vunpack.c.l.b16 %v3580
  %v3607 = vunpack.c.h.b16 %v3580
  %v3608 = vunpack.c.l.b16 %v3583
  %v3609 = vunpack.c.h.b16 %v3583
  %v3610 = vunpack.c.l.b16 %v3586
  %v3611 = vunpack.c.h.b16 %v3586
  %v3612 = vunpack.c.l.b16 %v3589
  %v3613 = vunpack.c.h.b16 %v3589
  %v3614 = vpack.c.b16 %v3598, %v3598
  %v3615 = vpack.c.b16 %v3599, %v3599
  %v3616 = vpack.c.b16 %v3600, %v3600
  %v3617 = vpack.c.b16 %v3601, %v3601
  %v3618 = vpack.c.b16 %v3602, %v3602
  %v3619 = vpack.c.b16 %v3603, %v3603
  %v3620 = vpack.c.b16 %v3604, %v3604
  %v3621 = vpack.c.b16 %v3605, %v3605
  %v3622 = vpack.c.b16 %v3606, %v3606
  %v3623 = vpack.c.b16 %v3607, %v3607
  %v3624 = vpack.c.b16 %v3608, %v3608
  %v3625 = vpack.c.b16 %v3609, %v3609
  %v3626 = vpack.c.b16 %v3610, %v3610
  %v3627 = vpack.c.b16 %v3611, %v3611
  %v3628 = vpack.c.b16 %v3612, %v3612
  %v3629 = vpack.c.b16 %v3613, %v3613
  %3646 = vst [vmem:[#allocation3 + $0x4] sm:$0xf] %v3614
  %3647 = vst [vmem:[#allocation3 + $0x18] sm:$0xf] %v3615
  %3648 = vst [vmem:[#allocation3 + $0x2c] sm:$0xf] %v3616
  %3649 = vst [vmem:[#allocation3 + $0x40] sm:$0xf] %v3617
  %3650 = vst [vmem:[#allocation3 + $0x54] sm:$0xf] %v3618
  %3651 = vst [vmem:[#allocation3 + $0x68] sm:$0xf] %v3619
  %3652 = vst [vmem:[#allocation3 + $0x7c] sm:$0xf] %v3620
  %3653 = vst [vmem:[#allocation3 + $0x90] sm:$0xf] %v3621
  %3654 = vst [vmem:[#allocation3 + $0xa4] sm:$0xf] %v3622
  %3655 = vst [vmem:[#allocation3 + $0xb8] sm:$0xf] %v3623
  %3656 = vst [vmem:[#allocation3 + $0xcc] sm:$0xf] %v3624
  %3657 = vst [vmem:[#allocation3 + $0xe0] sm:$0xf] %v3625
  %3658 = vst [vmem:[#allocation3 + $0xf4] sm:$0xf] %v3626
  %3659 = vst [vmem:[#allocation3 + $0x108] sm:$0xf] %v3627
  %3660 = vst [vmem:[#allocation3 + $0x11c] sm:$0xf] %v3628
  %3661 = vst [vmem:[#allocation3 + $0x130] sm:$0xf] %v3629
  %v3662 = vld [vmem:[%s2887] sm:$0xf]
  %v3663 = vld [vmem:[%s2887 + $0x4] sm:$0x1]
  %v3664 = vld [vmem:[%s2887 + $0x8] sm:$0xf]
  %v3665 = vld [vmem:[%s2887 + $0xc] sm:$0x1]
  %v3666 = vld [vmem:[%s2887 + $0x10] sm:$0xf]
  %v3667 = vld [vmem:[%s2887 + $0x14] sm:$0x1]
  %v3668 = vld [vmem:[%s2887 + $0x18] sm:$0xf]
  %v3669 = vld [vmem:[%s2887 + $0x1c] sm:$0x1]
  %v3670 = vld [vmem:[%s2887 + $0x20] sm:$0xf]
  %v3671 = vld [vmem:[%s2887 + $0x24] sm:$0x1]
  %v3672 = vld [vmem:[%s2887 + $0x28] sm:$0xf]
  %v3673 = vld [vmem:[%s2887 + $0x2c] sm:$0x1]
  %v3674 = vld [vmem:[%s2887 + $0x30] sm:$0xf]
  %v3675 = vld [vmem:[%s2887 + $0x34] sm:$0x1]
  %v3676 = vld [vmem:[%s2887 + $0x38] sm:$0xf]
  %v3677 = vld [vmem:[%s2887 + $0x3c] sm:$0x1]
  %v3678 = vld [vmem:[%s2887 + $0x50] sm:$0xf]
  %v3679 = vld [vmem:[%s2887 + $0x54] sm:$0x1]
  %v3680 = vld [vmem:[%s2887 + $0x58] sm:$0xf]
  %v3681 = vld [vmem:[%s2887 + $0x5c] sm:$0x1]
  %v3682 = vld [vmem:[%s2887 + $0x60] sm:$0xf]
  %v3683 = vld [vmem:[%s2887 + $0x64] sm:$0x1]
  %v3684 = vld [vmem:[%s2887 + $0x68] sm:$0xf]
  %v3685 = vld [vmem:[%s2887 + $0x6c] sm:$0x1]
  %v3686 = vld [vmem:[%s2887 + $0x70] sm:$0xf]
  %v3687 = vld [vmem:[%s2887 + $0x74] sm:$0x1]
  %v3688 = vld [vmem:[%s2887 + $0x78] sm:$0xf]
  %v3689 = vld [vmem:[%s2887 + $0x7c] sm:$0x1]
  %v3690 = vld [vmem:[%s2887 + $0x80] sm:$0xf]
  %v3691 = vld [vmem:[%s2887 + $0x84] sm:$0x1]
  %v3692 = vld [vmem:[%s2887 + $0x88] sm:$0xf]
  %v3693 = vld [vmem:[%s2887 + $0x8c] sm:$0x1]
  %v3695 = vshrl.u32 %v3662, 16
  %v3697 = vrot.slane %v3695, 4
  %v3698 = vshll.u32 %v3662, 16
  %v3700 = vrot.slane %v3698, 5
  %v3701 = vor.u32 %v3697, %v3700
  %v3702 = vrot.slane %v3701, 4
  %v3704 = vshll.u32 %v3663, 16
  %v3706 = vrot.slane %v3704, 5
  %v3707 = vsel %vm3261, %v3702, %v3706
  %v3709 = vshrl.u32 %v3664, 16
  %v3711 = vrot.slane %v3709, 4
  %v3712 = vshll.u32 %v3664, 16
  %v3714 = vrot.slane %v3712, 5
  %v3715 = vor.u32 %v3711, %v3714
  %v3716 = vrot.slane %v3715, 4
  %v3718 = vshll.u32 %v3665, 16
  %v3720 = vrot.slane %v3718, 5
  %v3721 = vsel %vm3261, %v3716, %v3720
  %v3723 = vshrl.u32 %v3666, 16
  %v3725 = vrot.slane %v3723, 4
  %v3726 = vshll.u32 %v3666, 16
  %v3728 = vrot.slane %v3726, 5
  %v3729 = vor.u32 %v3725, %v3728
  %v3730 = vrot.slane %v3729, 4
  %v3732 = vshll.u32 %v3667, 16
  %v3734 = vrot.slane %v3732, 5
  %v3735 = vsel %vm3261, %v3730, %v3734
  %v3737 = vshrl.u32 %v3668, 16
  %v3739 = vrot.slane %v3737, 4
  %v3740 = vshll.u32 %v3668, 16
  %v3742 = vrot.slane %v3740, 5
  %v3743 = vor.u32 %v3739, %v3742
  %v3744 = vrot.slane %v3743, 4
  %v3746 = vshll.u32 %v3669, 16
  %v3748 = vrot.slane %v3746, 5
  %v3749 = vsel %vm3261, %v3744, %v3748
  %v3751 = vshrl.u32 %v3670, 16
  %v3753 = vrot.slane %v3751, 4
  %v3754 = vshll.u32 %v3670, 16
  %v3756 = vrot.slane %v3754, 5
  %v3757 = vor.u32 %v3753, %v3756
  %v3758 = vrot.slane %v3757, 4
  %v3760 = vshll.u32 %v3671, 16
  %v3762 = vrot.slane %v3760, 5
  %v3763 = vsel %vm3261, %v3758, %v3762
  %v3765 = vshrl.u32 %v3672, 16
  %v3767 = vrot.slane %v3765, 4
  %v3768 = vshll.u32 %v3672, 16
  %v3770 = vrot.slane %v3768, 5
  %v3771 = vor.u32 %v3767, %v3770
  %v3772 = vrot.slane %v3771, 4
  %v3774 = vshll.u32 %v3673, 16
  %v3776 = vrot.slane %v3774, 5
  %v3777 = vsel %vm3261, %v3772, %v3776
  %v3779 = vshrl.u32 %v3674, 16
  %v3781 = vrot.slane %v3779, 4
  %v3782 = vshll.u32 %v3674, 16
  %v3784 = vrot.slane %v3782, 5
  %v3785 = vor.u32 %v3781, %v3784
  %v3786 = vrot.slane %v3785, 4
  %v3788 = vshll.u32 %v3675, 16
  %v3790 = vrot.slane %v3788, 5
  %v3791 = vsel %vm3261, %v3786, %v3790
  %v3793 = vshrl.u32 %v3676, 16
  %v3795 = vrot.slane %v3793, 4
  %v3796 = vshll.u32 %v3676, 16
  %v3798 = vrot.slane %v3796, 5
  %v3799 = vor.u32 %v3795, %v3798
  %v3800 = vrot.slane %v3799, 4
  %v3802 = vshll.u32 %v3677, 16
  %v3804 = vrot.slane %v3802, 5
  %v3805 = vsel %vm3261, %v3800, %v3804
  %v3807 = vshrl.u32 %v3678, 16
  %v3809 = vrot.slane %v3807, 4
  %v3810 = vshll.u32 %v3678, 16
  %v3812 = vrot.slane %v3810, 5
  %v3813 = vor.u32 %v3809, %v3812
  %v3814 = vrot.slane %v3813, 4
  %v3816 = vshll.u32 %v3679, 16
  %v3818 = vrot.slane %v3816, 5
  %v3819 = vsel %vm3261, %v3814, %v3818
  %v3821 = vshrl.u32 %v3680, 16
  %v3823 = vrot.slane %v3821, 4
  %v3824 = vshll.u32 %v3680, 16
  %v3826 = vrot.slane %v3824, 5
  %v3827 = vor.u32 %v3823, %v3826
  %v3828 = vrot.slane %v3827, 4
  %v3830 = vshll.u32 %v3681, 16
  %v3832 = vrot.slane %v3830, 5
  %v3833 = vsel %vm3261, %v3828, %v3832
  %v3835 = vshrl.u32 %v3682, 16
  %v3837 = vrot.slane %v3835, 4
  %v3838 = vshll.u32 %v3682, 16
  %v3840 = vrot.slane %v3838, 5
  %v3841 = vor.u32 %v3837, %v3840
  %v3842 = vrot.slane %v3841, 4
  %v3844 = vshll.u32 %v3683, 16
  %v3846 = vrot.slane %v3844, 5
  %v3847 = vsel %vm3261, %v3842, %v3846
  %v3849 = vshrl.u32 %v3684, 16
  %v3851 = vrot.slane %v3849, 4
  %v3852 = vshll.u32 %v3684, 16
  %v3854 = vrot.slane %v3852, 5
  %v3855 = vor.u32 %v3851, %v3854
  %v3856 = vrot.slane %v3855, 4
  %v3858 = vshll.u32 %v3685, 16
  %v3860 = vrot.slane %v3858, 5
  %v3861 = vsel %vm3261, %v3856, %v3860
  %v3863 = vshrl.u32 %v3686, 16
  %v3865 = vrot.slane %v3863, 4
  %v3866 = vshll.u32 %v3686, 16
  %v3868 = vrot.slane %v3866, 5
  %v3869 = vor.u32 %v3865, %v3868
  %v3870 = vrot.slane %v3869, 4
  %v3872 = vshll.u32 %v3687, 16
  %v3874 = vrot.slane %v3872, 5
  %v3875 = vsel %vm3261, %v3870, %v3874
  %v3877 = vshrl.u32 %v3688, 16
  %v3879 = vrot.slane %v3877, 4
  %v3880 = vshll.u32 %v3688, 16
  %v3882 = vrot.slane %v3880, 5
  %v3883 = vor.u32 %v3879, %v3882
  %v3884 = vrot.slane %v3883, 4
  %v3886 = vshll.u32 %v3689, 16
  %v3888 = vrot.slane %v3886, 5
  %v3889 = vsel %vm3261, %v3884, %v3888
  %v3891 = vshrl.u32 %v3690, 16
  %v3893 = vrot.slane %v3891, 4
  %v3894 = vshll.u32 %v3690, 16
  %v3896 = vrot.slane %v3894, 5
  %v3897 = vor.u32 %v3893, %v3896
  %v3898 = vrot.slane %v3897, 4
  %v3900 = vshll.u32 %v3691, 16
  %v3902 = vrot.slane %v3900, 5
  %v3903 = vsel %vm3261, %v3898, %v3902
  %v3905 = vshrl.u32 %v3692, 16
  %v3907 = vrot.slane %v3905, 4
  %v3908 = vshll.u32 %v3692, 16
  %v3910 = vrot.slane %v3908, 5
  %v3911 = vor.u32 %v3907, %v3910
  %v3912 = vrot.slane %v3911, 4
  %v3914 = vshll.u32 %v3693, 16
  %v3916 = vrot.slane %v3914, 5
  %v3917 = vsel %vm3261, %v3912, %v3916
  %v3918 = vld [vmem:[%s3210] sm:$0xf]
  %v3919 = vld [vmem:[%s3210 + $0x4] sm:$0x1]
  %v3920 = vld [vmem:[%s3210 + $0x8] sm:$0xf]
  %v3921 = vld [vmem:[%s3210 + $0xc] sm:$0x1]
  %v3922 = vld [vmem:[%s3210 + $0x10] sm:$0xf]
  %v3923 = vld [vmem:[%s3210 + $0x14] sm:$0x1]
  %v3924 = vld [vmem:[%s3210 + $0x18] sm:$0xf]
  %v3925 = vld [vmem:[%s3210 + $0x1c] sm:$0x1]
  %v3926 = vld [vmem:[%s3210 + $0x20] sm:$0xf]
  %v3927 = vld [vmem:[%s3210 + $0x24] sm:$0x1]
  %v3928 = vld [vmem:[%s3210 + $0x28] sm:$0xf]
  %v3929 = vld [vmem:[%s3210 + $0x2c] sm:$0x1]
  %v3930 = vld [vmem:[%s3210 + $0x30] sm:$0xf]
  %v3931 = vld [vmem:[%s3210 + $0x34] sm:$0x1]
  %v3932 = vld [vmem:[%s3210 + $0x38] sm:$0xf]
  %v3933 = vld [vmem:[%s3210 + $0x3c] sm:$0x1]
  %v3934 = vld [vmem:[%s3210 + $0x50] sm:$0xf]
  %v3935 = vld [vmem:[%s3210 + $0x54] sm:$0x1]
  %v3936 = vld [vmem:[%s3210 + $0x58] sm:$0xf]
  %v3937 = vld [vmem:[%s3210 + $0x5c] sm:$0x1]
  %v3938 = vld [vmem:[%s3210 + $0x60] sm:$0xf]
  %v3939 = vld [vmem:[%s3210 + $0x64] sm:$0x1]
  %v3940 = vld [vmem:[%s3210 + $0x68] sm:$0xf]
  %v3941 = vld [vmem:[%s3210 + $0x6c] sm:$0x1]
  %v3942 = vld [vmem:[%s3210 + $0x70] sm:$0xf]
  %v3943 = vld [vmem:[%s3210 + $0x74] sm:$0x1]
  %v3944 = vld [vmem:[%s3210 + $0x78] sm:$0xf]
  %v3945 = vld [vmem:[%s3210 + $0x7c] sm:$0x1]
  %v3946 = vld [vmem:[%s3210 + $0x80] sm:$0xf]
  %v3947 = vld [vmem:[%s3210 + $0x84] sm:$0x1]
  %v3948 = vld [vmem:[%s3210 + $0x88] sm:$0xf]
  %v3949 = vld [vmem:[%s3210 + $0x8c] sm:$0x1]
  %v3951 = vshrl.u32 %v3918, 16
  %v3953 = vrot.slane %v3951, 4
  %v3954 = vshll.u32 %v3918, 16
  %v3956 = vrot.slane %v3954, 5
  %v3957 = vor.u32 %v3953, %v3956
  %v3958 = vrot.slane %v3957, 4
  %v3960 = vshll.u32 %v3919, 16
  %v3962 = vrot.slane %v3960, 5
  %v3963 = vsel %vm3261, %v3958, %v3962
  %v3965 = vshrl.u32 %v3920, 16
  %v3967 = vrot.slane %v3965, 4
  %v3968 = vshll.u32 %v3920, 16
  %v3970 = vrot.slane %v3968, 5
  %v3971 = vor.u32 %v3967, %v3970
  %v3972 = vrot.slane %v3971, 4
  %v3974 = vshll.u32 %v3921, 16
  %v3976 = vrot.slane %v3974, 5
  %v3977 = vsel %vm3261, %v3972, %v3976
  %v3979 = vshrl.u32 %v3922, 16
  %v3981 = vrot.slane %v3979, 4
  %v3982 = vshll.u32 %v3922, 16
  %v3984 = vrot.slane %v3982, 5
  %v3985 = vor.u32 %v3981, %v3984
  %v3986 = vrot.slane %v3985, 4
  %v3988 = vshll.u32 %v3923, 16
  %v3990 = vrot.slane %v3988, 5
  %v3991 = vsel %vm3261, %v3986, %v3990
  %v3993 = vshrl.u32 %v3924, 16
  %v3995 = vrot.slane %v3993, 4
  %v3996 = vshll.u32 %v3924, 16
  %v3998 = vrot.slane %v3996, 5
  %v3999 = vor.u32 %v3995, %v3998
  %v4000 = vrot.slane %v3999, 4
  %v4002 = vshll.u32 %v3925, 16
  %v4004 = vrot.slane %v4002, 5
  %v4005 = vsel %vm3261, %v4000, %v4004
  %v4007 = vshrl.u32 %v3926, 16
  %v4009 = vrot.slane %v4007, 4
  %v4010 = vshll.u32 %v3926, 16
  %v4012 = vrot.slane %v4010, 5
  %v4013 = vor.u32 %v4009, %v4012
  %v4014 = vrot.slane %v4013, 4
  %v4016 = vshll.u32 %v3927, 16
  %v4018 = vrot.slane %v4016, 5
  %v4019 = vsel %vm3261, %v4014, %v4018
  %v4021 = vshrl.u32 %v3928, 16
  %v4023 = vrot.slane %v4021, 4
  %v4024 = vshll.u32 %v3928, 16
  %v4026 = vrot.slane %v4024, 5
  %v4027 = vor.u32 %v4023, %v4026
  %v4028 = vrot.slane %v4027, 4
  %v4030 = vshll.u32 %v3929, 16
  %v4032 = vrot.slane %v4030, 5
  %v4033 = vsel %vm3261, %v4028, %v4032
  %v4035 = vshrl.u32 %v3930, 16
  %v4037 = vrot.slane %v4035, 4
  %v4038 = vshll.u32 %v3930, 16
  %v4040 = vrot.slane %v4038, 5
  %v4041 = vor.u32 %v4037, %v4040
  %v4042 = vrot.slane %v4041, 4
  %v4044 = vshll.u32 %v3931, 16
  %v4046 = vrot.slane %v4044, 5
  %v4047 = vsel %vm3261, %v4042, %v4046
  %v4049 = vshrl.u32 %v3932, 16
  %v4051 = vrot.slane %v4049, 4
  %v4052 = vshll.u32 %v3932, 16
  %v4054 = vrot.slane %v4052, 5
  %v4055 = vor.u32 %v4051, %v4054
  %v4056 = vrot.slane %v4055, 4
  %v4058 = vshll.u32 %v3933, 16
  %v4060 = vrot.slane %v4058, 5
  %v4061 = vsel %vm3261, %v4056, %v4060
  %v4063 = vshrl.u32 %v3934, 16
  %v4065 = vrot.slane %v4063, 4
  %v4066 = vshll.u32 %v3934, 16
  %v4068 = vrot.slane %v4066, 5
  %v4069 = vor.u32 %v4065, %v4068
  %v4070 = vrot.slane %v4069, 4
  %v4072 = vshll.u32 %v3935, 16
  %v4074 = vrot.slane %v4072, 5
  %v4075 = vsel %vm3261, %v4070, %v4074
  %v4077 = vshrl.u32 %v3936, 16
  %v4079 = vrot.slane %v4077, 4
  %v4080 = vshll.u32 %v3936, 16
  %v4082 = vrot.slane %v4080, 5
  %v4083 = vor.u32 %v4079, %v4082
  %v4084 = vrot.slane %v4083, 4
  %v4086 = vshll.u32 %v3937, 16
  %v4088 = vrot.slane %v4086, 5
  %v4089 = vsel %vm3261, %v4084, %v4088
  %v4091 = vshrl.u32 %v3938, 16
  %v4093 = vrot.slane %v4091, 4
  %v4094 = vshll.u32 %v3938, 16
  %v4096 = vrot.slane %v4094, 5
  %v4097 = vor.u32 %v4093, %v4096
  %v4098 = vrot.slane %v4097, 4
  %v4100 = vshll.u32 %v3939, 16
  %v4102 = vrot.slane %v4100, 5
  %v4103 = vsel %vm3261, %v4098, %v4102
  %v4105 = vshrl.u32 %v3940, 16
  %v4107 = vrot.slane %v4105, 4
  %v4108 = vshll.u32 %v3940, 16
  %v4110 = vrot.slane %v4108, 5
  %v4111 = vor.u32 %v4107, %v4110
  %v4112 = vrot.slane %v4111, 4
  %v4114 = vshll.u32 %v3941, 16
  %v4116 = vrot.slane %v4114, 5
  %v4117 = vsel %vm3261, %v4112, %v4116
  %v4119 = vshrl.u32 %v3942, 16
  %v4121 = vrot.slane %v4119, 4
  %v4122 = vshll.u32 %v3942, 16
  %v4124 = vrot.slane %v4122, 5
  %v4125 = vor.u32 %v4121, %v4124
  %v4126 = vrot.slane %v4125, 4
  %v4128 = vshll.u32 %v3943, 16
  %v4130 = vrot.slane %v4128, 5
  %v4131 = vsel %vm3261, %v4126, %v4130
  %v4133 = vshrl.u32 %v3944, 16
  %v4135 = vrot.slane %v4133, 4
  %v4136 = vshll.u32 %v3944, 16
  %v4138 = vrot.slane %v4136, 5
  %v4139 = vor.u32 %v4135, %v4138
  %v4140 = vrot.slane %v4139, 4
  %v4142 = vshll.u32 %v3945, 16
  %v4144 = vrot.slane %v4142, 5
  %v4145 = vsel %vm3261, %v4140, %v4144
  %v4147 = vshrl.u32 %v3946, 16
  %v4149 = vrot.slane %v4147, 4
  %v4150 = vshll.u32 %v3946, 16
  %v4152 = vrot.slane %v4150, 5
  %v4153 = vor.u32 %v4149, %v4152
  %v4154 = vrot.slane %v4153, 4
  %v4156 = vshll.u32 %v3947, 16
  %v4158 = vrot.slane %v4156, 5
  %v4159 = vsel %vm3261, %v4154, %v4158
  %v4161 = vshrl.u32 %v3948, 16
  %v4163 = vrot.slane %v4161, 4
  %v4164 = vshll.u32 %v3948, 16
  %v4166 = vrot.slane %v4164, 5
  %v4167 = vor.u32 %v4163, %v4166
  %v4168 = vrot.slane %v4167, 4
  %v4170 = vshll.u32 %v3949, 16
  %v4172 = vrot.slane %v4170, 5
  %v4173 = vsel %vm3261, %v4168, %v4172
  %v4174 = vunpack.c.l.b16 %v3707
  %v4175 = vunpack.c.l.b16 %v3721
  %v4176 = vunpack.c.l.b16 %v3735
  %v4177 = vunpack.c.l.b16 %v3749
  %v4178 = vunpack.c.l.b16 %v3763
  %v4179 = vunpack.c.l.b16 %v3777
  %v4180 = vunpack.c.l.b16 %v3791
  %v4181 = vunpack.c.l.b16 %v3805
  %v4182 = vunpack.c.l.b16 %v3819
  %v4183 = vunpack.c.l.b16 %v3833
  %v4184 = vunpack.c.l.b16 %v3847
  %v4185 = vunpack.c.l.b16 %v3861
  %v4186 = vunpack.c.l.b16 %v3875
  %v4187 = vunpack.c.l.b16 %v3889
  %v4188 = vunpack.c.l.b16 %v3903
  %v4189 = vunpack.c.l.b16 %v3917
  %v4190 = vpack.c.b16 %v4175, %v4174
  %v4191 = vpack.c.b16 %v4177, %v4176
  %v4192 = vpack.c.b16 %v4179, %v4178
  %v4193 = vpack.c.b16 %v4181, %v4180
  %v4194 = vpack.c.b16 %v4183, %v4182
  %v4195 = vpack.c.b16 %v4185, %v4184
  %v4196 = vpack.c.b16 %v4187, %v4186
  %v4197 = vpack.c.b16 %v4189, %v4188
  %v4198 = vunpack.c.l.b16 %v3963
  %v4199 = vunpack.c.l.b16 %v3977
  %v4200 = vunpack.c.l.b16 %v3991
  %v4201 = vunpack.c.l.b16 %v4005
  %v4202 = vunpack.c.l.b16 %v4019
  %v4203 = vunpack.c.l.b16 %v4033
  %v4204 = vunpack.c.l.b16 %v4047
  %v4205 = vunpack.c.l.b16 %v4061
  %v4206 = vunpack.c.l.b16 %v4075
  %v4207 = vunpack.c.l.b16 %v4089
  %v4208 = vunpack.c.l.b16 %v4103
  %v4209 = vunpack.c.l.b16 %v4117
  %v4210 = vunpack.c.l.b16 %v4131
  %v4211 = vunpack.c.l.b16 %v4145
  %v4212 = vunpack.c.l.b16 %v4159
  %v4213 = vunpack.c.l.b16 %v4173
  %v4214 = vpack.c.b16 %v4199, %v4198
  %v4215 = vpack.c.b16 %v4201, %v4200
  %v4216 = vpack.c.b16 %v4203, %v4202
  %v4217 = vpack.c.b16 %v4205, %v4204
  %v4218 = vpack.c.b16 %v4207, %v4206
  %v4219 = vpack.c.b16 %v4209, %v4208
  %v4220 = vpack.c.b16 %v4211, %v4210
  %v4221 = vpack.c.b16 %v4213, %v4212
  %4222 = vrot.lane.b32.xlu0 %v4214, 64
  %v4223 = vpop.permute.xlu0 %4222
  %4224 = vrot.lane.b32.xlu0 %v4215, 64
  %v4225 = vpop.permute.xlu0 %4224
  %4226 = vrot.lane.b32.xlu0 %v4216, 64
  %v4227 = vpop.permute.xlu0 %4226
  %4228 = vrot.lane.b32.xlu0 %v4217, 64
  %v4229 = vpop.permute.xlu0 %4228
  %4230 = vrot.lane.b32.xlu0 %v4218, 64
  %v4231 = vpop.permute.xlu0 %4230
  %4232 = vrot.lane.b32.xlu0 %v4219, 64
  %v4233 = vpop.permute.xlu0 %4232
  %4234 = vrot.lane.b32.xlu0 %v4220, 64
  %v4235 = vpop.permute.xlu0 %4234
  %4236 = vrot.lane.b32.xlu0 %v4221, 64
  %v4237 = vpop.permute.xlu0 %4236
  %v4240 = vsel %vm893, %v4190, %v4223
  %v4243 = vsel %vm893, %v4191, %v4225
  %v4246 = vsel %vm893, %v4192, %v4227
  %v4249 = vsel %vm893, %v4193, %v4229
  %v4252 = vsel %vm893, %v4194, %v4231
  %v4255 = vsel %vm893, %v4195, %v4233
  %v4258 = vsel %vm893, %v4196, %v4235
  %v4261 = vsel %vm893, %v4197, %v4237
  %v4270 = vunpack.c.l.b16 %v4240
  %v4271 = vunpack.c.h.b16 %v4240
  %v4272 = vunpack.c.l.b16 %v4243
  %v4273 = vunpack.c.h.b16 %v4243
  %v4274 = vunpack.c.l.b16 %v4246
  %v4275 = vunpack.c.h.b16 %v4246
  %v4276 = vunpack.c.l.b16 %v4249
  %v4277 = vunpack.c.h.b16 %v4249
  %v4278 = vunpack.c.l.b16 %v4252
  %v4279 = vunpack.c.h.b16 %v4252
  %v4280 = vunpack.c.l.b16 %v4255
  %v4281 = vunpack.c.h.b16 %v4255
  %v4282 = vunpack.c.l.b16 %v4258
  %v4283 = vunpack.c.h.b16 %v4258
  %v4284 = vunpack.c.l.b16 %v4261
  %v4285 = vunpack.c.h.b16 %v4261
  %v4286 = vpack.c.b16 %v4270, %v4270
  %v4287 = vpack.c.b16 %v4271, %v4271
  %v4288 = vpack.c.b16 %v4272, %v4272
  %v4289 = vpack.c.b16 %v4273, %v4273
  %v4290 = vpack.c.b16 %v4274, %v4274
  %v4291 = vpack.c.b16 %v4275, %v4275
  %v4292 = vpack.c.b16 %v4276, %v4276
  %v4293 = vpack.c.b16 %v4277, %v4277
  %v4294 = vpack.c.b16 %v4278, %v4278
  %v4295 = vpack.c.b16 %v4279, %v4279
  %v4296 = vpack.c.b16 %v4280, %v4280
  %v4297 = vpack.c.b16 %v4281, %v4281
  %v4298 = vpack.c.b16 %v4282, %v4282
  %v4299 = vpack.c.b16 %v4283, %v4283
  %v4300 = vpack.c.b16 %v4284, %v4284
  %v4301 = vpack.c.b16 %v4285, %v4285
  %4318 = vst [vmem:[#allocation3 + $0x8] sm:$0xf] %v4286
  %4319 = vst [vmem:[#allocation3 + $0x1c] sm:$0xf] %v4287
  %4320 = vst [vmem:[#allocation3 + $0x30] sm:$0xf] %v4288
  %4321 = vst [vmem:[#allocation3 + $0x44] sm:$0xf] %v4289
  %4322 = vst [vmem:[#allocation3 + $0x58] sm:$0xf] %v4290
  %4323 = vst [vmem:[#allocation3 + $0x6c] sm:$0xf] %v4291
  %4324 = vst [vmem:[#allocation3 + $0x80] sm:$0xf] %v4292
  %4325 = vst [vmem:[#allocation3 + $0x94] sm:$0xf] %v4293
  %4326 = vst [vmem:[#allocation3 + $0xa8] sm:$0xf] %v4294
  %4327 = vst [vmem:[#allocation3 + $0xbc] sm:$0xf] %v4295
  %4328 = vst [vmem:[#allocation3 + $0xd0] sm:$0xf] %v4296
  %4329 = vst [vmem:[#allocation3 + $0xe4] sm:$0xf] %v4297
  %4330 = vst [vmem:[#allocation3 + $0xf8] sm:$0xf] %v4298
  %4331 = vst [vmem:[#allocation3 + $0x10c] sm:$0xf] %v4299
  %4332 = vst [vmem:[#allocation3 + $0x120] sm:$0xf] %v4300
  %4333 = vst [vmem:[#allocation3 + $0x134] sm:$0xf] %v4301
  %v4334 = vld [vmem:[#allocation2] sm:$0xe]
  %v4335 = vld [vmem:[#allocation2 + $0x4] sm:$0x1]
  %v4336 = vld [vmem:[#allocation2 + $0x8] sm:$0xe]
  %v4337 = vld [vmem:[#allocation2 + $0xc] sm:$0x1]
  %v4338 = vld [vmem:[#allocation2 + $0x10] sm:$0xe]
  %v4339 = vld [vmem:[#allocation2 + $0x14] sm:$0x1]
  %v4340 = vld [vmem:[#allocation2 + $0x18] sm:$0xe]
  %v4341 = vld [vmem:[#allocation2 + $0x1c] sm:$0x1]
  %v4342 = vld [vmem:[#allocation2 + $0x20] sm:$0xe]
  %v4343 = vld [vmem:[#allocation2 + $0x24] sm:$0x1]
  %v4344 = vld [vmem:[#allocation2 + $0x28] sm:$0xe]
  %v4345 = vld [vmem:[#allocation2 + $0x2c] sm:$0x1]
  %v4346 = vld [vmem:[#allocation2 + $0x30] sm:$0xe]
  %v4347 = vld [vmem:[#allocation2 + $0x34] sm:$0x1]
  %v4348 = vld [vmem:[#allocation2 + $0x38] sm:$0xe]
  %v4349 = vld [vmem:[#allocation2 + $0x3c] sm:$0x1]
  %v4350 = vld [vmem:[#allocation2 + $0x50] sm:$0xe]
  %v4351 = vld [vmem:[#allocation2 + $0x54] sm:$0x1]
  %v4352 = vld [vmem:[#allocation2 + $0x58] sm:$0xe]
  %v4353 = vld [vmem:[#allocation2 + $0x5c] sm:$0x1]
  %v4354 = vld [vmem:[#allocation2 + $0x60] sm:$0xe]
  %v4355 = vld [vmem:[#allocation2 + $0x64] sm:$0x1]
  %v4356 = vld [vmem:[#allocation2 + $0x68] sm:$0xe]
  %v4357 = vld [vmem:[#allocation2 + $0x6c] sm:$0x1]
  %v4358 = vld [vmem:[#allocation2 + $0x70] sm:$0xe]
  %v4359 = vld [vmem:[#allocation2 + $0x74] sm:$0x1]
  %v4360 = vld [vmem:[#allocation2 + $0x78] sm:$0xe]
  %v4361 = vld [vmem:[#allocation2 + $0x7c] sm:$0x1]
  %v4362 = vld [vmem:[#allocation2 + $0x80] sm:$0xe]
  %v4363 = vld [vmem:[#allocation2 + $0x84] sm:$0x1]
  %v4364 = vld [vmem:[#allocation2 + $0x88] sm:$0xe]
  %v4365 = vld [vmem:[#allocation2 + $0x8c] sm:$0x1]
  %vm4398 = vcmask 1042432
  %vm4399 = vcmask 1046532
  %vm4400 = vmor %vm4398, %vm4399
  %v4401 = vrot.slane %v4334, 5
  %v4402 = vrot.slane %v4401, 4
  %v4403 = vrot.slane %v4335, 5
  %v4404 = vsel %vm4400, %v4402, %v4403
  %v4405 = vrot.slane %v4336, 5
  %v4406 = vrot.slane %v4405, 4
  %v4407 = vrot.slane %v4337, 5
  %v4408 = vsel %vm4400, %v4406, %v4407
  %v4409 = vrot.slane %v4338, 5
  %v4410 = vrot.slane %v4409, 4
  %v4411 = vrot.slane %v4339, 5
  %v4412 = vsel %vm4400, %v4410, %v4411
  %v4413 = vrot.slane %v4340, 5
  %v4414 = vrot.slane %v4413, 4
  %v4415 = vrot.slane %v4341, 5
  %v4416 = vsel %vm4400, %v4414, %v4415
  %v4417 = vrot.slane %v4342, 5
  %v4418 = vrot.slane %v4417, 4
  %v4419 = vrot.slane %v4343, 5
  %v4420 = vsel %vm4400, %v4418, %v4419
  %v4421 = vrot.slane %v4344, 5
  %v4422 = vrot.slane %v4421, 4
  %v4423 = vrot.slane %v4345, 5
  %v4424 = vsel %vm4400, %v4422, %v4423
  %v4425 = vrot.slane %v4346, 5
  %v4426 = vrot.slane %v4425, 4
  %v4427 = vrot.slane %v4347, 5
  %v4428 = vsel %vm4400, %v4426, %v4427
  %v4429 = vrot.slane %v4348, 5
  %v4430 = vrot.slane %v4429, 4
  %v4431 = vrot.slane %v4349, 5
  %v4432 = vsel %vm4400, %v4430, %v4431
  %v4433 = vrot.slane %v4350, 5
  %v4434 = vrot.slane %v4433, 4
  %v4435 = vrot.slane %v4351, 5
  %v4436 = vsel %vm4400, %v4434, %v4435
  %v4437 = vrot.slane %v4352, 5
  %v4438 = vrot.slane %v4437, 4
  %v4439 = vrot.slane %v4353, 5
  %v4440 = vsel %vm4400, %v4438, %v4439
  %v4441 = vrot.slane %v4354, 5
  %v4442 = vrot.slane %v4441, 4
  %v4443 = vrot.slane %v4355, 5
  %v4444 = vsel %vm4400, %v4442, %v4443
  %v4445 = vrot.slane %v4356, 5
  %v4446 = vrot.slane %v4445, 4
  %v4447 = vrot.slane %v4357, 5
  %v4448 = vsel %vm4400, %v4446, %v4447
  %v4449 = vrot.slane %v4358, 5
  %v4450 = vrot.slane %v4449, 4
  %v4451 = vrot.slane %v4359, 5
  %v4452 = vsel %vm4400, %v4450, %v4451
  %v4453 = vrot.slane %v4360, 5
  %v4454 = vrot.slane %v4453, 4
  %v4455 = vrot.slane %v4361, 5
  %v4456 = vsel %vm4400, %v4454, %v4455
  %v4457 = vrot.slane %v4362, 5
  %v4458 = vrot.slane %v4457, 4
  %v4459 = vrot.slane %v4363, 5
  %v4460 = vsel %vm4400, %v4458, %v4459
  %v4461 = vrot.slane %v4364, 5
  %v4462 = vrot.slane %v4461, 4
  %v4463 = vrot.slane %v4365, 5
  %v4464 = vsel %vm4400, %v4462, %v4463
  %v4465 = vld [vmem:[%s2887] sm:$0xe]
  %v4466 = vld [vmem:[%s2887 + $0x4] sm:$0x1]
  %v4467 = vld [vmem:[%s2887 + $0x8] sm:$0xe]
  %v4468 = vld [vmem:[%s2887 + $0xc] sm:$0x1]
  %v4469 = vld [vmem:[%s2887 + $0x10] sm:$0xe]
  %v4470 = vld [vmem:[%s2887 + $0x14] sm:$0x1]
  %v4471 = vld [vmem:[%s2887 + $0x18] sm:$0xe]
  %v4472 = vld [vmem:[%s2887 + $0x1c] sm:$0x1]
  %v4473 = vld [vmem:[%s2887 + $0x20] sm:$0xe]
  %v4474 = vld [vmem:[%s2887 + $0x24] sm:$0x1]
  %v4475 = vld [vmem:[%s2887 + $0x28] sm:$0xe]
  %v4476 = vld [vmem:[%s2887 + $0x2c] sm:$0x1]
  %v4477 = vld [vmem:[%s2887 + $0x30] sm:$0xe]
  %v4478 = vld [vmem:[%s2887 + $0x34] sm:$0x1]
  %v4479 = vld [vmem:[%s2887 + $0x38] sm:$0xe]
  %v4480 = vld [vmem:[%s2887 + $0x3c] sm:$0x1]
  %v4481 = vld [vmem:[%s2887 + $0x50] sm:$0xe]
  %v4482 = vld [vmem:[%s2887 + $0x54] sm:$0x1]
  %v4483 = vld [vmem:[%s2887 + $0x58] sm:$0xe]
  %v4484 = vld [vmem:[%s2887 + $0x5c] sm:$0x1]
  %v4485 = vld [vmem:[%s2887 + $0x60] sm:$0xe]
  %v4486 = vld [vmem:[%s2887 + $0x64] sm:$0x1]
  %v4487 = vld [vmem:[%s2887 + $0x68] sm:$0xe]
  %v4488 = vld [vmem:[%s2887 + $0x6c] sm:$0x1]
  %v4489 = vld [vmem:[%s2887 + $0x70] sm:$0xe]
  %v4490 = vld [vmem:[%s2887 + $0x74] sm:$0x1]
  %v4491 = vld [vmem:[%s2887 + $0x78] sm:$0xe]
  %v4492 = vld [vmem:[%s2887 + $0x7c] sm:$0x1]
  %v4493 = vld [vmem:[%s2887 + $0x80] sm:$0xe]
  %v4494 = vld [vmem:[%s2887 + $0x84] sm:$0x1]
  %v4495 = vld [vmem:[%s2887 + $0x88] sm:$0xe]
  %v4496 = vld [vmem:[%s2887 + $0x8c] sm:$0x1]
  %v4529 = vrot.slane %v4465, 5
  %v4530 = vrot.slane %v4529, 4
  %v4531 = vrot.slane %v4466, 5
  %v4532 = vsel %vm4400, %v4530, %v4531
  %v4533 = vrot.slane %v4467, 5
  %v4534 = vrot.slane %v4533, 4
  %v4535 = vrot.slane %v4468, 5
  %v4536 = vsel %vm4400, %v4534, %v4535
  %v4537 = vrot.slane %v4469, 5
  %v4538 = vrot.slane %v4537, 4
  %v4539 = vrot.slane %v4470, 5
  %v4540 = vsel %vm4400, %v4538, %v4539
  %v4541 = vrot.slane %v4471, 5
  %v4542 = vrot.slane %v4541, 4
  %v4543 = vrot.slane %v4472, 5
  %v4544 = vsel %vm4400, %v4542, %v4543
  %v4545 = vrot.slane %v4473, 5
  %v4546 = vrot.slane %v4545, 4
  %v4547 = vrot.slane %v4474, 5
  %v4548 = vsel %vm4400, %v4546, %v4547
  %v4549 = vrot.slane %v4475, 5
  %v4550 = vrot.slane %v4549, 4
  %v4551 = vrot.slane %v4476, 5
  %v4552 = vsel %vm4400, %v4550, %v4551
  %v4553 = vrot.slane %v4477, 5
  %v4554 = vrot.slane %v4553, 4
  %v4555 = vrot.slane %v4478, 5
  %v4556 = vsel %vm4400, %v4554, %v4555
  %v4557 = vrot.slane %v4479, 5
  %v4558 = vrot.slane %v4557, 4
  %v4559 = vrot.slane %v4480, 5
  %v4560 = vsel %vm4400, %v4558, %v4559
  %v4561 = vrot.slane %v4481, 5
  %v4562 = vrot.slane %v4561, 4
  %v4563 = vrot.slane %v4482, 5
  %v4564 = vsel %vm4400, %v4562, %v4563
  %v4565 = vrot.slane %v4483, 5
  %v4566 = vrot.slane %v4565, 4
  %v4567 = vrot.slane %v4484, 5
  %v4568 = vsel %vm4400, %v4566, %v4567
  %v4569 = vrot.slane %v4485, 5
  %v4570 = vrot.slane %v4569, 4
  %v4571 = vrot.slane %v4486, 5
  %v4572 = vsel %vm4400, %v4570, %v4571
  %v4573 = vrot.slane %v4487, 5
  %v4574 = vrot.slane %v4573, 4
  %v4575 = vrot.slane %v4488, 5
  %v4576 = vsel %vm4400, %v4574, %v4575
  %v4577 = vrot.slane %v4489, 5
  %v4578 = vrot.slane %v4577, 4
  %v4579 = vrot.slane %v4490, 5
  %v4580 = vsel %vm4400, %v4578, %v4579
  %v4581 = vrot.slane %v4491, 5
  %v4582 = vrot.slane %v4581, 4
  %v4583 = vrot.slane %v4492, 5
  %v4584 = vsel %vm4400, %v4582, %v4583
  %v4585 = vrot.slane %v4493, 5
  %v4586 = vrot.slane %v4585, 4
  %v4587 = vrot.slane %v4494, 5
  %v4588 = vsel %vm4400, %v4586, %v4587
  %v4589 = vrot.slane %v4495, 5
  %v4590 = vrot.slane %v4589, 4
  %v4591 = vrot.slane %v4496, 5
  %v4592 = vsel %vm4400, %v4590, %v4591
  %v4593 = vunpack.c.l.b16 %v4404
  %v4594 = vunpack.c.l.b16 %v4408
  %v4595 = vunpack.c.l.b16 %v4412
  %v4596 = vunpack.c.l.b16 %v4416
  %v4597 = vunpack.c.l.b16 %v4420
  %v4598 = vunpack.c.l.b16 %v4424
  %v4599 = vunpack.c.l.b16 %v4428
  %v4600 = vunpack.c.l.b16 %v4432
  %v4601 = vunpack.c.l.b16 %v4436
  %v4602 = vunpack.c.l.b16 %v4440
  %v4603 = vunpack.c.l.b16 %v4444
  %v4604 = vunpack.c.l.b16 %v4448
  %v4605 = vunpack.c.l.b16 %v4452
  %v4606 = vunpack.c.l.b16 %v4456
  %v4607 = vunpack.c.l.b16 %v4460
  %v4608 = vunpack.c.l.b16 %v4464
  %v4609 = vpack.c.b16 %v4594, %v4593
  %v4610 = vpack.c.b16 %v4596, %v4595
  %v4611 = vpack.c.b16 %v4598, %v4597
  %v4612 = vpack.c.b16 %v4600, %v4599
  %v4613 = vpack.c.b16 %v4602, %v4601
  %v4614 = vpack.c.b16 %v4604, %v4603
  %v4615 = vpack.c.b16 %v4606, %v4605
  %v4616 = vpack.c.b16 %v4608, %v4607
  %v4617 = vunpack.c.l.b16 %v4532
  %v4618 = vunpack.c.l.b16 %v4536
  %v4619 = vunpack.c.l.b16 %v4540
  %v4620 = vunpack.c.l.b16 %v4544
  %v4621 = vunpack.c.l.b16 %v4548
  %v4622 = vunpack.c.l.b16 %v4552
  %v4623 = vunpack.c.l.b16 %v4556
  %v4624 = vunpack.c.l.b16 %v4560
  %v4625 = vunpack.c.l.b16 %v4564
  %v4626 = vunpack.c.l.b16 %v4568
  %v4627 = vunpack.c.l.b16 %v4572
  %v4628 = vunpack.c.l.b16 %v4576
  %v4629 = vunpack.c.l.b16 %v4580
  %v4630 = vunpack.c.l.b16 %v4584
  %v4631 = vunpack.c.l.b16 %v4588
  %v4632 = vunpack.c.l.b16 %v4592
  %v4633 = vpack.c.b16 %v4618, %v4617
  %v4634 = vpack.c.b16 %v4620, %v4619
  %v4635 = vpack.c.b16 %v4622, %v4621
  %v4636 = vpack.c.b16 %v4624, %v4623
  %v4637 = vpack.c.b16 %v4626, %v4625
  %v4638 = vpack.c.b16 %v4628, %v4627
  %v4639 = vpack.c.b16 %v4630, %v4629
  %v4640 = vpack.c.b16 %v4632, %v4631
  %4641 = vrot.lane.b32.xlu0 %v4633, 64
  %v4642 = vpop.permute.xlu0 %4641
  %4643 = vrot.lane.b32.xlu0 %v4634, 64
  %v4644 = vpop.permute.xlu0 %4643
  %4645 = vrot.lane.b32.xlu0 %v4635, 64
  %v4646 = vpop.permute.xlu0 %4645
  %4647 = vrot.lane.b32.xlu0 %v4636, 64
  %v4648 = vpop.permute.xlu0 %4647
  %4649 = vrot.lane.b32.xlu0 %v4637, 64
  %v4650 = vpop.permute.xlu0 %4649
  %4651 = vrot.lane.b32.xlu0 %v4638, 64
  %v4652 = vpop.permute.xlu0 %4651
  %4653 = vrot.lane.b32.xlu0 %v4639, 64
  %v4654 = vpop.permute.xlu0 %4653
  %4655 = vrot.lane.b32.xlu0 %v4640, 64
  %v4656 = vpop.permute.xlu0 %4655
  %v4659 = vsel %vm893, %v4609, %v4642
  %v4662 = vsel %vm893, %v4610, %v4644
  %v4665 = vsel %vm893, %v4611, %v4646
  %v4668 = vsel %vm893, %v4612, %v4648
  %v4671 = vsel %vm893, %v4613, %v4650
  %v4674 = vsel %vm893, %v4614, %v4652
  %v4677 = vsel %vm893, %v4615, %v4654
  %v4680 = vsel %vm893, %v4616, %v4656
  %v4689 = vunpack.c.l.b16 %v4659
  %v4690 = vunpack.c.h.b16 %v4659
  %v4691 = vunpack.c.l.b16 %v4662
  %v4692 = vunpack.c.h.b16 %v4662
  %v4693 = vunpack.c.l.b16 %v4665
  %v4694 = vunpack.c.h.b16 %v4665
  %v4695 = vunpack.c.l.b16 %v4668
  %v4696 = vunpack.c.h.b16 %v4668
  %v4697 = vunpack.c.l.b16 %v4671
  %v4698 = vunpack.c.h.b16 %v4671
  %v4699 = vunpack.c.l.b16 %v4674
  %v4700 = vunpack.c.h.b16 %v4674
  %v4701 = vunpack.c.l.b16 %v4677
  %v4702 = vunpack.c.h.b16 %v4677
  %v4703 = vunpack.c.l.b16 %v4680
  %v4704 = vunpack.c.h.b16 %v4680
  %v4705 = vpack.c.b16 %v4689, %v4689
  %v4706 = vpack.c.b16 %v4690, %v4690
  %v4707 = vpack.c.b16 %v4691, %v4691
  %v4708 = vpack.c.b16 %v4692, %v4692
  %v4709 = vpack.c.b16 %v4693, %v4693
  %v4710 = vpack.c.b16 %v4694, %v4694
  %v4711 = vpack.c.b16 %v4695, %v4695
  %v4712 = vpack.c.b16 %v4696, %v4696
  %v4713 = vpack.c.b16 %v4697, %v4697
  %v4714 = vpack.c.b16 %v4698, %v4698
  %v4715 = vpack.c.b16 %v4699, %v4699
  %v4716 = vpack.c.b16 %v4700, %v4700
  %v4717 = vpack.c.b16 %v4701, %v4701
  %v4718 = vpack.c.b16 %v4702, %v4702
  %v4719 = vpack.c.b16 %v4703, %v4703
  %v4720 = vpack.c.b16 %v4704, %v4704
  %4737 = vst [vmem:[#allocation3 + $0xc] sm:$0xf] %v4705
  %4738 = vst [vmem:[#allocation3 + $0x20] sm:$0xf] %v4706
  %4739 = vst [vmem:[#allocation3 + $0x34] sm:$0xf] %v4707
  %4740 = vst [vmem:[#allocation3 + $0x48] sm:$0xf] %v4708
  %4741 = vst [vmem:[#allocation3 + $0x5c] sm:$0xf] %v4709
  %4742 = vst [vmem:[#allocation3 + $0x70] sm:$0xf] %v4710
  %4743 = vst [vmem:[#allocation3 + $0x84] sm:$0xf] %v4711
  %4744 = vst [vmem:[#allocation3 + $0x98] sm:$0xf] %v4712
  %4745 = vst [vmem:[#allocation3 + $0xac] sm:$0xf] %v4713
  %4746 = vst [vmem:[#allocation3 + $0xc0] sm:$0xf] %v4714
  %4747 = vst [vmem:[#allocation3 + $0xd4] sm:$0xf] %v4715
  %4748 = vst [vmem:[#allocation3 + $0xe8] sm:$0xf] %v4716
  %4749 = vst [vmem:[#allocation3 + $0xfc] sm:$0xf] %v4717
  %4750 = vst [vmem:[#allocation3 + $0x110] sm:$0xf] %v4718
  %4751 = vst [vmem:[#allocation3 + $0x124] sm:$0xf] %v4719
  %4752 = vst [vmem:[#allocation3 + $0x138] sm:$0xf] %v4720
  %v4753 = vld [vmem:[%s3210] sm:$0xe]
  %v4754 = vld [vmem:[%s3210 + $0x4] sm:$0x1]
  %v4755 = vld [vmem:[%s3210 + $0x8] sm:$0xe]
  %v4756 = vld [vmem:[%s3210 + $0xc] sm:$0x1]
  %v4757 = vld [vmem:[%s3210 + $0x10] sm:$0xe]
  %v4758 = vld [vmem:[%s3210 + $0x14] sm:$0x1]
  %v4759 = vld [vmem:[%s3210 + $0x18] sm:$0xe]
  %v4760 = vld [vmem:[%s3210 + $0x1c] sm:$0x1]
  %v4761 = vld [vmem:[%s3210 + $0x20] sm:$0xe]
  %v4762 = vld [vmem:[%s3210 + $0x24] sm:$0x1]
  %v4763 = vld [vmem:[%s3210 + $0x28] sm:$0xe]
  %v4764 = vld [vmem:[%s3210 + $0x2c] sm:$0x1]
  %v4765 = vld [vmem:[%s3210 + $0x30] sm:$0xe]
  %v4766 = vld [vmem:[%s3210 + $0x34] sm:$0x1]
  %v4767 = vld [vmem:[%s3210 + $0x38] sm:$0xe]
  %v4768 = vld [vmem:[%s3210 + $0x3c] sm:$0x1]
  %v4769 = vld [vmem:[%s3210 + $0x50] sm:$0xe]
  %v4770 = vld [vmem:[%s3210 + $0x54] sm:$0x1]
  %v4771 = vld [vmem:[%s3210 + $0x58] sm:$0xe]
  %v4772 = vld [vmem:[%s3210 + $0x5c] sm:$0x1]
  %v4773 = vld [vmem:[%s3210 + $0x60] sm:$0xe]
  %v4774 = vld [vmem:[%s3210 + $0x64] sm:$0x1]
  %v4775 = vld [vmem:[%s3210 + $0x68] sm:$0xe]
  %v4776 = vld [vmem:[%s3210 + $0x6c] sm:$0x1]
  %v4777 = vld [vmem:[%s3210 + $0x70] sm:$0xe]
  %v4778 = vld [vmem:[%s3210 + $0x74] sm:$0x1]
  %v4779 = vld [vmem:[%s3210 + $0x78] sm:$0xe]
  %v4780 = vld [vmem:[%s3210 + $0x7c] sm:$0x1]
  %v4781 = vld [vmem:[%s3210 + $0x80] sm:$0xe]
  %v4782 = vld [vmem:[%s3210 + $0x84] sm:$0x1]
  %v4783 = vld [vmem:[%s3210 + $0x88] sm:$0xe]
  %v4784 = vld [vmem:[%s3210 + $0x8c] sm:$0x1]
  %v4817 = vrot.slane %v4753, 5
  %v4818 = vrot.slane %v4817, 4
  %v4819 = vrot.slane %v4754, 5
  %v4820 = vsel %vm4400, %v4818, %v4819
  %v4821 = vrot.slane %v4755, 5
  %v4822 = vrot.slane %v4821, 4
  %v4823 = vrot.slane %v4756, 5
  %v4824 = vsel %vm4400, %v4822, %v4823
  %v4825 = vrot.slane %v4757, 5
  %v4826 = vrot.slane %v4825, 4
  %v4827 = vrot.slane %v4758, 5
  %v4828 = vsel %vm4400, %v4826, %v4827
  %v4829 = vrot.slane %v4759, 5
  %v4830 = vrot.slane %v4829, 4
  %v4831 = vrot.slane %v4760, 5
  %v4832 = vsel %vm4400, %v4830, %v4831
  %v4833 = vrot.slane %v4761, 5
  %v4834 = vrot.slane %v4833, 4
  %v4835 = vrot.slane %v4762, 5
  %v4836 = vsel %vm4400, %v4834, %v4835
  %v4837 = vrot.slane %v4763, 5
  %v4838 = vrot.slane %v4837, 4
  %v4839 = vrot.slane %v4764, 5
  %v4840 = vsel %vm4400, %v4838, %v4839
  %v4841 = vrot.slane %v4765, 5
  %v4842 = vrot.slane %v4841, 4
  %v4843 = vrot.slane %v4766, 5
  %v4844 = vsel %vm4400, %v4842, %v4843
  %v4845 = vrot.slane %v4767, 5
  %v4846 = vrot.slane %v4845, 4
  %v4847 = vrot.slane %v4768, 5
  %v4848 = vsel %vm4400, %v4846, %v4847
  %v4849 = vrot.slane %v4769, 5
  %v4850 = vrot.slane %v4849, 4
  %v4851 = vrot.slane %v4770, 5
  %v4852 = vsel %vm4400, %v4850, %v4851
  %v4853 = vrot.slane %v4771, 5
  %v4854 = vrot.slane %v4853, 4
  %v4855 = vrot.slane %v4772, 5
  %v4856 = vsel %vm4400, %v4854, %v4855
  %v4857 = vrot.slane %v4773, 5
  %v4858 = vrot.slane %v4857, 4
  %v4859 = vrot.slane %v4774, 5
  %v4860 = vsel %vm4400, %v4858, %v4859
  %v4861 = vrot.slane %v4775, 5
  %v4862 = vrot.slane %v4861, 4
  %v4863 = vrot.slane %v4776, 5
  %v4864 = vsel %vm4400, %v4862, %v4863
  %v4865 = vrot.slane %v4777, 5
  %v4866 = vrot.slane %v4865, 4
  %v4867 = vrot.slane %v4778, 5
  %v4868 = vsel %vm4400, %v4866, %v4867
  %v4869 = vrot.slane %v4779, 5
  %v4870 = vrot.slane %v4869, 4
  %v4871 = vrot.slane %v4780, 5
  %v4872 = vsel %vm4400, %v4870, %v4871
  %v4873 = vrot.slane %v4781, 5
  %v4874 = vrot.slane %v4873, 4
  %v4875 = vrot.slane %v4782, 5
  %v4876 = vsel %vm4400, %v4874, %v4875
  %v4877 = vrot.slane %v4783, 5
  %v4878 = vrot.slane %v4877, 4
  %v4879 = vrot.slane %v4784, 5
  %v4880 = vsel %vm4400, %v4878, %v4879
  %4897 = vst.msk [vmem:[#allocation3 + $0x10] sm:$0xf] %vm2087, %v4820
  %4898 = vst.msk [vmem:[#allocation3 + $0x24] sm:$0xf] %vm2087, %v4824
  %4899 = vst.msk [vmem:[#allocation3 + $0x38] sm:$0xf] %vm2087, %v4828
  %4900 = vst.msk [vmem:[#allocation3 + $0x4c] sm:$0xf] %vm2087, %v4832
  %4901 = vst.msk [vmem:[#allocation3 + $0x60] sm:$0xf] %vm2087, %v4836
  %4902 = vst.msk [vmem:[#allocation3 + $0x74] sm:$0xf] %vm2087, %v4840
  %4903 = vst.msk [vmem:[#allocation3 + $0x88] sm:$0xf] %vm2087, %v4844
  %4904 = vst.msk [vmem:[#allocation3 + $0x9c] sm:$0xf] %vm2087, %v4848
  %4905 = vst.msk [vmem:[#allocation3 + $0xb0] sm:$0xf] %vm2087, %v4852
  %4906 = vst.msk [vmem:[#allocation3 + $0xc4] sm:$0xf] %vm2087, %v4856
  %4907 = vst.msk [vmem:[#allocation3 + $0xd8] sm:$0xf] %vm2087, %v4860
  %4908 = vst.msk [vmem:[#allocation3 + $0xec] sm:$0xf] %vm2087, %v4864
  %4909 = vst.msk [vmem:[#allocation3 + $0x100] sm:$0xf] %vm2087, %v4868
  %4910 = vst.msk [vmem:[#allocation3 + $0x114] sm:$0xf] %vm2087, %v4872
  %4911 = vst.msk [vmem:[#allocation3 + $0x128] sm:$0xf] %vm2087, %v4876
  %4912 = vst.msk [vmem:[#allocation3 + $0x13c] sm:$0xf] %vm2087, %v4880
  %v4913 = vld [vmem:[#allocation3] sm:$0xff]
  %v4914 = vld [vmem:[#allocation3 + $0x8] sm:$0xff]
  %v4915 = vld [vmem:[#allocation3 + $0x10] sm:$0xf]
  %v4916 = vld [vmem:[#allocation3 + $0x14] sm:$0xff]
  %v4917 = vld [vmem:[#allocation3 + $0x1c] sm:$0xff]
  %v4918 = vld [vmem:[#allocation3 + $0x24] sm:$0xf]
  %v4919 = vld [vmem:[#allocation3 + $0x28] sm:$0xff]
  %v4920 = vld [vmem:[#allocation3 + $0x30] sm:$0xff]
  %v4921 = vld [vmem:[#allocation3 + $0x38] sm:$0xf]
  %v4922 = vld [vmem:[#allocation3 + $0x3c] sm:$0xff]
  %v4923 = vld [vmem:[#allocation3 + $0x44] sm:$0xff]
  %v4924 = vld [vmem:[#allocation3 + $0x4c] sm:$0xf]
  %v4925 = vld [vmem:[#allocation3 + $0x50] sm:$0xff]
  %v4926 = vld [vmem:[#allocation3 + $0x58] sm:$0xff]
  %v4927 = vld [vmem:[#allocation3 + $0x60] sm:$0xf]
  %v4928 = vld [vmem:[#allocation3 + $0x64] sm:$0xff]
  %v4929 = vld [vmem:[#allocation3 + $0x6c] sm:$0xff]
  %v4930 = vld [vmem:[#allocation3 + $0x74] sm:$0xf]
  %v4931 = vld [vmem:[#allocation3 + $0x78] sm:$0xff]
  %v4932 = vld [vmem:[#allocation3 + $0x80] sm:$0xff]
  %v4933 = vld [vmem:[#allocation3 + $0x88] sm:$0xf]
  %v4934 = vld [vmem:[#allocation3 + $0x8c] sm:$0xff]
  %v4935 = vld [vmem:[#allocation3 + $0x94] sm:$0xff]
  %v4936 = vld [vmem:[#allocation3 + $0x9c] sm:$0xf]
  %v4937 = vld [vmem:[#allocation3 + $0xa0] sm:$0xff]
  %v4938 = vld [vmem:[#allocation3 + $0xa8] sm:$0xff]
  %v4939 = vld [vmem:[#allocation3 + $0xb0] sm:$0xf]
  %v4940 = vld [vmem:[#allocation3 + $0xb4] sm:$0xff]
  %v4941 = vld [vmem:[#allocation3 + $0xbc] sm:$0xff]
  %v4942 = vld [vmem:[#allocation3 + $0xc4] sm:$0xf]
  %v4943 = vld [vmem:[#allocation3 + $0xc8] sm:$0xff]
  %v4944 = vld [vmem:[#allocation3 + $0xd0] sm:$0xff]
  %v4945 = vld [vmem:[#allocation3 + $0xd8] sm:$0xf]
  %v4946 = vld [vmem:[#allocation3 + $0xdc] sm:$0xff]
  %v4947 = vld [vmem:[#allocation3 + $0xe4] sm:$0xff]
  %v4948 = vld [vmem:[#allocation3 + $0xec] sm:$0xf]
  %v4949 = vld [vmem:[#allocation3 + $0xf0] sm:$0xff]
  %v4950 = vld [vmem:[#allocation3 + $0xf8] sm:$0xff]
  %v4951 = vld [vmem:[#allocation3 + $0x100] sm:$0xf]
  %v4952 = vld [vmem:[#allocation3 + $0x104] sm:$0xff]
  %v4953 = vld [vmem:[#allocation3 + $0x10c] sm:$0xff]
  %v4954 = vld [vmem:[#allocation3 + $0x114] sm:$0xf]
  %v4955 = vld [vmem:[#allocation3 + $0x118] sm:$0xff]
  %v4956 = vld [vmem:[#allocation3 + $0x120] sm:$0xff]
  %v4957 = vld [vmem:[#allocation3 + $0x128] sm:$0xf]
  %v4958 = vld [vmem:[#allocation3 + $0x12c] sm:$0xff]
  %v4959 = vld [vmem:[#allocation3 + $0x134] sm:$0xff]
  %v4960 = vld [vmem:[#allocation3 + $0x13c] sm:$0xf]
  %v4961 = vld [vmem:[%s2] sm:$0xf]
  %v4962 = vld [vmem:[%s2 + $0x4] sm:$0xf]
  %v4963 = vld [vmem:[%s2 + $0x8] sm:$0xf]
  %v4964 = vld [vmem:[%s2 + $0xc] sm:$0xf]
  %v4965 = vld [vmem:[%s2 + $0x10] sm:$0xf]
  %v4966 = vld [vmem:[%s2 + $0x14] sm:$0xf]
  %v4967 = vld [vmem:[%s2 + $0x18] sm:$0xf]
  %v4968 = vld [vmem:[%s2 + $0x1c] sm:$0xf]
  %v4969 = vld [vmem:[%s2 + $0x20] sm:$0xf]
  %v4970 = vld [vmem:[%s2 + $0x24] sm:$0xf]
  %v4971 = vld [vmem:[%s2 + $0x28] sm:$0xf]
  %v4972 = vld [vmem:[%s2 + $0x2c] sm:$0xf]
  %v4973 = vld [vmem:[%s2 + $0x30] sm:$0xf]
  %v4974 = vld [vmem:[%s2 + $0x34] sm:$0xf]
  %v4975 = vld [vmem:[%s2 + $0x38] sm:$0xf]
  %v4976 = vld [vmem:[%s2 + $0x3c] sm:$0xf]
  %v4977 = vld [vmem:[%s2 + $0x40] sm:$0xf]
  %v4978 = vld [vmem:[%s2 + $0x44] sm:$0xf]
  %v4979 = vld [vmem:[%s2 + $0x48] sm:$0xf]
  %v4980 = vld [vmem:[%s2 + $0x4c] sm:$0xf]
  %v4981 = vld [vmem:[%s2 + $0x50] sm:$0xf]
  %v4982 = vld [vmem:[%s2 + $0x54] sm:$0xf]
  %v4983 = vld [vmem:[%s2 + $0x58] sm:$0xf]
  %v4984 = vld [vmem:[%s2 + $0x5c] sm:$0xf]
  %v4985 = vld [vmem:[%s2 + $0x60] sm:$0xf]
  %v4986 = vld [vmem:[%s2 + $0x64] sm:$0xf]
  %v4987 = vld [vmem:[%s2 + $0x68] sm:$0xf]
  %v4988 = vld [vmem:[%s2 + $0x6c] sm:$0xf]
  %v4989 = vld [vmem:[%s2 + $0x70] sm:$0xf]
  %v4990 = vld [vmem:[%s2 + $0x74] sm:$0xf]
  %v4991 = vld [vmem:[%s2 + $0x78] sm:$0xf]
  %v4992 = vld [vmem:[%s2 + $0x7c] sm:$0xf]
  %v4993 = vld [vmem:[%s2 + $0x80] sm:$0xf]
  %v4994 = vld [vmem:[%s2 + $0x84] sm:$0xf]
  %v4995 = vld [vmem:[%s2 + $0x88] sm:$0xf]
  %v4996 = vld [vmem:[%s2 + $0x8c] sm:$0xf]
  %v4997 = vld [vmem:[%s2 + $0x90] sm:$0xf]
  %v4998 = vld [vmem:[%s2 + $0x94] sm:$0xf]
  %v4999 = vld [vmem:[%s2 + $0x98] sm:$0xf]
  %v5000 = vld [vmem:[%s2 + $0x9c] sm:$0xf]
  %v5001 = vld [vmem:[%s2 + $0xa0] sm:$0xf]
  %v5002 = vld [vmem:[%s2 + $0xa4] sm:$0xf]
  %v5003 = vld [vmem:[%s2 + $0xa8] sm:$0xf]
  %v5004 = vld [vmem:[%s2 + $0xac] sm:$0xf]
  %v5005 = vld [vmem:[%s2 + $0xb0] sm:$0xf]
  %v5006 = vld [vmem:[%s2 + $0xb4] sm:$0xf]
  %v5007 = vld [vmem:[%s2 + $0xb8] sm:$0xf]
  %v5008 = vld [vmem:[%s2 + $0xbc] sm:$0xf]
  %v5009 = vld [vmem:[%s2 + $0xc0] sm:$0xf]
  %v5010 = vld [vmem:[%s2 + $0xc4] sm:$0xf]
  %v5011 = vld [vmem:[%s2 + $0xc8] sm:$0xf]
  %v5012 = vld [vmem:[%s2 + $0xcc] sm:$0xf]
  %v5013 = vld [vmem:[%s2 + $0xd0] sm:$0xf]
  %v5014 = vld [vmem:[%s2 + $0xd4] sm:$0xf]
  %v5015 = vld [vmem:[%s2 + $0xd8] sm:$0xf]
  %v5016 = vld [vmem:[%s2 + $0xdc] sm:$0xf]
  %v5017 = vld [vmem:[%s2 + $0xe0] sm:$0xf]
  %v5018 = vld [vmem:[%s2 + $0xe4] sm:$0xf]
  %v5019 = vld [vmem:[%s2 + $0xe8] sm:$0xf]
  %v5020 = vld [vmem:[%s2 + $0xec] sm:$0xf]
  %v5021 = vld [vmem:[%s2 + $0xf0] sm:$0xf]
  %v5022 = vld [vmem:[%s2 + $0xf4] sm:$0xf]
  %v5023 = vld [vmem:[%s2 + $0xf8] sm:$0xf]
  %v5024 = vld [vmem:[%s2 + $0xfc] sm:$0xf]
  %v5025 = vld [vmem:[%s2 + $0x100] sm:$0xf]
  %v5026 = vld [vmem:[%s2 + $0x104] sm:$0xf]
  %v5027 = vld [vmem:[%s2 + $0x108] sm:$0xf]
  %v5028 = vld [vmem:[%s2 + $0x10c] sm:$0xf]
  %v5029 = vld [vmem:[%s2 + $0x110] sm:$0xf]
  %v5030 = vld [vmem:[%s2 + $0x114] sm:$0xf]
  %v5031 = vld [vmem:[%s2 + $0x118] sm:$0xf]
  %v5032 = vld [vmem:[%s2 + $0x11c] sm:$0xf]
  %v5081 = vunpack.c.l.b16 %v4913
  %v5082 = vunpack.c.h.b16 %v4913
  %v5083 = vunpack.c.l.b16 %v4914
  %v5084 = vunpack.c.h.b16 %v4914
  %v5085 = vunpack.c.l.b16 %v4915
  %v5086 = vunpack.c.l.b16 %v4916
  %v5087 = vunpack.c.h.b16 %v4916
  %v5088 = vunpack.c.l.b16 %v4917
  %v5089 = vunpack.c.h.b16 %v4917
  %v5090 = vunpack.c.l.b16 %v4918
  %v5091 = vunpack.c.l.b16 %v4919
  %v5092 = vunpack.c.h.b16 %v4919
  %v5093 = vunpack.c.l.b16 %v4920
  %v5094 = vunpack.c.h.b16 %v4920
  %v5095 = vunpack.c.l.b16 %v4921
  %v5096 = vunpack.c.l.b16 %v4922
  %v5097 = vunpack.c.h.b16 %v4922
  %v5098 = vunpack.c.l.b16 %v4923
  %v5099 = vunpack.c.h.b16 %v4923
  %v5100 = vunpack.c.l.b16 %v4924
  %v5101 = vunpack.c.l.b16 %v4925
  %v5102 = vunpack.c.h.b16 %v4925
  %v5103 = vunpack.c.l.b16 %v4926
  %v5104 = vunpack.c.h.b16 %v4926
  %v5105 = vunpack.c.l.b16 %v4927
  %v5106 = vunpack.c.l.b16 %v4928
  %v5107 = vunpack.c.h.b16 %v4928
  %v5108 = vunpack.c.l.b16 %v4929
  %v5109 = vunpack.c.h.b16 %v4929
  %v5110 = vunpack.c.l.b16 %v4930
  %v5111 = vunpack.c.l.b16 %v4931
  %v5112 = vunpack.c.h.b16 %v4931
  %v5113 = vunpack.c.l.b16 %v4932
  %v5114 = vunpack.c.h.b16 %v4932
  %v5115 = vunpack.c.l.b16 %v4933
  %v5116 = vunpack.c.l.b16 %v4934
  %v5117 = vunpack.c.h.b16 %v4934
  %v5118 = vunpack.c.l.b16 %v4935
  %v5119 = vunpack.c.h.b16 %v4935
  %v5120 = vunpack.c.l.b16 %v4936
  %v5121 = vunpack.c.l.b16 %v4937
  %v5122 = vunpack.c.h.b16 %v4937
  %v5123 = vunpack.c.l.b16 %v4938
  %v5124 = vunpack.c.h.b16 %v4938
  %v5125 = vunpack.c.l.b16 %v4939
  %v5126 = vunpack.c.l.b16 %v4940
  %v5127 = vunpack.c.h.b16 %v4940
  %v5128 = vunpack.c.l.b16 %v4941
  %v5129 = vunpack.c.h.b16 %v4941
  %v5130 = vunpack.c.l.b16 %v4942
  %v5131 = vunpack.c.l.b16 %v4943
  %v5132 = vunpack.c.h.b16 %v4943
  %v5133 = vunpack.c.l.b16 %v4944
  %v5134 = vunpack.c.h.b16 %v4944
  %v5135 = vunpack.c.l.b16 %v4945
  %v5136 = vunpack.c.l.b16 %v4946
  %v5137 = vunpack.c.h.b16 %v4946
  %v5138 = vunpack.c.l.b16 %v4947
  %v5139 = vunpack.c.h.b16 %v4947
  %v5140 = vunpack.c.l.b16 %v4948
  %v5141 = vunpack.c.l.b16 %v4949
  %v5142 = vunpack.c.h.b16 %v4949
  %v5143 = vunpack.c.l.b16 %v4950
  %v5144 = vunpack.c.h.b16 %v4950
  %v5145 = vunpack.c.l.b16 %v4951
  %v5146 = vunpack.c.l.b16 %v4952
  %v5147 = vunpack.c.h.b16 %v4952
  %v5148 = vunpack.c.l.b16 %v4953
  %v5149 = vunpack.c.h.b16 %v4953
  %v5150 = vunpack.c.l.b16 %v4954
  %v5151 = vunpack.c.l.b16 %v4955
  %v5152 = vunpack.c.h.b16 %v4955
  %v5153 = vunpack.c.l.b16 %v4956
  %v5154 = vunpack.c.h.b16 %v4956
  %v5155 = vunpack.c.l.b16 %v4957
  %v5156 = vunpack.c.l.b16 %v4958
  %v5157 = vunpack.c.h.b16 %v4958
  %v5158 = vunpack.c.l.b16 %v4959
  %v5159 = vunpack.c.h.b16 %v4959
  %v5160 = vunpack.c.l.b16 %v4960
  %v5161 = vpack.c.b16 %v5086, %v5081
  %v5162 = vpack.c.b16 %v5087, %v5082
  %v5163 = vpack.c.b16 %v5088, %v5083
  %v5164 = vpack.c.b16 %v5089, %v5084
  %v5165 = vpack.c.b16 %v5090, %v5085
  %v5166 = vpack.c.b16 %v5096, %v5091
  %v5167 = vpack.c.b16 %v5097, %v5092
  %v5168 = vpack.c.b16 %v5098, %v5093
  %v5169 = vpack.c.b16 %v5099, %v5094
  %v5170 = vpack.c.b16 %v5100, %v5095
  %v5171 = vpack.c.b16 %v5106, %v5101
  %v5172 = vpack.c.b16 %v5107, %v5102
  %v5173 = vpack.c.b16 %v5108, %v5103
  %v5174 = vpack.c.b16 %v5109, %v5104
  %v5175 = vpack.c.b16 %v5110, %v5105
  %v5176 = vpack.c.b16 %v5116, %v5111
  %v5177 = vpack.c.b16 %v5117, %v5112
  %v5178 = vpack.c.b16 %v5118, %v5113
  %v5179 = vpack.c.b16 %v5119, %v5114
  %v5180 = vpack.c.b16 %v5120, %v5115
  %v5181 = vpack.c.b16 %v5126, %v5121
  %v5182 = vpack.c.b16 %v5127, %v5122
  %v5183 = vpack.c.b16 %v5128, %v5123
  %v5184 = vpack.c.b16 %v5129, %v5124
  %v5185 = vpack.c.b16 %v5130, %v5125
  %v5186 = vpack.c.b16 %v5136, %v5131
  %v5187 = vpack.c.b16 %v5137, %v5132
  %v5188 = vpack.c.b16 %v5138, %v5133
  %v5189 = vpack.c.b16 %v5139, %v5134
  %v5190 = vpack.c.b16 %v5140, %v5135
  %v5191 = vpack.c.b16 %v5146, %v5141
  %v5192 = vpack.c.b16 %v5147, %v5142
  %v5193 = vpack.c.b16 %v5148, %v5143
  %v5194 = vpack.c.b16 %v5149, %v5144
  %v5195 = vpack.c.b16 %v5150, %v5145
  %v5196 = vpack.c.b16 %v5156, %v5151
  %v5197 = vpack.c.b16 %v5157, %v5152
  %v5198 = vpack.c.b16 %v5158, %v5153
  %v5199 = vpack.c.b16 %v5159, %v5154
  %v5200 = vpack.c.b16 %v5160, %v5155
  %v5305 = vunpack.c.l.b16 %v4961
  %v5306 = vunpack.c.l.b16 %v4962
  %v5307 = vunpack.c.l.b16 %v4963
  %v5308 = vunpack.c.l.b16 %v4964
  %v5309 = vunpack.c.l.b16 %v4965
  %v5310 = vunpack.c.l.b16 %v4966
  %v5311 = vunpack.c.l.b16 %v4967
  %v5312 = vunpack.c.l.b16 %v4968
  %v5313 = vunpack.c.l.b16 %v4969
  %v5314 = vunpack.c.l.b16 %v4970
  %v5315 = vunpack.c.l.b16 %v4971
  %v5316 = vunpack.c.l.b16 %v4972
  %v5317 = vunpack.c.l.b16 %v4973
  %v5318 = vunpack.c.l.b16 %v4974
  %v5319 = vunpack.c.l.b16 %v4975
  %v5320 = vunpack.c.l.b16 %v4976
  %v5321 = vunpack.c.l.b16 %v4977
  %v5322 = vunpack.c.l.b16 %v4978
  %v5323 = vunpack.c.l.b16 %v4979
  %v5324 = vunpack.c.l.b16 %v4980
  %v5325 = vunpack.c.l.b16 %v4981
  %v5326 = vunpack.c.l.b16 %v4982
  %v5327 = vunpack.c.l.b16 %v4983
  %v5328 = vunpack.c.l.b16 %v4984
  %v5329 = vunpack.c.l.b16 %v4985
  %v5330 = vunpack.c.l.b16 %v4986
  %v5331 = vunpack.c.l.b16 %v4987
  %v5332 = vunpack.c.l.b16 %v4988
  %v5333 = vunpack.c.l.b16 %v4989
  %v5334 = vunpack.c.l.b16 %v4990
  %v5335 = vunpack.c.l.b16 %v4991
  %v5336 = vunpack.c.l.b16 %v4992
  %v5337 = vunpack.c.l.b16 %v4993
  %v5338 = vunpack.c.l.b16 %v4994
  %v5339 = vunpack.c.l.b16 %v4995
  %v5340 = vunpack.c.l.b16 %v4996
  %v5341 = vunpack.c.l.b16 %v4997
  %v5342 = vunpack.c.l.b16 %v4998
  %v5343 = vunpack.c.l.b16 %v4999
  %v5344 = vunpack.c.l.b16 %v5000
  %v5345 = vunpack.c.l.b16 %v5001
  %v5346 = vunpack.c.l.b16 %v5002
  %v5347 = vunpack.c.l.b16 %v5003
  %v5348 = vunpack.c.l.b16 %v5004
  %v5349 = vunpack.c.l.b16 %v5005
  %v5350 = vunpack.c.l.b16 %v5006
  %v5351 = vunpack.c.l.b16 %v5007
  %v5352 = vunpack.c.l.b16 %v5008
  %v5353 = vunpack.c.l.b16 %v5009
  %v5354 = vunpack.c.l.b16 %v5010
  %v5355 = vunpack.c.l.b16 %v5011
  %v5356 = vunpack.c.l.b16 %v5012
  %v5357 = vunpack.c.l.b16 %v5013
  %v5358 = vunpack.c.l.b16 %v5014
  %v5359 = vunpack.c.l.b16 %v5015
  %v5360 = vunpack.c.l.b16 %v5016
  %v5361 = vunpack.c.l.b16 %v5017
  %v5362 = vunpack.c.l.b16 %v5018
  %v5363 = vunpack.c.l.b16 %v5019
  %v5364 = vunpack.c.l.b16 %v5020
  %v5365 = vunpack.c.l.b16 %v5021
  %v5366 = vunpack.c.l.b16 %v5022
  %v5367 = vunpack.c.l.b16 %v5023
  %v5368 = vunpack.c.l.b16 %v5024
  %v5369 = vunpack.c.l.b16 %v5025
  %v5370 = vunpack.c.l.b16 %v5026
  %v5371 = vunpack.c.l.b16 %v5027
  %v5372 = vunpack.c.l.b16 %v5028
  %v5373 = vunpack.c.l.b16 %v5029
  %v5374 = vunpack.c.l.b16 %v5030
  %v5375 = vunpack.c.l.b16 %v5031
  %v5376 = vunpack.c.l.b16 %v5032
  %v5377 = vpack.c.b16 %v5306, %v5305
  %v5378 = vpack.c.b16 %v5308, %v5307
  %v5379 = vpack.c.b16 %v5310, %v5309
  %v5380 = vpack.c.b16 %v5312, %v5311
  %v5381 = vpack.c.b16 %v5314, %v5313
  %v5382 = vpack.c.b16 %v5316, %v5315
  %v5383 = vpack.c.b16 %v5318, %v5317
  %v5384 = vpack.c.b16 %v5320, %v5319
  %v5385 = vpack.c.b16 %v5322, %v5321
  %v5386 = vpack.c.b16 %v5324, %v5323
  %v5387 = vpack.c.b16 %v5326, %v5325
  %v5388 = vpack.c.b16 %v5328, %v5327
  %v5389 = vpack.c.b16 %v5330, %v5329
  %v5390 = vpack.c.b16 %v5332, %v5331
  %v5391 = vpack.c.b16 %v5334, %v5333
  %v5392 = vpack.c.b16 %v5336, %v5335
  %v5393 = vpack.c.b16 %v5338, %v5337
  %v5394 = vpack.c.b16 %v5340, %v5339
  %v5395 = vpack.c.b16 %v5342, %v5341
  %v5396 = vpack.c.b16 %v5344, %v5343
  %v5397 = vpack.c.b16 %v5346, %v5345
  %v5398 = vpack.c.b16 %v5348, %v5347
  %v5399 = vpack.c.b16 %v5350, %v5349
  %v5400 = vpack.c.b16 %v5352, %v5351
  %v5401 = vpack.c.b16 %v5354, %v5353
  %v5402 = vpack.c.b16 %v5356, %v5355
  %v5403 = vpack.c.b16 %v5358, %v5357
  %v5404 = vpack.c.b16 %v5360, %v5359
  %v5405 = vpack.c.b16 %v5362, %v5361
  %v5406 = vpack.c.b16 %v5364, %v5363
  %v5407 = vpack.c.b16 %v5366, %v5365
  %v5408 = vpack.c.b16 %v5368, %v5367
  %v5409 = vpack.c.b16 %v5370, %v5369
  %v5410 = vpack.c.b16 %v5372, %v5371
  %v5411 = vpack.c.b16 %v5374, %v5373
  %v5412 = vpack.c.b16 %v5376, %v5375
  %v5450 = vsel %vm893, %v5165, 0
  %v5453 = vsel %vm893, %v5170, 0
  %v5456 = vsel %vm893, %v5175, 0
  %v5459 = vsel %vm893, %v5180, 0
  %v5462 = vsel %vm893, %v5185, 0
  %v5465 = vsel %vm893, %v5190, 0
  %v5468 = vsel %vm893, %v5195, 0
  %v5471 = vsel %vm893, %v5200, 0
  %5473 = vmatpush.bf16.msra.mxu0 %v5384
  %5474 = vmatpush.bf16.msra.mxu0 %v5383
  %5475 = vmatpush.bf16.msra.mxu0 %v5382
  %5476 = vmatpush.bf16.msra.mxu0 %v5381
  %5477 = vmatpush.bf16.msra.mxu0 %v5380
  %5478 = vmatpush.bf16.msra.mxu0 %v5379
  %5479 = vmatpush.bf16.msra.mxu0 %v5378
  %5480 = vmatpush.bf16.msra.mxu0 %v5377
  %5481 = vmatmul.bf16.gmra.mxu0 %v5161
  %v5482 = vpop.f32.mrf.mxu0
  %v5483 = vadd.f32 0.0, %v5482
  %v5484 = vpop.f32.mrf.mxu0
  %v5485 = vadd.f32 0.0, %v5484
  %5486 = vmatmul.bf16.gmra.mxu0 %v5166
  %v5487 = vpop.f32.mrf.mxu0
  %v5488 = vadd.f32 0.0, %v5487
  %v5489 = vpop.f32.mrf.mxu0
  %v5490 = vadd.f32 0.0, %v5489
  %5491 = vmatmul.bf16.gmra.mxu0 %v5171
  %v5492 = vpop.f32.mrf.mxu0
  %v5493 = vadd.f32 0.0, %v5492
  %v5494 = vpop.f32.mrf.mxu0
  %v5495 = vadd.f32 0.0, %v5494
  %5496 = vmatmul.bf16.gmra.mxu0 %v5176
  %v5497 = vpop.f32.mrf.mxu0
  %v5498 = vadd.f32 0.0, %v5497
  %v5499 = vpop.f32.mrf.mxu0
  %v5500 = vadd.f32 0.0, %v5499
  %5501 = vmatmul.bf16.gmra.mxu0 %v5181
  %v5502 = vpop.f32.mrf.mxu0
  %v5503 = vadd.f32 0.0, %v5502
  %v5504 = vpop.f32.mrf.mxu0
  %v5505 = vadd.f32 0.0, %v5504
  %5506 = vmatmul.bf16.gmra.mxu0 %v5186
  %v5507 = vpop.f32.mrf.mxu0
  %v5508 = vadd.f32 0.0, %v5507
  %v5509 = vpop.f32.mrf.mxu0
  %v5510 = vadd.f32 0.0, %v5509
  %5511 = vmatmul.bf16.gmra.mxu0 %v5191
  %v5512 = vpop.f32.mrf.mxu0
  %v5513 = vadd.f32 0.0, %v5512
  %v5514 = vpop.f32.mrf.mxu0
  %v5515 = vadd.f32 0.0, %v5514
  %5516 = vmatmul.bf16.gmra.mxu0 %v5196
  %v5517 = vpop.f32.mrf.mxu0
  %v5518 = vadd.f32 0.0, %v5517
  %v5519 = vpop.f32.mrf.mxu0
  %v5520 = vadd.f32 0.0, %v5519
  %5521 = vdwg.mxu0
  %5522 = vmatpush.bf16.msra.mxu0 %v5392
  %5523 = vmatpush.bf16.msra.mxu0 %v5391
  %5524 = vmatpush.bf16.msra.mxu0 %v5390
  %5525 = vmatpush.bf16.msra.mxu0 %v5389
  %5526 = vmatpush.bf16.msra.mxu0 %v5388
  %5527 = vmatpush.bf16.msra.mxu0 %v5387
  %5528 = vmatpush.bf16.msra.mxu0 %v5386
  %5529 = vmatpush.bf16.msra.mxu0 %v5385
  %5530 = vmatmul.bf16.gmra.mxu0 %v5162
  %v5531 = vpop.f32.mrf.mxu0
  %v5532 = vadd.f32 %v5483, %v5531
  %v5533 = vpop.f32.mrf.mxu0
  %v5534 = vadd.f32 %v5485, %v5533
  %5535 = vmatmul.bf16.gmra.mxu0 %v5167
  %v5536 = vpop.f32.mrf.mxu0
  %v5537 = vadd.f32 %v5488, %v5536
  %v5538 = vpop.f32.mrf.mxu0
  %v5539 = vadd.f32 %v5490, %v5538
  %5540 = vmatmul.bf16.gmra.mxu0 %v5172
  %v5541 = vpop.f32.mrf.mxu0
  %v5542 = vadd.f32 %v5493, %v5541
  %v5543 = vpop.f32.mrf.mxu0
  %v5544 = vadd.f32 %v5495, %v5543
  %5545 = vmatmul.bf16.gmra.mxu0 %v5177
  %v5546 = vpop.f32.mrf.mxu0
  %v5547 = vadd.f32 %v5498, %v5546
  %v5548 = vpop.f32.mrf.mxu0
  %v5549 = vadd.f32 %v5500, %v5548
  %5550 = vmatmul.bf16.gmra.mxu0 %v5182
  %v5551 = vpop.f32.mrf.mxu0
  %v5552 = vadd.f32 %v5503, %v5551
  %v5553 = vpop.f32.mrf.mxu0
  %v5554 = vadd.f32 %v5505, %v5553
  %5555 = vmatmul.bf16.gmra.mxu0 %v5187
  %v5556 = vpop.f32.mrf.mxu0
  %v5557 = vadd.f32 %v5508, %v5556
  %v5558 = vpop.f32.mrf.mxu0
  %v5559 = vadd.f32 %v5510, %v5558
  %5560 = vmatmul.bf16.gmra.mxu0 %v5192
  %v5561 = vpop.f32.mrf.mxu0
  %v5562 = vadd.f32 %v5513, %v5561
  %v5563 = vpop.f32.mrf.mxu0
  %v5564 = vadd.f32 %v5515, %v5563
  %5565 = vmatmul.bf16.gmra.mxu0 %v5197
  %v5566 = vpop.f32.mrf.mxu0
  %v5567 = vadd.f32 %v5518, %v5566
  %v5568 = vpop.f32.mrf.mxu0
  %v5569 = vadd.f32 %v5520, %v5568
  %5570 = vdwg.mxu0
  %5571 = vmatpush.bf16.msra.mxu0 %v5400
  %5572 = vmatpush.bf16.msra.mxu0 %v5399
  %5573 = vmatpush.bf16.msra.mxu0 %v5398
  %5574 = vmatpush.bf16.msra.mxu0 %v5397
  %5575 = vmatpush.bf16.msra.mxu0 %v5396
  %5576 = vmatpush.bf16.msra.mxu0 %v5395
  %5577 = vmatpush.bf16.msra.mxu0 %v5394
  %5578 = vmatpush.bf16.msra.mxu0 %v5393
  %5579 = vmatmul.bf16.gmra.mxu0 %v5163
  %v5580 = vpop.f32.mrf.mxu0
  %v5581 = vadd.f32 %v5532, %v5580
  %v5582 = vpop.f32.mrf.mxu0
  %v5583 = vadd.f32 %v5534, %v5582
  %5584 = vmatmul.bf16.gmra.mxu0 %v5168
  %v5585 = vpop.f32.mrf.mxu0
  %v5586 = vadd.f32 %v5537, %v5585
  %v5587 = vpop.f32.mrf.mxu0
  %v5588 = vadd.f32 %v5539, %v5587
  %5589 = vmatmul.bf16.gmra.mxu0 %v5173
  %v5590 = vpop.f32.mrf.mxu0
  %v5591 = vadd.f32 %v5542, %v5590
  %v5592 = vpop.f32.mrf.mxu0
  %v5593 = vadd.f32 %v5544, %v5592
  %5594 = vmatmul.bf16.gmra.mxu0 %v5178
  %v5595 = vpop.f32.mrf.mxu0
  %v5596 = vadd.f32 %v5547, %v5595
  %v5597 = vpop.f32.mrf.mxu0
  %v5598 = vadd.f32 %v5549, %v5597
  %5599 = vmatmul.bf16.gmra.mxu0 %v5183
  %v5600 = vpop.f32.mrf.mxu0
  %v5601 = vadd.f32 %v5552, %v5600
  %v5602 = vpop.f32.mrf.mxu0
  %v5603 = vadd.f32 %v5554, %v5602
  %5604 = vmatmul.bf16.gmra.mxu0 %v5188
  %v5605 = vpop.f32.mrf.mxu0
  %v5606 = vadd.f32 %v5557, %v5605
  %v5607 = vpop.f32.mrf.mxu0
  %v5608 = vadd.f32 %v5559, %v5607
  %5609 = vmatmul.bf16.gmra.mxu0 %v5193
  %v5610 = vpop.f32.mrf.mxu0
  %v5611 = vadd.f32 %v5562, %v5610
  %v5612 = vpop.f32.mrf.mxu0
  %v5613 = vadd.f32 %v5564, %v5612
  %5614 = vmatmul.bf16.gmra.mxu0 %v5198
  %v5615 = vpop.f32.mrf.mxu0
  %v5616 = vadd.f32 %v5567, %v5615
  %v5617 = vpop.f32.mrf.mxu0
  %v5618 = vadd.f32 %v5569, %v5617
  %5619 = vdwg.mxu0
  %5620 = vmatpush.bf16.msra.mxu0 %v5408
  %5621 = vmatpush.bf16.msra.mxu0 %v5407
  %5622 = vmatpush.bf16.msra.mxu0 %v5406
  %5623 = vmatpush.bf16.msra.mxu0 %v5405
  %5624 = vmatpush.bf16.msra.mxu0 %v5404
  %5625 = vmatpush.bf16.msra.mxu0 %v5403
  %5626 = vmatpush.bf16.msra.mxu0 %v5402
  %5627 = vmatpush.bf16.msra.mxu0 %v5401
  %5628 = vmatmul.bf16.gmra.mxu0 %v5164
  %v5629 = vpop.f32.mrf.mxu0
  %v5630 = vadd.f32 %v5581, %v5629
  %v5631 = vpop.f32.mrf.mxu0
  %v5632 = vadd.f32 %v5583, %v5631
  %5633 = vmatmul.bf16.gmra.mxu0 %v5169
  %v5634 = vpop.f32.mrf.mxu0
  %v5635 = vadd.f32 %v5586, %v5634
  %v5636 = vpop.f32.mrf.mxu0
  %v5637 = vadd.f32 %v5588, %v5636
  %5638 = vmatmul.bf16.gmra.mxu0 %v5174
  %v5639 = vpop.f32.mrf.mxu0
  %v5640 = vadd.f32 %v5591, %v5639
  %v5641 = vpop.f32.mrf.mxu0
  %v5642 = vadd.f32 %v5593, %v5641
  %5643 = vmatmul.bf16.gmra.mxu0 %v5179
  %v5644 = vpop.f32.mrf.mxu0
  %v5645 = vadd.f32 %v5596, %v5644
  %v5646 = vpop.f32.mrf.mxu0
  %v5647 = vadd.f32 %v5598, %v5646
  %5648 = vmatmul.bf16.gmra.mxu0 %v5184
  %v5649 = vpop.f32.mrf.mxu0
  %v5650 = vadd.f32 %v5601, %v5649
  %v5651 = vpop.f32.mrf.mxu0
  %v5652 = vadd.f32 %v5603, %v5651
  %5653 = vmatmul.bf16.gmra.mxu0 %v5189
  %v5654 = vpop.f32.mrf.mxu0
  %v5655 = vadd.f32 %v5606, %v5654
  %v5656 = vpop.f32.mrf.mxu0
  %v5657 = vadd.f32 %v5608, %v5656
  %5658 = vmatmul.bf16.gmra.mxu0 %v5194
  %v5659 = vpop.f32.mrf.mxu0
  %v5660 = vadd.f32 %v5611, %v5659
  %v5661 = vpop.f32.mrf.mxu0
  %v5662 = vadd.f32 %v5613, %v5661
  %5663 = vmatmul.bf16.gmra.mxu0 %v5199
  %v5664 = vpop.f32.mrf.mxu0
  %v5665 = vadd.f32 %v5616, %v5664
  %v5666 = vpop.f32.mrf.mxu0
  %v5667 = vadd.f32 %v5618, %v5666
  %5668 = vdwg.mxu0
  %5669 = vmatpush.bf16.msra.mxu0 0
  %5670 = vmatpush.bf16.msra.mxu0 0
  %5671 = vmatpush.bf16.msra.mxu0 0
  %5672 = vmatpush.bf16.msra.mxu0 0
  %5673 = vmatpush.bf16.msra.mxu0 %v5412
  %5674 = vmatpush.bf16.msra.mxu0 %v5411
  %5675 = vmatpush.bf16.msra.mxu0 %v5410
  %5676 = vmatpush.bf16.msra.mxu0 %v5409
  %5677 = vmatmul.bf16.gmra.mxu0 %v5450
  %v5678 = vpop.f32.mrf.mxu0
  %v5679 = vadd.f32 %v5630, %v5678
  %v5680 = vpop.f32.mrf.mxu0
  %v5681 = vadd.f32 %v5632, %v5680
  %5682 = vmatmul.bf16.gmra.mxu0 %v5453
  %v5683 = vpop.f32.mrf.mxu0
  %v5684 = vadd.f32 %v5635, %v5683
  %v5685 = vpop.f32.mrf.mxu0
  %v5686 = vadd.f32 %v5637, %v5685
  %5687 = vmatmul.bf16.gmra.mxu0 %v5456
  %v5688 = vpop.f32.mrf.mxu0
  %v5689 = vadd.f32 %v5640, %v5688
  %v5690 = vpop.f32.mrf.mxu0
  %v5691 = vadd.f32 %v5642, %v5690
  %5692 = vmatmul.bf16.gmra.mxu0 %v5459
  %v5693 = vpop.f32.mrf.mxu0
  %v5694 = vadd.f32 %v5645, %v5693
  %v5695 = vpop.f32.mrf.mxu0
  %v5696 = vadd.f32 %v5647, %v5695
  %5697 = vmatmul.bf16.gmra.mxu0 %v5462
  %v5698 = vpop.f32.mrf.mxu0
  %v5699 = vadd.f32 %v5650, %v5698
  %v5700 = vpop.f32.mrf.mxu0
  %v5701 = vadd.f32 %v5652, %v5700
  %5702 = vmatmul.bf16.gmra.mxu0 %v5465
  %v5703 = vpop.f32.mrf.mxu0
  %v5704 = vadd.f32 %v5655, %v5703
  %v5705 = vpop.f32.mrf.mxu0
  %v5706 = vadd.f32 %v5657, %v5705
  %5707 = vmatmul.bf16.gmra.mxu0 %v5468
  %v5708 = vpop.f32.mrf.mxu0
  %v5709 = vadd.f32 %v5660, %v5708
  %v5710 = vpop.f32.mrf.mxu0
  %v5711 = vadd.f32 %v5662, %v5710
  %5712 = vmatmul.bf16.gmra.mxu0 %v5471
  %v5713 = vpop.f32.mrf.mxu0
  %v5714 = vadd.f32 %v5665, %v5713
  %v5715 = vpop.f32.mrf.mxu0
  %v5716 = vadd.f32 %v5667, %v5715
  %5717 = vdwg.mxu0
  %v5718 = vsel %vm893, %v5679, 0.0
  %v5719 = vsel %vm893, %v5681, 0.0
  %v5720 = vadd.f32 %v5718, %v5719
  %v5721 = vsel %vm893, %v5684, 0.0
  %v5722 = vadd.f32 %v5720, %v5721
  %v5723 = vsel %vm893, %v5686, 0.0
  %v5724 = vadd.f32 %v5722, %v5723
  %v5725 = vsel %vm893, %v5689, 0.0
  %v5726 = vadd.f32 %v5724, %v5725
  %v5727 = vsel %vm893, %v5691, 0.0
  %v5728 = vadd.f32 %v5726, %v5727
  %v5729 = vsel %vm893, %v5694, 0.0
  %v5730 = vadd.f32 %v5728, %v5729
  %v5731 = vsel %vm893, %v5696, 0.0
  %v5732 = vadd.f32 %v5730, %v5731
  %v5733 = vsel %vm893, %v5699, 0.0
  %v5734 = vadd.f32 %v5732, %v5733
  %v5735 = vsel %vm893, %v5701, 0.0
  %v5736 = vadd.f32 %v5734, %v5735
  %v5737 = vsel %vm893, %v5704, 0.0
  %v5738 = vadd.f32 %v5736, %v5737
  %v5739 = vsel %vm893, %v5706, 0.0
  %v5740 = vadd.f32 %v5738, %v5739
  %v5741 = vsel %vm893, %v5709, 0.0
  %v5742 = vadd.f32 %v5740, %v5741
  %v5743 = vsel %vm893, %v5711, 0.0
  %v5744 = vadd.f32 %v5742, %v5743
  %v5745 = vsel %vm893, %v5714, 0.0
  %v5746 = vadd.f32 %v5744, %v5745
  %v5747 = vsel %vm893, %v5716, 0.0
  %v5748 = vadd.f32 %v5746, %v5747
  %v5749 = vrot.slane %v5748, 4
  %v5750 = vadd.f32 %v5748, %v5749
  %v5751 = vrot.slane %v5750, 2
  %v5752 = vadd.f32 %v5750, %v5751
  %v5753 = vrot.slane %v5752, 1
  %v5754 = vadd.f32 %v5752, %v5753
  %v5755 = vmul.f32 %v5754, 0.0078125
  %v5756 = vsub.f32 %v5679, %v5755
  %v5757 = vsub.f32 %v5681, %v5755
  %v5758 = vsub.f32 %v5684, %v5755
  %v5759 = vsub.f32 %v5686, %v5755
  %v5760 = vsub.f32 %v5689, %v5755
  %v5761 = vsub.f32 %v5691, %v5755
  %v5762 = vsub.f32 %v5694, %v5755
  %v5763 = vsub.f32 %v5696, %v5755
  %v5764 = vsub.f32 %v5699, %v5755
  %v5765 = vsub.f32 %v5701, %v5755
  %v5766 = vsub.f32 %v5704, %v5755
  %v5767 = vsub.f32 %v5706, %v5755
  %v5768 = vsub.f32 %v5709, %v5755
  %v5769 = vsub.f32 %v5711, %v5755
  %v5770 = vsub.f32 %v5714, %v5755
  %v5771 = vsub.f32 %v5716, %v5755
  %v5772 = vmul.f32 %v5756, %v5756
  %v5773 = vmul.f32 %v5757, %v5757
  %v5774 = vmul.f32 %v5758, %v5758
  %v5775 = vmul.f32 %v5759, %v5759
  %v5776 = vmul.f32 %v5760, %v5760
  %v5777 = vmul.f32 %v5761, %v5761
  %v5778 = vmul.f32 %v5762, %v5762
  %v5779 = vmul.f32 %v5763, %v5763
  %v5780 = vmul.f32 %v5764, %v5764
  %v5781 = vmul.f32 %v5765, %v5765
  %v5782 = vmul.f32 %v5766, %v5766
  %v5783 = vmul.f32 %v5767, %v5767
  %v5784 = vmul.f32 %v5768, %v5768
  %v5785 = vmul.f32 %v5769, %v5769
  %v5786 = vmul.f32 %v5770, %v5770
  %v5787 = vmul.f32 %v5771, %v5771
  %v5788 = vsel %vm893, %v5772, 0.0
  %v5789 = vsel %vm893, %v5773, 0.0
  %v5790 = vadd.f32 %v5788, %v5789
  %v5791 = vsel %vm893, %v5774, 0.0
  %v5792 = vadd.f32 %v5790, %v5791
  %v5793 = vsel %vm893, %v5775, 0.0
  %v5794 = vadd.f32 %v5792, %v5793
  %v5795 = vsel %vm893, %v5776, 0.0
  %v5796 = vadd.f32 %v5794, %v5795
  %v5797 = vsel %vm893, %v5777, 0.0
  %v5798 = vadd.f32 %v5796, %v5797
  %v5799 = vsel %vm893, %v5778, 0.0
  %v5800 = vadd.f32 %v5798, %v5799
  %v5801 = vsel %vm893, %v5779, 0.0
  %v5802 = vadd.f32 %v5800, %v5801
  %v5803 = vsel %vm893, %v5780, 0.0
  %v5804 = vadd.f32 %v5802, %v5803
  %v5805 = vsel %vm893, %v5781, 0.0
  %v5806 = vadd.f32 %v5804, %v5805
  %v5807 = vsel %vm893, %v5782, 0.0
  %v5808 = vadd.f32 %v5806, %v5807
  %v5809 = vsel %vm893, %v5783, 0.0
  %v5810 = vadd.f32 %v5808, %v5809
  %v5811 = vsel %vm893, %v5784, 0.0
  %v5812 = vadd.f32 %v5810, %v5811
  %v5813 = vsel %vm893, %v5785, 0.0
  %v5814 = vadd.f32 %v5812, %v5813
  %v5815 = vsel %vm893, %v5786, 0.0
  %v5816 = vadd.f32 %v5814, %v5815
  %v5817 = vsel %vm893, %v5787, 0.0
  %v5818 = vadd.f32 %v5816, %v5817
  %v5819 = vrot.slane %v5818, 4
  %v5820 = vadd.f32 %v5818, %v5819
  %v5821 = vrot.slane %v5820, 2
  %v5822 = vadd.f32 %v5820, %v5821
  %v5823 = vrot.slane %v5822, 1
  %v5824 = vadd.f32 %v5822, %v5823
  %v5825 = vmul.f32 %v5824, 0.0078125
  %v5826 = vperm.slane %v2223, 0
  %v5827 = vmul.f32 %v5826, %v5756
  %v5828 = vmul.f32 %v5826, %v5757
  %v5829 = vmul.f32 %v5826, %v5758
  %v5830 = vmul.f32 %v5826, %v5759
  %v5831 = vmul.f32 %v5826, %v5760
  %v5832 = vmul.f32 %v5826, %v5761
  %v5833 = vmul.f32 %v5826, %v5762
  %v5834 = vmul.f32 %v5826, %v5763
  %v5835 = vmul.f32 %v5826, %v5764
  %v5836 = vmul.f32 %v5826, %v5765
  %v5837 = vmul.f32 %v5826, %v5766
  %v5838 = vmul.f32 %v5826, %v5767
  %v5839 = vmul.f32 %v5826, %v5768
  %v5840 = vmul.f32 %v5826, %v5769
  %v5841 = vmul.f32 %v5826, %v5770
  %v5842 = vmul.f32 %v5826, %v5771
  %v5843 = vadd.f32 %v5825, 1e-05
  %v5844 = vrsqrt.pop %v5843
  %v5845 = vmul.f32 %v5844, %v5843
  %v5846 = vmul.f32 %v5845, %v5844
  %v5847 = vmul.f32 0.5, %v5846
  %v5848 = vsub.f32 1.5, %v5847
  %v5849 = vmul.f32 %v5844, %v5848
  %vm5850 = vweird.f32 %v5843
  %vm5851 = vweird.f32 %v5844
  %vm5852 = vmor %vm5850, %vm5851
  %v5853 = vsel %vm5852, %v5844, %v5849
  %v5854 = vmul.f32 %v5827, %v5853
  %v5855 = vmul.f32 %v5828, %v5853
  %v5856 = vmul.f32 %v5829, %v5853
  %v5857 = vmul.f32 %v5830, %v5853
  %v5858 = vmul.f32 %v5831, %v5853
  %v5859 = vmul.f32 %v5832, %v5853
  %v5860 = vmul.f32 %v5833, %v5853
  %v5861 = vmul.f32 %v5834, %v5853
  %v5862 = vmul.f32 %v5835, %v5853
  %v5863 = vmul.f32 %v5836, %v5853
  %v5864 = vmul.f32 %v5837, %v5853
  %v5865 = vmul.f32 %v5838, %v5853
  %v5866 = vmul.f32 %v5839, %v5853
  %v5867 = vmul.f32 %v5840, %v5853
  %v5868 = vmul.f32 %v5841, %v5853
  %v5869 = vmul.f32 %v5842, %v5853
  %v5870 = vperm.slane %v2224, 0
  %v5871 = vadd.f32 %v5854, %v5870
  %v5872 = vadd.f32 %v5855, %v5870
  %v5873 = vadd.f32 %v5856, %v5870
  %v5874 = vadd.f32 %v5857, %v5870
  %v5875 = vadd.f32 %v5858, %v5870
  %v5876 = vadd.f32 %v5859, %v5870
  %v5877 = vadd.f32 %v5860, %v5870
  %v5878 = vadd.f32 %v5861, %v5870
  %v5879 = vadd.f32 %v5862, %v5870
  %v5880 = vadd.f32 %v5863, %v5870
  %v5881 = vadd.f32 %v5864, %v5870
  %v5882 = vadd.f32 %v5865, %v5870
  %v5883 = vadd.f32 %v5866, %v5870
  %v5884 = vadd.f32 %v5867, %v5870
  %v5885 = vadd.f32 %v5868, %v5870
  %v5886 = vadd.f32 %v5869, %v5870
  %v5887 = vmax.f32 %v5871, 0.0
  %v5888 = vmax.f32 %v5872, 0.0
  %v5889 = vmax.f32 %v5873, 0.0
  %v5890 = vmax.f32 %v5874, 0.0
  %v5891 = vmax.f32 %v5875, 0.0
  %v5892 = vmax.f32 %v5876, 0.0
  %v5893 = vmax.f32 %v5877, 0.0
  %v5894 = vmax.f32 %v5878, 0.0
  %v5895 = vmax.f32 %v5879, 0.0
  %v5896 = vmax.f32 %v5880, 0.0
  %v5897 = vmax.f32 %v5881, 0.0
  %v5898 = vmax.f32 %v5882, 0.0
  %v5899 = vmax.f32 %v5883, 0.0
  %v5900 = vmax.f32 %v5884, 0.0
  %v5901 = vmax.f32 %v5885, 0.0
  %v5902 = vmax.f32 %v5886, 0.0
  %v5903 = vld [vmem:[%s4 + $0x4] sm:$0x1]
  %v5904 = vld [vmem:[%s4 + $0x5] sm:$0x1]
  %v5905 = vpack.c.bf16 %v5887, %v5887
  %v5906 = vpack.c.bf16 %v5888, %v5888
  %v5907 = vpack.c.bf16 %v5889, %v5889
  %v5908 = vpack.c.bf16 %v5890, %v5890
  %v5909 = vpack.c.bf16 %v5891, %v5891
  %v5910 = vpack.c.bf16 %v5892, %v5892
  %v5911 = vpack.c.bf16 %v5893, %v5893
  %v5912 = vpack.c.bf16 %v5894, %v5894
  %v5913 = vpack.c.bf16 %v5895, %v5895
  %v5914 = vpack.c.bf16 %v5896, %v5896
  %v5915 = vpack.c.bf16 %v5897, %v5897
  %v5916 = vpack.c.bf16 %v5898, %v5898
  %v5917 = vpack.c.bf16 %v5899, %v5899
  %v5918 = vpack.c.bf16 %v5900, %v5900
  %v5919 = vpack.c.bf16 %v5901, %v5901
  %v5920 = vpack.c.bf16 %v5902, %v5902
  %v5922 = vshrl.u32 %v5905, 16
  %v5924 = vrot.slane %v5922, 7
  %v5925 = vshll.u32 %v5905, 16
  %v5927 = vor.u32 %v5924, %v5925
  %v5928 = vrot.slane %v5924, 4
  %v5930 = vshrl.u32 %v5906, 16
  %v5932 = vrot.slane %v5930, 7
  %v5933 = vshll.u32 %v5906, 16
  %v5935 = vor.u32 %v5932, %v5933
  %v5936 = vrot.slane %v5932, 4
  %v5938 = vshrl.u32 %v5907, 16
  %v5940 = vrot.slane %v5938, 7
  %v5941 = vshll.u32 %v5907, 16
  %v5943 = vor.u32 %v5940, %v5941
  %v5944 = vrot.slane %v5940, 4
  %v5946 = vshrl.u32 %v5908, 16
  %v5948 = vrot.slane %v5946, 7
  %v5949 = vshll.u32 %v5908, 16
  %v5951 = vor.u32 %v5948, %v5949
  %v5952 = vrot.slane %v5948, 4
  %v5954 = vshrl.u32 %v5909, 16
  %v5956 = vrot.slane %v5954, 7
  %v5957 = vshll.u32 %v5909, 16
  %v5959 = vor.u32 %v5956, %v5957
  %v5960 = vrot.slane %v5956, 4
  %v5962 = vshrl.u32 %v5910, 16
  %v5964 = vrot.slane %v5962, 7
  %v5965 = vshll.u32 %v5910, 16
  %v5967 = vor.u32 %v5964, %v5965
  %v5968 = vrot.slane %v5964, 4
  %v5970 = vshrl.u32 %v5911, 16
  %v5972 = vrot.slane %v5970, 7
  %v5973 = vshll.u32 %v5911, 16
  %v5975 = vor.u32 %v5972, %v5973
  %v5976 = vrot.slane %v5972, 4
  %v5978 = vshrl.u32 %v5912, 16
  %v5980 = vrot.slane %v5978, 7
  %v5981 = vshll.u32 %v5912, 16
  %v5983 = vor.u32 %v5980, %v5981
  %v5984 = vrot.slane %v5980, 4
  %v5986 = vshrl.u32 %v5913, 16
  %v5988 = vrot.slane %v5986, 7
  %v5989 = vshll.u32 %v5913, 16
  %v5991 = vor.u32 %v5988, %v5989
  %v5992 = vrot.slane %v5988, 4
  %v5994 = vshrl.u32 %v5914, 16
  %v5996 = vrot.slane %v5994, 7
  %v5997 = vshll.u32 %v5914, 16
  %v5999 = vor.u32 %v5996, %v5997
  %v6000 = vrot.slane %v5996, 4
  %v6002 = vshrl.u32 %v5915, 16
  %v6004 = vrot.slane %v6002, 7
  %v6005 = vshll.u32 %v5915, 16
  %v6007 = vor.u32 %v6004, %v6005
  %v6008 = vrot.slane %v6004, 4
  %v6010 = vshrl.u32 %v5916, 16
  %v6012 = vrot.slane %v6010, 7
  %v6013 = vshll.u32 %v5916, 16
  %v6015 = vor.u32 %v6012, %v6013
  %v6016 = vrot.slane %v6012, 4
  %v6018 = vshrl.u32 %v5917, 16
  %v6020 = vrot.slane %v6018, 7
  %v6021 = vshll.u32 %v5917, 16
  %v6023 = vor.u32 %v6020, %v6021
  %v6024 = vrot.slane %v6020, 4
  %v6026 = vshrl.u32 %v5918, 16
  %v6028 = vrot.slane %v6026, 7
  %v6029 = vshll.u32 %v5918, 16
  %v6031 = vor.u32 %v6028, %v6029
  %v6032 = vrot.slane %v6028, 4
  %v6034 = vshrl.u32 %v5919, 16
  %v6036 = vrot.slane %v6034, 7
  %v6037 = vshll.u32 %v5919, 16
  %v6039 = vor.u32 %v6036, %v6037
  %v6040 = vrot.slane %v6036, 4
  %v6042 = vshrl.u32 %v5920, 16
  %v6044 = vrot.slane %v6042, 7
  %v6045 = vshll.u32 %v5920, 16
  %v6047 = vor.u32 %v6044, %v6045
  %v6048 = vrot.slane %v6044, 4
  %v6081 = vld [vmem:[%s2887] sm:$0xf]
  %v6082 = vsel %vm2889, %v5927, %v6081
  %6083 = vst [vmem:[%s2887] sm:$0xf] %v6082
  %v6084 = vld [vmem:[%s2887 + $0x4] sm:$0x1]
  %v6085 = vsel %vm2100, %v5928, %v6084
  %6086 = vst [vmem:[%s2887 + $0x4] sm:$0x1] %v6085
  %v6087 = vld [vmem:[%s2887 + $0x8] sm:$0xf]
  %v6088 = vsel %vm2889, %v5935, %v6087
  %6089 = vst [vmem:[%s2887 + $0x8] sm:$0xf] %v6088
  %v6090 = vld [vmem:[%s2887 + $0xc] sm:$0x1]
  %v6091 = vsel %vm2100, %v5936, %v6090
  %6092 = vst [vmem:[%s2887 + $0xc] sm:$0x1] %v6091
  %v6093 = vld [vmem:[%s2887 + $0x10] sm:$0xf]
  %v6094 = vsel %vm2889, %v5943, %v6093
  %6095 = vst [vmem:[%s2887 + $0x10] sm:$0xf] %v6094
  %v6096 = vld [vmem:[%s2887 + $0x14] sm:$0x1]
  %v6097 = vsel %vm2100, %v5944, %v6096
  %6098 = vst [vmem:[%s2887 + $0x14] sm:$0x1] %v6097
  %v6099 = vld [vmem:[%s2887 + $0x18] sm:$0xf]
  %v6100 = vsel %vm2889, %v5951, %v6099
  %6101 = vst [vmem:[%s2887 + $0x18] sm:$0xf] %v6100
  %v6102 = vld [vmem:[%s2887 + $0x1c] sm:$0x1]
  %v6103 = vsel %vm2100, %v5952, %v6102
  %6104 = vst [vmem:[%s2887 + $0x1c] sm:$0x1] %v6103
  %v6105 = vld [vmem:[%s2887 + $0x20] sm:$0xf]
  %v6106 = vsel %vm2889, %v5959, %v6105
  %6107 = vst [vmem:[%s2887 + $0x20] sm:$0xf] %v6106
  %v6108 = vld [vmem:[%s2887 + $0x24] sm:$0x1]
  %v6109 = vsel %vm2100, %v5960, %v6108
  %6110 = vst [vmem:[%s2887 + $0x24] sm:$0x1] %v6109
  %v6111 = vld [vmem:[%s2887 + $0x28] sm:$0xf]
  %v6112 = vsel %vm2889, %v5967, %v6111
  %6113 = vst [vmem:[%s2887 + $0x28] sm:$0xf] %v6112
  %v6114 = vld [vmem:[%s2887 + $0x2c] sm:$0x1]
  %v6115 = vsel %vm2100, %v5968, %v6114
  %6116 = vst [vmem:[%s2887 + $0x2c] sm:$0x1] %v6115
  %v6117 = vld [vmem:[%s2887 + $0x30] sm:$0xf]
  %v6118 = vsel %vm2889, %v5975, %v6117
  %6119 = vst [vmem:[%s2887 + $0x30] sm:$0xf] %v6118
  %v6120 = vld [vmem:[%s2887 + $0x34] sm:$0x1]
  %v6121 = vsel %vm2100, %v5976, %v6120
  %6122 = vst [vmem:[%s2887 + $0x34] sm:$0x1] %v6121
  %v6123 = vld [vmem:[%s2887 + $0x38] sm:$0xf]
  %v6124 = vsel %vm2889, %v5983, %v6123
  %6125 = vst [vmem:[%s2887 + $0x38] sm:$0xf] %v6124
  %v6126 = vld [vmem:[%s2887 + $0x3c] sm:$0x1]
  %v6127 = vsel %vm2100, %v5984, %v6126
  %6128 = vst [vmem:[%s2887 + $0x3c] sm:$0x1] %v6127
  %v6129 = vld [vmem:[%s2887 + $0x50] sm:$0xf]
  %v6130 = vsel %vm2889, %v5991, %v6129
  %6131 = vst [vmem:[%s2887 + $0x50] sm:$0xf] %v6130
  %v6132 = vld [vmem:[%s2887 + $0x54] sm:$0x1]
  %v6133 = vsel %vm2100, %v5992, %v6132
  %6134 = vst [vmem:[%s2887 + $0x54] sm:$0x1] %v6133
  %v6135 = vld [vmem:[%s2887 + $0x58] sm:$0xf]
  %v6136 = vsel %vm2889, %v5999, %v6135
  %6137 = vst [vmem:[%s2887 + $0x58] sm:$0xf] %v6136
  %v6138 = vld [vmem:[%s2887 + $0x5c] sm:$0x1]
  %v6139 = vsel %vm2100, %v6000, %v6138
  %6140 = vst [vmem:[%s2887 + $0x5c] sm:$0x1] %v6139
  %v6141 = vld [vmem:[%s2887 + $0x60] sm:$0xf]
  %v6142 = vsel %vm2889, %v6007, %v6141
  %6143 = vst [vmem:[%s2887 + $0x60] sm:$0xf] %v6142
  %v6144 = vld [vmem:[%s2887 + $0x64] sm:$0x1]
  %v6145 = vsel %vm2100, %v6008, %v6144
  %6146 = vst [vmem:[%s2887 + $0x64] sm:$0x1] %v6145
  %v6147 = vld [vmem:[%s2887 + $0x68] sm:$0xf]
  %v6148 = vsel %vm2889, %v6015, %v6147
  %6149 = vst [vmem:[%s2887 + $0x68] sm:$0xf] %v6148
  %v6150 = vld [vmem:[%s2887 + $0x6c] sm:$0x1]
  %v6151 = vsel %vm2100, %v6016, %v6150
  %6152 = vst [vmem:[%s2887 + $0x6c] sm:$0x1] %v6151
  %v6153 = vld [vmem:[%s2887 + $0x70] sm:$0xf]
  %v6154 = vsel %vm2889, %v6023, %v6153
  %6155 = vst [vmem:[%s2887 + $0x70] sm:$0xf] %v6154
  %v6156 = vld [vmem:[%s2887 + $0x74] sm:$0x1]
  %v6157 = vsel %vm2100, %v6024, %v6156
  %6158 = vst [vmem:[%s2887 + $0x74] sm:$0x1] %v6157
  %v6159 = vld [vmem:[%s2887 + $0x78] sm:$0xf]
  %v6160 = vsel %vm2889, %v6031, %v6159
  %6161 = vst [vmem:[%s2887 + $0x78] sm:$0xf] %v6160
  %v6162 = vld [vmem:[%s2887 + $0x7c] sm:$0x1]
  %v6163 = vsel %vm2100, %v6032, %v6162
  %6164 = vst [vmem:[%s2887 + $0x7c] sm:$0x1] %v6163
  %v6165 = vld [vmem:[%s2887 + $0x80] sm:$0xf]
  %v6166 = vsel %vm2889, %v6039, %v6165
  %6167 = vst [vmem:[%s2887 + $0x80] sm:$0xf] %v6166
  %v6168 = vld [vmem:[%s2887 + $0x84] sm:$0x1]
  %v6169 = vsel %vm2100, %v6040, %v6168
  %6170 = vst [vmem:[%s2887 + $0x84] sm:$0x1] %v6169
  %v6171 = vld [vmem:[%s2887 + $0x88] sm:$0xf]
  %v6172 = vsel %vm2889, %v6047, %v6171
  %6173 = vst [vmem:[%s2887 + $0x88] sm:$0xf] %v6172
  %v6174 = vld [vmem:[%s2887 + $0x8c] sm:$0x1]
  %v6175 = vsel %vm2100, %v6048, %v6174
  %6176 = vst [vmem:[%s2887 + $0x8c] sm:$0x1] %v6175
  %v6177 = vld [vmem:[#allocation2] sm:$0xf]
  %v6178 = vld [vmem:[#allocation2 + $0x8] sm:$0xf]
  %v6179 = vld [vmem:[#allocation2 + $0x10] sm:$0xf]
  %v6180 = vld [vmem:[#allocation2 + $0x18] sm:$0xf]
  %v6181 = vld [vmem:[#allocation2 + $0x20] sm:$0xf]
  %v6182 = vld [vmem:[#allocation2 + $0x28] sm:$0xf]
  %v6183 = vld [vmem:[#allocation2 + $0x30] sm:$0xf]
  %v6184 = vld [vmem:[#allocation2 + $0x38] sm:$0xf]
  %v6185 = vld [vmem:[#allocation2 + $0x50] sm:$0xf]
  %v6186 = vld [vmem:[#allocation2 + $0x58] sm:$0xf]
  %v6187 = vld [vmem:[#allocation2 + $0x60] sm:$0xf]
  %v6188 = vld [vmem:[#allocation2 + $0x68] sm:$0xf]
  %v6189 = vld [vmem:[#allocation2 + $0x70] sm:$0xf]
  %v6190 = vld [vmem:[#allocation2 + $0x78] sm:$0xf]
  %v6191 = vld [vmem:[#allocation2 + $0x80] sm:$0xf]
  %v6192 = vld [vmem:[#allocation2 + $0x88] sm:$0xf]
  %v6193 = vld [vmem:[%s2887] sm:$0xf]
  %v6194 = vld [vmem:[%s2887 + $0x8] sm:$0xf]
  %v6195 = vld [vmem:[%s2887 + $0x10] sm:$0xf]
  %v6196 = vld [vmem:[%s2887 + $0x18] sm:$0xf]
  %v6197 = vld [vmem:[%s2887 + $0x20] sm:$0xf]
  %v6198 = vld [vmem:[%s2887 + $0x28] sm:$0xf]
  %v6199 = vld [vmem:[%s2887 + $0x30] sm:$0xf]
  %v6200 = vld [vmem:[%s2887 + $0x38] sm:$0xf]
  %v6201 = vld [vmem:[%s2887 + $0x50] sm:$0xf]
  %v6202 = vld [vmem:[%s2887 + $0x58] sm:$0xf]
  %v6203 = vld [vmem:[%s2887 + $0x60] sm:$0xf]
  %v6204 = vld [vmem:[%s2887 + $0x68] sm:$0xf]
  %v6205 = vld [vmem:[%s2887 + $0x70] sm:$0xf]
  %v6206 = vld [vmem:[%s2887 + $0x78] sm:$0xf]
  %v6207 = vld [vmem:[%s2887 + $0x80] sm:$0xf]
  %v6208 = vld [vmem:[%s2887 + $0x88] sm:$0xf]
  %v6225 = vunpack.c.l.b16 %v6177
  %v6226 = vunpack.c.l.b16 %v6178
  %v6227 = vunpack.c.l.b16 %v6179
  %v6228 = vunpack.c.l.b16 %v6180
  %v6229 = vunpack.c.l.b16 %v6181
  %v6230 = vunpack.c.l.b16 %v6182
  %v6231 = vunpack.c.l.b16 %v6183
  %v6232 = vunpack.c.l.b16 %v6184
  %v6233 = vunpack.c.l.b16 %v6185
  %v6234 = vunpack.c.l.b16 %v6186
  %v6235 = vunpack.c.l.b16 %v6187
  %v6236 = vunpack.c.l.b16 %v6188
  %v6237 = vunpack.c.l.b16 %v6189
  %v6238 = vunpack.c.l.b16 %v6190
  %v6239 = vunpack.c.l.b16 %v6191
  %v6240 = vunpack.c.l.b16 %v6192
  %v6241 = vpack.c.b16 %v6226, %v6225
  %v6242 = vpack.c.b16 %v6228, %v6227
  %v6243 = vpack.c.b16 %v6230, %v6229
  %v6244 = vpack.c.b16 %v6232, %v6231
  %v6245 = vpack.c.b16 %v6234, %v6233
  %v6246 = vpack.c.b16 %v6236, %v6235
  %v6247 = vpack.c.b16 %v6238, %v6237
  %v6248 = vpack.c.b16 %v6240, %v6239
  %v6265 = vunpack.c.l.b16 %v6193
  %v6266 = vunpack.c.l.b16 %v6194
  %v6267 = vunpack.c.l.b16 %v6195
  %v6268 = vunpack.c.l.b16 %v6196
  %v6269 = vunpack.c.l.b16 %v6197
  %v6270 = vunpack.c.l.b16 %v6198
  %v6271 = vunpack.c.l.b16 %v6199
  %v6272 = vunpack.c.l.b16 %v6200
  %v6273 = vunpack.c.l.b16 %v6201
  %v6274 = vunpack.c.l.b16 %v6202
  %v6275 = vunpack.c.l.b16 %v6203
  %v6276 = vunpack.c.l.b16 %v6204
  %v6277 = vunpack.c.l.b16 %v6205
  %v6278 = vunpack.c.l.b16 %v6206
  %v6279 = vunpack.c.l.b16 %v6207
  %v6280 = vunpack.c.l.b16 %v6208
  %v6281 = vpack.c.b16 %v6266, %v6265
  %v6282 = vpack.c.b16 %v6268, %v6267
  %v6283 = vpack.c.b16 %v6270, %v6269
  %v6284 = vpack.c.b16 %v6272, %v6271
  %v6285 = vpack.c.b16 %v6274, %v6273
  %v6286 = vpack.c.b16 %v6276, %v6275
  %v6287 = vpack.c.b16 %v6278, %v6277
  %v6288 = vpack.c.b16 %v6280, %v6279
  %6289 = vrot.lane.b32.xlu0 %v6281, 64
  %v6290 = vpop.permute.xlu0 %6289
  %6291 = vrot.lane.b32.xlu0 %v6282, 64
  %v6292 = vpop.permute.xlu0 %6291
  %6293 = vrot.lane.b32.xlu0 %v6283, 64
  %v6294 = vpop.permute.xlu0 %6293
  %6295 = vrot.lane.b32.xlu0 %v6284, 64
  %v6296 = vpop.permute.xlu0 %6295
  %6297 = vrot.lane.b32.xlu0 %v6285, 64
  %v6298 = vpop.permute.xlu0 %6297
  %6299 = vrot.lane.b32.xlu0 %v6286, 64
  %v6300 = vpop.permute.xlu0 %6299
  %6301 = vrot.lane.b32.xlu0 %v6287, 64
  %v6302 = vpop.permute.xlu0 %6301
  %6303 = vrot.lane.b32.xlu0 %v6288, 64
  %v6304 = vpop.permute.xlu0 %6303
  %v6307 = vsel %vm893, %v6241, %v6290
  %v6310 = vsel %vm893, %v6242, %v6292
  %v6313 = vsel %vm893, %v6243, %v6294
  %v6316 = vsel %vm893, %v6244, %v6296
  %v6319 = vsel %vm893, %v6245, %v6298
  %v6322 = vsel %vm893, %v6246, %v6300
  %v6325 = vsel %vm893, %v6247, %v6302
  %v6328 = vsel %vm893, %v6248, %v6304
  %v6337 = vunpack.c.l.b16 %v6307
  %v6338 = vunpack.c.h.b16 %v6307
  %v6339 = vunpack.c.l.b16 %v6310
  %v6340 = vunpack.c.h.b16 %v6310
  %v6341 = vunpack.c.l.b16 %v6313
  %v6342 = vunpack.c.h.b16 %v6313
  %v6343 = vunpack.c.l.b16 %v6316
  %v6344 = vunpack.c.h.b16 %v6316
  %v6345 = vunpack.c.l.b16 %v6319
  %v6346 = vunpack.c.h.b16 %v6319
  %v6347 = vunpack.c.l.b16 %v6322
  %v6348 = vunpack.c.h.b16 %v6322
  %v6349 = vunpack.c.l.b16 %v6325
  %v6350 = vunpack.c.h.b16 %v6325
  %v6351 = vunpack.c.l.b16 %v6328
  %v6352 = vunpack.c.h.b16 %v6328
  %v6353 = vpack.c.b16 %v6337, %v6337
  %v6354 = vpack.c.b16 %v6338, %v6338
  %v6355 = vpack.c.b16 %v6339, %v6339
  %v6356 = vpack.c.b16 %v6340, %v6340
  %v6357 = vpack.c.b16 %v6341, %v6341
  %v6358 = vpack.c.b16 %v6342, %v6342
  %v6359 = vpack.c.b16 %v6343, %v6343
  %v6360 = vpack.c.b16 %v6344, %v6344
  %v6361 = vpack.c.b16 %v6345, %v6345
  %v6362 = vpack.c.b16 %v6346, %v6346
  %v6363 = vpack.c.b16 %v6347, %v6347
  %v6364 = vpack.c.b16 %v6348, %v6348
  %v6365 = vpack.c.b16 %v6349, %v6349
  %v6366 = vpack.c.b16 %v6350, %v6350
  %v6367 = vpack.c.b16 %v6351, %v6351
  %v6368 = vpack.c.b16 %v6352, %v6352
  %6385 = vst [vmem:[#allocation3] sm:$0xf] %v6353
  %6386 = vst [vmem:[#allocation3 + $0x14] sm:$0xf] %v6354
  %6387 = vst [vmem:[#allocation3 + $0x28] sm:$0xf] %v6355
  %6388 = vst [vmem:[#allocation3 + $0x3c] sm:$0xf] %v6356
  %6389 = vst [vmem:[#allocation3 + $0x50] sm:$0xf] %v6357
  %6390 = vst [vmem:[#allocation3 + $0x64] sm:$0xf] %v6358
  %6391 = vst [vmem:[#allocation3 + $0x78] sm:$0xf] %v6359
  %6392 = vst [vmem:[#allocation3 + $0x8c] sm:$0xf] %v6360
  %6393 = vst [vmem:[#allocation3 + $0xa0] sm:$0xf] %v6361
  %6394 = vst [vmem:[#allocation3 + $0xb4] sm:$0xf] %v6362
  %6395 = vst [vmem:[#allocation3 + $0xc8] sm:$0xf] %v6363
  %6396 = vst [vmem:[#allocation3 + $0xdc] sm:$0xf] %v6364
  %6397 = vst [vmem:[#allocation3 + $0xf0] sm:$0xf] %v6365
  %6398 = vst [vmem:[#allocation3 + $0x104] sm:$0xf] %v6366
  %6399 = vst [vmem:[#allocation3 + $0x118] sm:$0xf] %v6367
  %6400 = vst [vmem:[#allocation3 + $0x12c] sm:$0xf] %v6368
  %v6401 = vld [vmem:[%s3210] sm:$0xf]
  %v6402 = vld [vmem:[%s3210 + $0x8] sm:$0xf]
  %v6403 = vld [vmem:[%s3210 + $0x10] sm:$0xf]
  %v6404 = vld [vmem:[%s3210 + $0x18] sm:$0xf]
  %v6405 = vld [vmem:[%s3210 + $0x20] sm:$0xf]
  %v6406 = vld [vmem:[%s3210 + $0x28] sm:$0xf]
  %v6407 = vld [vmem:[%s3210 + $0x30] sm:$0xf]
  %v6408 = vld [vmem:[%s3210 + $0x38] sm:$0xf]
  %v6409 = vld [vmem:[%s3210 + $0x50] sm:$0xf]
  %v6410 = vld [vmem:[%s3210 + $0x58] sm:$0xf]
  %v6411 = vld [vmem:[%s3210 + $0x60] sm:$0xf]
  %v6412 = vld [vmem:[%s3210 + $0x68] sm:$0xf]
  %v6413 = vld [vmem:[%s3210 + $0x70] sm:$0xf]
  %v6414 = vld [vmem:[%s3210 + $0x78] sm:$0xf]
  %v6415 = vld [vmem:[%s3210 + $0x80] sm:$0xf]
  %v6416 = vld [vmem:[%s3210 + $0x88] sm:$0xf]
  %v6417 = vld [vmem:[#allocation2] sm:$0xf]
  %v6418 = vld [vmem:[#allocation2 + $0x4] sm:$0x1]
  %v6419 = vld [vmem:[#allocation2 + $0x8] sm:$0xf]
  %v6420 = vld [vmem:[#allocation2 + $0xc] sm:$0x1]
  %v6421 = vld [vmem:[#allocation2 + $0x10] sm:$0xf]
  %v6422 = vld [vmem:[#allocation2 + $0x14] sm:$0x1]
  %v6423 = vld [vmem:[#allocation2 + $0x18] sm:$0xf]
  %v6424 = vld [vmem:[#allocation2 + $0x1c] sm:$0x1]
  %v6425 = vld [vmem:[#allocation2 + $0x20] sm:$0xf]
  %v6426 = vld [vmem:[#allocation2 + $0x24] sm:$0x1]
  %v6427 = vld [vmem:[#allocation2 + $0x28] sm:$0xf]
  %v6428 = vld [vmem:[#allocation2 + $0x2c] sm:$0x1]
  %v6429 = vld [vmem:[#allocation2 + $0x30] sm:$0xf]
  %v6430 = vld [vmem:[#allocation2 + $0x34] sm:$0x1]
  %v6431 = vld [vmem:[#allocation2 + $0x38] sm:$0xf]
  %v6432 = vld [vmem:[#allocation2 + $0x3c] sm:$0x1]
  %v6433 = vld [vmem:[#allocation2 + $0x50] sm:$0xf]
  %v6434 = vld [vmem:[#allocation2 + $0x54] sm:$0x1]
  %v6435 = vld [vmem:[#allocation2 + $0x58] sm:$0xf]
  %v6436 = vld [vmem:[#allocation2 + $0x5c] sm:$0x1]
  %v6437 = vld [vmem:[#allocation2 + $0x60] sm:$0xf]
  %v6438 = vld [vmem:[#allocation2 + $0x64] sm:$0x1]
  %v6439 = vld [vmem:[#allocation2 + $0x68] sm:$0xf]
  %v6440 = vld [vmem:[#allocation2 + $0x6c] sm:$0x1]
  %v6441 = vld [vmem:[#allocation2 + $0x70] sm:$0xf]
  %v6442 = vld [vmem:[#allocation2 + $0x74] sm:$0x1]
  %v6443 = vld [vmem:[#allocation2 + $0x78] sm:$0xf]
  %v6444 = vld [vmem:[#allocation2 + $0x7c] sm:$0x1]
  %v6445 = vld [vmem:[#allocation2 + $0x80] sm:$0xf]
  %v6446 = vld [vmem:[#allocation2 + $0x84] sm:$0x1]
  %v6447 = vld [vmem:[#allocation2 + $0x88] sm:$0xf]
  %v6448 = vld [vmem:[#allocation2 + $0x8c] sm:$0x1]
  %v6450 = vshrl.u32 %v6417, 16
  %v6452 = vrot.slane %v6450, 4
  %v6453 = vshll.u32 %v6417, 16
  %v6455 = vrot.slane %v6453, 5
  %v6456 = vor.u32 %v6452, %v6455
  %v6457 = vrot.slane %v6456, 4
  %v6459 = vshll.u32 %v6418, 16
  %v6461 = vrot.slane %v6459, 5
  %v6462 = vsel %vm3261, %v6457, %v6461
  %v6464 = vshrl.u32 %v6419, 16
  %v6466 = vrot.slane %v6464, 4
  %v6467 = vshll.u32 %v6419, 16
  %v6469 = vrot.slane %v6467, 5
  %v6470 = vor.u32 %v6466, %v6469
  %v6471 = vrot.slane %v6470, 4
  %v6473 = vshll.u32 %v6420, 16
  %v6475 = vrot.slane %v6473, 5
  %v6476 = vsel %vm3261, %v6471, %v6475
  %v6478 = vshrl.u32 %v6421, 16
  %v6480 = vrot.slane %v6478, 4
  %v6481 = vshll.u32 %v6421, 16
  %v6483 = vrot.slane %v6481, 5
  %v6484 = vor.u32 %v6480, %v6483
  %v6485 = vrot.slane %v6484, 4
  %v6487 = vshll.u32 %v6422, 16
  %v6489 = vrot.slane %v6487, 5
  %v6490 = vsel %vm3261, %v6485, %v6489
  %v6492 = vshrl.u32 %v6423, 16
  %v6494 = vrot.slane %v6492, 4
  %v6495 = vshll.u32 %v6423, 16
  %v6497 = vrot.slane %v6495, 5
  %v6498 = vor.u32 %v6494, %v6497
  %v6499 = vrot.slane %v6498, 4
  %v6501 = vshll.u32 %v6424, 16
  %v6503 = vrot.slane %v6501, 5
  %v6504 = vsel %vm3261, %v6499, %v6503
  %v6506 = vshrl.u32 %v6425, 16
  %v6508 = vrot.slane %v6506, 4
  %v6509 = vshll.u32 %v6425, 16
  %v6511 = vrot.slane %v6509, 5
  %v6512 = vor.u32 %v6508, %v6511
  %v6513 = vrot.slane %v6512, 4
  %v6515 = vshll.u32 %v6426, 16
  %v6517 = vrot.slane %v6515, 5
  %v6518 = vsel %vm3261, %v6513, %v6517
  %v6520 = vshrl.u32 %v6427, 16
  %v6522 = vrot.slane %v6520, 4
  %v6523 = vshll.u32 %v6427, 16
  %v6525 = vrot.slane %v6523, 5
  %v6526 = vor.u32 %v6522, %v6525
  %v6527 = vrot.slane %v6526, 4
  %v6529 = vshll.u32 %v6428, 16
  %v6531 = vrot.slane %v6529, 5
  %v6532 = vsel %vm3261, %v6527, %v6531
  %v6534 = vshrl.u32 %v6429, 16
  %v6536 = vrot.slane %v6534, 4
  %v6537 = vshll.u32 %v6429, 16
  %v6539 = vrot.slane %v6537, 5
  %v6540 = vor.u32 %v6536, %v6539
  %v6541 = vrot.slane %v6540, 4
  %v6543 = vshll.u32 %v6430, 16
  %v6545 = vrot.slane %v6543, 5
  %v6546 = vsel %vm3261, %v6541, %v6545
  %v6548 = vshrl.u32 %v6431, 16
  %v6550 = vrot.slane %v6548, 4
  %v6551 = vshll.u32 %v6431, 16
  %v6553 = vrot.slane %v6551, 5
  %v6554 = vor.u32 %v6550, %v6553
  %v6555 = vrot.slane %v6554, 4
  %v6557 = vshll.u32 %v6432, 16
  %v6559 = vrot.slane %v6557, 5
  %v6560 = vsel %vm3261, %v6555, %v6559
  %v6562 = vshrl.u32 %v6433, 16
  %v6564 = vrot.slane %v6562, 4
  %v6565 = vshll.u32 %v6433, 16
  %v6567 = vrot.slane %v6565, 5
  %v6568 = vor.u32 %v6564, %v6567
  %v6569 = vrot.slane %v6568, 4
  %v6571 = vshll.u32 %v6434, 16
  %v6573 = vrot.slane %v6571, 5
  %v6574 = vsel %vm3261, %v6569, %v6573
  %v6576 = vshrl.u32 %v6435, 16
  %v6578 = vrot.slane %v6576, 4
  %v6579 = vshll.u32 %v6435, 16
  %v6581 = vrot.slane %v6579, 5
  %v6582 = vor.u32 %v6578, %v6581
  %v6583 = vrot.slane %v6582, 4
  %v6585 = vshll.u32 %v6436, 16
  %v6587 = vrot.slane %v6585, 5
  %v6588 = vsel %vm3261, %v6583, %v6587
  %v6590 = vshrl.u32 %v6437, 16
  %v6592 = vrot.slane %v6590, 4
  %v6593 = vshll.u32 %v6437, 16
  %v6595 = vrot.slane %v6593, 5
  %v6596 = vor.u32 %v6592, %v6595
  %v6597 = vrot.slane %v6596, 4
  %v6599 = vshll.u32 %v6438, 16
  %v6601 = vrot.slane %v6599, 5
  %v6602 = vsel %vm3261, %v6597, %v6601
  %v6604 = vshrl.u32 %v6439, 16
  %v6606 = vrot.slane %v6604, 4
  %v6607 = vshll.u32 %v6439, 16
  %v6609 = vrot.slane %v6607, 5
  %v6610 = vor.u32 %v6606, %v6609
  %v6611 = vrot.slane %v6610, 4
  %v6613 = vshll.u32 %v6440, 16
  %v6615 = vrot.slane %v6613, 5
  %v6616 = vsel %vm3261, %v6611, %v6615
  %v6618 = vshrl.u32 %v6441, 16
  %v6620 = vrot.slane %v6618, 4
  %v6621 = vshll.u32 %v6441, 16
  %v6623 = vrot.slane %v6621, 5
  %v6624 = vor.u32 %v6620, %v6623
  %v6625 = vrot.slane %v6624, 4
  %v6627 = vshll.u32 %v6442, 16
  %v6629 = vrot.slane %v6627, 5
  %v6630 = vsel %vm3261, %v6625, %v6629
  %v6632 = vshrl.u32 %v6443, 16
  %v6634 = vrot.slane %v6632, 4
  %v6635 = vshll.u32 %v6443, 16
  %v6637 = vrot.slane %v6635, 5
  %v6638 = vor.u32 %v6634, %v6637
  %v6639 = vrot.slane %v6638, 4
  %v6641 = vshll.u32 %v6444, 16
  %v6643 = vrot.slane %v6641, 5
  %v6644 = vsel %vm3261, %v6639, %v6643
  %v6646 = vshrl.u32 %v6445, 16
  %v6648 = vrot.slane %v6646, 4
  %v6649 = vshll.u32 %v6445, 16
  %v6651 = vrot.slane %v6649, 5
  %v6652 = vor.u32 %v6648, %v6651
  %v6653 = vrot.slane %v6652, 4
  %v6655 = vshll.u32 %v6446, 16
  %v6657 = vrot.slane %v6655, 5
  %v6658 = vsel %vm3261, %v6653, %v6657
  %v6660 = vshrl.u32 %v6447, 16
  %v6662 = vrot.slane %v6660, 4
  %v6663 = vshll.u32 %v6447, 16
  %v6665 = vrot.slane %v6663, 5
  %v6666 = vor.u32 %v6662, %v6665
  %v6667 = vrot.slane %v6666, 4
  %v6669 = vshll.u32 %v6448, 16
  %v6671 = vrot.slane %v6669, 5
  %v6672 = vsel %vm3261, %v6667, %v6671
  %v6689 = vunpack.c.l.b16 %v6401
  %v6690 = vunpack.c.l.b16 %v6402
  %v6691 = vunpack.c.l.b16 %v6403
  %v6692 = vunpack.c.l.b16 %v6404
  %v6693 = vunpack.c.l.b16 %v6405
  %v6694 = vunpack.c.l.b16 %v6406
  %v6695 = vunpack.c.l.b16 %v6407
  %v6696 = vunpack.c.l.b16 %v6408
  %v6697 = vunpack.c.l.b16 %v6409
  %v6698 = vunpack.c.l.b16 %v6410
  %v6699 = vunpack.c.l.b16 %v6411
  %v6700 = vunpack.c.l.b16 %v6412
  %v6701 = vunpack.c.l.b16 %v6413
  %v6702 = vunpack.c.l.b16 %v6414
  %v6703 = vunpack.c.l.b16 %v6415
  %v6704 = vunpack.c.l.b16 %v6416
  %v6705 = vpack.c.b16 %v6690, %v6689
  %v6706 = vpack.c.b16 %v6692, %v6691
  %v6707 = vpack.c.b16 %v6694, %v6693
  %v6708 = vpack.c.b16 %v6696, %v6695
  %v6709 = vpack.c.b16 %v6698, %v6697
  %v6710 = vpack.c.b16 %v6700, %v6699
  %v6711 = vpack.c.b16 %v6702, %v6701
  %v6712 = vpack.c.b16 %v6704, %v6703
  %v6713 = vunpack.c.l.b16 %v6462
  %v6714 = vunpack.c.l.b16 %v6476
  %v6715 = vunpack.c.l.b16 %v6490
  %v6716 = vunpack.c.l.b16 %v6504
  %v6717 = vunpack.c.l.b16 %v6518
  %v6718 = vunpack.c.l.b16 %v6532
  %v6719 = vunpack.c.l.b16 %v6546
  %v6720 = vunpack.c.l.b16 %v6560
  %v6721 = vunpack.c.l.b16 %v6574
  %v6722 = vunpack.c.l.b16 %v6588
  %v6723 = vunpack.c.l.b16 %v6602
  %v6724 = vunpack.c.l.b16 %v6616
  %v6725 = vunpack.c.l.b16 %v6630
  %v6726 = vunpack.c.l.b16 %v6644
  %v6727 = vunpack.c.l.b16 %v6658
  %v6728 = vunpack.c.l.b16 %v6672
  %v6729 = vpack.c.b16 %v6714, %v6713
  %v6730 = vpack.c.b16 %v6716, %v6715
  %v6731 = vpack.c.b16 %v6718, %v6717
  %v6732 = vpack.c.b16 %v6720, %v6719
  %v6733 = vpack.c.b16 %v6722, %v6721
  %v6734 = vpack.c.b16 %v6724, %v6723
  %v6735 = vpack.c.b16 %v6726, %v6725
  %v6736 = vpack.c.b16 %v6728, %v6727
  %6737 = vrot.lane.b32.xlu0 %v6729, 64
  %v6738 = vpop.permute.xlu0 %6737
  %6739 = vrot.lane.b32.xlu0 %v6730, 64
  %v6740 = vpop.permute.xlu0 %6739
  %6741 = vrot.lane.b32.xlu0 %v6731, 64
  %v6742 = vpop.permute.xlu0 %6741
  %6743 = vrot.lane.b32.xlu0 %v6732, 64
  %v6744 = vpop.permute.xlu0 %6743
  %6745 = vrot.lane.b32.xlu0 %v6733, 64
  %v6746 = vpop.permute.xlu0 %6745
  %6747 = vrot.lane.b32.xlu0 %v6734, 64
  %v6748 = vpop.permute.xlu0 %6747
  %6749 = vrot.lane.b32.xlu0 %v6735, 64
  %v6750 = vpop.permute.xlu0 %6749
  %6751 = vrot.lane.b32.xlu0 %v6736, 64
  %v6752 = vpop.permute.xlu0 %6751
  %v6755 = vsel %vm893, %v6705, %v6738
  %v6758 = vsel %vm893, %v6706, %v6740
  %v6761 = vsel %vm893, %v6707, %v6742
  %v6764 = vsel %vm893, %v6708, %v6744
  %v6767 = vsel %vm893, %v6709, %v6746
  %v6770 = vsel %vm893, %v6710, %v6748
  %v6773 = vsel %vm893, %v6711, %v6750
  %v6776 = vsel %vm893, %v6712, %v6752
  %v6785 = vunpack.c.l.b16 %v6755
  %v6786 = vunpack.c.h.b16 %v6755
  %v6787 = vunpack.c.l.b16 %v6758
  %v6788 = vunpack.c.h.b16 %v6758
  %v6789 = vunpack.c.l.b16 %v6761
  %v6790 = vunpack.c.h.b16 %v6761
  %v6791 = vunpack.c.l.b16 %v6764
  %v6792 = vunpack.c.h.b16 %v6764
  %v6793 = vunpack.c.l.b16 %v6767
  %v6794 = vunpack.c.h.b16 %v6767
  %v6795 = vunpack.c.l.b16 %v6770
  %v6796 = vunpack.c.h.b16 %v6770
  %v6797 = vunpack.c.l.b16 %v6773
  %v6798 = vunpack.c.h.b16 %v6773
  %v6799 = vunpack.c.l.b16 %v6776
  %v6800 = vunpack.c.h.b16 %v6776
  %v6801 = vpack.c.b16 %v6785, %v6785
  %v6802 = vpack.c.b16 %v6786, %v6786
  %v6803 = vpack.c.b16 %v6787, %v6787
  %v6804 = vpack.c.b16 %v6788, %v6788
  %v6805 = vpack.c.b16 %v6789, %v6789
  %v6806 = vpack.c.b16 %v6790, %v6790
  %v6807 = vpack.c.b16 %v6791, %v6791
  %v6808 = vpack.c.b16 %v6792, %v6792
  %v6809 = vpack.c.b16 %v6793, %v6793
  %v6810 = vpack.c.b16 %v6794, %v6794
  %v6811 = vpack.c.b16 %v6795, %v6795
  %v6812 = vpack.c.b16 %v6796, %v6796
  %v6813 = vpack.c.b16 %v6797, %v6797
  %v6814 = vpack.c.b16 %v6798, %v6798
  %v6815 = vpack.c.b16 %v6799, %v6799
  %v6816 = vpack.c.b16 %v6800, %v6800
  %6833 = vst [vmem:[#allocation3 + $0x4] sm:$0xf] %v6801
  %6834 = vst [vmem:[#allocation3 + $0x18] sm:$0xf] %v6802
  %6835 = vst [vmem:[#allocation3 + $0x2c] sm:$0xf] %v6803
  %6836 = vst [vmem:[#allocation3 + $0x40] sm:$0xf] %v6804
  %6837 = vst [vmem:[#allocation3 + $0x54] sm:$0xf] %v6805
  %6838 = vst [vmem:[#allocation3 + $0x68] sm:$0xf] %v6806
  %6839 = vst [vmem:[#allocation3 + $0x7c] sm:$0xf] %v6807
  %6840 = vst [vmem:[#allocation3 + $0x90] sm:$0xf] %v6808
  %6841 = vst [vmem:[#allocation3 + $0xa4] sm:$0xf] %v6809
  %6842 = vst [vmem:[#allocation3 + $0xb8] sm:$0xf] %v6810
  %6843 = vst [vmem:[#allocation3 + $0xcc] sm:$0xf] %v6811
  %6844 = vst [vmem:[#allocation3 + $0xe0] sm:$0xf] %v6812
  %6845 = vst [vmem:[#allocation3 + $0xf4] sm:$0xf] %v6813
  %6846 = vst [vmem:[#allocation3 + $0x108] sm:$0xf] %v6814
  %6847 = vst [vmem:[#allocation3 + $0x11c] sm:$0xf] %v6815
  %6848 = vst [vmem:[#allocation3 + $0x130] sm:$0xf] %v6816
  %v6849 = vld [vmem:[%s2887] sm:$0xf]
  %v6850 = vld [vmem:[%s2887 + $0x4] sm:$0x1]
  %v6851 = vld [vmem:[%s2887 + $0x8] sm:$0xf]
  %v6852 = vld [vmem:[%s2887 + $0xc] sm:$0x1]
  %v6853 = vld [vmem:[%s2887 + $0x10] sm:$0xf]
  %v6854 = vld [vmem:[%s2887 + $0x14] sm:$0x1]
  %v6855 = vld [vmem:[%s2887 + $0x18] sm:$0xf]
  %v6856 = vld [vmem:[%s2887 + $0x1c] sm:$0x1]
  %v6857 = vld [vmem:[%s2887 + $0x20] sm:$0xf]
  %v6858 = vld [vmem:[%s2887 + $0x24] sm:$0x1]
  %v6859 = vld [vmem:[%s2887 + $0x28] sm:$0xf]
  %v6860 = vld [vmem:[%s2887 + $0x2c] sm:$0x1]
  %v6861 = vld [vmem:[%s2887 + $0x30] sm:$0xf]
  %v6862 = vld [vmem:[%s2887 + $0x34] sm:$0x1]
  %v6863 = vld [vmem:[%s2887 + $0x38] sm:$0xf]
  %v6864 = vld [vmem:[%s2887 + $0x3c] sm:$0x1]
  %v6865 = vld [vmem:[%s2887 + $0x50] sm:$0xf]
  %v6866 = vld [vmem:[%s2887 + $0x54] sm:$0x1]
  %v6867 = vld [vmem:[%s2887 + $0x58] sm:$0xf]
  %v6868 = vld [vmem:[%s2887 + $0x5c] sm:$0x1]
  %v6869 = vld [vmem:[%s2887 + $0x60] sm:$0xf]
  %v6870 = vld [vmem:[%s2887 + $0x64] sm:$0x1]
  %v6871 = vld [vmem:[%s2887 + $0x68] sm:$0xf]
  %v6872 = vld [vmem:[%s2887 + $0x6c] sm:$0x1]
  %v6873 = vld [vmem:[%s2887 + $0x70] sm:$0xf]
  %v6874 = vld [vmem:[%s2887 + $0x74] sm:$0x1]
  %v6875 = vld [vmem:[%s2887 + $0x78] sm:$0xf]
  %v6876 = vld [vmem:[%s2887 + $0x7c] sm:$0x1]
  %v6877 = vld [vmem:[%s2887 + $0x80] sm:$0xf]
  %v6878 = vld [vmem:[%s2887 + $0x84] sm:$0x1]
  %v6879 = vld [vmem:[%s2887 + $0x88] sm:$0xf]
  %v6880 = vld [vmem:[%s2887 + $0x8c] sm:$0x1]
  %v6882 = vshrl.u32 %v6849, 16
  %v6884 = vrot.slane %v6882, 4
  %v6885 = vshll.u32 %v6849, 16
  %v6887 = vrot.slane %v6885, 5
  %v6888 = vor.u32 %v6884, %v6887
  %v6889 = vrot.slane %v6888, 4
  %v6891 = vshll.u32 %v6850, 16
  %v6893 = vrot.slane %v6891, 5
  %v6894 = vsel %vm3261, %v6889, %v6893
  %v6896 = vshrl.u32 %v6851, 16
  %v6898 = vrot.slane %v6896, 4
  %v6899 = vshll.u32 %v6851, 16
  %v6901 = vrot.slane %v6899, 5
  %v6902 = vor.u32 %v6898, %v6901
  %v6903 = vrot.slane %v6902, 4
  %v6905 = vshll.u32 %v6852, 16
  %v6907 = vrot.slane %v6905, 5
  %v6908 = vsel %vm3261, %v6903, %v6907
  %v6910 = vshrl.u32 %v6853, 16
  %v6912 = vrot.slane %v6910, 4
  %v6913 = vshll.u32 %v6853, 16
  %v6915 = vrot.slane %v6913, 5
  %v6916 = vor.u32 %v6912, %v6915
  %v6917 = vrot.slane %v6916, 4
  %v6919 = vshll.u32 %v6854, 16
  %v6921 = vrot.slane %v6919, 5
  %v6922 = vsel %vm3261, %v6917, %v6921
  %v6924 = vshrl.u32 %v6855, 16
  %v6926 = vrot.slane %v6924, 4
  %v6927 = vshll.u32 %v6855, 16
  %v6929 = vrot.slane %v6927, 5
  %v6930 = vor.u32 %v6926, %v6929
  %v6931 = vrot.slane %v6930, 4
  %v6933 = vshll.u32 %v6856, 16
  %v6935 = vrot.slane %v6933, 5
  %v6936 = vsel %vm3261, %v6931, %v6935
  %v6938 = vshrl.u32 %v6857, 16
  %v6940 = vrot.slane %v6938, 4
  %v6941 = vshll.u32 %v6857, 16
  %v6943 = vrot.slane %v6941, 5
  %v6944 = vor.u32 %v6940, %v6943
  %v6945 = vrot.slane %v6944, 4
  %v6947 = vshll.u32 %v6858, 16
  %v6949 = vrot.slane %v6947, 5
  %v6950 = vsel %vm3261, %v6945, %v6949
  %v6952 = vshrl.u32 %v6859, 16
  %v6954 = vrot.slane %v6952, 4
  %v6955 = vshll.u32 %v6859, 16
  %v6957 = vrot.slane %v6955, 5
  %v6958 = vor.u32 %v6954, %v6957
  %v6959 = vrot.slane %v6958, 4
  %v6961 = vshll.u32 %v6860, 16
  %v6963 = vrot.slane %v6961, 5
  %v6964 = vsel %vm3261, %v6959, %v6963
  %v6966 = vshrl.u32 %v6861, 16
  %v6968 = vrot.slane %v6966, 4
  %v6969 = vshll.u32 %v6861, 16
  %v6971 = vrot.slane %v6969, 5
  %v6972 = vor.u32 %v6968, %v6971
  %v6973 = vrot.slane %v6972, 4
  %v6975 = vshll.u32 %v6862, 16
  %v6977 = vrot.slane %v6975, 5
  %v6978 = vsel %vm3261, %v6973, %v6977
  %v6980 = vshrl.u32 %v6863, 16
  %v6982 = vrot.slane %v6980, 4
  %v6983 = vshll.u32 %v6863, 16
  %v6985 = vrot.slane %v6983, 5
  %v6986 = vor.u32 %v6982, %v6985
  %v6987 = vrot.slane %v6986, 4
  %v6989 = vshll.u32 %v6864, 16
  %v6991 = vrot.slane %v6989, 5
  %v6992 = vsel %vm3261, %v6987, %v6991
  %v6994 = vshrl.u32 %v6865, 16
  %v6996 = vrot.slane %v6994, 4
  %v6997 = vshll.u32 %v6865, 16
  %v6999 = vrot.slane %v6997, 5
  %v7000 = vor.u32 %v6996, %v6999
  %v7001 = vrot.slane %v7000, 4
  %v7003 = vshll.u32 %v6866, 16
  %v7005 = vrot.slane %v7003, 5
  %v7006 = vsel %vm3261, %v7001, %v7005
  %v7008 = vshrl.u32 %v6867, 16
  %v7010 = vrot.slane %v7008, 4
  %v7011 = vshll.u32 %v6867, 16
  %v7013 = vrot.slane %v7011, 5
  %v7014 = vor.u32 %v7010, %v7013
  %v7015 = vrot.slane %v7014, 4
  %v7017 = vshll.u32 %v6868, 16
  %v7019 = vrot.slane %v7017, 5
  %v7020 = vsel %vm3261, %v7015, %v7019
  %v7022 = vshrl.u32 %v6869, 16
  %v7024 = vrot.slane %v7022, 4
  %v7025 = vshll.u32 %v6869, 16
  %v7027 = vrot.slane %v7025, 5
  %v7028 = vor.u32 %v7024, %v7027
  %v7029 = vrot.slane %v7028, 4
  %v7031 = vshll.u32 %v6870, 16
  %v7033 = vrot.slane %v7031, 5
  %v7034 = vsel %vm3261, %v7029, %v7033
  %v7036 = vshrl.u32 %v6871, 16
  %v7038 = vrot.slane %v7036, 4
  %v7039 = vshll.u32 %v6871, 16
  %v7041 = vrot.slane %v7039, 5
  %v7042 = vor.u32 %v7038, %v7041
  %v7043 = vrot.slane %v7042, 4
  %v7045 = vshll.u32 %v6872, 16
  %v7047 = vrot.slane %v7045, 5
  %v7048 = vsel %vm3261, %v7043, %v7047
  %v7050 = vshrl.u32 %v6873, 16
  %v7052 = vrot.slane %v7050, 4
  %v7053 = vshll.u32 %v6873, 16
  %v7055 = vrot.slane %v7053, 5
  %v7056 = vor.u32 %v7052, %v7055
  %v7057 = vrot.slane %v7056, 4
  %v7059 = vshll.u32 %v6874, 16
  %v7061 = vrot.slane %v7059, 5
  %v7062 = vsel %vm3261, %v7057, %v7061
  %v7064 = vshrl.u32 %v6875, 16
  %v7066 = vrot.slane %v7064, 4
  %v7067 = vshll.u32 %v6875, 16
  %v7069 = vrot.slane %v7067, 5
  %v7070 = vor.u32 %v7066, %v7069
  %v7071 = vrot.slane %v7070, 4
  %v7073 = vshll.u32 %v6876, 16
  %v7075 = vrot.slane %v7073, 5
  %v7076 = vsel %vm3261, %v7071, %v7075
  %v7078 = vshrl.u32 %v6877, 16
  %v7080 = vrot.slane %v7078, 4
  %v7081 = vshll.u32 %v6877, 16
  %v7083 = vrot.slane %v7081, 5
  %v7084 = vor.u32 %v7080, %v7083
  %v7085 = vrot.slane %v7084, 4
  %v7087 = vshll.u32 %v6878, 16
  %v7089 = vrot.slane %v7087, 5
  %v7090 = vsel %vm3261, %v7085, %v7089
  %v7092 = vshrl.u32 %v6879, 16
  %v7094 = vrot.slane %v7092, 4
  %v7095 = vshll.u32 %v6879, 16
  %v7097 = vrot.slane %v7095, 5
  %v7098 = vor.u32 %v7094, %v7097
  %v7099 = vrot.slane %v7098, 4
  %v7101 = vshll.u32 %v6880, 16
  %v7103 = vrot.slane %v7101, 5
  %v7104 = vsel %vm3261, %v7099, %v7103
  %v7105 = vld [vmem:[%s3210] sm:$0xf]
  %v7106 = vld [vmem:[%s3210 + $0x4] sm:$0x1]
  %v7107 = vld [vmem:[%s3210 + $0x8] sm:$0xf]
  %v7108 = vld [vmem:[%s3210 + $0xc] sm:$0x1]
  %v7109 = vld [vmem:[%s3210 + $0x10] sm:$0xf]
  %v7110 = vld [vmem:[%s3210 + $0x14] sm:$0x1]
  %v7111 = vld [vmem:[%s3210 + $0x18] sm:$0xf]
  %v7112 = vld [vmem:[%s3210 + $0x1c] sm:$0x1]
  %v7113 = vld [vmem:[%s3210 + $0x20] sm:$0xf]
  %v7114 = vld [vmem:[%s3210 + $0x24] sm:$0x1]
  %v7115 = vld [vmem:[%s3210 + $0x28] sm:$0xf]
  %v7116 = vld [vmem:[%s3210 + $0x2c] sm:$0x1]
  %v7117 = vld [vmem:[%s3210 + $0x30] sm:$0xf]
  %v7118 = vld [vmem:[%s3210 + $0x34] sm:$0x1]
  %v7119 = vld [vmem:[%s3210 + $0x38] sm:$0xf]
  %v7120 = vld [vmem:[%s3210 + $0x3c] sm:$0x1]
  %v7121 = vld [vmem:[%s3210 + $0x50] sm:$0xf]
  %v7122 = vld [vmem:[%s3210 + $0x54] sm:$0x1]
  %v7123 = vld [vmem:[%s3210 + $0x58] sm:$0xf]
  %v7124 = vld [vmem:[%s3210 + $0x5c] sm:$0x1]
  %v7125 = vld [vmem:[%s3210 + $0x60] sm:$0xf]
  %v7126 = vld [vmem:[%s3210 + $0x64] sm:$0x1]
  %v7127 = vld [vmem:[%s3210 + $0x68] sm:$0xf]
  %v7128 = vld [vmem:[%s3210 + $0x6c] sm:$0x1]
  %v7129 = vld [vmem:[%s3210 + $0x70] sm:$0xf]
  %v7130 = vld [vmem:[%s3210 + $0x74] sm:$0x1]
  %v7131 = vld [vmem:[%s3210 + $0x78] sm:$0xf]
  %v7132 = vld [vmem:[%s3210 + $0x7c] sm:$0x1]
  %v7133 = vld [vmem:[%s3210 + $0x80] sm:$0xf]
  %v7134 = vld [vmem:[%s3210 + $0x84] sm:$0x1]
  %v7135 = vld [vmem:[%s3210 + $0x88] sm:$0xf]
  %v7136 = vld [vmem:[%s3210 + $0x8c] sm:$0x1]
  %v7138 = vshrl.u32 %v7105, 16
  %v7140 = vrot.slane %v7138, 4
  %v7141 = vshll.u32 %v7105, 16
  %v7143 = vrot.slane %v7141, 5
  %v7144 = vor.u32 %v7140, %v7143
  %v7145 = vrot.slane %v7144, 4
  %v7147 = vshll.u32 %v7106, 16
  %v7149 = vrot.slane %v7147, 5
  %v7150 = vsel %vm3261, %v7145, %v7149
  %v7152 = vshrl.u32 %v7107, 16
  %v7154 = vrot.slane %v7152, 4
  %v7155 = vshll.u32 %v7107, 16
  %v7157 = vrot.slane %v7155, 5
  %v7158 = vor.u32 %v7154, %v7157
  %v7159 = vrot.slane %v7158, 4
  %v7161 = vshll.u32 %v7108, 16
  %v7163 = vrot.slane %v7161, 5
  %v7164 = vsel %vm3261, %v7159, %v7163
  %v7166 = vshrl.u32 %v7109, 16
  %v7168 = vrot.slane %v7166, 4
  %v7169 = vshll.u32 %v7109, 16
  %v7171 = vrot.slane %v7169, 5
  %v7172 = vor.u32 %v7168, %v7171
  %v7173 = vrot.slane %v7172, 4
  %v7175 = vshll.u32 %v7110, 16
  %v7177 = vrot.slane %v7175, 5
  %v7178 = vsel %vm3261, %v7173, %v7177
  %v7180 = vshrl.u32 %v7111, 16
  %v7182 = vrot.slane %v7180, 4
  %v7183 = vshll.u32 %v7111, 16
  %v7185 = vrot.slane %v7183, 5
  %v7186 = vor.u32 %v7182, %v7185
  %v7187 = vrot.slane %v7186, 4
  %v7189 = vshll.u32 %v7112, 16
  %v7191 = vrot.slane %v7189, 5
  %v7192 = vsel %vm3261, %v7187, %v7191
  %v7194 = vshrl.u32 %v7113, 16
  %v7196 = vrot.slane %v7194, 4
  %v7197 = vshll.u32 %v7113, 16
  %v7199 = vrot.slane %v7197, 5
  %v7200 = vor.u32 %v7196, %v7199
  %v7201 = vrot.slane %v7200, 4
  %v7203 = vshll.u32 %v7114, 16
  %v7205 = vrot.slane %v7203, 5
  %v7206 = vsel %vm3261, %v7201, %v7205
  %v7208 = vshrl.u32 %v7115, 16
  %v7210 = vrot.slane %v7208, 4
  %v7211 = vshll.u32 %v7115, 16
  %v7213 = vrot.slane %v7211, 5
  %v7214 = vor.u32 %v7210, %v7213
  %v7215 = vrot.slane %v7214, 4
  %v7217 = vshll.u32 %v7116, 16
  %v7219 = vrot.slane %v7217, 5
  %v7220 = vsel %vm3261, %v7215, %v7219
  %v7222 = vshrl.u32 %v7117, 16
  %v7224 = vrot.slane %v7222, 4
  %v7225 = vshll.u32 %v7117, 16
  %v7227 = vrot.slane %v7225, 5
  %v7228 = vor.u32 %v7224, %v7227
  %v7229 = vrot.slane %v7228, 4
  %v7231 = vshll.u32 %v7118, 16
  %v7233 = vrot.slane %v7231, 5
  %v7234 = vsel %vm3261, %v7229, %v7233
  %v7236 = vshrl.u32 %v7119, 16
  %v7238 = vrot.slane %v7236, 4
  %v7239 = vshll.u32 %v7119, 16
  %v7241 = vrot.slane %v7239, 5
  %v7242 = vor.u32 %v7238, %v7241
  %v7243 = vrot.slane %v7242, 4
  %v7245 = vshll.u32 %v7120, 16
  %v7247 = vrot.slane %v7245, 5
  %v7248 = vsel %vm3261, %v7243, %v7247
  %v7250 = vshrl.u32 %v7121, 16
  %v7252 = vrot.slane %v7250, 4
  %v7253 = vshll.u32 %v7121, 16
  %v7255 = vrot.slane %v7253, 5
  %v7256 = vor.u32 %v7252, %v7255
  %v7257 = vrot.slane %v7256, 4
  %v7259 = vshll.u32 %v7122, 16
  %v7261 = vrot.slane %v7259, 5
  %v7262 = vsel %vm3261, %v7257, %v7261
  %v7264 = vshrl.u32 %v7123, 16
  %v7266 = vrot.slane %v7264, 4
  %v7267 = vshll.u32 %v7123, 16
  %v7269 = vrot.slane %v7267, 5
  %v7270 = vor.u32 %v7266, %v7269
  %v7271 = vrot.slane %v7270, 4
  %v7273 = vshll.u32 %v7124, 16
  %v7275 = vrot.slane %v7273, 5
  %v7276 = vsel %vm3261, %v7271, %v7275
  %v7278 = vshrl.u32 %v7125, 16
  %v7280 = vrot.slane %v7278, 4
  %v7281 = vshll.u32 %v7125, 16
  %v7283 = vrot.slane %v7281, 5
  %v7284 = vor.u32 %v7280, %v7283
  %v7285 = vrot.slane %v7284, 4
  %v7287 = vshll.u32 %v7126, 16
  %v7289 = vrot.slane %v7287, 5
  %v7290 = vsel %vm3261, %v7285, %v7289
  %v7292 = vshrl.u32 %v7127, 16
  %v7294 = vrot.slane %v7292, 4
  %v7295 = vshll.u32 %v7127, 16
  %v7297 = vrot.slane %v7295, 5
  %v7298 = vor.u32 %v7294, %v7297
  %v7299 = vrot.slane %v7298, 4
  %v7301 = vshll.u32 %v7128, 16
  %v7303 = vrot.slane %v7301, 5
  %v7304 = vsel %vm3261, %v7299, %v7303
  %v7306 = vshrl.u32 %v7129, 16
  %v7308 = vrot.slane %v7306, 4
  %v7309 = vshll.u32 %v7129, 16
  %v7311 = vrot.slane %v7309, 5
  %v7312 = vor.u32 %v7308, %v7311
  %v7313 = vrot.slane %v7312, 4
  %v7315 = vshll.u32 %v7130, 16
  %v7317 = vrot.slane %v7315, 5
  %v7318 = vsel %vm3261, %v7313, %v7317
  %v7320 = vshrl.u32 %v7131, 16
  %v7322 = vrot.slane %v7320, 4
  %v7323 = vshll.u32 %v7131, 16
  %v7325 = vrot.slane %v7323, 5
  %v7326 = vor.u32 %v7322, %v7325
  %v7327 = vrot.slane %v7326, 4
  %v7329 = vshll.u32 %v7132, 16
  %v7331 = vrot.slane %v7329, 5
  %v7332 = vsel %vm3261, %v7327, %v7331
  %v7334 = vshrl.u32 %v7133, 16
  %v7336 = vrot.slane %v7334, 4
  %v7337 = vshll.u32 %v7133, 16
  %v7339 = vrot.slane %v7337, 5
  %v7340 = vor.u32 %v7336, %v7339
  %v7341 = vrot.slane %v7340, 4
  %v7343 = vshll.u32 %v7134, 16
  %v7345 = vrot.slane %v7343, 5
  %v7346 = vsel %vm3261, %v7341, %v7345
  %v7348 = vshrl.u32 %v7135, 16
  %v7350 = vrot.slane %v7348, 4
  %v7351 = vshll.u32 %v7135, 16
  %v7353 = vrot.slane %v7351, 5
  %v7354 = vor.u32 %v7350, %v7353
  %v7355 = vrot.slane %v7354, 4
  %v7357 = vshll.u32 %v7136, 16
  %v7359 = vrot.slane %v7357, 5
  %v7360 = vsel %vm3261, %v7355, %v7359
  %v7361 = vunpack.c.l.b16 %v6894
  %v7362 = vunpack.c.l.b16 %v6908
  %v7363 = vunpack.c.l.b16 %v6922
  %v7364 = vunpack.c.l.b16 %v6936
  %v7365 = vunpack.c.l.b16 %v6950
  %v7366 = vunpack.c.l.b16 %v6964
  %v7367 = vunpack.c.l.b16 %v6978
  %v7368 = vunpack.c.l.b16 %v6992
  %v7369 = vunpack.c.l.b16 %v7006
  %v7370 = vunpack.c.l.b16 %v7020
  %v7371 = vunpack.c.l.b16 %v7034
  %v7372 = vunpack.c.l.b16 %v7048
  %v7373 = vunpack.c.l.b16 %v7062
  %v7374 = vunpack.c.l.b16 %v7076
  %v7375 = vunpack.c.l.b16 %v7090
  %v7376 = vunpack.c.l.b16 %v7104
  %v7377 = vpack.c.b16 %v7362, %v7361
  %v7378 = vpack.c.b16 %v7364, %v7363
  %v7379 = vpack.c.b16 %v7366, %v7365
  %v7380 = vpack.c.b16 %v7368, %v7367
  %v7381 = vpack.c.b16 %v7370, %v7369
  %v7382 = vpack.c.b16 %v7372, %v7371
  %v7383 = vpack.c.b16 %v7374, %v7373
  %v7384 = vpack.c.b16 %v7376, %v7375
  %v7385 = vunpack.c.l.b16 %v7150
  %v7386 = vunpack.c.l.b16 %v7164
  %v7387 = vunpack.c.l.b16 %v7178
  %v7388 = vunpack.c.l.b16 %v7192
  %v7389 = vunpack.c.l.b16 %v7206
  %v7390 = vunpack.c.l.b16 %v7220
  %v7391 = vunpack.c.l.b16 %v7234
  %v7392 = vunpack.c.l.b16 %v7248
  %v7393 = vunpack.c.l.b16 %v7262
  %v7394 = vunpack.c.l.b16 %v7276
  %v7395 = vunpack.c.l.b16 %v7290
  %v7396 = vunpack.c.l.b16 %v7304
  %v7397 = vunpack.c.l.b16 %v7318
  %v7398 = vunpack.c.l.b16 %v7332
  %v7399 = vunpack.c.l.b16 %v7346
  %v7400 = vunpack.c.l.b16 %v7360
  %v7401 = vpack.c.b16 %v7386, %v7385
  %v7402 = vpack.c.b16 %v7388, %v7387
  %v7403 = vpack.c.b16 %v7390, %v7389
  %v7404 = vpack.c.b16 %v7392, %v7391
  %v7405 = vpack.c.b16 %v7394, %v7393
  %v7406 = vpack.c.b16 %v7396, %v7395
  %v7407 = vpack.c.b16 %v7398, %v7397
  %v7408 = vpack.c.b16 %v7400, %v7399
  %7409 = vrot.lane.b32.xlu0 %v7401, 64
  %v7410 = vpop.permute.xlu0 %7409
  %7411 = vrot.lane.b32.xlu0 %v7402, 64
  %v7412 = vpop.permute.xlu0 %7411
  %7413 = vrot.lane.b32.xlu0 %v7403, 64
  %v7414 = vpop.permute.xlu0 %7413
  %7415 = vrot.lane.b32.xlu0 %v7404, 64
  %v7416 = vpop.permute.xlu0 %7415
  %7417 = vrot.lane.b32.xlu0 %v7405, 64
  %v7418 = vpop.permute.xlu0 %7417
  %7419 = vrot.lane.b32.xlu0 %v7406, 64
  %v7420 = vpop.permute.xlu0 %7419
  %7421 = vrot.lane.b32.xlu0 %v7407, 64
  %v7422 = vpop.permute.xlu0 %7421
  %7423 = vrot.lane.b32.xlu0 %v7408, 64
  %v7424 = vpop.permute.xlu0 %7423
  %v7427 = vsel %vm893, %v7377, %v7410
  %v7430 = vsel %vm893, %v7378, %v7412
  %v7433 = vsel %vm893, %v7379, %v7414
  %v7436 = vsel %vm893, %v7380, %v7416
  %v7439 = vsel %vm893, %v7381, %v7418
  %v7442 = vsel %vm893, %v7382, %v7420
  %v7445 = vsel %vm893, %v7383, %v7422
  %v7448 = vsel %vm893, %v7384, %v7424
  %v7457 = vunpack.c.l.b16 %v7427
  %v7458 = vunpack.c.h.b16 %v7427
  %v7459 = vunpack.c.l.b16 %v7430
  %v7460 = vunpack.c.h.b16 %v7430
  %v7461 = vunpack.c.l.b16 %v7433
  %v7462 = vunpack.c.h.b16 %v7433
  %v7463 = vunpack.c.l.b16 %v7436
  %v7464 = vunpack.c.h.b16 %v7436
  %v7465 = vunpack.c.l.b16 %v7439
  %v7466 = vunpack.c.h.b16 %v7439
  %v7467 = vunpack.c.l.b16 %v7442
  %v7468 = vunpack.c.h.b16 %v7442
  %v7469 = vunpack.c.l.b16 %v7445
  %v7470 = vunpack.c.h.b16 %v7445
  %v7471 = vunpack.c.l.b16 %v7448
  %v7472 = vunpack.c.h.b16 %v7448
  %v7473 = vpack.c.b16 %v7457, %v7457
  %v7474 = vpack.c.b16 %v7458, %v7458
  %v7475 = vpack.c.b16 %v7459, %v7459
  %v7476 = vpack.c.b16 %v7460, %v7460
  %v7477 = vpack.c.b16 %v7461, %v7461
  %v7478 = vpack.c.b16 %v7462, %v7462
  %v7479 = vpack.c.b16 %v7463, %v7463
  %v7480 = vpack.c.b16 %v7464, %v7464
  %v7481 = vpack.c.b16 %v7465, %v7465
  %v7482 = vpack.c.b16 %v7466, %v7466
  %v7483 = vpack.c.b16 %v7467, %v7467
  %v7484 = vpack.c.b16 %v7468, %v7468
  %v7485 = vpack.c.b16 %v7469, %v7469
  %v7486 = vpack.c.b16 %v7470, %v7470
  %v7487 = vpack.c.b16 %v7471, %v7471
  %v7488 = vpack.c.b16 %v7472, %v7472
  %7505 = vst [vmem:[#allocation3 + $0x8] sm:$0xf] %v7473
  %7506 = vst [vmem:[#allocation3 + $0x1c] sm:$0xf] %v7474
  %7507 = vst [vmem:[#allocation3 + $0x30] sm:$0xf] %v7475
  %7508 = vst [vmem:[#allocation3 + $0x44] sm:$0xf] %v7476
  %7509 = vst [vmem:[#allocation3 + $0x58] sm:$0xf] %v7477
  %7510 = vst [vmem:[#allocation3 + $0x6c] sm:$0xf] %v7478
  %7511 = vst [vmem:[#allocation3 + $0x80] sm:$0xf] %v7479
  %7512 = vst [vmem:[#allocation3 + $0x94] sm:$0xf] %v7480
  %7513 = vst [vmem:[#allocation3 + $0xa8] sm:$0xf] %v7481
  %7514 = vst [vmem:[#allocation3 + $0xbc] sm:$0xf] %v7482
  %7515 = vst [vmem:[#allocation3 + $0xd0] sm:$0xf] %v7483
  %7516 = vst [vmem:[#allocation3 + $0xe4] sm:$0xf] %v7484
  %7517 = vst [vmem:[#allocation3 + $0xf8] sm:$0xf] %v7485
  %7518 = vst [vmem:[#allocation3 + $0x10c] sm:$0xf] %v7486
  %7519 = vst [vmem:[#allocation3 + $0x120] sm:$0xf] %v7487
  %7520 = vst [vmem:[#allocation3 + $0x134] sm:$0xf] %v7488
  %v7521 = vld [vmem:[#allocation2] sm:$0xe]
  %v7522 = vld [vmem:[#allocation2 + $0x4] sm:$0x1]
  %v7523 = vld [vmem:[#allocation2 + $0x8] sm:$0xe]
  %v7524 = vld [vmem:[#allocation2 + $0xc] sm:$0x1]
  %v7525 = vld [vmem:[#allocation2 + $0x10] sm:$0xe]
  %v7526 = vld [vmem:[#allocation2 + $0x14] sm:$0x1]
  %v7527 = vld [vmem:[#allocation2 + $0x18] sm:$0xe]
  %v7528 = vld [vmem:[#allocation2 + $0x1c] sm:$0x1]
  %v7529 = vld [vmem:[#allocation2 + $0x20] sm:$0xe]
  %v7530 = vld [vmem:[#allocation2 + $0x24] sm:$0x1]
  %v7531 = vld [vmem:[#allocation2 + $0x28] sm:$0xe]
  %v7532 = vld [vmem:[#allocation2 + $0x2c] sm:$0x1]
  %v7533 = vld [vmem:[#allocation2 + $0x30] sm:$0xe]
  %v7534 = vld [vmem:[#allocation2 + $0x34] sm:$0x1]
  %v7535 = vld [vmem:[#allocation2 + $0x38] sm:$0xe]
  %v7536 = vld [vmem:[#allocation2 + $0x3c] sm:$0x1]
  %v7537 = vld [vmem:[#allocation2 + $0x50] sm:$0xe]
  %v7538 = vld [vmem:[#allocation2 + $0x54] sm:$0x1]
  %v7539 = vld [vmem:[#allocation2 + $0x58] sm:$0xe]
  %v7540 = vld [vmem:[#allocation2 + $0x5c] sm:$0x1]
  %v7541 = vld [vmem:[#allocation2 + $0x60] sm:$0xe]
  %v7542 = vld [vmem:[#allocation2 + $0x64] sm:$0x1]
  %v7543 = vld [vmem:[#allocation2 + $0x68] sm:$0xe]
  %v7544 = vld [vmem:[#allocation2 + $0x6c] sm:$0x1]
  %v7545 = vld [vmem:[#allocation2 + $0x70] sm:$0xe]
  %v7546 = vld [vmem:[#allocation2 + $0x74] sm:$0x1]
  %v7547 = vld [vmem:[#allocation2 + $0x78] sm:$0xe]
  %v7548 = vld [vmem:[#allocation2 + $0x7c] sm:$0x1]
  %v7549 = vld [vmem:[#allocation2 + $0x80] sm:$0xe]
  %v7550 = vld [vmem:[#allocation2 + $0x84] sm:$0x1]
  %v7551 = vld [vmem:[#allocation2 + $0x88] sm:$0xe]
  %v7552 = vld [vmem:[#allocation2 + $0x8c] sm:$0x1]
  %v7585 = vrot.slane %v7521, 5
  %v7586 = vrot.slane %v7585, 4
  %v7587 = vrot.slane %v7522, 5
  %v7588 = vsel %vm4400, %v7586, %v7587
  %v7589 = vrot.slane %v7523, 5
  %v7590 = vrot.slane %v7589, 4
  %v7591 = vrot.slane %v7524, 5
  %v7592 = vsel %vm4400, %v7590, %v7591
  %v7593 = vrot.slane %v7525, 5
  %v7594 = vrot.slane %v7593, 4
  %v7595 = vrot.slane %v7526, 5
  %v7596 = vsel %vm4400, %v7594, %v7595
  %v7597 = vrot.slane %v7527, 5
  %v7598 = vrot.slane %v7597, 4
  %v7599 = vrot.slane %v7528, 5
  %v7600 = vsel %vm4400, %v7598, %v7599
  %v7601 = vrot.slane %v7529, 5
  %v7602 = vrot.slane %v7601, 4
  %v7603 = vrot.slane %v7530, 5
  %v7604 = vsel %vm4400, %v7602, %v7603
  %v7605 = vrot.slane %v7531, 5
  %v7606 = vrot.slane %v7605, 4
  %v7607 = vrot.slane %v7532, 5
  %v7608 = vsel %vm4400, %v7606, %v7607
  %v7609 = vrot.slane %v7533, 5
  %v7610 = vrot.slane %v7609, 4
  %v7611 = vrot.slane %v7534, 5
  %v7612 = vsel %vm4400, %v7610, %v7611
  %v7613 = vrot.slane %v7535, 5
  %v7614 = vrot.slane %v7613, 4
  %v7615 = vrot.slane %v7536, 5
  %v7616 = vsel %vm4400, %v7614, %v7615
  %v7617 = vrot.slane %v7537, 5
  %v7618 = vrot.slane %v7617, 4
  %v7619 = vrot.slane %v7538, 5
  %v7620 = vsel %vm4400, %v7618, %v7619
  %v7621 = vrot.slane %v7539, 5
  %v7622 = vrot.slane %v7621, 4
  %v7623 = vrot.slane %v7540, 5
  %v7624 = vsel %vm4400, %v7622, %v7623
  %v7625 = vrot.slane %v7541, 5
  %v7626 = vrot.slane %v7625, 4
  %v7627 = vrot.slane %v7542, 5
  %v7628 = vsel %vm4400, %v7626, %v7627
  %v7629 = vrot.slane %v7543, 5
  %v7630 = vrot.slane %v7629, 4
  %v7631 = vrot.slane %v7544, 5
  %v7632 = vsel %vm4400, %v7630, %v7631
  %v7633 = vrot.slane %v7545, 5
  %v7634 = vrot.slane %v7633, 4
  %v7635 = vrot.slane %v7546, 5
  %v7636 = vsel %vm4400, %v7634, %v7635
  %v7637 = vrot.slane %v7547, 5
  %v7638 = vrot.slane %v7637, 4
  %v7639 = vrot.slane %v7548, 5
  %v7640 = vsel %vm4400, %v7638, %v7639
  %v7641 = vrot.slane %v7549, 5
  %v7642 = vrot.slane %v7641, 4
  %v7643 = vrot.slane %v7550, 5
  %v7644 = vsel %vm4400, %v7642, %v7643
  %v7645 = vrot.slane %v7551, 5
  %v7646 = vrot.slane %v7645, 4
  %v7647 = vrot.slane %v7552, 5
  %v7648 = vsel %vm4400, %v7646, %v7647
  %v7649 = vld [vmem:[%s2887] sm:$0xe]
  %v7650 = vld [vmem:[%s2887 + $0x4] sm:$0x1]
  %v7651 = vld [vmem:[%s2887 + $0x8] sm:$0xe]
  %v7652 = vld [vmem:[%s2887 + $0xc] sm:$0x1]
  %v7653 = vld [vmem:[%s2887 + $0x10] sm:$0xe]
  %v7654 = vld [vmem:[%s2887 + $0x14] sm:$0x1]
  %v7655 = vld [vmem:[%s2887 + $0x18] sm:$0xe]
  %v7656 = vld [vmem:[%s2887 + $0x1c] sm:$0x1]
  %v7657 = vld [vmem:[%s2887 + $0x20] sm:$0xe]
  %v7658 = vld [vmem:[%s2887 + $0x24] sm:$0x1]
  %v7659 = vld [vmem:[%s2887 + $0x28] sm:$0xe]
  %v7660 = vld [vmem:[%s2887 + $0x2c] sm:$0x1]
  %v7661 = vld [vmem:[%s2887 + $0x30] sm:$0xe]
  %v7662 = vld [vmem:[%s2887 + $0x34] sm:$0x1]
  %v7663 = vld [vmem:[%s2887 + $0x38] sm:$0xe]
  %v7664 = vld [vmem:[%s2887 + $0x3c] sm:$0x1]
  %v7665 = vld [vmem:[%s2887 + $0x50] sm:$0xe]
  %v7666 = vld [vmem:[%s2887 + $0x54] sm:$0x1]
  %v7667 = vld [vmem:[%s2887 + $0x58] sm:$0xe]
  %v7668 = vld [vmem:[%s2887 + $0x5c] sm:$0x1]
  %v7669 = vld [vmem:[%s2887 + $0x60] sm:$0xe]
  %v7670 = vld [vmem:[%s2887 + $0x64] sm:$0x1]
  %v7671 = vld [vmem:[%s2887 + $0x68] sm:$0xe]
  %v7672 = vld [vmem:[%s2887 + $0x6c] sm:$0x1]
  %v7673 = vld [vmem:[%s2887 + $0x70] sm:$0xe]
  %v7674 = vld [vmem:[%s2887 + $0x74] sm:$0x1]
  %v7675 = vld [vmem:[%s2887 + $0x78] sm:$0xe]
  %v7676 = vld [vmem:[%s2887 + $0x7c] sm:$0x1]
  %v7677 = vld [vmem:[%s2887 + $0x80] sm:$0xe]
  %v7678 = vld [vmem:[%s2887 + $0x84] sm:$0x1]
  %v7679 = vld [vmem:[%s2887 + $0x88] sm:$0xe]
  %v7680 = vld [vmem:[%s2887 + $0x8c] sm:$0x1]
  %v7713 = vrot.slane %v7649, 5
  %v7714 = vrot.slane %v7713, 4
  %v7715 = vrot.slane %v7650, 5
  %v7716 = vsel %vm4400, %v7714, %v7715
  %v7717 = vrot.slane %v7651, 5
  %v7718 = vrot.slane %v7717, 4
  %v7719 = vrot.slane %v7652, 5
  %v7720 = vsel %vm4400, %v7718, %v7719
  %v7721 = vrot.slane %v7653, 5
  %v7722 = vrot.slane %v7721, 4
  %v7723 = vrot.slane %v7654, 5
  %v7724 = vsel %vm4400, %v7722, %v7723
  %v7725 = vrot.slane %v7655, 5
  %v7726 = vrot.slane %v7725, 4
  %v7727 = vrot.slane %v7656, 5
  %v7728 = vsel %vm4400, %v7726, %v7727
  %v7729 = vrot.slane %v7657, 5
  %v7730 = vrot.slane %v7729, 4
  %v7731 = vrot.slane %v7658, 5
  %v7732 = vsel %vm4400, %v7730, %v7731
  %v7733 = vrot.slane %v7659, 5
  %v7734 = vrot.slane %v7733, 4
  %v7735 = vrot.slane %v7660, 5
  %v7736 = vsel %vm4400, %v7734, %v7735
  %v7737 = vrot.slane %v7661, 5
  %v7738 = vrot.slane %v7737, 4
  %v7739 = vrot.slane %v7662, 5
  %v7740 = vsel %vm4400, %v7738, %v7739
  %v7741 = vrot.slane %v7663, 5
  %v7742 = vrot.slane %v7741, 4
  %v7743 = vrot.slane %v7664, 5
  %v7744 = vsel %vm4400, %v7742, %v7743
  %v7745 = vrot.slane %v7665, 5
  %v7746 = vrot.slane %v7745, 4
  %v7747 = vrot.slane %v7666, 5
  %v7748 = vsel %vm4400, %v7746, %v7747
  %v7749 = vrot.slane %v7667, 5
  %v7750 = vrot.slane %v7749, 4
  %v7751 = vrot.slane %v7668, 5
  %v7752 = vsel %vm4400, %v7750, %v7751
  %v7753 = vrot.slane %v7669, 5
  %v7754 = vrot.slane %v7753, 4
  %v7755 = vrot.slane %v7670, 5
  %v7756 = vsel %vm4400, %v7754, %v7755
  %v7757 = vrot.slane %v7671, 5
  %v7758 = vrot.slane %v7757, 4
  %v7759 = vrot.slane %v7672, 5
  %v7760 = vsel %vm4400, %v7758, %v7759
  %v7761 = vrot.slane %v7673, 5
  %v7762 = vrot.slane %v7761, 4
  %v7763 = vrot.slane %v7674, 5
  %v7764 = vsel %vm4400, %v7762, %v7763
  %v7765 = vrot.slane %v7675, 5
  %v7766 = vrot.slane %v7765, 4
  %v7767 = vrot.slane %v7676, 5
  %v7768 = vsel %vm4400, %v7766, %v7767
  %v7769 = vrot.slane %v7677, 5
  %v7770 = vrot.slane %v7769, 4
  %v7771 = vrot.slane %v7678, 5
  %v7772 = vsel %vm4400, %v7770, %v7771
  %v7773 = vrot.slane %v7679, 5
  %v7774 = vrot.slane %v7773, 4
  %v7775 = vrot.slane %v7680, 5
  %v7776 = vsel %vm4400, %v7774, %v7775
  %v7777 = vunpack.c.l.b16 %v7588
  %v7778 = vunpack.c.l.b16 %v7592
  %v7779 = vunpack.c.l.b16 %v7596
  %v7780 = vunpack.c.l.b16 %v7600
  %v7781 = vunpack.c.l.b16 %v7604
  %v7782 = vunpack.c.l.b16 %v7608
  %v7783 = vunpack.c.l.b16 %v7612
  %v7784 = vunpack.c.l.b16 %v7616
  %v7785 = vunpack.c.l.b16 %v7620
  %v7786 = vunpack.c.l.b16 %v7624
  %v7787 = vunpack.c.l.b16 %v7628
  %v7788 = vunpack.c.l.b16 %v7632
  %v7789 = vunpack.c.l.b16 %v7636
  %v7790 = vunpack.c.l.b16 %v7640
  %v7791 = vunpack.c.l.b16 %v7644
  %v7792 = vunpack.c.l.b16 %v7648
  %v7793 = vpack.c.b16 %v7778, %v7777
  %v7794 = vpack.c.b16 %v7780, %v7779
  %v7795 = vpack.c.b16 %v7782, %v7781
  %v7796 = vpack.c.b16 %v7784, %v7783
  %v7797 = vpack.c.b16 %v7786, %v7785
  %v7798 = vpack.c.b16 %v7788, %v7787
  %v7799 = vpack.c.b16 %v7790, %v7789
  %v7800 = vpack.c.b16 %v7792, %v7791
  %v7801 = vunpack.c.l.b16 %v7716
  %v7802 = vunpack.c.l.b16 %v7720
  %v7803 = vunpack.c.l.b16 %v7724
  %v7804 = vunpack.c.l.b16 %v7728
  %v7805 = vunpack.c.l.b16 %v7732
  %v7806 = vunpack.c.l.b16 %v7736
  %v7807 = vunpack.c.l.b16 %v7740
  %v7808 = vunpack.c.l.b16 %v7744
  %v7809 = vunpack.c.l.b16 %v7748
  %v7810 = vunpack.c.l.b16 %v7752
  %v7811 = vunpack.c.l.b16 %v7756
  %v7812 = vunpack.c.l.b16 %v7760
  %v7813 = vunpack.c.l.b16 %v7764
  %v7814 = vunpack.c.l.b16 %v7768
  %v7815 = vunpack.c.l.b16 %v7772
  %v7816 = vunpack.c.l.b16 %v7776
  %v7817 = vpack.c.b16 %v7802, %v7801
  %v7818 = vpack.c.b16 %v7804, %v7803
  %v7819 = vpack.c.b16 %v7806, %v7805
  %v7820 = vpack.c.b16 %v7808, %v7807
  %v7821 = vpack.c.b16 %v7810, %v7809
  %v7822 = vpack.c.b16 %v7812, %v7811
  %v7823 = vpack.c.b16 %v7814, %v7813
  %v7824 = vpack.c.b16 %v7816, %v7815
  %7825 = vrot.lane.b32.xlu0 %v7817, 64
  %v7826 = vpop.permute.xlu0 %7825
  %7827 = vrot.lane.b32.xlu0 %v7818, 64
  %v7828 = vpop.permute.xlu0 %7827
  %7829 = vrot.lane.b32.xlu0 %v7819, 64
  %v7830 = vpop.permute.xlu0 %7829
  %7831 = vrot.lane.b32.xlu0 %v7820, 64
  %v7832 = vpop.permute.xlu0 %7831
  %7833 = vrot.lane.b32.xlu0 %v7821, 64
  %v7834 = vpop.permute.xlu0 %7833
  %7835 = vrot.lane.b32.xlu0 %v7822, 64
  %v7836 = vpop.permute.xlu0 %7835
  %7837 = vrot.lane.b32.xlu0 %v7823, 64
  %v7838 = vpop.permute.xlu0 %7837
  %7839 = vrot.lane.b32.xlu0 %v7824, 64
  %v7840 = vpop.permute.xlu0 %7839
  %v7843 = vsel %vm893, %v7793, %v7826
  %v7846 = vsel %vm893, %v7794, %v7828
  %v7849 = vsel %vm893, %v7795, %v7830
  %v7852 = vsel %vm893, %v7796, %v7832
  %v7855 = vsel %vm893, %v7797, %v7834
  %v7858 = vsel %vm893, %v7798, %v7836
  %v7861 = vsel %vm893, %v7799, %v7838
  %v7864 = vsel %vm893, %v7800, %v7840
  %v7873 = vunpack.c.l.b16 %v7843
  %v7874 = vunpack.c.h.b16 %v7843
  %v7875 = vunpack.c.l.b16 %v7846
  %v7876 = vunpack.c.h.b16 %v7846
  %v7877 = vunpack.c.l.b16 %v7849
  %v7878 = vunpack.c.h.b16 %v7849
  %v7879 = vunpack.c.l.b16 %v7852
  %v7880 = vunpack.c.h.b16 %v7852
  %v7881 = vunpack.c.l.b16 %v7855
  %v7882 = vunpack.c.h.b16 %v7855
  %v7883 = vunpack.c.l.b16 %v7858
  %v7884 = vunpack.c.h.b16 %v7858
  %v7885 = vunpack.c.l.b16 %v7861
  %v7886 = vunpack.c.h.b16 %v7861
  %v7887 = vunpack.c.l.b16 %v7864
  %v7888 = vunpack.c.h.b16 %v7864
  %v7889 = vpack.c.b16 %v7873, %v7873
  %v7890 = vpack.c.b16 %v7874, %v7874
  %v7891 = vpack.c.b16 %v7875, %v7875
  %v7892 = vpack.c.b16 %v7876, %v7876
  %v7893 = vpack.c.b16 %v7877, %v7877
  %v7894 = vpack.c.b16 %v7878, %v7878
  %v7895 = vpack.c.b16 %v7879, %v7879
  %v7896 = vpack.c.b16 %v7880, %v7880
  %v7897 = vpack.c.b16 %v7881, %v7881
  %v7898 = vpack.c.b16 %v7882, %v7882
  %v7899 = vpack.c.b16 %v7883, %v7883
  %v7900 = vpack.c.b16 %v7884, %v7884
  %v7901 = vpack.c.b16 %v7885, %v7885
  %v7902 = vpack.c.b16 %v7886, %v7886
  %v7903 = vpack.c.b16 %v7887, %v7887
  %v7904 = vpack.c.b16 %v7888, %v7888
  %7921 = vst [vmem:[#allocation3 + $0xc] sm:$0xf] %v7889
  %7922 = vst [vmem:[#allocation3 + $0x20] sm:$0xf] %v7890
  %7923 = vst [vmem:[#allocation3 + $0x34] sm:$0xf] %v7891
  %7924 = vst [vmem:[#allocation3 + $0x48] sm:$0xf] %v7892
  %7925 = vst [vmem:[#allocation3 + $0x5c] sm:$0xf] %v7893
  %7926 = vst [vmem:[#allocation3 + $0x70] sm:$0xf] %v7894
  %7927 = vst [vmem:[#allocation3 + $0x84] sm:$0xf] %v7895
  %7928 = vst [vmem:[#allocation3 + $0x98] sm:$0xf] %v7896
  %7929 = vst [vmem:[#allocation3 + $0xac] sm:$0xf] %v7897
  %7930 = vst [vmem:[#allocation3 + $0xc0] sm:$0xf] %v7898
  %7931 = vst [vmem:[#allocation3 + $0xd4] sm:$0xf] %v7899
  %7932 = vst [vmem:[#allocation3 + $0xe8] sm:$0xf] %v7900
  %7933 = vst [vmem:[#allocation3 + $0xfc] sm:$0xf] %v7901
  %7934 = vst [vmem:[#allocation3 + $0x110] sm:$0xf] %v7902
  %7935 = vst [vmem:[#allocation3 + $0x124] sm:$0xf] %v7903
  %7936 = vst [vmem:[#allocation3 + $0x138] sm:$0xf] %v7904
  %v7937 = vld [vmem:[%s3210] sm:$0xe]
  %v7938 = vld [vmem:[%s3210 + $0x4] sm:$0x1]
  %v7939 = vld [vmem:[%s3210 + $0x8] sm:$0xe]
  %v7940 = vld [vmem:[%s3210 + $0xc] sm:$0x1]
  %v7941 = vld [vmem:[%s3210 + $0x10] sm:$0xe]
  %v7942 = vld [vmem:[%s3210 + $0x14] sm:$0x1]
  %v7943 = vld [vmem:[%s3210 + $0x18] sm:$0xe]
  %v7944 = vld [vmem:[%s3210 + $0x1c] sm:$0x1]
  %v7945 = vld [vmem:[%s3210 + $0x20] sm:$0xe]
  %v7946 = vld [vmem:[%s3210 + $0x24] sm:$0x1]
  %v7947 = vld [vmem:[%s3210 + $0x28] sm:$0xe]
  %v7948 = vld [vmem:[%s3210 + $0x2c] sm:$0x1]
  %v7949 = vld [vmem:[%s3210 + $0x30] sm:$0xe]
  %v7950 = vld [vmem:[%s3210 + $0x34] sm:$0x1]
  %v7951 = vld [vmem:[%s3210 + $0x38] sm:$0xe]
  %v7952 = vld [vmem:[%s3210 + $0x3c] sm:$0x1]
  %v7953 = vld [vmem:[%s3210 + $0x50] sm:$0xe]
  %v7954 = vld [vmem:[%s3210 + $0x54] sm:$0x1]
  %v7955 = vld [vmem:[%s3210 + $0x58] sm:$0xe]
  %v7956 = vld [vmem:[%s3210 + $0x5c] sm:$0x1]
  %v7957 = vld [vmem:[%s3210 + $0x60] sm:$0xe]
  %v7958 = vld [vmem:[%s3210 + $0x64] sm:$0x1]
  %v7959 = vld [vmem:[%s3210 + $0x68] sm:$0xe]
  %v7960 = vld [vmem:[%s3210 + $0x6c] sm:$0x1]
  %v7961 = vld [vmem:[%s3210 + $0x70] sm:$0xe]
  %v7962 = vld [vmem:[%s3210 + $0x74] sm:$0x1]
  %v7963 = vld [vmem:[%s3210 + $0x78] sm:$0xe]
  %v7964 = vld [vmem:[%s3210 + $0x7c] sm:$0x1]
  %v7965 = vld [vmem:[%s3210 + $0x80] sm:$0xe]
  %v7966 = vld [vmem:[%s3210 + $0x84] sm:$0x1]
  %v7967 = vld [vmem:[%s3210 + $0x88] sm:$0xe]
  %v7968 = vld [vmem:[%s3210 + $0x8c] sm:$0x1]
  %v8001 = vrot.slane %v7937, 5
  %v8002 = vrot.slane %v8001, 4
  %v8003 = vrot.slane %v7938, 5
  %v8004 = vsel %vm4400, %v8002, %v8003
  %v8005 = vrot.slane %v7939, 5
  %v8006 = vrot.slane %v8005, 4
  %v8007 = vrot.slane %v7940, 5
  %v8008 = vsel %vm4400, %v8006, %v8007
  %v8009 = vrot.slane %v7941, 5
  %v8010 = vrot.slane %v8009, 4
  %v8011 = vrot.slane %v7942, 5
  %v8012 = vsel %vm4400, %v8010, %v8011
  %v8013 = vrot.slane %v7943, 5
  %v8014 = vrot.slane %v8013, 4
  %v8015 = vrot.slane %v7944, 5
  %v8016 = vsel %vm4400, %v8014, %v8015
  %v8017 = vrot.slane %v7945, 5
  %v8018 = vrot.slane %v8017, 4
  %v8019 = vrot.slane %v7946, 5
  %v8020 = vsel %vm4400, %v8018, %v8019
  %v8021 = vrot.slane %v7947, 5
  %v8022 = vrot.slane %v8021, 4
  %v8023 = vrot.slane %v7948, 5
  %v8024 = vsel %vm4400, %v8022, %v8023
  %v8025 = vrot.slane %v7949, 5
  %v8026 = vrot.slane %v8025, 4
  %v8027 = vrot.slane %v7950, 5
  %v8028 = vsel %vm4400, %v8026, %v8027
  %v8029 = vrot.slane %v7951, 5
  %v8030 = vrot.slane %v8029, 4
  %v8031 = vrot.slane %v7952, 5
  %v8032 = vsel %vm4400, %v8030, %v8031
  %v8033 = vrot.slane %v7953, 5
  %v8034 = vrot.slane %v8033, 4
  %v8035 = vrot.slane %v7954, 5
  %v8036 = vsel %vm4400, %v8034, %v8035
  %v8037 = vrot.slane %v7955, 5
  %v8038 = vrot.slane %v8037, 4
  %v8039 = vrot.slane %v7956, 5
  %v8040 = vsel %vm4400, %v8038, %v8039
  %v8041 = vrot.slane %v7957, 5
  %v8042 = vrot.slane %v8041, 4
  %v8043 = vrot.slane %v7958, 5
  %v8044 = vsel %vm4400, %v8042, %v8043
  %v8045 = vrot.slane %v7959, 5
  %v8046 = vrot.slane %v8045, 4
  %v8047 = vrot.slane %v7960, 5
  %v8048 = vsel %vm4400, %v8046, %v8047
  %v8049 = vrot.slane %v7961, 5
  %v8050 = vrot.slane %v8049, 4
  %v8051 = vrot.slane %v7962, 5
  %v8052 = vsel %vm4400, %v8050, %v8051
  %v8053 = vrot.slane %v7963, 5
  %v8054 = vrot.slane %v8053, 4
  %v8055 = vrot.slane %v7964, 5
  %v8056 = vsel %vm4400, %v8054, %v8055
  %v8057 = vrot.slane %v7965, 5
  %v8058 = vrot.slane %v8057, 4
  %v8059 = vrot.slane %v7966, 5
  %v8060 = vsel %vm4400, %v8058, %v8059
  %v8061 = vrot.slane %v7967, 5
  %v8062 = vrot.slane %v8061, 4
  %v8063 = vrot.slane %v7968, 5
  %v8064 = vsel %vm4400, %v8062, %v8063
  %8081 = vst.msk [vmem:[#allocation3 + $0x10] sm:$0xf] %vm2087, %v8004
  %8082 = vst.msk [vmem:[#allocation3 + $0x24] sm:$0xf] %vm2087, %v8008
  %8083 = vst.msk [vmem:[#allocation3 + $0x38] sm:$0xf] %vm2087, %v8012
  %8084 = vst.msk [vmem:[#allocation3 + $0x4c] sm:$0xf] %vm2087, %v8016
  %8085 = vst.msk [vmem:[#allocation3 + $0x60] sm:$0xf] %vm2087, %v8020
  %8086 = vst.msk [vmem:[#allocation3 + $0x74] sm:$0xf] %vm2087, %v8024
  %8087 = vst.msk [vmem:[#allocation3 + $0x88] sm:$0xf] %vm2087, %v8028
  %8088 = vst.msk [vmem:[#allocation3 + $0x9c] sm:$0xf] %vm2087, %v8032
  %8089 = vst.msk [vmem:[#allocation3 + $0xb0] sm:$0xf] %vm2087, %v8036
  %8090 = vst.msk [vmem:[#allocation3 + $0xc4] sm:$0xf] %vm2087, %v8040
  %8091 = vst.msk [vmem:[#allocation3 + $0xd8] sm:$0xf] %vm2087, %v8044
  %8092 = vst.msk [vmem:[#allocation3 + $0xec] sm:$0xf] %vm2087, %v8048
  %8093 = vst.msk [vmem:[#allocation3 + $0x100] sm:$0xf] %vm2087, %v8052
  %8094 = vst.msk [vmem:[#allocation3 + $0x114] sm:$0xf] %vm2087, %v8056
  %8095 = vst.msk [vmem:[#allocation3 + $0x128] sm:$0xf] %vm2087, %v8060
  %8096 = vst.msk [vmem:[#allocation3 + $0x13c] sm:$0xf] %vm2087, %v8064
  %v8097 = vld [vmem:[#allocation3] sm:$0xff]
  %v8098 = vld [vmem:[#allocation3 + $0x8] sm:$0xff]
  %v8099 = vld [vmem:[#allocation3 + $0x10] sm:$0xf]
  %v8100 = vld [vmem:[#allocation3 + $0x14] sm:$0xff]
  %v8101 = vld [vmem:[#allocation3 + $0x1c] sm:$0xff]
  %v8102 = vld [vmem:[#allocation3 + $0x24] sm:$0xf]
  %v8103 = vld [vmem:[#allocation3 + $0x28] sm:$0xff]
  %v8104 = vld [vmem:[#allocation3 + $0x30] sm:$0xff]
  %v8105 = vld [vmem:[#allocation3 + $0x38] sm:$0xf]
  %v8106 = vld [vmem:[#allocation3 + $0x3c] sm:$0xff]
  %v8107 = vld [vmem:[#allocation3 + $0x44] sm:$0xff]
  %v8108 = vld [vmem:[#allocation3 + $0x4c] sm:$0xf]
  %v8109 = vld [vmem:[#allocation3 + $0x50] sm:$0xff]
  %v8110 = vld [vmem:[#allocation3 + $0x58] sm:$0xff]
  %v8111 = vld [vmem:[#allocation3 + $0x60] sm:$0xf]
  %v8112 = vld [vmem:[#allocation3 + $0x64] sm:$0xff]
  %v8113 = vld [vmem:[#allocation3 + $0x6c] sm:$0xff]
  %v8114 = vld [vmem:[#allocation3 + $0x74] sm:$0xf]
  %v8115 = vld [vmem:[#allocation3 + $0x78] sm:$0xff]
  %v8116 = vld [vmem:[#allocation3 + $0x80] sm:$0xff]
  %v8117 = vld [vmem:[#allocation3 + $0x88] sm:$0xf]
  %v8118 = vld [vmem:[#allocation3 + $0x8c] sm:$0xff]
  %v8119 = vld [vmem:[#allocation3 + $0x94] sm:$0xff]
  %v8120 = vld [vmem:[#allocation3 + $0x9c] sm:$0xf]
  %v8121 = vld [vmem:[#allocation3 + $0xa0] sm:$0xff]
  %v8122 = vld [vmem:[#allocation3 + $0xa8] sm:$0xff]
  %v8123 = vld [vmem:[#allocation3 + $0xb0] sm:$0xf]
  %v8124 = vld [vmem:[#allocation3 + $0xb4] sm:$0xff]
  %v8125 = vld [vmem:[#allocation3 + $0xbc] sm:$0xff]
  %v8126 = vld [vmem:[#allocation3 + $0xc4] sm:$0xf]
  %v8127 = vld [vmem:[#allocation3 + $0xc8] sm:$0xff]
  %v8128 = vld [vmem:[#allocation3 + $0xd0] sm:$0xff]
  %v8129 = vld [vmem:[#allocation3 + $0xd8] sm:$0xf]
  %v8130 = vld [vmem:[#allocation3 + $0xdc] sm:$0xff]
  %v8131 = vld [vmem:[#allocation3 + $0xe4] sm:$0xff]
  %v8132 = vld [vmem:[#allocation3 + $0xec] sm:$0xf]
  %v8133 = vld [vmem:[#allocation3 + $0xf0] sm:$0xff]
  %v8134 = vld [vmem:[#allocation3 + $0xf8] sm:$0xff]
  %v8135 = vld [vmem:[#allocation3 + $0x100] sm:$0xf]
  %v8136 = vld [vmem:[#allocation3 + $0x104] sm:$0xff]
  %v8137 = vld [vmem:[#allocation3 + $0x10c] sm:$0xff]
  %v8138 = vld [vmem:[#allocation3 + $0x114] sm:$0xf]
  %v8139 = vld [vmem:[#allocation3 + $0x118] sm:$0xff]
  %v8140 = vld [vmem:[#allocation3 + $0x120] sm:$0xff]
  %v8141 = vld [vmem:[#allocation3 + $0x128] sm:$0xf]
  %v8142 = vld [vmem:[#allocation3 + $0x12c] sm:$0xff]
  %v8143 = vld [vmem:[#allocation3 + $0x134] sm:$0xff]
  %v8144 = vld [vmem:[#allocation3 + $0x13c] sm:$0xf]
  %v8145 = vld [vmem:[%s3] sm:$0xf]
  %v8146 = vld [vmem:[%s3 + $0x4] sm:$0xf]
  %v8147 = vld [vmem:[%s3 + $0x8] sm:$0xf]
  %v8148 = vld [vmem:[%s3 + $0xc] sm:$0xf]
  %v8149 = vld [vmem:[%s3 + $0x10] sm:$0xf]
  %v8150 = vld [vmem:[%s3 + $0x14] sm:$0xf]
  %v8151 = vld [vmem:[%s3 + $0x18] sm:$0xf]
  %v8152 = vld [vmem:[%s3 + $0x1c] sm:$0xf]
  %v8153 = vld [vmem:[%s3 + $0x20] sm:$0xf]
  %v8154 = vld [vmem:[%s3 + $0x24] sm:$0xf]
  %v8155 = vld [vmem:[%s3 + $0x28] sm:$0xf]
  %v8156 = vld [vmem:[%s3 + $0x2c] sm:$0xf]
  %v8157 = vld [vmem:[%s3 + $0x30] sm:$0xf]
  %v8158 = vld [vmem:[%s3 + $0x34] sm:$0xf]
  %v8159 = vld [vmem:[%s3 + $0x38] sm:$0xf]
  %v8160 = vld [vmem:[%s3 + $0x3c] sm:$0xf]
  %v8161 = vld [vmem:[%s3 + $0x40] sm:$0xf]
  %v8162 = vld [vmem:[%s3 + $0x44] sm:$0xf]
  %v8163 = vld [vmem:[%s3 + $0x48] sm:$0xf]
  %v8164 = vld [vmem:[%s3 + $0x4c] sm:$0xf]
  %v8165 = vld [vmem:[%s3 + $0x50] sm:$0xf]
  %v8166 = vld [vmem:[%s3 + $0x54] sm:$0xf]
  %v8167 = vld [vmem:[%s3 + $0x58] sm:$0xf]
  %v8168 = vld [vmem:[%s3 + $0x5c] sm:$0xf]
  %v8169 = vld [vmem:[%s3 + $0x60] sm:$0xf]
  %v8170 = vld [vmem:[%s3 + $0x64] sm:$0xf]
  %v8171 = vld [vmem:[%s3 + $0x68] sm:$0xf]
  %v8172 = vld [vmem:[%s3 + $0x6c] sm:$0xf]
  %v8173 = vld [vmem:[%s3 + $0x70] sm:$0xf]
  %v8174 = vld [vmem:[%s3 + $0x74] sm:$0xf]
  %v8175 = vld [vmem:[%s3 + $0x78] sm:$0xf]
  %v8176 = vld [vmem:[%s3 + $0x7c] sm:$0xf]
  %v8177 = vld [vmem:[%s3 + $0x80] sm:$0xf]
  %v8178 = vld [vmem:[%s3 + $0x84] sm:$0xf]
  %v8179 = vld [vmem:[%s3 + $0x88] sm:$0xf]
  %v8180 = vld [vmem:[%s3 + $0x8c] sm:$0xf]
  %v8181 = vld [vmem:[%s3 + $0x90] sm:$0xf]
  %v8182 = vld [vmem:[%s3 + $0x94] sm:$0xf]
  %v8183 = vld [vmem:[%s3 + $0x98] sm:$0xf]
  %v8184 = vld [vmem:[%s3 + $0x9c] sm:$0xf]
  %v8185 = vld [vmem:[%s3 + $0xa0] sm:$0xf]
  %v8186 = vld [vmem:[%s3 + $0xa4] sm:$0xf]
  %v8187 = vld [vmem:[%s3 + $0xa8] sm:$0xf]
  %v8188 = vld [vmem:[%s3 + $0xac] sm:$0xf]
  %v8189 = vld [vmem:[%s3 + $0xb0] sm:$0xf]
  %v8190 = vld [vmem:[%s3 + $0xb4] sm:$0xf]
  %v8191 = vld [vmem:[%s3 + $0xb8] sm:$0xf]
  %v8192 = vld [vmem:[%s3 + $0xbc] sm:$0xf]
  %v8193 = vld [vmem:[%s3 + $0xc0] sm:$0xf]
  %v8194 = vld [vmem:[%s3 + $0xc4] sm:$0xf]
  %v8195 = vld [vmem:[%s3 + $0xc8] sm:$0xf]
  %v8196 = vld [vmem:[%s3 + $0xcc] sm:$0xf]
  %v8197 = vld [vmem:[%s3 + $0xd0] sm:$0xf]
  %v8198 = vld [vmem:[%s3 + $0xd4] sm:$0xf]
  %v8199 = vld [vmem:[%s3 + $0xd8] sm:$0xf]
  %v8200 = vld [vmem:[%s3 + $0xdc] sm:$0xf]
  %v8201 = vld [vmem:[%s3 + $0xe0] sm:$0xf]
  %v8202 = vld [vmem:[%s3 + $0xe4] sm:$0xf]
  %v8203 = vld [vmem:[%s3 + $0xe8] sm:$0xf]
  %v8204 = vld [vmem:[%s3 + $0xec] sm:$0xf]
  %v8205 = vld [vmem:[%s3 + $0xf0] sm:$0xf]
  %v8206 = vld [vmem:[%s3 + $0xf4] sm:$0xf]
  %v8207 = vld [vmem:[%s3 + $0xf8] sm:$0xf]
  %v8208 = vld [vmem:[%s3 + $0xfc] sm:$0xf]
  %v8209 = vld [vmem:[%s3 + $0x100] sm:$0xf]
  %v8210 = vld [vmem:[%s3 + $0x104] sm:$0xf]
  %v8211 = vld [vmem:[%s3 + $0x108] sm:$0xf]
  %v8212 = vld [vmem:[%s3 + $0x10c] sm:$0xf]
  %v8213 = vld [vmem:[%s3 + $0x110] sm:$0xf]
  %v8214 = vld [vmem:[%s3 + $0x114] sm:$0xf]
  %v8215 = vld [vmem:[%s3 + $0x118] sm:$0xf]
  %v8216 = vld [vmem:[%s3 + $0x11c] sm:$0xf]
  %v8265 = vunpack.c.l.b16 %v8097
  %v8266 = vunpack.c.h.b16 %v8097
  %v8267 = vunpack.c.l.b16 %v8098
  %v8268 = vunpack.c.h.b16 %v8098
  %v8269 = vunpack.c.l.b16 %v8099
  %v8270 = vunpack.c.l.b16 %v8100
  %v8271 = vunpack.c.h.b16 %v8100
  %v8272 = vunpack.c.l.b16 %v8101
  %v8273 = vunpack.c.h.b16 %v8101
  %v8274 = vunpack.c.l.b16 %v8102
  %v8275 = vunpack.c.l.b16 %v8103
  %v8276 = vunpack.c.h.b16 %v8103
  %v8277 = vunpack.c.l.b16 %v8104
  %v8278 = vunpack.c.h.b16 %v8104
  %v8279 = vunpack.c.l.b16 %v8105
  %v8280 = vunpack.c.l.b16 %v8106
  %v8281 = vunpack.c.h.b16 %v8106
  %v8282 = vunpack.c.l.b16 %v8107
  %v8283 = vunpack.c.h.b16 %v8107
  %v8284 = vunpack.c.l.b16 %v8108
  %v8285 = vunpack.c.l.b16 %v8109
  %v8286 = vunpack.c.h.b16 %v8109
  %v8287 = vunpack.c.l.b16 %v8110
  %v8288 = vunpack.c.h.b16 %v8110
  %v8289 = vunpack.c.l.b16 %v8111
  %v8290 = vunpack.c.l.b16 %v8112
  %v8291 = vunpack.c.h.b16 %v8112
  %v8292 = vunpack.c.l.b16 %v8113
  %v8293 = vunpack.c.h.b16 %v8113
  %v8294 = vunpack.c.l.b16 %v8114
  %v8295 = vunpack.c.l.b16 %v8115
  %v8296 = vunpack.c.h.b16 %v8115
  %v8297 = vunpack.c.l.b16 %v8116
  %v8298 = vunpack.c.h.b16 %v8116
  %v8299 = vunpack.c.l.b16 %v8117
  %v8300 = vunpack.c.l.b16 %v8118
  %v8301 = vunpack.c.h.b16 %v8118
  %v8302 = vunpack.c.l.b16 %v8119
  %v8303 = vunpack.c.h.b16 %v8119
  %v8304 = vunpack.c.l.b16 %v8120
  %v8305 = vunpack.c.l.b16 %v8121
  %v8306 = vunpack.c.h.b16 %v8121
  %v8307 = vunpack.c.l.b16 %v8122
  %v8308 = vunpack.c.h.b16 %v8122
  %v8309 = vunpack.c.l.b16 %v8123
  %v8310 = vunpack.c.l.b16 %v8124
  %v8311 = vunpack.c.h.b16 %v8124
  %v8312 = vunpack.c.l.b16 %v8125
  %v8313 = vunpack.c.h.b16 %v8125
  %v8314 = vunpack.c.l.b16 %v8126
  %v8315 = vunpack.c.l.b16 %v8127
  %v8316 = vunpack.c.h.b16 %v8127
  %v8317 = vunpack.c.l.b16 %v8128
  %v8318 = vunpack.c.h.b16 %v8128
  %v8319 = vunpack.c.l.b16 %v8129
  %v8320 = vunpack.c.l.b16 %v8130
  %v8321 = vunpack.c.h.b16 %v8130
  %v8322 = vunpack.c.l.b16 %v8131
  %v8323 = vunpack.c.h.b16 %v8131
  %v8324 = vunpack.c.l.b16 %v8132
  %v8325 = vunpack.c.l.b16 %v8133
  %v8326 = vunpack.c.h.b16 %v8133
  %v8327 = vunpack.c.l.b16 %v8134
  %v8328 = vunpack.c.h.b16 %v8134
  %v8329 = vunpack.c.l.b16 %v8135
  %v8330 = vunpack.c.l.b16 %v8136
  %v8331 = vunpack.c.h.b16 %v8136
  %v8332 = vunpack.c.l.b16 %v8137
  %v8333 = vunpack.c.h.b16 %v8137
  %v8334 = vunpack.c.l.b16 %v8138
  %v8335 = vunpack.c.l.b16 %v8139
  %v8336 = vunpack.c.h.b16 %v8139
  %v8337 = vunpack.c.l.b16 %v8140
  %v8338 = vunpack.c.h.b16 %v8140
  %v8339 = vunpack.c.l.b16 %v8141
  %v8340 = vunpack.c.l.b16 %v8142
  %v8341 = vunpack.c.h.b16 %v8142
  %v8342 = vunpack.c.l.b16 %v8143
  %v8343 = vunpack.c.h.b16 %v8143
  %v8344 = vunpack.c.l.b16 %v8144
  %v8345 = vpack.c.b16 %v8270, %v8265
  %v8346 = vpack.c.b16 %v8271, %v8266
  %v8347 = vpack.c.b16 %v8272, %v8267
  %v8348 = vpack.c.b16 %v8273, %v8268
  %v8349 = vpack.c.b16 %v8274, %v8269
  %v8350 = vpack.c.b16 %v8280, %v8275
  %v8351 = vpack.c.b16 %v8281, %v8276
  %v8352 = vpack.c.b16 %v8282, %v8277
  %v8353 = vpack.c.b16 %v8283, %v8278
  %v8354 = vpack.c.b16 %v8284, %v8279
  %v8355 = vpack.c.b16 %v8290, %v8285
  %v8356 = vpack.c.b16 %v8291, %v8286
  %v8357 = vpack.c.b16 %v8292, %v8287
  %v8358 = vpack.c.b16 %v8293, %v8288
  %v8359 = vpack.c.b16 %v8294, %v8289
  %v8360 = vpack.c.b16 %v8300, %v8295
  %v8361 = vpack.c.b16 %v8301, %v8296
  %v8362 = vpack.c.b16 %v8302, %v8297
  %v8363 = vpack.c.b16 %v8303, %v8298
  %v8364 = vpack.c.b16 %v8304, %v8299
  %v8365 = vpack.c.b16 %v8310, %v8305
  %v8366 = vpack.c.b16 %v8311, %v8306
  %v8367 = vpack.c.b16 %v8312, %v8307
  %v8368 = vpack.c.b16 %v8313, %v8308
  %v8369 = vpack.c.b16 %v8314, %v8309
  %v8370 = vpack.c.b16 %v8320, %v8315
  %v8371 = vpack.c.b16 %v8321, %v8316
  %v8372 = vpack.c.b16 %v8322, %v8317
  %v8373 = vpack.c.b16 %v8323, %v8318
  %v8374 = vpack.c.b16 %v8324, %v8319
  %v8375 = vpack.c.b16 %v8330, %v8325
  %v8376 = vpack.c.b16 %v8331, %v8326
  %v8377 = vpack.c.b16 %v8332, %v8327
  %v8378 = vpack.c.b16 %v8333, %v8328
  %v8379 = vpack.c.b16 %v8334, %v8329
  %v8380 = vpack.c.b16 %v8340, %v8335
  %v8381 = vpack.c.b16 %v8341, %v8336
  %v8382 = vpack.c.b16 %v8342, %v8337
  %v8383 = vpack.c.b16 %v8343, %v8338
  %v8384 = vpack.c.b16 %v8344, %v8339
  %v8489 = vunpack.c.l.b16 %v8145
  %v8490 = vunpack.c.l.b16 %v8146
  %v8491 = vunpack.c.l.b16 %v8147
  %v8492 = vunpack.c.l.b16 %v8148
  %v8493 = vunpack.c.l.b16 %v8149
  %v8494 = vunpack.c.l.b16 %v8150
  %v8495 = vunpack.c.l.b16 %v8151
  %v8496 = vunpack.c.l.b16 %v8152
  %v8497 = vunpack.c.l.b16 %v8153
  %v8498 = vunpack.c.l.b16 %v8154
  %v8499 = vunpack.c.l.b16 %v8155
  %v8500 = vunpack.c.l.b16 %v8156
  %v8501 = vunpack.c.l.b16 %v8157
  %v8502 = vunpack.c.l.b16 %v8158
  %v8503 = vunpack.c.l.b16 %v8159
  %v8504 = vunpack.c.l.b16 %v8160
  %v8505 = vunpack.c.l.b16 %v8161
  %v8506 = vunpack.c.l.b16 %v8162
  %v8507 = vunpack.c.l.b16 %v8163
  %v8508 = vunpack.c.l.b16 %v8164
  %v8509 = vunpack.c.l.b16 %v8165
  %v8510 = vunpack.c.l.b16 %v8166
  %v8511 = vunpack.c.l.b16 %v8167
  %v8512 = vunpack.c.l.b16 %v8168
  %v8513 = vunpack.c.l.b16 %v8169
  %v8514 = vunpack.c.l.b16 %v8170
  %v8515 = vunpack.c.l.b16 %v8171
  %v8516 = vunpack.c.l.b16 %v8172
  %v8517 = vunpack.c.l.b16 %v8173
  %v8518 = vunpack.c.l.b16 %v8174
  %v8519 = vunpack.c.l.b16 %v8175
  %v8520 = vunpack.c.l.b16 %v8176
  %v8521 = vunpack.c.l.b16 %v8177
  %v8522 = vunpack.c.l.b16 %v8178
  %v8523 = vunpack.c.l.b16 %v8179
  %v8524 = vunpack.c.l.b16 %v8180
  %v8525 = vunpack.c.l.b16 %v8181
  %v8526 = vunpack.c.l.b16 %v8182
  %v8527 = vunpack.c.l.b16 %v8183
  %v8528 = vunpack.c.l.b16 %v8184
  %v8529 = vunpack.c.l.b16 %v8185
  %v8530 = vunpack.c.l.b16 %v8186
  %v8531 = vunpack.c.l.b16 %v8187
  %v8532 = vunpack.c.l.b16 %v8188
  %v8533 = vunpack.c.l.b16 %v8189
  %v8534 = vunpack.c.l.b16 %v8190
  %v8535 = vunpack.c.l.b16 %v8191
  %v8536 = vunpack.c.l.b16 %v8192
  %v8537 = vunpack.c.l.b16 %v8193
  %v8538 = vunpack.c.l.b16 %v8194
  %v8539 = vunpack.c.l.b16 %v8195
  %v8540 = vunpack.c.l.b16 %v8196
  %v8541 = vunpack.c.l.b16 %v8197
  %v8542 = vunpack.c.l.b16 %v8198
  %v8543 = vunpack.c.l.b16 %v8199
  %v8544 = vunpack.c.l.b16 %v8200
  %v8545 = vunpack.c.l.b16 %v8201
  %v8546 = vunpack.c.l.b16 %v8202
  %v8547 = vunpack.c.l.b16 %v8203
  %v8548 = vunpack.c.l.b16 %v8204
  %v8549 = vunpack.c.l.b16 %v8205
  %v8550 = vunpack.c.l.b16 %v8206
  %v8551 = vunpack.c.l.b16 %v8207
  %v8552 = vunpack.c.l.b16 %v8208
  %v8553 = vunpack.c.l.b16 %v8209
  %v8554 = vunpack.c.l.b16 %v8210
  %v8555 = vunpack.c.l.b16 %v8211
  %v8556 = vunpack.c.l.b16 %v8212
  %v8557 = vunpack.c.l.b16 %v8213
  %v8558 = vunpack.c.l.b16 %v8214
  %v8559 = vunpack.c.l.b16 %v8215
  %v8560 = vunpack.c.l.b16 %v8216
  %v8561 = vpack.c.b16 %v8490, %v8489
  %v8562 = vpack.c.b16 %v8492, %v8491
  %v8563 = vpack.c.b16 %v8494, %v8493
  %v8564 = vpack.c.b16 %v8496, %v8495
  %v8565 = vpack.c.b16 %v8498, %v8497
  %v8566 = vpack.c.b16 %v8500, %v8499
  %v8567 = vpack.c.b16 %v8502, %v8501
  %v8568 = vpack.c.b16 %v8504, %v8503
  %v8569 = vpack.c.b16 %v8506, %v8505
  %v8570 = vpack.c.b16 %v8508, %v8507
  %v8571 = vpack.c.b16 %v8510, %v8509
  %v8572 = vpack.c.b16 %v8512, %v8511
  %v8573 = vpack.c.b16 %v8514, %v8513
  %v8574 = vpack.c.b16 %v8516, %v8515
  %v8575 = vpack.c.b16 %v8518, %v8517
  %v8576 = vpack.c.b16 %v8520, %v8519
  %v8577 = vpack.c.b16 %v8522, %v8521
  %v8578 = vpack.c.b16 %v8524, %v8523
  %v8579 = vpack.c.b16 %v8526, %v8525
  %v8580 = vpack.c.b16 %v8528, %v8527
  %v8581 = vpack.c.b16 %v8530, %v8529
  %v8582 = vpack.c.b16 %v8532, %v8531
  %v8583 = vpack.c.b16 %v8534, %v8533
  %v8584 = vpack.c.b16 %v8536, %v8535
  %v8585 = vpack.c.b16 %v8538, %v8537
  %v8586 = vpack.c.b16 %v8540, %v8539
  %v8587 = vpack.c.b16 %v8542, %v8541
  %v8588 = vpack.c.b16 %v8544, %v8543
  %v8589 = vpack.c.b16 %v8546, %v8545
  %v8590 = vpack.c.b16 %v8548, %v8547
  %v8591 = vpack.c.b16 %v8550, %v8549
  %v8592 = vpack.c.b16 %v8552, %v8551
  %v8593 = vpack.c.b16 %v8554, %v8553
  %v8594 = vpack.c.b16 %v8556, %v8555
  %v8595 = vpack.c.b16 %v8558, %v8557
  %v8596 = vpack.c.b16 %v8560, %v8559
  %v8634 = vsel %vm893, %v8349, 0
  %v8637 = vsel %vm893, %v8354, 0
  %v8640 = vsel %vm893, %v8359, 0
  %v8643 = vsel %vm893, %v8364, 0
  %v8646 = vsel %vm893, %v8369, 0
  %v8649 = vsel %vm893, %v8374, 0
  %v8652 = vsel %vm893, %v8379, 0
  %v8655 = vsel %vm893, %v8384, 0
  %8657 = vmatpush.bf16.msra.mxu0 %v8568
  %8658 = vmatpush.bf16.msra.mxu0 %v8567
  %8659 = vmatpush.bf16.msra.mxu0 %v8566
  %8660 = vmatpush.bf16.msra.mxu0 %v8565
  %8661 = vmatpush.bf16.msra.mxu0 %v8564
  %8662 = vmatpush.bf16.msra.mxu0 %v8563
  %8663 = vmatpush.bf16.msra.mxu0 %v8562
  %8664 = vmatpush.bf16.msra.mxu0 %v8561
  %8665 = vmatmul.bf16.gmra.mxu0 %v8345
  %v8666 = vpop.f32.mrf.mxu0
  %v8667 = vadd.f32 0.0, %v8666
  %v8668 = vpop.f32.mrf.mxu0
  %v8669 = vadd.f32 0.0, %v8668
  %8670 = vmatmul.bf16.gmra.mxu0 %v8350
  %v8671 = vpop.f32.mrf.mxu0
  %v8672 = vadd.f32 0.0, %v8671
  %v8673 = vpop.f32.mrf.mxu0
  %v8674 = vadd.f32 0.0, %v8673
  %8675 = vmatmul.bf16.gmra.mxu0 %v8355
  %v8676 = vpop.f32.mrf.mxu0
  %v8677 = vadd.f32 0.0, %v8676
  %v8678 = vpop.f32.mrf.mxu0
  %v8679 = vadd.f32 0.0, %v8678
  %8680 = vmatmul.bf16.gmra.mxu0 %v8360
  %v8681 = vpop.f32.mrf.mxu0
  %v8682 = vadd.f32 0.0, %v8681
  %v8683 = vpop.f32.mrf.mxu0
  %v8684 = vadd.f32 0.0, %v8683
  %8685 = vmatmul.bf16.gmra.mxu0 %v8365
  %v8686 = vpop.f32.mrf.mxu0
  %v8687 = vadd.f32 0.0, %v8686
  %v8688 = vpop.f32.mrf.mxu0
  %v8689 = vadd.f32 0.0, %v8688
  %8690 = vmatmul.bf16.gmra.mxu0 %v8370
  %v8691 = vpop.f32.mrf.mxu0
  %v8692 = vadd.f32 0.0, %v8691
  %v8693 = vpop.f32.mrf.mxu0
  %v8694 = vadd.f32 0.0, %v8693
  %8695 = vmatmul.bf16.gmra.mxu0 %v8375
  %v8696 = vpop.f32.mrf.mxu0
  %v8697 = vadd.f32 0.0, %v8696
  %v8698 = vpop.f32.mrf.mxu0
  %v8699 = vadd.f32 0.0, %v8698
  %8700 = vmatmul.bf16.gmra.mxu0 %v8380
  %v8701 = vpop.f32.mrf.mxu0
  %v8702 = vadd.f32 0.0, %v8701
  %v8703 = vpop.f32.mrf.mxu0
  %v8704 = vadd.f32 0.0, %v8703
  %8705 = vdwg.mxu0
  %8706 = vmatpush.bf16.msra.mxu0 %v8576
  %8707 = vmatpush.bf16.msra.mxu0 %v8575
  %8708 = vmatpush.bf16.msra.mxu0 %v8574
  %8709 = vmatpush.bf16.msra.mxu0 %v8573
  %8710 = vmatpush.bf16.msra.mxu0 %v8572
  %8711 = vmatpush.bf16.msra.mxu0 %v8571
  %8712 = vmatpush.bf16.msra.mxu0 %v8570
  %8713 = vmatpush.bf16.msra.mxu0 %v8569
  %8714 = vmatmul.bf16.gmra.mxu0 %v8346
  %v8715 = vpop.f32.mrf.mxu0
  %v8716 = vadd.f32 %v8667, %v8715
  %v8717 = vpop.f32.mrf.mxu0
  %v8718 = vadd.f32 %v8669, %v8717
  %8719 = vmatmul.bf16.gmra.mxu0 %v8351
  %v8720 = vpop.f32.mrf.mxu0
  %v8721 = vadd.f32 %v8672, %v8720
  %v8722 = vpop.f32.mrf.mxu0
  %v8723 = vadd.f32 %v8674, %v8722
  %8724 = vmatmul.bf16.gmra.mxu0 %v8356
  %v8725 = vpop.f32.mrf.mxu0
  %v8726 = vadd.f32 %v8677, %v8725
  %v8727 = vpop.f32.mrf.mxu0
  %v8728 = vadd.f32 %v8679, %v8727
  %8729 = vmatmul.bf16.gmra.mxu0 %v8361
  %v8730 = vpop.f32.mrf.mxu0
  %v8731 = vadd.f32 %v8682, %v8730
  %v8732 = vpop.f32.mrf.mxu0
  %v8733 = vadd.f32 %v8684, %v8732
  %8734 = vmatmul.bf16.gmra.mxu0 %v8366
  %v8735 = vpop.f32.mrf.mxu0
  %v8736 = vadd.f32 %v8687, %v8735
  %v8737 = vpop.f32.mrf.mxu0
  %v8738 = vadd.f32 %v8689, %v8737
  %8739 = vmatmul.bf16.gmra.mxu0 %v8371
  %v8740 = vpop.f32.mrf.mxu0
  %v8741 = vadd.f32 %v8692, %v8740
  %v8742 = vpop.f32.mrf.mxu0
  %v8743 = vadd.f32 %v8694, %v8742
  %8744 = vmatmul.bf16.gmra.mxu0 %v8376
  %v8745 = vpop.f32.mrf.mxu0
  %v8746 = vadd.f32 %v8697, %v8745
  %v8747 = vpop.f32.mrf.mxu0
  %v8748 = vadd.f32 %v8699, %v8747
  %8749 = vmatmul.bf16.gmra.mxu0 %v8381
  %v8750 = vpop.f32.mrf.mxu0
  %v8751 = vadd.f32 %v8702, %v8750
  %v8752 = vpop.f32.mrf.mxu0
  %v8753 = vadd.f32 %v8704, %v8752
  %8754 = vdwg.mxu0
  %8755 = vmatpush.bf16.msra.mxu0 %v8584
  %8756 = vmatpush.bf16.msra.mxu0 %v8583
  %8757 = vmatpush.bf16.msra.mxu0 %v8582
  %8758 = vmatpush.bf16.msra.mxu0 %v8581
  %8759 = vmatpush.bf16.msra.mxu0 %v8580
  %8760 = vmatpush.bf16.msra.mxu0 %v8579
  %8761 = vmatpush.bf16.msra.mxu0 %v8578
  %8762 = vmatpush.bf16.msra.mxu0 %v8577
  %8763 = vmatmul.bf16.gmra.mxu0 %v8347
  %v8764 = vpop.f32.mrf.mxu0
  %v8765 = vadd.f32 %v8716, %v8764
  %v8766 = vpop.f32.mrf.mxu0
  %v8767 = vadd.f32 %v8718, %v8766
  %8768 = vmatmul.bf16.gmra.mxu0 %v8352
  %v8769 = vpop.f32.mrf.mxu0
  %v8770 = vadd.f32 %v8721, %v8769
  %v8771 = vpop.f32.mrf.mxu0
  %v8772 = vadd.f32 %v8723, %v8771
  %8773 = vmatmul.bf16.gmra.mxu0 %v8357
  %v8774 = vpop.f32.mrf.mxu0
  %v8775 = vadd.f32 %v8726, %v8774
  %v8776 = vpop.f32.mrf.mxu0
  %v8777 = vadd.f32 %v8728, %v8776
  %8778 = vmatmul.bf16.gmra.mxu0 %v8362
  %v8779 = vpop.f32.mrf.mxu0
  %v8780 = vadd.f32 %v8731, %v8779
  %v8781 = vpop.f32.mrf.mxu0
  %v8782 = vadd.f32 %v8733, %v8781
  %8783 = vmatmul.bf16.gmra.mxu0 %v8367
  %v8784 = vpop.f32.mrf.mxu0
  %v8785 = vadd.f32 %v8736, %v8784
  %v8786 = vpop.f32.mrf.mxu0
  %v8787 = vadd.f32 %v8738, %v8786
  %8788 = vmatmul.bf16.gmra.mxu0 %v8372
  %v8789 = vpop.f32.mrf.mxu0
  %v8790 = vadd.f32 %v8741, %v8789
  %v8791 = vpop.f32.mrf.mxu0
  %v8792 = vadd.f32 %v8743, %v8791
  %8793 = vmatmul.bf16.gmra.mxu0 %v8377
  %v8794 = vpop.f32.mrf.mxu0
  %v8795 = vadd.f32 %v8746, %v8794
  %v8796 = vpop.f32.mrf.mxu0
  %v8797 = vadd.f32 %v8748, %v8796
  %8798 = vmatmul.bf16.gmra.mxu0 %v8382
  %v8799 = vpop.f32.mrf.mxu0
  %v8800 = vadd.f32 %v8751, %v8799
  %v8801 = vpop.f32.mrf.mxu0
  %v8802 = vadd.f32 %v8753, %v8801
  %8803 = vdwg.mxu0
  %8804 = vmatpush.bf16.msra.mxu0 %v8592
  %8805 = vmatpush.bf16.msra.mxu0 %v8591
  %8806 = vmatpush.bf16.msra.mxu0 %v8590
  %8807 = vmatpush.bf16.msra.mxu0 %v8589
  %8808 = vmatpush.bf16.msra.mxu0 %v8588
  %8809 = vmatpush.bf16.msra.mxu0 %v8587
  %8810 = vmatpush.bf16.msra.mxu0 %v8586
  %8811 = vmatpush.bf16.msra.mxu0 %v8585
  %8812 = vmatmul.bf16.gmra.mxu0 %v8348
  %v8813 = vpop.f32.mrf.mxu0
  %v8814 = vadd.f32 %v8765, %v8813
  %v8815 = vpop.f32.mrf.mxu0
  %v8816 = vadd.f32 %v8767, %v8815
  %8817 = vmatmul.bf16.gmra.mxu0 %v8353
  %v8818 = vpop.f32.mrf.mxu0
  %v8819 = vadd.f32 %v8770, %v8818
  %v8820 = vpop.f32.mrf.mxu0
  %v8821 = vadd.f32 %v8772, %v8820
  %8822 = vmatmul.bf16.gmra.mxu0 %v8358
  %v8823 = vpop.f32.mrf.mxu0
  %v8824 = vadd.f32 %v8775, %v8823
  %v8825 = vpop.f32.mrf.mxu0
  %v8826 = vadd.f32 %v8777, %v8825
  %8827 = vmatmul.bf16.gmra.mxu0 %v8363
  %v8828 = vpop.f32.mrf.mxu0
  %v8829 = vadd.f32 %v8780, %v8828
  %v8830 = vpop.f32.mrf.mxu0
  %v8831 = vadd.f32 %v8782, %v8830
  %8832 = vmatmul.bf16.gmra.mxu0 %v8368
  %v8833 = vpop.f32.mrf.mxu0
  %v8834 = vadd.f32 %v8785, %v8833
  %v8835 = vpop.f32.mrf.mxu0
  %v8836 = vadd.f32 %v8787, %v8835
  %8837 = vmatmul.bf16.gmra.mxu0 %v8373
  %v8838 = vpop.f32.mrf.mxu0
  %v8839 = vadd.f32 %v8790, %v8838
  %v8840 = vpop.f32.mrf.mxu0
  %v8841 = vadd.f32 %v8792, %v8840
  %8842 = vmatmul.bf16.gmra.mxu0 %v8378
  %v8843 = vpop.f32.mrf.mxu0
  %v8844 = vadd.f32 %v8795, %v8843
  %v8845 = vpop.f32.mrf.mxu0
  %v8846 = vadd.f32 %v8797, %v8845
  %8847 = vmatmul.bf16.gmra.mxu0 %v8383
  %v8848 = vpop.f32.mrf.mxu0
  %v8849 = vadd.f32 %v8800, %v8848
  %v8850 = vpop.f32.mrf.mxu0
  %v8851 = vadd.f32 %v8802, %v8850
  %8852 = vdwg.mxu0
  %8853 = vmatpush.bf16.msra.mxu0 0
  %8854 = vmatpush.bf16.msra.mxu0 0
  %8855 = vmatpush.bf16.msra.mxu0 0
  %8856 = vmatpush.bf16.msra.mxu0 0
  %8857 = vmatpush.bf16.msra.mxu0 %v8596
  %8858 = vmatpush.bf16.msra.mxu0 %v8595
  %8859 = vmatpush.bf16.msra.mxu0 %v8594
  %8860 = vmatpush.bf16.msra.mxu0 %v8593
  %8861 = vmatmul.bf16.gmra.mxu0 %v8634
  %v8862 = vpop.f32.mrf.mxu0
  %v8863 = vadd.f32 %v8814, %v8862
  %v8864 = vpop.f32.mrf.mxu0
  %v8865 = vadd.f32 %v8816, %v8864
  %8866 = vmatmul.bf16.gmra.mxu0 %v8637
  %v8867 = vpop.f32.mrf.mxu0
  %v8868 = vadd.f32 %v8819, %v8867
  %v8869 = vpop.f32.mrf.mxu0
  %v8870 = vadd.f32 %v8821, %v8869
  %8871 = vmatmul.bf16.gmra.mxu0 %v8640
  %v8872 = vpop.f32.mrf.mxu0
  %v8873 = vadd.f32 %v8824, %v8872
  %v8874 = vpop.f32.mrf.mxu0
  %v8875 = vadd.f32 %v8826, %v8874
  %8876 = vmatmul.bf16.gmra.mxu0 %v8643
  %v8877 = vpop.f32.mrf.mxu0
  %v8878 = vadd.f32 %v8829, %v8877
  %v8879 = vpop.f32.mrf.mxu0
  %v8880 = vadd.f32 %v8831, %v8879
  %8881 = vmatmul.bf16.gmra.mxu0 %v8646
  %v8882 = vpop.f32.mrf.mxu0
  %v8883 = vadd.f32 %v8834, %v8882
  %v8884 = vpop.f32.mrf.mxu0
  %v8885 = vadd.f32 %v8836, %v8884
  %8886 = vmatmul.bf16.gmra.mxu0 %v8649
  %v8887 = vpop.f32.mrf.mxu0
  %v8888 = vadd.f32 %v8839, %v8887
  %v8889 = vpop.f32.mrf.mxu0
  %v8890 = vadd.f32 %v8841, %v8889
  %8891 = vmatmul.bf16.gmra.mxu0 %v8652
  %v8892 = vpop.f32.mrf.mxu0
  %v8893 = vadd.f32 %v8844, %v8892
  %v8894 = vpop.f32.mrf.mxu0
  %v8895 = vadd.f32 %v8846, %v8894
  %8896 = vmatmul.bf16.gmra.mxu0 %v8655
  %v8897 = vpop.f32.mrf.mxu0
  %v8898 = vadd.f32 %v8849, %v8897
  %v8899 = vpop.f32.mrf.mxu0
  %v8900 = vadd.f32 %v8851, %v8899
  %8901 = vdwg.mxu0
  %v8902 = vsel %vm893, %v8863, 0.0
  %v8903 = vsel %vm893, %v8865, 0.0
  %v8904 = vadd.f32 %v8902, %v8903
  %v8905 = vsel %vm893, %v8868, 0.0
  %v8906 = vadd.f32 %v8904, %v8905
  %v8907 = vsel %vm893, %v8870, 0.0
  %v8908 = vadd.f32 %v8906, %v8907
  %v8909 = vsel %vm893, %v8873, 0.0
  %v8910 = vadd.f32 %v8908, %v8909
  %v8911 = vsel %vm893, %v8875, 0.0
  %v8912 = vadd.f32 %v8910, %v8911
  %v8913 = vsel %vm893, %v8878, 0.0
  %v8914 = vadd.f32 %v8912, %v8913
  %v8915 = vsel %vm893, %v8880, 0.0
  %v8916 = vadd.f32 %v8914, %v8915
  %v8917 = vsel %vm893, %v8883, 0.0
  %v8918 = vadd.f32 %v8916, %v8917
  %v8919 = vsel %vm893, %v8885, 0.0
  %v8920 = vadd.f32 %v8918, %v8919
  %v8921 = vsel %vm893, %v8888, 0.0
  %v8922 = vadd.f32 %v8920, %v8921
  %v8923 = vsel %vm893, %v8890, 0.0
  %v8924 = vadd.f32 %v8922, %v8923
  %v8925 = vsel %vm893, %v8893, 0.0
  %v8926 = vadd.f32 %v8924, %v8925
  %v8927 = vsel %vm893, %v8895, 0.0
  %v8928 = vadd.f32 %v8926, %v8927
  %v8929 = vsel %vm893, %v8898, 0.0
  %v8930 = vadd.f32 %v8928, %v8929
  %v8931 = vsel %vm893, %v8900, 0.0
  %v8932 = vadd.f32 %v8930, %v8931
  %v8933 = vrot.slane %v8932, 4
  %v8934 = vadd.f32 %v8932, %v8933
  %v8935 = vrot.slane %v8934, 2
  %v8936 = vadd.f32 %v8934, %v8935
  %v8937 = vrot.slane %v8936, 1
  %v8938 = vadd.f32 %v8936, %v8937
  %v8939 = vmul.f32 %v8938, 0.0078125
  %v8940 = vsub.f32 %v8863, %v8939
  %v8941 = vsub.f32 %v8865, %v8939
  %v8942 = vsub.f32 %v8868, %v8939
  %v8943 = vsub.f32 %v8870, %v8939
  %v8944 = vsub.f32 %v8873, %v8939
  %v8945 = vsub.f32 %v8875, %v8939
  %v8946 = vsub.f32 %v8878, %v8939
  %v8947 = vsub.f32 %v8880, %v8939
  %v8948 = vsub.f32 %v8883, %v8939
  %v8949 = vsub.f32 %v8885, %v8939
  %v8950 = vsub.f32 %v8888, %v8939
  %v8951 = vsub.f32 %v8890, %v8939
  %v8952 = vsub.f32 %v8893, %v8939
  %v8953 = vsub.f32 %v8895, %v8939
  %v8954 = vsub.f32 %v8898, %v8939
  %v8955 = vsub.f32 %v8900, %v8939
  %v8956 = vmul.f32 %v8940, %v8940
  %v8957 = vmul.f32 %v8941, %v8941
  %v8958 = vmul.f32 %v8942, %v8942
  %v8959 = vmul.f32 %v8943, %v8943
  %v8960 = vmul.f32 %v8944, %v8944
  %v8961 = vmul.f32 %v8945, %v8945
  %v8962 = vmul.f32 %v8946, %v8946
  %v8963 = vmul.f32 %v8947, %v8947
  %v8964 = vmul.f32 %v8948, %v8948
  %v8965 = vmul.f32 %v8949, %v8949
  %v8966 = vmul.f32 %v8950, %v8950
  %v8967 = vmul.f32 %v8951, %v8951
  %v8968 = vmul.f32 %v8952, %v8952
  %v8969 = vmul.f32 %v8953, %v8953
  %v8970 = vmul.f32 %v8954, %v8954
  %v8971 = vmul.f32 %v8955, %v8955
  %v8972 = vsel %vm893, %v8956, 0.0
  %v8973 = vsel %vm893, %v8957, 0.0
  %v8974 = vadd.f32 %v8972, %v8973
  %v8975 = vsel %vm893, %v8958, 0.0
  %v8976 = vadd.f32 %v8974, %v8975
  %v8977 = vsel %vm893, %v8959, 0.0
  %v8978 = vadd.f32 %v8976, %v8977
  %v8979 = vsel %vm893, %v8960, 0.0
  %v8980 = vadd.f32 %v8978, %v8979
  %v8981 = vsel %vm893, %v8961, 0.0
  %v8982 = vadd.f32 %v8980, %v8981
  %v8983 = vsel %vm893, %v8962, 0.0
  %v8984 = vadd.f32 %v8982, %v8983
  %v8985 = vsel %vm893, %v8963, 0.0
  %v8986 = vadd.f32 %v8984, %v8985
  %v8987 = vsel %vm893, %v8964, 0.0
  %v8988 = vadd.f32 %v8986, %v8987
  %v8989 = vsel %vm893, %v8965, 0.0
  %v8990 = vadd.f32 %v8988, %v8989
  %v8991 = vsel %vm893, %v8966, 0.0
  %v8992 = vadd.f32 %v8990, %v8991
  %v8993 = vsel %vm893, %v8967, 0.0
  %v8994 = vadd.f32 %v8992, %v8993
  %v8995 = vsel %vm893, %v8968, 0.0
  %v8996 = vadd.f32 %v8994, %v8995
  %v8997 = vsel %vm893, %v8969, 0.0
  %v8998 = vadd.f32 %v8996, %v8997
  %v8999 = vsel %vm893, %v8970, 0.0
  %v9000 = vadd.f32 %v8998, %v8999
  %v9001 = vsel %vm893, %v8971, 0.0
  %v9002 = vadd.f32 %v9000, %v9001
  %v9003 = vrot.slane %v9002, 4
  %v9004 = vadd.f32 %v9002, %v9003
  %v9005 = vrot.slane %v9004, 2
  %v9006 = vadd.f32 %v9004, %v9005
  %v9007 = vrot.slane %v9006, 1
  %v9008 = vadd.f32 %v9006, %v9007
  %v9009 = vmul.f32 %v9008, 0.0078125
  %v9010 = vperm.slane %v5903, 0
  %v9011 = vmul.f32 %v9010, %v8940
  %v9012 = vmul.f32 %v9010, %v8941
  %v9013 = vmul.f32 %v9010, %v8942
  %v9014 = vmul.f32 %v9010, %v8943
  %v9015 = vmul.f32 %v9010, %v8944
  %v9016 = vmul.f32 %v9010, %v8945
  %v9017 = vmul.f32 %v9010, %v8946
  %v9018 = vmul.f32 %v9010, %v8947
  %v9019 = vmul.f32 %v9010, %v8948
  %v9020 = vmul.f32 %v9010, %v8949
  %v9021 = vmul.f32 %v9010, %v8950
  %v9022 = vmul.f32 %v9010, %v8951
  %v9023 = vmul.f32 %v9010, %v8952
  %v9024 = vmul.f32 %v9010, %v8953
  %v9025 = vmul.f32 %v9010, %v8954
  %v9026 = vmul.f32 %v9010, %v8955
  %v9027 = vadd.f32 %v9009, 1e-05
  %v9028 = vrsqrt.pop %v9027
  %v9029 = vmul.f32 %v9028, %v9027
  %v9030 = vmul.f32 %v9029, %v9028
  %v9031 = vmul.f32 0.5, %v9030
  %v9032 = vsub.f32 1.5, %v9031
  %v9033 = vmul.f32 %v9028, %v9032
  %vm9034 = vweird.f32 %v9027
  %vm9035 = vweird.f32 %v9028
  %vm9036 = vmor %vm9034, %vm9035
  %v9037 = vsel %vm9036, %v9028, %v9033
  %v9038 = vmul.f32 %v9011, %v9037
  %v9039 = vmul.f32 %v9012, %v9037
  %v9040 = vmul.f32 %v9013, %v9037
  %v9041 = vmul.f32 %v9014, %v9037
  %v9042 = vmul.f32 %v9015, %v9037
  %v9043 = vmul.f32 %v9016, %v9037
  %v9044 = vmul.f32 %v9017, %v9037
  %v9045 = vmul.f32 %v9018, %v9037
  %v9046 = vmul.f32 %v9019, %v9037
  %v9047 = vmul.f32 %v9020, %v9037
  %v9048 = vmul.f32 %v9021, %v9037
  %v9049 = vmul.f32 %v9022, %v9037
  %v9050 = vmul.f32 %v9023, %v9037
  %v9051 = vmul.f32 %v9024, %v9037
  %v9052 = vmul.f32 %v9025, %v9037
  %v9053 = vmul.f32 %v9026, %v9037
  %v9054 = vperm.slane %v5904, 0
  %v9055 = vadd.f32 %v9038, %v9054
  %v9056 = vadd.f32 %v9039, %v9054
  %v9057 = vadd.f32 %v9040, %v9054
  %v9058 = vadd.f32 %v9041, %v9054
  %v9059 = vadd.f32 %v9042, %v9054
  %v9060 = vadd.f32 %v9043, %v9054
  %v9061 = vadd.f32 %v9044, %v9054
  %v9062 = vadd.f32 %v9045, %v9054
  %v9063 = vadd.f32 %v9046, %v9054
  %v9064 = vadd.f32 %v9047, %v9054
  %v9065 = vadd.f32 %v9048, %v9054
  %v9066 = vadd.f32 %v9049, %v9054
  %v9067 = vadd.f32 %v9050, %v9054
  %v9068 = vadd.f32 %v9051, %v9054
  %v9069 = vadd.f32 %v9052, %v9054
  %v9070 = vadd.f32 %v9053, %v9054
  %v9103 = vrot.slane %v1672, 7
  %vm9104 = vcmask 1041409
  %v9105 = vsel %vm9104, %v9103, %v1671
  %v9106 = vrot.slane %v1673, 6
  %v9107 = vsel %vm2611, %v9106, %v9105
  %v9108 = vrot.slane %v1674, 5
  %v9109 = vsel %vm2614, %v9108, %v9107
  %v9110 = vrot.slane %v1675, 4
  %v9111 = vsel %vm2617, %v9110, %v9109
  %v9112 = vrot.slane %v1676, 3
  %v9113 = vsel %vm2620, %v9112, %v9111
  %v9114 = vrot.slane %v1677, 2
  %v9115 = vsel %vm2623, %v9114, %v9113
  %v9116 = vrot.slane %v1678, 1
  %v9117 = vsel %vm2626, %v9116, %v9115
  %v9118 = vrot.slane %v1880, 7
  %v9119 = vsel %vm9104, %v9118, %v1879
  %v9120 = vrot.slane %v1881, 6
  %v9121 = vsel %vm2611, %v9120, %v9119
  %v9122 = vrot.slane %v1882, 5
  %v9123 = vsel %vm2614, %v9122, %v9121
  %v9124 = vrot.slane %v1883, 4
  %v9125 = vsel %vm2617, %v9124, %v9123
  %v9126 = vrot.slane %v1884, 3
  %v9127 = vsel %vm2620, %v9126, %v9125
  %v9128 = vrot.slane %v1885, 2
  %v9129 = vsel %vm2623, %v9128, %v9127
  %v9130 = vrot.slane %v1886, 1
  %v9131 = vsel %vm2626, %v9130, %v9129
  %v9132 = vrot.slane %v1912, 7
  %v9133 = vsel %vm9104, %v9132, %v1911
  %v9134 = vrot.slane %v1913, 6
  %v9135 = vsel %vm2611, %v9134, %v9133
  %v9136 = vrot.slane %v1914, 5
  %v9137 = vsel %vm2614, %v9136, %v9135
  %v9138 = vrot.slane %v1915, 4
  %v9139 = vsel %vm2617, %v9138, %v9137
  %v9140 = vrot.slane %v1916, 3
  %v9141 = vsel %vm2620, %v9140, %v9139
  %v9142 = vrot.slane %v1917, 2
  %v9143 = vsel %vm2623, %v9142, %v9141
  %v9144 = vrot.slane %v1918, 1
  %v9145 = vsel %vm2626, %v9144, %v9143
  %v9146 = vrot.slane %v1944, 7
  %v9147 = vsel %vm9104, %v9146, %v1943
  %v9148 = vrot.slane %v1945, 6
  %v9149 = vsel %vm2611, %v9148, %v9147
  %v9150 = vrot.slane %v1946, 5
  %v9151 = vsel %vm2614, %v9150, %v9149
  %v9152 = vrot.slane %v1947, 4
  %v9153 = vsel %vm2617, %v9152, %v9151
  %v9154 = vrot.slane %v1948, 3
  %v9155 = vsel %vm2620, %v9154, %v9153
  %v9156 = vrot.slane %v1949, 2
  %v9157 = vsel %vm2623, %v9156, %v9155
  %v9158 = vrot.slane %v1950, 1
  %v9159 = vsel %vm2626, %v9158, %v9157
  %v9160 = vrot.slane %v1800, 7
  %v9161 = vsel %vm9104, %v9160, %v1799
  %v9162 = vrot.slane %v1801, 6
  %v9163 = vsel %vm2611, %v9162, %v9161
  %v9164 = vrot.slane %v1802, 5
  %v9165 = vsel %vm2614, %v9164, %v9163
  %v9166 = vrot.slane %v1803, 4
  %v9167 = vsel %vm2617, %v9166, %v9165
  %v9168 = vrot.slane %v1804, 3
  %v9169 = vsel %vm2620, %v9168, %v9167
  %v9170 = vrot.slane %v1805, 2
  %v9171 = vsel %vm2623, %v9170, %v9169
  %v9172 = vrot.slane %v1806, 1
  %v9173 = vsel %vm2626, %v9172, %v9171
  %v9174 = vrot.slane %v1992, 7
  %v9175 = vsel %vm9104, %v9174, %v1991
  %v9176 = vrot.slane %v1993, 6
  %v9177 = vsel %vm2611, %v9176, %v9175
  %v9178 = vrot.slane %v1994, 5
  %v9179 = vsel %vm2614, %v9178, %v9177
  %v9180 = vrot.slane %v1995, 4
  %v9181 = vsel %vm2617, %v9180, %v9179
  %v9182 = vrot.slane %v1996, 3
  %v9183 = vsel %vm2620, %v9182, %v9181
  %v9184 = vrot.slane %v1997, 2
  %v9185 = vsel %vm2623, %v9184, %v9183
  %v9186 = vrot.slane %v1998, 1
  %v9187 = vsel %vm2626, %v9186, %v9185
  %v9188 = vrot.slane %v2024, 7
  %v9189 = vsel %vm9104, %v9188, %v2023
  %v9190 = vrot.slane %v2025, 6
  %v9191 = vsel %vm2611, %v9190, %v9189
  %v9192 = vrot.slane %v2026, 5
  %v9193 = vsel %vm2614, %v9192, %v9191
  %v9194 = vrot.slane %v2027, 4
  %v9195 = vsel %vm2617, %v9194, %v9193
  %v9196 = vrot.slane %v2028, 3
  %v9197 = vsel %vm2620, %v9196, %v9195
  %v9198 = vrot.slane %v2029, 2
  %v9199 = vsel %vm2623, %v9198, %v9197
  %v9200 = vrot.slane %v2030, 1
  %v9201 = vsel %vm2626, %v9200, %v9199
  %v9202 = vrot.slane %v2056, 7
  %v9203 = vsel %vm9104, %v9202, %v2055
  %v9204 = vrot.slane %v2057, 6
  %v9205 = vsel %vm2611, %v9204, %v9203
  %v9206 = vrot.slane %v2058, 5
  %v9207 = vsel %vm2614, %v9206, %v9205
  %v9208 = vrot.slane %v2059, 4
  %v9209 = vsel %vm2617, %v9208, %v9207
  %v9210 = vrot.slane %v2060, 3
  %v9211 = vsel %vm2620, %v9210, %v9209
  %v9212 = vrot.slane %v2061, 2
  %v9213 = vsel %vm2623, %v9212, %v9211
  %v9214 = vrot.slane %v2062, 1
  %v9215 = vsel %vm2626, %v9214, %v9213
  %v9216 = vrot.slane %v1680, 7
  %v9217 = vsel %vm9104, %v9216, %v1679
  %v9218 = vrot.slane %v1681, 6
  %v9219 = vsel %vm2611, %v9218, %v9217
  %v9220 = vrot.slane %v1682, 5
  %v9221 = vsel %vm2614, %v9220, %v9219
  %v9222 = vrot.slane %v1683, 4
  %v9223 = vsel %vm2617, %v9222, %v9221
  %v9224 = vrot.slane %v1684, 3
  %v9225 = vsel %vm2620, %v9224, %v9223
  %v9226 = vrot.slane %v1685, 2
  %v9227 = vsel %vm2623, %v9226, %v9225
  %v9228 = vrot.slane %v1686, 1
  %v9229 = vsel %vm2626, %v9228, %v9227
  %v9230 = vrot.slane %v1888, 7
  %v9231 = vsel %vm9104, %v9230, %v1887
  %v9232 = vrot.slane %v1889, 6
  %v9233 = vsel %vm2611, %v9232, %v9231
  %v9234 = vrot.slane %v1890, 5
  %v9235 = vsel %vm2614, %v9234, %v9233
  %v9236 = vrot.slane %v1891, 4
  %v9237 = vsel %vm2617, %v9236, %v9235
  %v9238 = vrot.slane %v1892, 3
  %v9239 = vsel %vm2620, %v9238, %v9237
  %v9240 = vrot.slane %v1893, 2
  %v9241 = vsel %vm2623, %v9240, %v9239
  %v9242 = vrot.slane %v1894, 1
  %v9243 = vsel %vm2626, %v9242, %v9241
  %v9244 = vrot.slane %v1920, 7
  %v9245 = vsel %vm9104, %v9244, %v1919
  %v9246 = vrot.slane %v1921, 6
  %v9247 = vsel %vm2611, %v9246, %v9245
  %v9248 = vrot.slane %v1922, 5
  %v9249 = vsel %vm2614, %v9248, %v9247
  %v9250 = vrot.slane %v1923, 4
  %v9251 = vsel %vm2617, %v9250, %v9249
  %v9252 = vrot.slane %v1924, 3
  %v9253 = vsel %vm2620, %v9252, %v9251
  %v9254 = vrot.slane %v1925, 2
  %v9255 = vsel %vm2623, %v9254, %v9253
  %v9256 = vrot.slane %v1926, 1
  %v9257 = vsel %vm2626, %v9256, %v9255
  %v9258 = vrot.slane %v1952, 7
  %v9259 = vsel %vm9104, %v9258, %v1951
  %v9260 = vrot.slane %v1953, 6
  %v9261 = vsel %vm2611, %v9260, %v9259
  %v9262 = vrot.slane %v1954, 5
  %v9263 = vsel %vm2614, %v9262, %v9261
  %v9264 = vrot.slane %v1955, 4
  %v9265 = vsel %vm2617, %v9264, %v9263
  %v9266 = vrot.slane %v1956, 3
  %v9267 = vsel %vm2620, %v9266, %v9265
  %v9268 = vrot.slane %v1957, 2
  %v9269 = vsel %vm2623, %v9268, %v9267
  %v9270 = vrot.slane %v1958, 1
  %v9271 = vsel %vm2626, %v9270, %v9269
  %v9272 = vrot.slane %v1808, 7
  %v9273 = vsel %vm9104, %v9272, %v1807
  %v9274 = vrot.slane %v1809, 6
  %v9275 = vsel %vm2611, %v9274, %v9273
  %v9276 = vrot.slane %v1810, 5
  %v9277 = vsel %vm2614, %v9276, %v9275
  %v9278 = vrot.slane %v1811, 4
  %v9279 = vsel %vm2617, %v9278, %v9277
  %v9280 = vrot.slane %v1812, 3
  %v9281 = vsel %vm2620, %v9280, %v9279
  %v9282 = vrot.slane %v1813, 2
  %v9283 = vsel %vm2623, %v9282, %v9281
  %v9284 = vrot.slane %v1814, 1
  %v9285 = vsel %vm2626, %v9284, %v9283
  %v9286 = vrot.slane %v2000, 7
  %v9287 = vsel %vm9104, %v9286, %v1999
  %v9288 = vrot.slane %v2001, 6
  %v9289 = vsel %vm2611, %v9288, %v9287
  %v9290 = vrot.slane %v2002, 5
  %v9291 = vsel %vm2614, %v9290, %v9289
  %v9292 = vrot.slane %v2003, 4
  %v9293 = vsel %vm2617, %v9292, %v9291
  %v9294 = vrot.slane %v2004, 3
  %v9295 = vsel %vm2620, %v9294, %v9293
  %v9296 = vrot.slane %v2005, 2
  %v9297 = vsel %vm2623, %v9296, %v9295
  %v9298 = vrot.slane %v2006, 1
  %v9299 = vsel %vm2626, %v9298, %v9297
  %v9300 = vrot.slane %v2032, 7
  %v9301 = vsel %vm9104, %v9300, %v2031
  %v9302 = vrot.slane %v2033, 6
  %v9303 = vsel %vm2611, %v9302, %v9301
  %v9304 = vrot.slane %v2034, 5
  %v9305 = vsel %vm2614, %v9304, %v9303
  %v9306 = vrot.slane %v2035, 4
  %v9307 = vsel %vm2617, %v9306, %v9305
  %v9308 = vrot.slane %v2036, 3
  %v9309 = vsel %vm2620, %v9308, %v9307
  %v9310 = vrot.slane %v2037, 2
  %v9311 = vsel %vm2623, %v9310, %v9309
  %v9312 = vrot.slane %v2038, 1
  %v9313 = vsel %vm2626, %v9312, %v9311
  %v9314 = vrot.slane %v2064, 7
  %v9315 = vsel %vm9104, %v9314, %v2063
  %v9316 = vrot.slane %v2065, 6
  %v9317 = vsel %vm2611, %v9316, %v9315
  %v9318 = vrot.slane %v2066, 5
  %v9319 = vsel %vm2614, %v9318, %v9317
  %v9320 = vrot.slane %v2067, 4
  %v9321 = vsel %vm2617, %v9320, %v9319
  %v9322 = vrot.slane %v2068, 3
  %v9323 = vsel %vm2620, %v9322, %v9321
  %v9324 = vrot.slane %v2069, 2
  %v9325 = vsel %vm2623, %v9324, %v9323
  %v9326 = vrot.slane %v2070, 1
  %v9327 = vsel %vm2626, %v9326, %v9325
  %v9344 = vadd.f32 %v9055, %v9117
  %v9345 = vadd.f32 %v9056, %v9131
  %v9346 = vadd.f32 %v9057, %v9145
  %v9347 = vadd.f32 %v9058, %v9159
  %v9348 = vadd.f32 %v9059, %v9173
  %v9349 = vadd.f32 %v9060, %v9187
  %v9350 = vadd.f32 %v9061, %v9201
  %v9351 = vadd.f32 %v9062, %v9215
  %v9352 = vadd.f32 %v9063, %v9229
  %v9353 = vadd.f32 %v9064, %v9243
  %v9354 = vadd.f32 %v9065, %v9257
  %v9355 = vadd.f32 %v9066, %v9271
  %v9356 = vadd.f32 %v9067, %v9285
  %v9357 = vadd.f32 %v9068, %v9299
  %v9358 = vadd.f32 %v9069, %v9313
  %v9359 = vadd.f32 %v9070, %v9327
  %v9360 = vmax.f32 %v9344, 0.0
  %v9361 = vmax.f32 %v9345, 0.0
  %v9362 = vmax.f32 %v9346, 0.0
  %v9363 = vmax.f32 %v9347, 0.0
  %v9364 = vmax.f32 %v9348, 0.0
  %v9365 = vmax.f32 %v9349, 0.0
  %v9366 = vmax.f32 %v9350, 0.0
  %v9367 = vmax.f32 %v9351, 0.0
  %v9368 = vmax.f32 %v9352, 0.0
  %v9369 = vmax.f32 %v9353, 0.0
  %v9370 = vmax.f32 %v9354, 0.0
  %v9371 = vmax.f32 %v9355, 0.0
  %v9372 = vmax.f32 %v9356, 0.0
  %v9373 = vmax.f32 %v9357, 0.0
  %v9374 = vmax.f32 %v9358, 0.0
  %v9375 = vmax.f32 %v9359, 0.0
  %9384 = vrot.lane.b32.xlu0 %v9368, 64
  %v9385 = vpop.permute.xlu0 %9384
  %9386 = vrot.lane.b32.xlu0 %v9369, 64
  %v9387 = vpop.permute.xlu0 %9386
  %9388 = vrot.lane.b32.xlu0 %v9370, 64
  %v9389 = vpop.permute.xlu0 %9388
  %9390 = vrot.lane.b32.xlu0 %v9371, 64
  %v9391 = vpop.permute.xlu0 %9390
  %9392 = vrot.lane.b32.xlu0 %v9372, 64
  %v9393 = vpop.permute.xlu0 %9392
  %9394 = vrot.lane.b32.xlu0 %v9373, 64
  %v9395 = vpop.permute.xlu0 %9394
  %9396 = vrot.lane.b32.xlu0 %v9374, 64
  %v9397 = vpop.permute.xlu0 %9396
  %9398 = vrot.lane.b32.xlu0 %v9375, 64
  %v9399 = vpop.permute.xlu0 %9398
  %v9408 = vsel %vm893, %v9360, %v9385
  %v9409 = vsel %vm893, %v9361, %v9387
  %v9410 = vsel %vm893, %v9362, %v9389
  %v9411 = vsel %vm893, %v9363, %v9391
  %v9412 = vsel %vm893, %v9364, %v9393
  %v9413 = vsel %vm893, %v9365, %v9395
  %v9414 = vsel %vm893, %v9366, %v9397
  %v9415 = vsel %vm893, %v9367, %v9399
  %9416 = vst [vmem:[%s5] sm:$0xff] %v9408
  %9417 = vst [vmem:[%s5 + $0x8] sm:$0xff] %v9409
  %9418 = vst [vmem:[%s5 + $0x10] sm:$0xff] %v9410
  %9419 = vst [vmem:[%s5 + $0x18] sm:$0xff] %v9411
  %9420 = vst [vmem:[%s5 + $0x20] sm:$0xff] %v9412
  %9421 = vst [vmem:[%s5 + $0x28] sm:$0xff] %v9413
  %9422 = vst [vmem:[%s5 + $0x30] sm:$0xff] %v9414
  %9423 = vst [vmem:[%s5 + $0x38] sm:$0xff] %v9415
  // Predicated region
  $region22: #{resnet18_client_forward.1} parent=0 // pred_check
    _
  $region23: #{resnet18_client_forward.1} parent=0 // pred_check_branch
    %9425 = sbr.rel (0) target = $region25
  $region24: #{resnet18_client_forward.1} parent=0 // pred_region
    _
  $region25: #{resnet18_client_forward.1} parent=0 // pred_fallthru
    _
  // Predicated region
  $region26: #{resnet18_client_forward.1} parent=0 // pred_check
    _
  $region27: #{resnet18_client_forward.1} parent=0 // pred_check_branch
    %9427 = sbr.rel (0) target = $region29
  $region28: #{resnet18_client_forward.1} parent=0 // pred_region
    _
  $region29: #{resnet18_client_forward.1} parent=0 // pred_fallthru
    _

</llo_original>
